<compile_context>
chip_gen: v6e
topology: v6e:2x2x1
jax: 0.10.0
libtpu: 0.0.40
codegen_flags: <defaults>
</compile_context>

<pallas_src>
import functools
import math

import jax
import jax.numpy as jnp
from jax.experimental import pallas as pl
from jax.experimental.pallas import tpu as pltpu

NEG_SLOPE = 0.01  # F.leaky_relu default negative_slope


def _leaky(v):
    return jnp.where(v >= 0, v, NEG_SLOPE * v)


def _dotb(a, w):
    # bf16 MXU matmul with f32 accumulation.
    return jnp.dot(a.astype(jnp.bfloat16), w, preferred_element_type=jnp.float32)


def _mlp(v, weights):
    # MLP.forward: x = F.leaky_relu(layer(x)) for every bias-free Linear.
    for w in weights:
        v = _leaky(_dotb(v, w))
    return v


# ---------------------------------------------------------------------------
# Kernel 1: encoder stand-in + fused (conv2 || shallow_conv) + global avg pool.
# grid = (pixel_splits, B, blocks_per_split); activations are channels-major
# (B, Cin, HW) bf16 so the 128-lane axis is always the big pixel axis.
# ---------------------------------------------------------------------------
def _enc_pool_kernel(x_ref, w1_ref, w2sh_ref, out_ref, acc_ref, *,
                     cfeat, hw, inv_hw, blocks_per_split):
    s = pl.program_id(0)
    j = pl.program_id(2)
    tile = x_ref.shape[2]

    @pl.when(j == 0)
    def _init():
        acc_ref[...] = jnp.zeros_like(acc_ref)

    # Mask pixels past the end of the image (partial last tile / clamped
    # duplicate block of the pixel-split axis).  Uses the *unclamped* logical
    # block index, so fully-out-of-range blocks contribute exactly zero.
    pix0 = (s * blocks_per_split + j) * tile
    lane = jax.lax.broadcasted_iota(jnp.int32, (1, tile), 1)
    valid = (pix0 + lane) < hw                                    # (1, tile)

    x = jnp.where(valid, x_ref[0].astype(jnp.float32), 0.0)       # (Cin, tile) f32

    # 1x1 conv #1 + ReLU on the VPU (Cin is tiny: broadcast FMAs, no MXU push).
    w1 = w1_ref[...]                                              # (Cmid, Cin) f32
    cin = w1.shape[1]
    inter = w1[:, 0:1] * x[0:1, :]
    for c in range(1, cin):
        inter = inter + w1[:, c:c + 1] * x[c:c + 1, :]
    inter = jnp.maximum(inter, 0.0)                               # (Cmid, tile) f32

    # Fused conv2 || shallow_conv on the MXU: (2*Cfeat, Cmid) @ (Cmid, tile).
    feat = jnp.dot(w2sh_ref[...], inter.astype(jnp.bfloat16),
                   preferred_element_type=jnp.float32)            # (2*Cfeat, tile)

    # Global-average-pool partial sums (origin rows get the encoder ReLU;
    # shallow rows are linear).  Aligned sublane slices, lane reduces.
    o_sum = jnp.sum(jnp.maximum(feat[:cfeat], 0.0), axis=1, keepdims=True)
    s_sum = jnp.sum(feat[cfeat:], axis=1, keepdims=True)
    acc_ref[:cfeat] += o_sum
    acc_ref[cfeat:] += s_sum

    @pl.when(j == pl.num_programs(2) - 1)
    def _finalize():
        out_ref[0, 0] = acc_ref[...] * inv_hw                     # written once


def _enc_pool(x, w1t, w2sh, *, hw, cfeat, max_tile, vmem_limit_bytes):
    """x: (B, Cin, HW) bf16; returns mean-pooled (B, 2*Cfeat) f32."""
    B, cin, _ = x.shape
    cmid = w1t.shape[0]

    if hw <= max_tile:
        tile, nblocks = hw, 1
    else:
        assert max_tile % 128 == 0
        tile, nblocks = max_tile, pl.cdiv(hw, max_tile)

    splits = 2 if nblocks >= 2 else 1          # feeds both v7x TensorCores
    jsteps = pl.cdiv(nblocks, splits)

    def x_index_map(s, b, j):
        # Clamp: a fully out-of-range block re-reads the last real block and is
        # zeroed by the in-kernel mask.
        return (b, 0, jnp.minimum(s * jsteps + j, nblocks - 1))

    kernel = functools.partial(
        _enc_pool_kernel, cfeat=cfeat, hw=hw, inv_hw=1.0 / hw,
        blocks_per_split=jsteps)

    pooled = pl.pallas_call(
        kernel,
        out_shape=jax.ShapeDtypeStruct((splits, B, 2 * cfeat, 1), jnp.float32),
        grid=(splits, B, jsteps),
        in_specs=[
            pl.BlockSpec((1, cin, tile), x_index_map),
            # Constant-index weights are DMA'd once.  (pipeline_mode=
            # pl.Buffered(1) would drop the spare buffer; savings are a few
            # KiB, so the default is kept for robustness.)
            pl.BlockSpec((cmid, cin), lambda s, b, j: (0, 0)),
            pl.BlockSpec((2 * cfeat, cmid), lambda s, b, j: (0, 0)),
        ],
        out_specs=pl.BlockSpec((1, 1, 2 * cfeat, 1), lambda s, b, j: (s, b, 0, 0)),
        scratch_shapes=[pltpu.VMEM((2 * cfeat, 1), jnp.float32)],
        compiler_params=pltpu.CompilerParams(
            dimension_semantics=("parallel", "parallel", "arbitrary"),
            vmem_limit_bytes=vmem_limit_bytes),
    )(x, w1t, w2sh)

    return jnp.sum(pooled[..., 0], axis=0)     # (B, 2*Cfeat) mean-pooled maps


# ---------------------------------------------------------------------------
# Kernel 2: MLP heads + prototype distances + losses (tiny, runs once).
# ---------------------------------------------------------------------------
def _tail_math(origin0, shallow0, wo, ws, wt1a, wt1b, wt2,
               wc1a, wc1b, wc2, woc1, woc2, center, proto, proto_t):
    origin_feat = _mlp(origin0, wo)                            # (B, 64)
    shallow_feat = _mlp(shallow0, ws)                          # (B, 64)

    # texture_fc(cat([shallow, shallow - center], dim=1)) with split 1st-layer weights
    t1 = _leaky(_dotb(shallow_feat, wt1a) + _dotb(shallow_feat - center, wt1b))
    texture_feat = _leaky(_dotb(t1, wt2))                      # (B, 64)

    # similarity_matrix[i] = -||texture - proto_i||^2, as one matmul
    tsq = jnp.sum(texture_feat * texture_feat, axis=1, keepdims=True)        # (B, 1)
    psq = jnp.sum(proto * proto, axis=1)[None, :]                            # (1, D)
    sim = (2.0 * jnp.dot(texture_feat, proto_t, preferred_element_type=jnp.float32)
           - tsq - psq)                                                      # (B, D)

    D = proto.shape[0]
    maxv = jnp.max(sim, axis=1, keepdims=True)                               # (B, 1)
    iota = jax.lax.broadcasted_iota(jnp.int32, sim.shape, 1)                 # (B, D)
    cat_idx = jnp.min(jnp.where(sim == maxv, iota, D), axis=1, keepdims=True)
    onehot = (iota == cat_idx).astype(jnp.float32)                           # (B, D)

    # CrossEntropyLoss(sim, argmax(sim)): the picked logit is the row max.
    lse = maxv + jnp.log(jnp.sum(jnp.exp(sim - maxv), axis=1, keepdims=True))
    domain_prototype_loss = jnp.mean(lse - maxv, keepdims=True)              # (1, 1)

    # class_fc(cat([origin, origin - proto[category]], dim=1)) with split weights
    sel_proto = jnp.dot(onehot, proto, preferred_element_type=jnp.float32)   # (B, 64)
    c1 = _leaky(_dotb(origin_feat, wc1a) + _dotb(origin_feat - sel_proto, wc1b))
    class_feat = _leaky(_dotb(c1, wc2))                                      # (B, 64)
    class_svdd = jnp.sum((class_feat - center) ** 2, axis=1, keepdims=True)  # (B, 1)

    origin_class = _mlp(origin_feat, (woc1, woc2))                           # (B, 64)
    origin_svdd = jnp.sum((origin_class - center) ** 2, axis=1, keepdims=True)

    align = jnp.abs(origin_svdd - class_svdd)                                # (B, 1)

    return jnp.concatenate([
        domain_prototype_loss,
        jnp.mean(origin_svdd, keepdims=True),
        jnp.mean(class_svdd, keepdims=True),
        jnp.mean(align, keepdims=True),
    ], axis=1)                                                               # (1, 4)


def _tail_kernel(origin_ref, shallow_ref,
                 wo1, wo2, wo3, ws1, ws2, ws3,
                 wt1a, wt1b, wt2, wc1a, wc1b, wc2, woc1, woc2,
                 center_ref, proto_ref, proto_t_ref, out_ref):
    # TODO(synk): for large training batches, pad B up to a sublane multiple of 8
    # and mask the batch means; at B=2 the tail is negligible either way.
    out_ref[...] = _tail_math(
        origin_ref[...], shallow_ref[...],
        (wo1[...], wo2[...], wo3[...]),
        (ws1[...], ws2[...], ws3[...]),
        wt1a[...], wt1b[...], wt2[...],
        wc1a[...], wc1b[...], wc2[...],
        woc1[...], woc2[...],
        center_ref[...], proto_ref[...], proto_t_ref[...])


# ---------------------------------------------------------------------------
# Wrapper
# ---------------------------------------------------------------------------
def dgad_forward(image_nhwc, params, *, max_tile=8192,
                 vmem_limit_bytes=48 * 1024 * 1024):
    """image_nhwc: (B, H, W, Cin) float32; params: tuple from init_params.

    Tuning (per review): v7x (64 MiB VMEM) keep max_tile <= 8192-16384 and
    vmem_limit <= ~48 MiB; v5e/v6e (128 MiB) can raise max_tile to 16384-32768
    with vmem_limit ~64 MiB for very large images.
    """
    (w_enc1, w_enc2, w_shallow,
     wo1, wo2, wo3, ws1, ws2, ws3,
     wt1, wt2, wc1, wc2, woc1, woc2,
     center, proto) = params

    B, H, W, Cin = image_nhwc.shape
    HW = H * W
    Cfeat = w_enc2.shape[1]

    bf = lambda a: a.astype(jnp.bfloat16)

    # Channels-major lane-dense activation layout: (B, Cin, HW).  The
    # transpose+cast is one fused XLA pass over the image (small next to the
    # kernel's own traffic); everything downstream is lane-dense.
    x = bf(jnp.transpose(image_nhwc.reshape(B, HW, Cin), (0, 2, 1)))

    w1t = w_enc1.T.astype(jnp.float32)                             # VPU conv weight
    w2sh = bf(jnp.concatenate([w_enc2.T, w_shallow.T], axis=0))    # (2*Cfeat, Cmid)

    pooled = _enc_pool(x, w1t, w2sh, hw=HW, cfeat=Cfeat,
                       max_tile=max_tile, vmem_limit_bytes=vmem_limit_bytes)
    origin0 = pooled[:, :Cfeat]                                    # (B, Cfeat) f32
    shallow0 = pooled[:, Cfeat:]                                   # (B, Cfeat) f32

    # Split the lane-concat first layers once on the host (no in-kernel concat).
    wt1a, wt1b = bf(wt1[:Cfeat]), bf(wt1[Cfeat:])
    wc1a, wc1b = bf(wc1[:Cfeat]), bf(wc1[Cfeat:])

    tail_inputs = (origin0, shallow0,
                   bf(wo1), bf(wo2), bf(wo3),
                   bf(ws1), bf(ws2), bf(ws3),
                   wt1a, wt1b, bf(wt2),
                   wc1a, wc1b, bf(wc2),
                   bf(woc1), bf(woc2),
                   center.astype(jnp.float32),
                   proto.astype(jnp.float32),
                   proto.T.astype(jnp.float32))

    # TODO(synk): this tail is fixed overhead (~2.5 MiB weight DMA + B-row
    # matmuls); for tiny images it could run in plain XLA instead, kept as a
    # Pallas kernel to keep the forward fully kernelized.
    out = pl.pallas_call(
        _tail_kernel,
        out_shape=jax.ShapeDtypeStruct((1, 4), jnp.float32),
        in_specs=[pl.BlockSpec(memory_space=pltpu.MemorySpace.VMEM)] * len(tail_inputs),
        out_specs=pl.BlockSpec(memory_space=pltpu.MemorySpace.VMEM),
        compiler_params=pltpu.CompilerParams(vmem_limit_bytes=32 * 1024 * 1024),
    )(*tail_inputs)

    # torch returns a cat of four (1,1) tensors along dim 0 -> (4, 1)
    return out.reshape(4, 1)


# ---------------------------------------------------------------------------
# Pure-JAX reference (same math / same bf16 casts, no Pallas) for sanity check.
# ---------------------------------------------------------------------------
def _reference_forward(image_nhwc, params):
    (w_enc1, w_enc2, w_shallow,
     wo1, wo2, wo3, ws1, ws2, ws3,
     wt1, wt2, wc1, wc2, woc1, woc2,
     center, proto) = params
    B, H, W, Cin = image_nhwc.shape
    HW = H * W
    Cfeat = w_enc2.shape[1]
    bf = lambda a: a.astype(jnp.bfloat16)

    x = bf(jnp.transpose(image_nhwc.reshape(B, HW, Cin), (0, 2, 1)))
    xf = x.astype(jnp.float32)                                      # (B, Cin, HW)
    w1t = w_enc1.T.astype(jnp.float32)
    w2sh = bf(jnp.concatenate([w_enc2.T, w_shallow.T], axis=0))

    inter = jnp.maximum(jnp.einsum('mc,bcp->bmp', w1t, xf), 0.0)
    feat = jnp.einsum('fm,bmp->bfp', w2sh, inter.astype(jnp.bfloat16),
                      preferred_element_type=jnp.float32)           # (B, 2C, HW)
    origin0 = jnp.mean(jnp.maximum(feat[:, :Cfeat], 0.0), axis=2)
    shallow0 = jnp.mean(feat[:, Cfeat:], axis=2)

    return _tail_math(
        origin0, shallow0,
        (bf(wo1), bf(wo2), bf(wo3)),
        (bf(ws1), bf(ws2), bf(ws3)),
        bf(wt1[:Cfeat]), bf(wt1[Cfeat:]), bf(wt2),
        bf(wc1[:Cfeat]), bf(wc1[Cfeat:]), bf(wc2),
        bf(woc1), bf(woc2),
        center.astype(jnp.float32), proto.astype(jnp.float32),
        proto.T.astype(jnp.float32)).reshape(4, 1)


def init_params(key, cin=3, cmid=32, cfeat=64, domain_cnt=3):
    """Deterministic synthetic parameters (weights stored as (in, out))."""
    def dense(k, fan_in, fan_out):
        return jax.random.normal(k, (fan_in, fan_out), jnp.float32) / math.sqrt(fan_in)

    ks = jax.random.split(key, 17)
    w_enc1 = dense(ks[0], cin, cmid)
    w_enc2 = dense(ks[1], cmid, cfeat)
    w_shallow = dense(ks[2], cmid, cfeat)
    # origin_fc: [cfeat, 1024, 512, 64]
    wo1, wo2, wo3 = dense(ks[3], cfeat, 1024), dense(ks[4], 1024, 512), dense(ks[5], 512, 64)
    # shallow_fc: [cfeat, 1024, 512, 64]
    ws1, ws2, ws3 = dense(ks[6], cfeat, 1024), dense(ks[7], 1024, 512), dense(ks[8], 512, 64)
    # texture_fc: [128, 64, 64]
    wt1, wt2 = dense(ks[9], 128, 64), dense(ks[10], 64, 64)
    # class_fc: [128, 64, 64]
    wc1, wc2 = dense(ks[11], 128, 64), dense(ks[12], 64, 64)
    # origin_class_fc: [64, 64, 64]
    woc1, woc2 = dense(ks[13], 64, 64), dense(ks[14], 64, 64)
    center = jax.random.normal(ks[15], (1, 64), jnp.float32)
    proto = jax.random.normal(ks[16], (domain_cnt, 64), jnp.float32)
    return (w_enc1, w_enc2, w_shallow,
            wo1, wo2, wo3,
            ws1, ws2, ws3,
            wt1, wt2,
            wc1, wc2,
            woc1, woc2,
            center, proto)


if __name__ == "__main__":
    key = jax.random.PRNGKey(0)
    k_img, k_par = jax.random.split(key)

    B, H, W, Cin = 2, 16, 16, 3
    image = jax.random.normal(k_img, (B, H, W, Cin), jnp.float32)
    params = init_params(k_par, cin=Cin)

    out = jax.jit(dgad_forward)(image, params)
    out = jax.block_until_ready(out)

    ref = _reference_forward(image, params)

    assert out.shape == (4, 1), out.shape
    assert bool(jnp.all(jnp.isfinite(out)))
    assert bool(jnp.allclose(out, ref, rtol=2e-2, atol=2e-2)), (out, ref)

    print("KERNEL_OK")
</pallas_src>

<mosaic_0001>
module attributes {stable_mosaic.version = 11 : i64} {
  func.func @_enc_pool_kernel(%arg0: i32, %arg1: i32, %arg2: i32, %arg3: memref<1x3x256xbf16, #tpu.memory_space<vmem>>, %arg4: memref<32x3xf32, #tpu.memory_space<vmem>>, %arg5: memref<128x32xbf16, #tpu.memory_space<vmem>>, %arg6: memref<1x1x128x1xf32, #tpu.memory_space<vmem>>, %arg7: memref<128x1xf32, #tpu.memory_space<vmem>>) attributes {dimension_semantics = [#tpu.dimension_semantics<parallel>, #tpu.dimension_semantics<parallel>, #tpu.dimension_semantics<arbitrary>], iteration_bounds = array<i64: 1, 2, 1>, scalar_prefetch = 0 : i64, scratch_operands = 1 : i64, tpu.core_type = #tpu.core_type<tc>, window_params = [{transform_indices = @transform_0, window_bounds = array<i64: 1, 3, 256>}, {pipeline_mode = #tpu.pipeline_mode<synchronous>, transform_indices = @transform_1, window_bounds = array<i64: 32, 3>}, {pipeline_mode = #tpu.pipeline_mode<synchronous>, transform_indices = @transform_2, window_bounds = array<i64: 128, 32>}, {transform_indices = @transform_3, window_bounds = array<i64: 1, 1, 128, 1>}]} {
    %c0_i32 = arith.constant 0 : i32
    %0 = arith.cmpi eq, %arg2, %c0_i32 : i32
    %1 = arith.extui %0 : i1 to i32
    %c0_i32_0 = arith.constant 0 : i32
    %2 = arith.cmpi ne, %1, %c0_i32_0 : i32
    scf.if %2 {
      %cst_22 = arith.constant 0.000000e+00 : f32
      %58 = vector.broadcast %cst_22 : f32 to vector<128x1xf32>
      %c0_23 = arith.constant 0 : index
      %c0_24 = arith.constant 0 : index
      %59 = vector.load %arg7[%c0_23, %c0_24] : memref<128x1xf32, #tpu.memory_space<vmem>>, vector<128x1xf32>
      tpu.vector_store %arg7[%c0_23, %c0_24], %58 {strides = array<i32>} : memref<128x1xf32, #tpu.memory_space<vmem>>, vector<128x1xf32>,
    } else {
    }
    %c1_i32 = arith.constant 1 : i32
    %3 = arith.muli %arg0, %c1_i32 : i32
    %4 = arith.addi %3, %arg2 : i32
    %c256_i32 = arith.constant 256 : i32
    %5 = arith.muli %4, %c256_i32 : i32
    %6 = tpu.iota {dimensions = array<i32: 1>} : vector<1x256xi32>
    %7 = vector.broadcast %5 : i32 to vector<1x256xi32>
    %8 = arith.addi %7, %6 : vector<1x256xi32>
    %c256_i32_1 = arith.constant 256 : i32
    %9 = vector.broadcast %c256_i32_1 : i32 to vector<1x256xi32>
    %10 = arith.cmpi slt, %8, %9 : vector<1x256xi32>
    %c0 = arith.constant 0 : index
    %c0_2 = arith.constant 0 : index
    %c0_3 = arith.constant 0 : index
    %11 = vector.load %arg3[%c0, %c0_2, %c0_3] : memref<1x3x256xbf16, #tpu.memory_space<vmem>>, vector<1x3x256xbf16>
    %12 = vector.shape_cast %11 : vector<1x3x256xbf16> to vector<3x256xbf16>
    %13 = arith.extf %12 : vector<3x256xbf16> to vector<3x256xf32>
    %cst = arith.constant 0.000000e+00 : f32
    %14 = vector.shape_cast %10 : vector<1x256xi1> to vector<1x256xi1>
    %15 = vector.broadcast %14 : vector<1x256xi1> to vector<3x256xi1>
    %16 = vector.broadcast %cst : f32 to vector<3x256xf32>
    %17 = arith.select %15, %13, %16 : vector<3x256xi1>, vector<3x256xf32>
    %c0_4 = arith.constant 0 : index
    %c0_5 = arith.constant 0 : index
    %18 = vector.load %arg4[%c0_4, %c0_5] : memref<32x3xf32, #tpu.memory_space<vmem>>, vector<32x3xf32>
    %19 = vector.extract_strided_slice %18 {offsets = [0, 0], sizes = [32, 1], strides = [1, 1]} : vector<32x3xf32> to vector<32x1xf32>
    %20 = vector.extract_strided_slice %17 {offsets = [0, 0], sizes = [1, 256], strides = [1, 1]} : vector<3x256xf32> to vector<1x256xf32>
    %21 = vector.broadcast %19 : vector<32x1xf32> to vector<32x256xf32>
    %22 = vector.broadcast %20 : vector<1x256xf32> to vector<32x256xf32>
    %23 = arith.mulf %21, %22 : vector<32x256xf32>
    %24 = vector.extract_strided_slice %18 {offsets = [0, 1], sizes = [32, 1], strides = [1, 1]} : vector<32x3xf32> to vector<32x1xf32>
    %25 = vector.extract_strided_slice %17 {offsets = [1, 0], sizes = [1, 256], strides = [1, 1]} : vector<3x256xf32> to vector<1x256xf32>
    %26 = vector.broadcast %24 : vector<32x1xf32> to vector<32x256xf32>
    %27 = vector.broadcast %25 : vector<1x256xf32> to vector<32x256xf32>
    %28 = arith.mulf %26, %27 : vector<32x256xf32>
    %29 = arith.addf %23, %28 : vector<32x256xf32>
    %30 = vector.extract_strided_slice %18 {offsets = [0, 2], sizes = [32, 1], strides = [1, 1]} : vector<32x3xf32> to vector<32x1xf32>
    %31 = vector.extract_strided_slice %17 {offsets = [2, 0], sizes = [1, 256], strides = [1, 1]} : vector<3x256xf32> to vector<1x256xf32>
    %32 = vector.broadcast %30 : vector<32x1xf32> to vector<32x256xf32>
    %33 = vector.broadcast %31 : vector<1x256xf32> to vector<32x256xf32>
    %34 = arith.mulf %32, %33 : vector<32x256xf32>
    %35 = arith.addf %29, %34 : vector<32x256xf32>
    %cst_6 = arith.constant 0.000000e+00 : f32
    %36 = vector.broadcast %cst_6 : f32 to vector<32x256xf32>
    %37 = arith.maximumf %35, %36 : vector<32x256xf32>
    %c0_7 = arith.constant 0 : index
    %c0_8 = arith.constant 0 : index
    %38 = vector.load %arg5[%c0_7, %c0_8] : memref<128x32xbf16, #tpu.memory_space<vmem>>, vector<128x32xbf16>
    %39 = arith.truncf %37 : vector<32x256xf32> to vector<32x256xbf16>
    %cst_9 = arith.constant dense<0.000000e+00> : vector<128x256xf32>
    %40 = tpu.matmul %38, %39, %cst_9 {dimension_numbers = #tpu.dot_dimension_numbers<[1], [0], [0], [1], [0, 0, 1, 1], [], []>} : vector<128x32xbf16>, vector<32x256xbf16>, vector<128x256xf32> -> vector<128x256xf32>
    %41 = vector.extract_strided_slice %40 {offsets = [0, 0], sizes = [64, 256], strides = [1, 1]} : vector<128x256xf32> to vector<64x256xf32>
    %cst_10 = arith.constant 0.000000e+00 : f32
    %42 = vector.broadcast %cst_10 : f32 to vector<64x256xf32>
    %43 = arith.maximumf %41, %42 : vector<64x256xf32>
    %cst_11 = arith.constant dense<0.000000e+00> : vector<64xf32>
    %44 = vector.multi_reduction <add>, %43, %cst_11 [1] : vector<64x256xf32> to vector<64xf32>
    %45 = vector.shape_cast %44 : vector<64xf32> to vector<64x1xf32>
    %46 = vector.extract_strided_slice %40 {offsets = [64, 0], sizes = [64, 256], strides = [1, 1]} : vector<128x256xf32> to vector<64x256xf32>
    %cst_12 = arith.constant dense<0.000000e+00> : vector<64xf32>
    %47 = vector.multi_reduction <add>, %46, %cst_12 [1] : vector<64x256xf32> to vector<64xf32>
    %48 = vector.shape_cast %47 : vector<64xf32> to vector<64x1xf32>
    %c0_13 = arith.constant 0 : index
    %c0_14 = arith.constant 0 : index
    %49 = vector.load %arg7[%c0_13, %c0_14] : memref<128x1xf32, #tpu.memory_space<vmem>>, vector<64x1xf32>
    %50 = arith.addf %49, %45 : vector<64x1xf32>
    %c0_15 = arith.constant 0 : index
    %c0_16 = arith.constant 0 : index
    %51 = vector.load %arg7[%c0_15, %c0_16] : memref<128x1xf32, #tpu.memory_space<vmem>>, vector<64x1xf32>
    tpu.vector_store %arg7[%c0_15, %c0_16], %50 {strides = array<i32>} : memref<128x1xf32, #tpu.memory_space<vmem>>, vector<64x1xf32>,
    %c64 = arith.constant 64 : index
    %c0_17 = arith.constant 0 : index
    %52 = vector.load %arg7[%c64, %c0_17] : memref<128x1xf32, #tpu.memory_space<vmem>>, vector<64x1xf32>
    %53 = arith.addf %52, %48 : vector<64x1xf32>
    %c64_18 = arith.constant 64 : index
    %c0_19 = arith.constant 0 : index
    %54 = vector.load %arg7[%c64_18, %c0_19] : memref<128x1xf32, #tpu.memory_space<vmem>>, vector<64x1xf32>
    tpu.vector_store %arg7[%c64_18, %c0_19], %53 {strides = array<i32>} : memref<128x1xf32, #tpu.memory_space<vmem>>, vector<64x1xf32>,
    %c0_i32_20 = arith.constant 0 : i32
    %55 = arith.cmpi eq, %arg2, %c0_i32_20 : i32
    %56 = arith.extui %55 : i1 to i32
    %c0_i32_21 = arith.constant 0 : i32
    %57 = arith.cmpi ne, %56, %c0_i32_21 : i32
    scf.if %57 {
      %c0_22 = arith.constant 0 : index
      %c0_23 = arith.constant 0 : index
      %58 = vector.load %arg7[%c0_22, %c0_23] : memref<128x1xf32, #tpu.memory_space<vmem>>, vector<128x1xf32>
      %cst_24 = arith.constant 3.906250e-03 : f32
      %59 = vector.broadcast %cst_24 : f32 to vector<128x1xf32>
      %60 = arith.mulf %58, %59 : vector<128x1xf32>
      %c0_25 = arith.constant 0 : index
      %c0_26 = arith.constant 0 : index
      %c0_27 = arith.constant 0 : index
      %c0_28 = arith.constant 0 : index
      %61 = vector.load %arg6[%c0_25, %c0_26, %c0_27, %c0_28] : memref<1x1x128x1xf32, #tpu.memory_space<vmem>>, vector<1x1x128x1xf32>
      %62 = vector.shape_cast %61 : vector<1x1x128x1xf32> to vector<128x1xf32>
      %63 = vector.shape_cast %60 : vector<128x1xf32> to vector<1x1x128x1xf32>
      tpu.vector_store %arg6[%c0_25, %c0_26, %c0_27, %c0_28], %63 {strides = array<i32>} : memref<1x1x128x1xf32, #tpu.memory_space<vmem>>, vector<1x1x128x1xf32>,
    } else {
    }
    return
  }
  func.func @transform_0(%arg0: i32, %arg1: i32, %arg2: i32) -> (i32, i32, i32) {
    %c1_i32 = arith.constant 1 : i32
    %0 = arith.muli %arg0, %c1_i32 : i32
    %1 = arith.addi %0, %arg2 : i32
    %c0_i32 = arith.constant 0 : i32
    %2 = arith.minsi %1, %c0_i32 : i32
    %c0_i32_0 = arith.constant 0 : i32
    %c0_i32_1 = arith.constant 0 : i32
    return %arg1, %c0_i32_0, %2 : i32, i32, i32
  }
  func.func @transform_1(%arg0: i32, %arg1: i32, %arg2: i32) -> (i32, i32) {
    %c0_i32 = arith.constant 0 : i32
    %c0_i32_0 = arith.constant 0 : i32
    %c0_i32_1 = arith.constant 0 : i32
    return %c0_i32, %c0_i32_0 : i32, i32
  }
  func.func @transform_2(%arg0: i32, %arg1: i32, %arg2: i32) -> (i32, i32) {
    %c0_i32 = arith.constant 0 : i32
    %c0_i32_0 = arith.constant 0 : i32
    %c0_i32_1 = arith.constant 0 : i32
    return %c0_i32, %c0_i32_0 : i32, i32
  }
  func.func @transform_3(%arg0: i32, %arg1: i32, %arg2: i32) -> (i32, i32, i32, i32) {
    %c0_i32 = arith.constant 0 : i32
    %c0_i32_0 = arith.constant 0 : i32
    %c0_i32_1 = arith.constant 0 : i32
    return %arg0, %arg1, %c0_i32, %c0_i32_0 : i32, i32, i32, i32
  }
}

module attributes {stable_mosaic.version = 11 : i64} {
  func.func @_tail_kernel(%arg0: memref<2x64xf32, #tpu.memory_space<vmem>>, %arg1: memref<2x64xf32, #tpu.memory_space<vmem>>, %arg2: memref<64x1024xbf16, #tpu.memory_space<vmem>>, %arg3: memref<1024x512xbf16, #tpu.memory_space<vmem>>, %arg4: memref<512x64xbf16, #tpu.memory_space<vmem>>, %arg5: memref<64x1024xbf16, #tpu.memory_space<vmem>>, %arg6: memref<1024x512xbf16, #tpu.memory_space<vmem>>, %arg7: memref<512x64xbf16, #tpu.memory_space<vmem>>, %arg8: memref<64x64xbf16, #tpu.memory_space<vmem>>, %arg9: memref<64x64xbf16, #tpu.memory_space<vmem>>, %arg10: memref<64x64xbf16, #tpu.memory_space<vmem>>, %arg11: memref<64x64xbf16, #tpu.memory_space<vmem>>, %arg12: memref<64x64xbf16, #tpu.memory_space<vmem>>, %arg13: memref<64x64xbf16, #tpu.memory_space<vmem>>, %arg14: memref<64x64xbf16, #tpu.memory_space<vmem>>, %arg15: memref<64x64xbf16, #tpu.memory_space<vmem>>, %arg16: memref<1x64xf32, #tpu.memory_space<vmem>>, %arg17: memref<3x64xf32, #tpu.memory_space<vmem>>, %arg18: memref<64x3xf32, #tpu.memory_space<vmem>>, %arg19: memref<1x4xf32, #tpu.memory_space<vmem>>) attributes {dimension_semantics = [], scalar_prefetch = 0 : i64, scratch_operands = 0 : i64, tpu.core_type = #tpu.core_type<tc>} {
    %c0 = arith.constant 0 : index
    %c0_0 = arith.constant 0 : index
    %0 = vector.load %arg0[%c0, %c0_0] : memref<2x64xf32, #tpu.memory_space<vmem>>, vector<2x64xf32>
    %c0_1 = arith.constant 0 : index
    %c0_2 = arith.constant 0 : index
    %1 = vector.load %arg1[%c0_1, %c0_2] : memref<2x64xf32, #tpu.memory_space<vmem>>, vector<2x64xf32>
    %c0_3 = arith.constant 0 : index
    %c0_4 = arith.constant 0 : index
    %2 = vector.load %arg2[%c0_3, %c0_4] : memref<64x1024xbf16, #tpu.memory_space<vmem>>, vector<64x1024xbf16>
    %c0_5 = arith.constant 0 : index
    %c0_6 = arith.constant 0 : index
    %3 = vector.load %arg3[%c0_5, %c0_6] : memref<1024x512xbf16, #tpu.memory_space<vmem>>, vector<1024x512xbf16>
    %c0_7 = arith.constant 0 : index
    %c0_8 = arith.constant 0 : index
    %4 = vector.load %arg4[%c0_7, %c0_8] : memref<512x64xbf16, #tpu.memory_space<vmem>>, vector<512x64xbf16>
    %c0_9 = arith.constant 0 : index
    %c0_10 = arith.constant 0 : index
    %5 = vector.load %arg5[%c0_9, %c0_10] : memref<64x1024xbf16, #tpu.memory_space<vmem>>, vector<64x1024xbf16>
    %c0_11 = arith.constant 0 : index
    %c0_12 = arith.constant 0 : index
    %6 = vector.load %arg6[%c0_11, %c0_12] : memref<1024x512xbf16, #tpu.memory_space<vmem>>, vector<1024x512xbf16>
    %c0_13 = arith.constant 0 : index
    %c0_14 = arith.constant 0 : index
    %7 = vector.load %arg7[%c0_13, %c0_14] : memref<512x64xbf16, #tpu.memory_space<vmem>>, vector<512x64xbf16>
    %c0_15 = arith.constant 0 : index
    %c0_16 = arith.constant 0 : index
    %8 = vector.load %arg8[%c0_15, %c0_16] : memref<64x64xbf16, #tpu.memory_space<vmem>>, vector<64x64xbf16>
    %c0_17 = arith.constant 0 : index
    %c0_18 = arith.constant 0 : index
    %9 = vector.load %arg9[%c0_17, %c0_18] : memref<64x64xbf16, #tpu.memory_space<vmem>>, vector<64x64xbf16>
    %c0_19 = arith.constant 0 : index
    %c0_20 = arith.constant 0 : index
    %10 = vector.load %arg10[%c0_19, %c0_20] : memref<64x64xbf16, #tpu.memory_space<vmem>>, vector<64x64xbf16>
    %c0_21 = arith.constant 0 : index
    %c0_22 = arith.constant 0 : index
    %11 = vector.load %arg11[%c0_21, %c0_22] : memref<64x64xbf16, #tpu.memory_space<vmem>>, vector<64x64xbf16>
    %c0_23 = arith.constant 0 : index
    %c0_24 = arith.constant 0 : index
    %12 = vector.load %arg12[%c0_23, %c0_24] : memref<64x64xbf16, #tpu.memory_space<vmem>>, vector<64x64xbf16>
    %c0_25 = arith.constant 0 : index
    %c0_26 = arith.constant 0 : index
    %13 = vector.load %arg13[%c0_25, %c0_26] : memref<64x64xbf16, #tpu.memory_space<vmem>>, vector<64x64xbf16>
    %c0_27 = arith.constant 0 : index
    %c0_28 = arith.constant 0 : index
    %14 = vector.load %arg14[%c0_27, %c0_28] : memref<64x64xbf16, #tpu.memory_space<vmem>>, vector<64x64xbf16>
    %c0_29 = arith.constant 0 : index
    %c0_30 = arith.constant 0 : index
    %15 = vector.load %arg15[%c0_29, %c0_30] : memref<64x64xbf16, #tpu.memory_space<vmem>>, vector<64x64xbf16>
    %c0_31 = arith.constant 0 : index
    %c0_32 = arith.constant 0 : index
    %16 = vector.load %arg16[%c0_31, %c0_32] : memref<1x64xf32, #tpu.memory_space<vmem>>, vector<1x64xf32>
    %c0_33 = arith.constant 0 : index
    %c0_34 = arith.constant 0 : index
    %17 = vector.load %arg17[%c0_33, %c0_34] : memref<3x64xf32, #tpu.memory_space<vmem>>, vector<3x64xf32>
    %c0_35 = arith.constant 0 : index
    %c0_36 = arith.constant 0 : index
    %18 = vector.load %arg18[%c0_35, %c0_36] : memref<64x3xf32, #tpu.memory_space<vmem>>, vector<64x3xf32>
    %19 = arith.truncf %0 : vector<2x64xf32> to vector<2x64xbf16>
    %cst = arith.constant dense<0.000000e+00> : vector<2x1024xf32>
    %20 = tpu.matmul %19, %2, %cst {dimension_numbers = #tpu.dot_dimension_numbers<[1], [0], [0], [1], [0, 0, 1, 1], [], []>} : vector<2x64xbf16>, vector<64x1024xbf16>, vector<2x1024xf32> -> vector<2x1024xf32>
    %cst_37 = arith.constant 0.000000e+00 : f32
    %21 = vector.broadcast %cst_37 : f32 to vector<2x1024xf32>
    %22 = arith.cmpf oge, %20, %21 : vector<2x1024xf32>
    %cst_38 = arith.constant 0.00999999977 : f32
    %23 = vector.broadcast %cst_38 : f32 to vector<2x1024xf32>
    %24 = arith.mulf %23, %20 : vector<2x1024xf32>
    %25 = arith.select %22, %20, %24 : vector<2x1024xi1>, vector<2x1024xf32>
    %26 = arith.truncf %25 : vector<2x1024xf32> to vector<2x1024xbf16>
    %cst_39 = arith.constant dense<0.000000e+00> : vector<2x512xf32>
    %27 = tpu.matmul %26, %3, %cst_39 {dimension_numbers = #tpu.dot_dimension_numbers<[1], [0], [0], [1], [0, 0, 1, 1], [], []>} : vector<2x1024xbf16>, vector<1024x512xbf16>, vector<2x512xf32> -> vector<2x512xf32>
    %cst_40 = arith.constant 0.000000e+00 : f32
    %28 = vector.broadcast %cst_40 : f32 to vector<2x512xf32>
    %29 = arith.cmpf oge, %27, %28 : vector<2x512xf32>
    %cst_41 = arith.constant 0.00999999977 : f32
    %30 = vector.broadcast %cst_41 : f32 to vector<2x512xf32>
    %31 = arith.mulf %30, %27 : vector<2x512xf32>
    %32 = arith.select %29, %27, %31 : vector<2x512xi1>, vector<2x512xf32>
    %33 = arith.truncf %32 : vector<2x512xf32> to vector<2x512xbf16>
    %cst_42 = arith.constant dense<0.000000e+00> : vector<2x64xf32>
    %34 = tpu.matmul %33, %4, %cst_42 {dimension_numbers = #tpu.dot_dimension_numbers<[1], [0], [0], [1], [0, 0, 1, 1], [], []>} : vector<2x512xbf16>, vector<512x64xbf16>, vector<2x64xf32> -> vector<2x64xf32>
    %cst_43 = arith.constant 0.000000e+00 : f32
    %35 = vector.broadcast %cst_43 : f32 to vector<2x64xf32>
    %36 = arith.cmpf oge, %34, %35 : vector<2x64xf32>
    %cst_44 = arith.constant 0.00999999977 : f32
    %37 = vector.broadcast %cst_44 : f32 to vector<2x64xf32>
    %38 = arith.mulf %37, %34 : vector<2x64xf32>
    %39 = arith.select %36, %34, %38 : vector<2x64xi1>, vector<2x64xf32>
    %40 = arith.truncf %1 : vector<2x64xf32> to vector<2x64xbf16>
    %cst_45 = arith.constant dense<0.000000e+00> : vector<2x1024xf32>
    %41 = tpu.matmul %40, %5, %cst_45 {dimension_numbers = #tpu.dot_dimension_numbers<[1], [0], [0], [1], [0, 0, 1, 1], [], []>} : vector<2x64xbf16>, vector<64x1024xbf16>, vector<2x1024xf32> -> vector<2x1024xf32>
    %cst_46 = arith.constant 0.000000e+00 : f32
    %42 = vector.broadcast %cst_46 : f32 to vector<2x1024xf32>
    %43 = arith.cmpf oge, %41, %42 : vector<2x1024xf32>
    %cst_47 = arith.constant 0.00999999977 : f32
    %44 = vector.broadcast %cst_47 : f32 to vector<2x1024xf32>
    %45 = arith.mulf %44, %41 : vector<2x1024xf32>
    %46 = arith.select %43, %41, %45 : vector<2x1024xi1>, vector<2x1024xf32>
    %47 = arith.truncf %46 : vector<2x1024xf32> to vector<2x1024xbf16>
    %cst_48 = arith.constant dense<0.000000e+00> : vector<2x512xf32>
    %48 = tpu.matmul %47, %6, %cst_48 {dimension_numbers = #tpu.dot_dimension_numbers<[1], [0], [0], [1], [0, 0, 1, 1], [], []>} : vector<2x1024xbf16>, vector<1024x512xbf16>, vector<2x512xf32> -> vector<2x512xf32>
    %cst_49 = arith.constant 0.000000e+00 : f32
    %49 = vector.broadcast %cst_49 : f32 to vector<2x512xf32>
    %50 = arith.cmpf oge, %48, %49 : vector<2x512xf32>
    %cst_50 = arith.constant 0.00999999977 : f32
    %51 = vector.broadcast %cst_50 : f32 to vector<2x512xf32>
    %52 = arith.mulf %51, %48 : vector<2x512xf32>
    %53 = arith.select %50, %48, %52 : vector<2x512xi1>, vector<2x512xf32>
    %54 = arith.truncf %53 : vector<2x512xf32> to vector<2x512xbf16>
    %cst_51 = arith.constant dense<0.000000e+00> : vector<2x64xf32>
    %55 = tpu.matmul %54, %7, %cst_51 {dimension_numbers = #tpu.dot_dimension_numbers<[1], [0], [0], [1], [0, 0, 1, 1], [], []>} : vector<2x512xbf16>, vector<512x64xbf16>, vector<2x64xf32> -> vector<2x64xf32>
    %cst_52 = arith.constant 0.000000e+00 : f32
    %56 = vector.broadcast %cst_52 : f32 to vector<2x64xf32>
    %57 = arith.cmpf oge, %55, %56 : vector<2x64xf32>
    %cst_53 = arith.constant 0.00999999977 : f32
    %58 = vector.broadcast %cst_53 : f32 to vector<2x64xf32>
    %59 = arith.mulf %58, %55 : vector<2x64xf32>
    %60 = arith.select %57, %55, %59 : vector<2x64xi1>, vector<2x64xf32>
    %61 = arith.truncf %60 : vector<2x64xf32> to vector<2x64xbf16>
    %cst_54 = arith.constant dense<0.000000e+00> : vector<2x64xf32>
    %62 = tpu.matmul %61, %8, %cst_54 {dimension_numbers = #tpu.dot_dimension_numbers<[1], [0], [0], [1], [0, 0, 1, 1], [], []>} : vector<2x64xbf16>, vector<64x64xbf16>, vector<2x64xf32> -> vector<2x64xf32>
    %63 = vector.broadcast %16 : vector<1x64xf32> to vector<2x64xf32>
    %64 = arith.subf %60, %63 : vector<2x64xf32>
    %65 = arith.truncf %64 : vector<2x64xf32> to vector<2x64xbf16>
    %cst_55 = arith.constant dense<0.000000e+00> : vector<2x64xf32>
    %66 = tpu.matmul %65, %9, %cst_55 {dimension_numbers = #tpu.dot_dimension_numbers<[1], [0], [0], [1], [0, 0, 1, 1], [], []>} : vector<2x64xbf16>, vector<64x64xbf16>, vector<2x64xf32> -> vector<2x64xf32>
    %67 = arith.addf %62, %66 : vector<2x64xf32>
    %cst_56 = arith.constant 0.000000e+00 : f32
    %68 = vector.broadcast %cst_56 : f32 to vector<2x64xf32>
    %69 = arith.cmpf oge, %67, %68 : vector<2x64xf32>
    %cst_57 = arith.constant 0.00999999977 : f32
    %70 = vector.broadcast %cst_57 : f32 to vector<2x64xf32>
    %71 = arith.mulf %70, %67 : vector<2x64xf32>
    %72 = arith.select %69, %67, %71 : vector<2x64xi1>, vector<2x64xf32>
    %73 = arith.truncf %72 : vector<2x64xf32> to vector<2x64xbf16>
    %cst_58 = arith.constant dense<0.000000e+00> : vector<2x64xf32>
    %74 = tpu.matmul %73, %10, %cst_58 {dimension_numbers = #tpu.dot_dimension_numbers<[1], [0], [0], [1], [0, 0, 1, 1], [], []>} : vector<2x64xbf16>, vector<64x64xbf16>, vector<2x64xf32> -> vector<2x64xf32>
    %cst_59 = arith.constant 0.000000e+00 : f32
    %75 = vector.broadcast %cst_59 : f32 to vector<2x64xf32>
    %76 = arith.cmpf oge, %74, %75 : vector<2x64xf32>
    %cst_60 = arith.constant 0.00999999977 : f32
    %77 = vector.broadcast %cst_60 : f32 to vector<2x64xf32>
    %78 = arith.mulf %77, %74 : vector<2x64xf32>
    %79 = arith.select %76, %74, %78 : vector<2x64xi1>, vector<2x64xf32>
    %80 = arith.mulf %79, %79 : vector<2x64xf32>
    %cst_61 = arith.constant dense<0.000000e+00> : vector<2xf32>
    %81 = vector.multi_reduction <add>, %80, %cst_61 [1] : vector<2x64xf32> to vector<2xf32>
    %82 = vector.shape_cast %81 : vector<2xf32> to vector<2x1xf32>
    %83 = arith.mulf %17, %17 : vector<3x64xf32>
    %cst_62 = arith.constant dense<0.000000e+00> : vector<3xf32>
    %84 = vector.multi_reduction <add>, %83, %cst_62 [1] : vector<3x64xf32> to vector<3xf32>
    %85 = vector.shape_cast %84 : vector<3xf32> to vector<1x3xf32>
    %cst_63 = arith.constant dense<0.000000e+00> : vector<2x3xf32>
    %86 = tpu.matmul %79, %18, %cst_63 {dimension_numbers = #tpu.dot_dimension_numbers<[1], [0], [0], [1], [0, 0, 1, 1], [], []>} : vector<2x64xf32>, vector<64x3xf32>, vector<2x3xf32> -> vector<2x3xf32>
    %cst_64 = arith.constant 2.000000e+00 : f32
    %87 = vector.broadcast %cst_64 : f32 to vector<2x3xf32>
    %88 = arith.mulf %87, %86 : vector<2x3xf32>
    %89 = vector.broadcast %82 : vector<2x1xf32> to vector<2x3xf32>
    %90 = arith.subf %88, %89 : vector<2x3xf32>
    %91 = vector.broadcast %85 : vector<1x3xf32> to vector<2x3xf32>
    %92 = arith.subf %90, %91 : vector<2x3xf32>
    %cst_65 = arith.constant dense<0xFF800000> : vector<2xf32>
    %93 = vector.multi_reduction <maximumf>, %92, %cst_65 [1] : vector<2x3xf32> to vector<2xf32>
    %94 = vector.shape_cast %93 : vector<2xf32> to vector<2x1xf32>
    %95 = tpu.iota {dimensions = array<i32: 1>} : vector<2x3xi32>
    %96 = vector.broadcast %94 : vector<2x1xf32> to vector<2x3xf32>
    %97 = arith.cmpf oeq, %92, %96 : vector<2x3xf32>
    %c3_i32 = arith.constant 3 : i32
    %98 = vector.broadcast %c3_i32 : i32 to vector<2x3xi32>
    %99 = arith.select %97, %95, %98 : vector<2x3xi1>, vector<2x3xi32>
    %cst_66 = arith.constant dense<2147483647> : vector<2xi32>
    %100 = vector.multi_reduction <minsi>, %99, %cst_66 [1] : vector<2x3xi32> to vector<2xi32>
    %101 = vector.shape_cast %100 : vector<2xi32> to vector<2x1xi32>
    %102 = vector.broadcast %101 : vector<2x1xi32> to vector<2x3xi32>
    %103 = arith.cmpi eq, %95, %102 : vector<2x3xi32>
    %104 = arith.extui %103 : vector<2x3xi1> to vector<2x3xi32>
    %105 = arith.sitofp %104 : vector<2x3xi32> to vector<2x3xf32>
    %106 = vector.broadcast %94 : vector<2x1xf32> to vector<2x3xf32>
    %107 = arith.subf %92, %106 : vector<2x3xf32>
    %108 = math.exp %107 : vector<2x3xf32>
    %cst_67 = arith.constant dense<0.000000e+00> : vector<2xf32>
    %109 = vector.multi_reduction <add>, %108, %cst_67 [1] : vector<2x3xf32> to vector<2xf32>
    %110 = vector.shape_cast %109 : vector<2xf32> to vector<2x1xf32>
    %111 = math.log %110 : vector<2x1xf32>
    %112 = arith.addf %94, %111 : vector<2x1xf32>
    %113 = arith.subf %112, %94 : vector<2x1xf32>
    %114 = vector.shape_cast %113 : vector<2x1xf32> to vector<1x2x1xf32>
    %cst_68 = arith.constant dense<0.000000e+00> : vector<1xf32>
    %115 = vector.multi_reduction <add>, %114, %cst_68 [1, 2] : vector<1x2x1xf32> to vector<1xf32>
    %116 = vector.shape_cast %115 : vector<1xf32> to vector<1x1x1xf32>
    %117 = vector.extract %116[0, 0, 0] : f32 from vector<1x1x1xf32>
    %118 = vector.broadcast %117 : f32 to vector<1x1xf32>
    %cst_69 = arith.constant 2.000000e+00 : f32
    %119 = vector.broadcast %cst_69 : f32 to vector<1x1xf32>
    %120 = arith.divf %118, %119 : vector<1x1xf32>
    %cst_70 = arith.constant dense<0.000000e+00> : vector<2x64xf32>
    %121 = tpu.matmul %105, %17, %cst_70 {dimension_numbers = #tpu.dot_dimension_numbers<[1], [0], [0], [1], [0, 0, 1, 1], [], []>} : vector<2x3xf32>, vector<3x64xf32>, vector<2x64xf32> -> vector<2x64xf32>
    %122 = arith.truncf %39 : vector<2x64xf32> to vector<2x64xbf16>
    %cst_71 = arith.constant dense<0.000000e+00> : vector<2x64xf32>
    %123 = tpu.matmul %122, %11, %cst_71 {dimension_numbers = #tpu.dot_dimension_numbers<[1], [0], [0], [1], [0, 0, 1, 1], [], []>} : vector<2x64xbf16>, vector<64x64xbf16>, vector<2x64xf32> -> vector<2x64xf32>
    %124 = arith.subf %39, %121 : vector<2x64xf32>
    %125 = arith.truncf %124 : vector<2x64xf32> to vector<2x64xbf16>
    %cst_72 = arith.constant dense<0.000000e+00> : vector<2x64xf32>
    %126 = tpu.matmul %125, %12, %cst_72 {dimension_numbers = #tpu.dot_dimension_numbers<[1], [0], [0], [1], [0, 0, 1, 1], [], []>} : vector<2x64xbf16>, vector<64x64xbf16>, vector<2x64xf32> -> vector<2x64xf32>
    %127 = arith.addf %123, %126 : vector<2x64xf32>
    %cst_73 = arith.constant 0.000000e+00 : f32
    %128 = vector.broadcast %cst_73 : f32 to vector<2x64xf32>
    %129 = arith.cmpf oge, %127, %128 : vector<2x64xf32>
    %cst_74 = arith.constant 0.00999999977 : f32
    %130 = vector.broadcast %cst_74 : f32 to vector<2x64xf32>
    %131 = arith.mulf %130, %127 : vector<2x64xf32>
    %132 = arith.select %129, %127, %131 : vector<2x64xi1>, vector<2x64xf32>
    %133 = arith.truncf %132 : vector<2x64xf32> to vector<2x64xbf16>
    %cst_75 = arith.constant dense<0.000000e+00> : vector<2x64xf32>
    %134 = tpu.matmul %133, %13, %cst_75 {dimension_numbers = #tpu.dot_dimension_numbers<[1], [0], [0], [1], [0, 0, 1, 1], [], []>} : vector<2x64xbf16>, vector<64x64xbf16>, vector<2x64xf32> -> vector<2x64xf32>
    %cst_76 = arith.constant 0.000000e+00 : f32
    %135 = vector.broadcast %cst_76 : f32 to vector<2x64xf32>
    %136 = arith.cmpf oge, %134, %135 : vector<2x64xf32>
    %cst_77 = arith.constant 0.00999999977 : f32
    %137 = vector.broadcast %cst_77 : f32 to vector<2x64xf32>
    %138 = arith.mulf %137, %134 : vector<2x64xf32>
    %139 = arith.select %136, %134, %138 : vector<2x64xi1>, vector<2x64xf32>
    %140 = vector.broadcast %16 : vector<1x64xf32> to vector<2x64xf32>
    %141 = arith.subf %139, %140 : vector<2x64xf32>
    %142 = arith.mulf %141, %141 : vector<2x64xf32>
    %cst_78 = arith.constant dense<0.000000e+00> : vector<2xf32>
    %143 = vector.multi_reduction <add>, %142, %cst_78 [1] : vector<2x64xf32> to vector<2xf32>
    %144 = vector.shape_cast %143 : vector<2xf32> to vector<2x1xf32>
    %145 = arith.truncf %39 : vector<2x64xf32> to vector<2x64xbf16>
    %cst_79 = arith.constant dense<0.000000e+00> : vector<2x64xf32>
    %146 = tpu.matmul %145, %14, %cst_79 {dimension_numbers = #tpu.dot_dimension_numbers<[1], [0], [0], [1], [0, 0, 1, 1], [], []>} : vector<2x64xbf16>, vector<64x64xbf16>, vector<2x64xf32> -> vector<2x64xf32>
    %cst_80 = arith.constant 0.000000e+00 : f32
    %147 = vector.broadcast %cst_80 : f32 to vector<2x64xf32>
    %148 = arith.cmpf oge, %146, %147 : vector<2x64xf32>
    %cst_81 = arith.constant 0.00999999977 : f32
    %149 = vector.broadcast %cst_81 : f32 to vector<2x64xf32>
    %150 = arith.mulf %149, %146 : vector<2x64xf32>
    %151 = arith.select %148, %146, %150 : vector<2x64xi1>, vector<2x64xf32>
    %152 = arith.truncf %151 : vector<2x64xf32> to vector<2x64xbf16>
    %cst_82 = arith.constant dense<0.000000e+00> : vector<2x64xf32>
    %153 = tpu.matmul %152, %15, %cst_82 {dimension_numbers = #tpu.dot_dimension_numbers<[1], [0], [0], [1], [0, 0, 1, 1], [], []>} : vector<2x64xbf16>, vector<64x64xbf16>, vector<2x64xf32> -> vector<2x64xf32>
    %cst_83 = arith.constant 0.000000e+00 : f32
    %154 = vector.broadcast %cst_83 : f32 to vector<2x64xf32>
    %155 = arith.cmpf oge, %153, %154 : vector<2x64xf32>
    %cst_84 = arith.constant 0.00999999977 : f32
    %156 = vector.broadcast %cst_84 : f32 to vector<2x64xf32>
    %157 = arith.mulf %156, %153 : vector<2x64xf32>
    %158 = arith.select %155, %153, %157 : vector<2x64xi1>, vector<2x64xf32>
    %159 = vector.broadcast %16 : vector<1x64xf32> to vector<2x64xf32>
    %160 = arith.subf %158, %159 : vector<2x64xf32>
    %161 = arith.mulf %160, %160 : vector<2x64xf32>
    %cst_85 = arith.constant dense<0.000000e+00> : vector<2xf32>
    %162 = vector.multi_reduction <add>, %161, %cst_85 [1] : vector<2x64xf32> to vector<2xf32>
    %163 = vector.shape_cast %162 : vector<2xf32> to vector<2x1xf32>
    %164 = arith.subf %163, %144 : vector<2x1xf32>
    %165 = math.absf %164 : vector<2x1xf32>
    %166 = vector.shape_cast %163 : vector<2x1xf32> to vector<1x2x1xf32>
    %cst_86 = arith.constant dense<0.000000e+00> : vector<1xf32>
    %167 = vector.multi_reduction <add>, %166, %cst_86 [1, 2] : vector<1x2x1xf32> to vector<1xf32>
    %168 = vector.shape_cast %167 : vector<1xf32> to vector<1x1x1xf32>
    %169 = vector.extract %168[0, 0, 0] : f32 from vector<1x1x1xf32>
    %170 = vector.broadcast %169 : f32 to vector<1x1xf32>
    %cst_87 = arith.constant 2.000000e+00 : f32
    %171 = vector.broadcast %cst_87 : f32 to vector<1x1xf32>
    %172 = arith.divf %170, %171 : vector<1x1xf32>
    %173 = vector.shape_cast %144 : vector<2x1xf32> to vector<1x2x1xf32>
    %cst_88 = arith.constant dense<0.000000e+00> : vector<1xf32>
    %174 = vector.multi_reduction <add>, %173, %cst_88 [1, 2] : vector<1x2x1xf32> to vector<1xf32>
    %175 = vector.shape_cast %174 : vector<1xf32> to vector<1x1x1xf32>
    %176 = vector.extract %175[0, 0, 0] : f32 from vector<1x1x1xf32>
    %177 = vector.broadcast %176 : f32 to vector<1x1xf32>
    %cst_89 = arith.constant 2.000000e+00 : f32
    %178 = vector.broadcast %cst_89 : f32 to vector<1x1xf32>
    %179 = arith.divf %177, %178 : vector<1x1xf32>
    %180 = vector.shape_cast %165 : vector<2x1xf32> to vector<1x2x1xf32>
    %cst_90 = arith.constant dense<0.000000e+00> : vector<1xf32>
    %181 = vector.multi_reduction <add>, %180, %cst_90 [1, 2] : vector<1x2x1xf32> to vector<1xf32>
    %182 = vector.shape_cast %181 : vector<1xf32> to vector<1x1x1xf32>
    %183 = vector.extract %182[0, 0, 0] : f32 from vector<1x1x1xf32>
    %184 = vector.broadcast %183 : f32 to vector<1x1xf32>
    %cst_91 = arith.constant 2.000000e+00 : f32
    %185 = vector.broadcast %cst_91 : f32 to vector<1x1xf32>
    %186 = arith.divf %184, %185 : vector<1x1xf32>
    %187 = tpu.concatenate %120, %172, %179, %186 in 1 : vector<1x1xf32>, vector<1x1xf32>, vector<1x1xf32>, vector<1x1xf32> -> vector<1x4xf32>
    %c0_92 = arith.constant 0 : index
    %c0_93 = arith.constant 0 : index
    %188 = vector.load %arg19[%c0_92, %c0_93] : memref<1x4xf32, #tpu.memory_space<vmem>>, vector<1x4xf32>
    tpu.vector_store %arg19[%c0_92, %c0_93], %187 {strides = array<i32>} : memref<1x4xf32, #tpu.memory_space<vmem>>, vector<1x4xf32>,
    return
  }
}

</mosaic_0001>

<llo_original>
// kernel: dgad_forward.2
$region0: #{dgad_forward.2}
  #allocation0 [shape = 'u32[]', space=smem, size = 0x4, offset = 0x4, fixed_abs, tag = 'smem constant byte address 0x4 - core index']
  #allocation1 [shape = 'u32[144,128]{1,0:T(1,128)}', space=vmem, size = 0x12000, scoped, tag = 'internal scratch']
  #allocation2 [shape = 'f32[128,1]{1,0:T(8,128)}', space=vmem, size = 0x10000, scoped, tag = 'scratch operand']
  %s0 = inlined_call_operand.vmem [shape: bf16[2,3,256], index: 0, kind: input, shape index: {}]
  %s1 = inlined_call_operand.vmem [shape: f32[32,3], index: 1, kind: input, shape index: {}]
  %s2 = inlined_call_operand.vmem [shape: bf16[128,32], index: 2, kind: input, shape index: {}]
  %s3 = inlined_call_operand.vmem [shape: f32[1,2,128,1], index: 3, kind: output, shape index: {}]
  %s4 = sld [smem:[#allocation0]]
  $region53: #{dgad_forward.2} parent=0
    _
  %s6 = ssub.s32 1, %s4
  %s7 = scalar_select 0, %s6, %s4
  loop: start=0, step=1, limit=4
  $region2: #{dgad_forward.2} parent=0 // loop_pre_header
    _
  $region3: #{dgad_forward.2} parent=0 // loop_header
    %s9 = sphi 0, %s13
    %p10 = scmp.ge.s32.totalorder %s9, 4
    %s16 = sphi 0, %s35
    %s17 = sphi 0, %s31
    %s18 = sphi 0, %s27
    %s19 = sphi 0, %s16
    %s20 = sphi 0, %s17
    %s21 = sphi 0, %s18
    %s22 = sphi 0, %s19
    %s23 = sphi 0, %s20
    %s24 = sphi 0, %s21
    %s46 = sphi 0, %s48
    %s49 = sphi 0, %s46
    %s50 = sphi 0, %s49
    %s66 = sphi 0, %s50
    %s70 = sphi 0, %s70
    %s72 = sphi 0, %s70
    %s73 = sphi 0, %s72
    %s87 = sphi 0, %s73
    %s91 = sphi 0, %s91
    %s93 = sphi 0, %s91
    %s94 = sphi 0, %s93
    %s108 = sphi 0, %s94
    %s116 = sphi 0, %s118
    %s119 = sphi 0, %s116
    %s120 = sphi 0, %s119
    %s136 = sphi 0, %s120
  $region4: #{dgad_forward.2} parent=0 // loop_header_branch
    %12 = sbr.rel (%p10) target = $region8
  $region5: #{dgad_forward.2} parent=0 // loop_body
    %s14 = ssub.s32 %s9, 1
    %s15 = ssub.s32 %s9, 2
    %s25 = sadd.s32 1, %s18
    %p26 = scmp.ge.s32.totalorder %s25, 1
    %s27 = scalar_select %p26, 0, %s25
    %s28 = sadd.s32 1, %s17
    %s29 = scalar_select %p26, %s28, %s17
    %p30 = scmp.ge.s32.totalorder %s29, 2
    %s31 = scalar_select %p30, 0, %s29
    %s32 = sadd.s32 1, %s16
    %s33 = scalar_select %p30, %s32, %s16
    %p34 = scmp.ge.s32.totalorder %s33, 1
    %s35 = scalar_select %p34, 0, %s33
    %s36 = sadd.s32 %s16, %s18
    %p37 = scmp.lt.s32.totalorder %s36, 0
    %s38 = scalar_select %p37, %s36, 0
    %s39 = sadd.s32 %s35, %s27
    %p40 = scmp.lt.s32.totalorder %s39, 0
    %s41 = scalar_select %p40, %s39, 0
    %s42 = ssub.s32 %s17, %s31
    %s43 = ssub.s32 %s38, %s41
    %s44 = sor.u32 %s42, %s43
    %p45 = scmp.eq.s32.totalorder %s44, 0
    %s47 = sadd.s32 %s46, 1
    %s48 = scalar_select %p45, %s46, %s47
    %p51 = pneg %p45
    %p52 = scmp.eq.s32.totalorder %s9, 1
    %p53 = por %p51, %p52
    %p54 = scmp.ne.s32.totalorder %s46, %s49
    %p55 = scmp.eq.s32.totalorder %s9, 0
    %p56 = por %p54, %p55
    %p57 = scmp.ne.s32.totalorder %s46, %s49
    %p58 = scmp.eq.s32.totalorder %s14, 1
    %p59 = por %p57, %p58
    %p60 = scmp.ne.s32.totalorder %s49, %s50
    %p61 = scmp.eq.s32.totalorder %s14, 0
    %p62 = por %p60, %p61
    %p63 = scmp.ne.s32.totalorder %s49, %s50
    %p64 = scmp.eq.s32.totalorder %s15, 1
    %p65 = por %p63, %p64
    %p67 = scmp.ne.s32.totalorder %s50, %s66
    %p68 = scmp.eq.s32.totalorder %s15, 0
    %p69 = por %p67, %p68
    %s71 = sadd.s32 %s70, 1
    %p74 = scmp.eq.s32.totalorder %s9, 1
    %p75 = scmp.ne.s32.totalorder %s70, %s72
    %p76 = scmp.eq.s32.totalorder %s9, 0
    %p77 = por %p75, %p76
    %p78 = scmp.ne.s32.totalorder %s70, %s72
    %p79 = scmp.eq.s32.totalorder %s14, 1
    %p80 = por %p78, %p79
    %p81 = scmp.ne.s32.totalorder %s72, %s73
    %p82 = scmp.eq.s32.totalorder %s14, 0
    %p83 = por %p81, %p82
    %p84 = scmp.ne.s32.totalorder %s72, %s73
    %p85 = scmp.eq.s32.totalorder %s15, 1
    %p86 = por %p84, %p85
    %p88 = scmp.ne.s32.totalorder %s73, %s87
    %p89 = scmp.eq.s32.totalorder %s15, 0
    %p90 = por %p88, %p89
    %s92 = sadd.s32 %s91, 1
    %p95 = scmp.eq.s32.totalorder %s9, 1
    %p96 = scmp.ne.s32.totalorder %s91, %s93
    %p97 = scmp.eq.s32.totalorder %s9, 0
    %p98 = por %p96, %p97
    %p99 = scmp.ne.s32.totalorder %s91, %s93
    %p100 = scmp.eq.s32.totalorder %s14, 1
    %p101 = por %p99, %p100
    %p102 = scmp.ne.s32.totalorder %s93, %s94
    %p103 = scmp.eq.s32.totalorder %s14, 0
    %p104 = por %p102, %p103
    %p105 = scmp.ne.s32.totalorder %s93, %s94
    %p106 = scmp.eq.s32.totalorder %s15, 1
    %p107 = por %p105, %p106
    %p109 = scmp.ne.s32.totalorder %s94, %s108
    %p110 = scmp.eq.s32.totalorder %s15, 0
    %p111 = por %p109, %p110
    %s112 = ssub.s32 %s16, %s35
    %s113 = ssub.s32 %s17, %s31
    %s114 = sor.u32 %s112, %s113
    %p115 = scmp.eq.s32.totalorder %s114, 0
    %s117 = sadd.s32 %s116, 1
    %s118 = scalar_select %p115, %s116, %s117
    %p121 = pneg %p115
    %p122 = scmp.eq.s32.totalorder %s9, 1
    %p123 = por %p121, %p122
    %p124 = scmp.ne.s32.totalorder %s116, %s119
    %p125 = scmp.eq.s32.totalorder %s9, 0
    %p126 = por %p124, %p125
    %p127 = scmp.ne.s32.totalorder %s116, %s119
    %p128 = scmp.eq.s32.totalorder %s14, 1
    %p129 = por %p127, %p128
    %p130 = scmp.ne.s32.totalorder %s119, %s120
    %p131 = scmp.eq.s32.totalorder %s14, 0
    %p132 = por %p130, %p131
    %p133 = scmp.ne.s32.totalorder %s119, %s120
    %p134 = scmp.eq.s32.totalorder %s15, 1
    %p135 = por %p133, %p134
    %p137 = scmp.ne.s32.totalorder %s120, %s136
    %p138 = scmp.eq.s32.totalorder %s15, 0
    %p139 = por %p137, %p138
    %p140 = scmp.le.s32.totalorder 1, %s9
    %p141 = scmp.lt.s32.totalorder %s9, 3
    %p142 = pnand %p140, %p141
    %p143 = pneg %p142
    // Predicated region
    $region9: #{dgad_forward.2} parent=5 // pred_check
      _
    $region10: #{dgad_forward.2} parent=5 // pred_check_branch
      %145 = sbr.rel (%p142) target = $region12
    $region11: #{dgad_forward.2} parent=5 // pred_region
      %s146 = ssub.s32 %s9, 1
      // Predicated region
      $region13: #{dgad_forward.2} parent=11 // pred_check
        %p147 = pneg %p83
      $region14: #{dgad_forward.2} parent=11 // pred_check_branch
        %149 = sbr.rel (%p147) target = $region16
      $region15: #{dgad_forward.2} parent=11 // pred_region
        _
      $region16: #{dgad_forward.2} parent=11 // pred_fallthru
        _
      // Predicated region
      $region17: #{dgad_forward.2} parent=11 // pred_check
        %p150 = pneg %p104
      $region18: #{dgad_forward.2} parent=11 // pred_check_branch
        %152 = sbr.rel (%p150) target = $region20
      $region19: #{dgad_forward.2} parent=11 // pred_region
        _
      $region20: #{dgad_forward.2} parent=11 // pred_fallthru
        _
    $region12: #{dgad_forward.2} parent=5 // pred_fallthru
      _
    %p153 = scmp.lt.s32.totalorder %s9, 2
    // Predicated region
    $region21: #{dgad_forward.2} parent=5 // pred_check
      %p154 = pneg %p153
    $region22: #{dgad_forward.2} parent=5 // pred_check_branch
      %156 = sbr.rel (%p154) target = $region24
    $region23: #{dgad_forward.2} parent=5 // pred_region
      // Predicated region
      $region25: #{dgad_forward.2} parent=23 // pred_check
        %p157 = pneg %p56
      $region26: #{dgad_forward.2} parent=23 // pred_check_branch
        %159 = sbr.rel (%p157) target = $region28
      $region27: #{dgad_forward.2} parent=23 // pred_region
        %s160 = sadd.s32 %s16, %s18
        %p161 = scmp.lt.s32.totalorder %s160, 0
        %s162 = scalar_select %p161, %s160, 0
        %s163 = smul.u32 2, %s162
        %p164 = scmp.lt.s32.totalorder %s17, 1
        %s165 = scalar_select %p164, %s17, 1
        %p166 = scmp.lt.s32.totalorder %s163, 1
        %s167 = scalar_select %p166, %s163, 1
        %s168 = smul.addr %s165, 2
        %s169 = sadd.s32 %s167, %s168
        %s170 = smul.addr %s169, 2
        %s171 = scalar_lea.vmem %s0, %s170
        %s172 = sadd.s32 %s16, %s18
        %p173 = scmp.lt.s32.totalorder %s172, 0
        %s174 = scalar_select %p173, %s172, 0
        %s175 = smul.u32 2, %s174
      $region28: #{dgad_forward.2} parent=23 // pred_fallthru
        _
    $region24: #{dgad_forward.2} parent=5 // pred_fallthru
      _
    %p176 = scmp.le.s32.totalorder 1, %s9
    %p177 = scmp.lt.s32.totalorder %s9, 3
    %p178 = pnand %p176, %p177
    %p179 = pneg %p178
    // Predicated region
    $region29: #{dgad_forward.2} parent=5 // pred_check
      _
    $region30: #{dgad_forward.2} parent=5 // pred_check_branch
      %181 = sbr.rel (%p178) target = $region32
    $region31: #{dgad_forward.2} parent=5 // pred_region
      %s182 = ssub.s32 %s9, 1
      %s183 = sadd.s32 %s19, %s21
      %p184 = scmp.lt.s32.totalorder %s183, 0
      %s185 = scalar_select %p184, %s183, 0
      %s186 = smul.u32 2, %s185
      %p187 = scmp.lt.s32.totalorder %s20, 1
      %s188 = scalar_select %p187, %s20, 1
      %p189 = scmp.lt.s32.totalorder %s186, 1
      %s190 = scalar_select %p189, %s186, 1
      %s191 = smul.addr %s188, 2
      %s192 = sadd.s32 %s190, %s191
      %s193 = smul.addr %s192, 2
      %s194 = scalar_lea.vmem %s0, %s193
      %p195 = pneg %p62
      %p196 = pneg %p59
      %p197 = pneg %p83
      %p198 = pneg %p80
      %p199 = pneg %p104
      %p200 = pneg %p101
      %p201 = pneg %p132
      %p202 = pneg %p129
      %p203 = scmp.lt.s32.totalorder %s19, 0
      %s204 = scalar_select %p203, %s19, 0
      %p205 = scmp.lt.s32.totalorder %s20, 1
      %s206 = scalar_select %p205, %s20, 1
      %s207 = smul.addr %s206, 16
      %s208 = smul.addr %s204, 32
      %s209 = sadd.s32 %s207, %s208
      %s210 = smul.addr %s209, 8
      %s211 = scalar_lea.vmem %s3, %s210
      %s212 = sadd.s32 %s19, %s21
      %p213 = scmp.lt.s32.totalorder %s212, 0
      %s214 = scalar_select %p213, %s212, 0
      %s215 = smul.u32 2, %s214
      %p216 = scmp.lt.s32.totalorder %s20, 1
      %s217 = scalar_select %p216, %s20, 1
      %p218 = scmp.lt.s32.totalorder %s215, 1
      %s219 = scalar_select %p218, %s215, 1
      %s220 = smul.addr %s217, 2
      %s221 = sadd.s32 %s219, %s220
      %s222 = smul.addr %s221, 2
      %s223 = scalar_lea.vmem %s0, %s222
      %s224 = sadd.s32 %s19, %s21
      %p225 = scmp.lt.s32.totalorder %s224, 0
      %s226 = scalar_select %p225, %s224, 0
      %s227 = smul.u32 2, %s226
      %p228 = scmp.lt.s32.totalorder %s19, 0
      %s229 = scalar_select %p228, %s19, 0
      %p230 = scmp.lt.s32.totalorder %s20, 1
      %s231 = scalar_select %p230, %s20, 1
      %s232 = smul.addr %s231, 16
      %s233 = smul.addr %s229, 32
      %s234 = sadd.s32 %s232, %s233
      %s235 = smul.addr %s234, 8
      %s236 = scalar_lea.vmem %s3, %s235
      %p238 = scmp.eq.s32.totalorder %s21, 0
      // Predicated region
      $region33: #{dgad_forward.2} parent=31 // pred_check
        %p239 = pneg %p238
      $region34: #{dgad_forward.2} parent=31 // pred_check_branch
        %241 = sbr.rel (%p239) target = $region36
      $region35: #{dgad_forward.2} parent=31 // pred_region
        %vm242 = vcmask 7168
        %243 = vst.msk [vmem:[#allocation2] sm:$0xff] %vm242, 0.0
        %244 = vst.msk [vmem:[#allocation2 + $0x8] sm:$0xff] %vm242, 0.0
        %245 = vst.msk [vmem:[#allocation2 + $0x10] sm:$0xff] %vm242, 0.0
        %246 = vst.msk [vmem:[#allocation2 + $0x18] sm:$0xff] %vm242, 0.0
        %247 = vst.msk [vmem:[#allocation2 + $0x20] sm:$0xff] %vm242, 0.0
        %248 = vst.msk [vmem:[#allocation2 + $0x28] sm:$0xff] %vm242, 0.0
        %249 = vst.msk [vmem:[#allocation2 + $0x30] sm:$0xff] %vm242, 0.0
        %250 = vst.msk [vmem:[#allocation2 + $0x38] sm:$0xff] %vm242, 0.0
        %251 = vst.msk [vmem:[#allocation2 + $0x40] sm:$0xff] %vm242, 0.0
        %252 = vst.msk [vmem:[#allocation2 + $0x48] sm:$0xff] %vm242, 0.0
        %253 = vst.msk [vmem:[#allocation2 + $0x50] sm:$0xff] %vm242, 0.0
        %254 = vst.msk [vmem:[#allocation2 + $0x58] sm:$0xff] %vm242, 0.0
        %255 = vst.msk [vmem:[#allocation2 + $0x60] sm:$0xff] %vm242, 0.0
        %256 = vst.msk [vmem:[#allocation2 + $0x68] sm:$0xff] %vm242, 0.0
        %257 = vst.msk [vmem:[#allocation2 + $0x70] sm:$0xff] %vm242, 0.0
        %258 = vst.msk [vmem:[#allocation2 + $0x78] sm:$0xff] %vm242, 0.0
      $region36: #{dgad_forward.2} parent=31 // pred_fallthru
        _
      %s259 = sadd.s32 %s19, %s21
      %s260 = smul.u32 %s259, 256
      %v261 = vlaneseq
      %v262 = vand.u32 %v261, 127
      %v263 = vadd.s32 %v262, 128
      %v264 = vstv %s260
      %v265 = vadd.s32 %v264, %v262
      %v266 = vadd.s32 %v264, %v263
      %vm267 = vcmp.lt.s32.totalorder %v265, 256
      %vm268 = vcmp.lt.s32.totalorder %v266, 256
      %v269 = vld [vmem:[%s223] sm:$0xf]
      %v270 = vunpack.c.l.bf16 %v269
      %v271 = vsel %vm267, 1, 0
      %v272 = vsel %vm268, 1, 0
      %vm273 = vcmp.eq.s32.totalorder %v271, 1
      %vm274 = vcmp.eq.s32.totalorder %v272, 1
      %v276 = vcombine.high %v270, %v270
      %v278 = vsel %vm273, %v270, 0.0
      %v279 = vsel %vm274, %v276, 0.0
      %v280 = vld [vmem:[%s1] sm:$0xff]
      %v281 = vld [vmem:[%s1 + $0x8] sm:$0xff]
      %v282 = vld [vmem:[%s1 + $0x10] sm:$0xff]
      %v283 = vld [vmem:[%s1 + $0x18] sm:$0xff]
      %285 = vset.pattern.permute.xlu0 0
      %286 = vperm.xlu0 %285, %v280
      %v287 = vpop.permute.xlu0 %286
      %290 = vset.pattern.permute.xlu0 0
      %291 = vperm.xlu0 %290, %v281
      %v292 = vpop.permute.xlu0 %291
      %295 = vset.pattern.permute.xlu0 0
      %296 = vperm.xlu0 %295, %v282
      %v297 = vpop.permute.xlu0 %296
      %300 = vset.pattern.permute.xlu0 0
      %301 = vperm.xlu0 %300, %v283
      %v302 = vpop.permute.xlu0 %301
      %v304 = vlaneseq
      %v305 = vshrl.u32 %v304, 7
      %v306 = vsub.s32 0, %v305
      %v307 = vrot.slane %v278, %v306
      %v308 = vlaneseq
      %v309 = vshrl.u32 %v308, 7
      %v310 = vsub.s32 0, %v309
      %v311 = vrot.slane %v279, %v310
      %v312 = vmul.f32 %v287, %v307
      %v313 = vmul.f32 %v287, %v311
      %v314 = vmul.f32 %v292, %v307
      %v315 = vmul.f32 %v292, %v311
      %v316 = vmul.f32 %v297, %v307
      %v317 = vmul.f32 %v297, %v311
      %v318 = vmul.f32 %v302, %v307
      %v319 = vmul.f32 %v302, %v311
      %320 = vset.pattern.permute.xlu0 1
      %321 = vperm.xlu0 %320, %v280
      %v322 = vpop.permute.xlu0 %321
      %324 = vset.pattern.permute.xlu0 1
      %325 = vperm.xlu0 %324, %v281
      %v326 = vpop.permute.xlu0 %325
      %328 = vset.pattern.permute.xlu0 1
      %329 = vperm.xlu0 %328, %v282
      %v330 = vpop.permute.xlu0 %329
      %332 = vset.pattern.permute.xlu0 1
      %333 = vperm.xlu0 %332, %v283
      %v334 = vpop.permute.xlu0 %333
      %v336 = vlaneseq
      %v337 = vshrl.u32 %v336, 7
      %v338 = vsub.s32 1, %v337
      %v339 = vrot.slane %v278, %v338
      %v340 = vlaneseq
      %v341 = vshrl.u32 %v340, 7
      %v342 = vsub.s32 1, %v341
      %v343 = vrot.slane %v279, %v342
      %v344 = vmul.f32 %v322, %v339
      %v345 = vmul.f32 %v322, %v343
      %v346 = vmul.f32 %v326, %v339
      %v347 = vmul.f32 %v326, %v343
      %v348 = vmul.f32 %v330, %v339
      %v349 = vmul.f32 %v330, %v343
      %v350 = vmul.f32 %v334, %v339
      %v351 = vmul.f32 %v334, %v343
      %v352 = vadd.f32 %v312, %v344
      %v353 = vadd.f32 %v313, %v345
      %v354 = vadd.f32 %v314, %v346
      %v355 = vadd.f32 %v315, %v347
      %v356 = vadd.f32 %v316, %v348
      %v357 = vadd.f32 %v317, %v349
      %v358 = vadd.f32 %v318, %v350
      %v359 = vadd.f32 %v319, %v351
      %360 = vset.pattern.permute.xlu0 2
      %361 = vperm.xlu0 %360, %v280
      %v362 = vpop.permute.xlu0 %361
      %364 = vset.pattern.permute.xlu0 2
      %365 = vperm.xlu0 %364, %v281
      %v366 = vpop.permute.xlu0 %365
      %368 = vset.pattern.permute.xlu0 2
      %369 = vperm.xlu0 %368, %v282
      %v370 = vpop.permute.xlu0 %369
      %372 = vset.pattern.permute.xlu0 2
      %373 = vperm.xlu0 %372, %v283
      %v374 = vpop.permute.xlu0 %373
      %v376 = vlaneseq
      %v377 = vshrl.u32 %v376, 7
      %v378 = vsub.s32 2, %v377
      %v379 = vrot.slane %v278, %v378
      %v380 = vlaneseq
      %v381 = vshrl.u32 %v380, 7
      %v382 = vsub.s32 2, %v381
      %v383 = vrot.slane %v279, %v382
      %v384 = vmul.f32 %v362, %v379
      %v385 = vmul.f32 %v362, %v383
      %v386 = vmul.f32 %v366, %v379
      %v387 = vmul.f32 %v366, %v383
      %v388 = vmul.f32 %v370, %v379
      %v389 = vmul.f32 %v370, %v383
      %v390 = vmul.f32 %v374, %v379
      %v391 = vmul.f32 %v374, %v383
      %v392 = vadd.f32 %v352, %v384
      %v393 = vadd.f32 %v353, %v385
      %v394 = vadd.f32 %v354, %v386
      %v395 = vadd.f32 %v355, %v387
      %v396 = vadd.f32 %v356, %v388
      %v397 = vadd.f32 %v357, %v389
      %v398 = vadd.f32 %v358, %v390
      %v399 = vadd.f32 %v359, %v391
      %v400 = vmax.f32 %v392, 0.0
      %v401 = vmax.f32 %v393, 0.0
      %v402 = vmax.f32 %v394, 0.0
      %v403 = vmax.f32 %v395, 0.0
      %v404 = vmax.f32 %v396, 0.0
      %v405 = vmax.f32 %v397, 0.0
      %v406 = vmax.f32 %v398, 0.0
      %v407 = vmax.f32 %v399, 0.0
      %v408 = vld [vmem:[%s2] sm:$0xf]
      %v409 = vld [vmem:[%s2 + $0x4] sm:$0xf]
      %v410 = vld [vmem:[%s2 + $0x8] sm:$0xf]
      %v411 = vld [vmem:[%s2 + $0xc] sm:$0xf]
      %v412 = vld [vmem:[%s2 + $0x10] sm:$0xf]
      %v413 = vld [vmem:[%s2 + $0x14] sm:$0xf]
      %v414 = vld [vmem:[%s2 + $0x18] sm:$0xf]
      %v415 = vld [vmem:[%s2 + $0x1c] sm:$0xf]
      %v416 = vld [vmem:[%s2 + $0x20] sm:$0xf]
      %v417 = vld [vmem:[%s2 + $0x24] sm:$0xf]
      %v418 = vld [vmem:[%s2 + $0x28] sm:$0xf]
      %v419 = vld [vmem:[%s2 + $0x2c] sm:$0xf]
      %v420 = vld [vmem:[%s2 + $0x30] sm:$0xf]
      %v421 = vld [vmem:[%s2 + $0x34] sm:$0xf]
      %v422 = vld [vmem:[%s2 + $0x38] sm:$0xf]
      %v423 = vld [vmem:[%s2 + $0x3c] sm:$0xf]
      %v424 = vpack.c.bf16 %v402, %v400
      %v425 = vpack.c.bf16 %v403, %v401
      %v426 = vpack.c.bf16 %v406, %v404
      %v427 = vpack.c.bf16 %v407, %v405
      %v444 = vunpack.c.l.b16 %v408
      %v445 = vunpack.c.l.b16 %v409
      %v446 = vunpack.c.l.b16 %v410
      %v447 = vunpack.c.l.b16 %v411
      %v448 = vunpack.c.l.b16 %v412
      %v449 = vunpack.c.l.b16 %v413
      %v450 = vunpack.c.l.b16 %v414
      %v451 = vunpack.c.l.b16 %v415
      %v452 = vunpack.c.l.b16 %v416
      %v453 = vunpack.c.l.b16 %v417
      %v454 = vunpack.c.l.b16 %v418
      %v455 = vunpack.c.l.b16 %v419
      %v456 = vunpack.c.l.b16 %v420
      %v457 = vunpack.c.l.b16 %v421
      %v458 = vunpack.c.l.b16 %v422
      %v459 = vunpack.c.l.b16 %v423
      %v460 = vpack.c.b16 %v445, %v444
      %v461 = vpack.c.b16 %v447, %v446
      %v462 = vpack.c.b16 %v449, %v448
      %v463 = vpack.c.b16 %v451, %v450
      %v464 = vpack.c.b16 %v453, %v452
      %v465 = vpack.c.b16 %v455, %v454
      %v466 = vpack.c.b16 %v457, %v456
      %v467 = vpack.c.b16 %v459, %v458
      %vm468 = vcmask 261120
      %v470 = vsel %vm468, %v460, 0
      %v473 = vsel %vm468, %v461, 0
      %v476 = vsel %vm468, %v462, 0
      %v479 = vsel %vm468, %v463, 0
      %v482 = vsel %vm468, %v464, 0
      %v485 = vsel %vm468, %v465, 0
      %v488 = vsel %vm468, %v466, 0
      %v491 = vsel %vm468, %v467, 0
      %493 = vmatprep.subr.bf16.mxu0 0
      %494 = vmatpush1.bf16.msra.mxu0 0
      %495 = vmatprep.subr.bf16.mxu0 0
      %496 = vmatpush1.bf16.msra.mxu0 0
      %497 = vmatprep.subr.bf16.mxu0 0
      %498 = vmatpush1.bf16.msra.mxu0 0
      %499 = vmatprep.subr.bf16.mxu0 0
      %500 = vmatpush1.bf16.msra.mxu0 0
      %501 = vmatprep.subr.bf16.mxu0 0
      %502 = vmatpush1.bf16.msra.mxu0 0
      %503 = vmatprep.subr.bf16.mxu0 0
      %504 = vmatpush1.bf16.msra.mxu0 0
      %505 = vmatprep.subr.bf16.mxu0 %v427
      %506 = vmatpush1.bf16.msra.mxu0 %v426
      %507 = vmatprep.subr.bf16.mxu0 %v425
      %508 = vmatpush1.bf16.msra.mxu0 %v424
      %509 = vmatprep.subr.bf16.mxu0 0
      %510 = vmatpush2.bf16.msra.mxu0 0
      %511 = vmatprep.subr.bf16.mxu0 0
      %512 = vmatpush2.bf16.msra.mxu0 0
      %513 = vmatprep.subr.bf16.mxu0 0
      %514 = vmatpush2.bf16.msra.mxu0 0
      %515 = vmatprep.subr.bf16.mxu0 0
      %516 = vmatpush2.bf16.msra.mxu0 0
      %517 = vmatprep.subr.bf16.mxu0 0
      %518 = vmatpush2.bf16.msra.mxu0 0
      %519 = vmatprep.subr.bf16.mxu0 0
      %520 = vmatpush2.bf16.msra.mxu0 0
      %521 = vmatprep.subr.bf16.mxu0 0
      %522 = vmatpush2.bf16.msra.mxu0 0
      %523 = vmatprep.subr.bf16.mxu0 0
      %524 = vmatpush2.bf16.msra.mxu0 0
      %525 = vmatprep.mubr.bf16.mxu0 0
      %526 = vmatmul.mubr.bf16.gmra.mxu0 %v470
      %v527 = vpop.f32.mrf.mxu0
      %v528 = vadd.f32 0.0, %v527
      %v529 = vpop.f32.mrf.mxu0
      %v530 = vadd.f32 0.0, %v529
      %v531 = vpop.f32.mrf.mxu0
      %v532 = vadd.f32 0.0, %v531
      %v533 = vpop.f32.mrf.mxu0
      %v534 = vadd.f32 0.0, %v533
      %535 = vmatprep.mubr.bf16.mxu0 0
      %536 = vmatmul.mubr.bf16.gmra.mxu0 %v473
      %v537 = vpop.f32.mrf.mxu0
      %v538 = vadd.f32 0.0, %v537
      %v539 = vpop.f32.mrf.mxu0
      %v540 = vadd.f32 0.0, %v539
      %v541 = vpop.f32.mrf.mxu0
      %v542 = vadd.f32 0.0, %v541
      %v543 = vpop.f32.mrf.mxu0
      %v544 = vadd.f32 0.0, %v543
      %545 = vmatprep.mubr.bf16.mxu0 0
      %546 = vmatmul.mubr.bf16.gmra.mxu0 %v476
      %v547 = vpop.f32.mrf.mxu0
      %v548 = vadd.f32 0.0, %v547
      %v549 = vpop.f32.mrf.mxu0
      %v550 = vadd.f32 0.0, %v549
      %v551 = vpop.f32.mrf.mxu0
      %v552 = vadd.f32 0.0, %v551
      %v553 = vpop.f32.mrf.mxu0
      %v554 = vadd.f32 0.0, %v553
      %555 = vmatprep.mubr.bf16.mxu0 0
      %556 = vmatmul.mubr.bf16.gmra.mxu0 %v479
      %v557 = vpop.f32.mrf.mxu0
      %v558 = vadd.f32 0.0, %v557
      %v559 = vpop.f32.mrf.mxu0
      %v560 = vadd.f32 0.0, %v559
      %v561 = vpop.f32.mrf.mxu0
      %v562 = vadd.f32 0.0, %v561
      %v563 = vpop.f32.mrf.mxu0
      %v564 = vadd.f32 0.0, %v563
      %565 = vmatprep.mubr.bf16.mxu0 0
      %566 = vmatmul.mubr.bf16.gmra.mxu0 %v482
      %v567 = vpop.f32.mrf.mxu0
      %v568 = vadd.f32 0.0, %v567
      %v569 = vpop.f32.mrf.mxu0
      %v570 = vadd.f32 0.0, %v569
      %v571 = vpop.f32.mrf.mxu0
      %v572 = vadd.f32 0.0, %v571
      %v573 = vpop.f32.mrf.mxu0
      %v574 = vadd.f32 0.0, %v573
      %575 = vmatprep.mubr.bf16.mxu0 0
      %576 = vmatmul.mubr.bf16.gmra.mxu0 %v485
      %v577 = vpop.f32.mrf.mxu0
      %v578 = vadd.f32 0.0, %v577
      %v579 = vpop.f32.mrf.mxu0
      %v580 = vadd.f32 0.0, %v579
      %v581 = vpop.f32.mrf.mxu0
      %v582 = vadd.f32 0.0, %v581
      %v583 = vpop.f32.mrf.mxu0
      %v584 = vadd.f32 0.0, %v583
      %585 = vmatprep.mubr.bf16.mxu0 0
      %586 = vmatmul.mubr.bf16.gmra.mxu0 %v488
      %v587 = vpop.f32.mrf.mxu0
      %v588 = vadd.f32 0.0, %v587
      %v589 = vpop.f32.mrf.mxu0
      %v590 = vadd.f32 0.0, %v589
      %v591 = vpop.f32.mrf.mxu0
      %v592 = vadd.f32 0.0, %v591
      %v593 = vpop.f32.mrf.mxu0
      %v594 = vadd.f32 0.0, %v593
      %595 = vmatprep.mubr.bf16.mxu0 0
      %596 = vmatmul.mubr.bf16.gmra.mxu0 %v491
      %v597 = vpop.f32.mrf.mxu0
      %v598 = vadd.f32 0.0, %v597
      %v599 = vpop.f32.mrf.mxu0
      %v600 = vadd.f32 0.0, %v599
      %v601 = vpop.f32.mrf.mxu0
      %v602 = vadd.f32 0.0, %v601
      %v603 = vpop.f32.mrf.mxu0
      %v604 = vadd.f32 0.0, %v603
      %605 = vdwg.mxu0
      %v606 = vmax.f32 %v528, 0.0
      %v607 = vmax.f32 %v530, 0.0
      %v608 = vmax.f32 %v532, 0.0
      %v609 = vmax.f32 %v534, 0.0
      %v610 = vmax.f32 %v538, 0.0
      %v611 = vmax.f32 %v540, 0.0
      %v612 = vmax.f32 %v542, 0.0
      %v613 = vmax.f32 %v544, 0.0
      %v614 = vmax.f32 %v548, 0.0
      %v615 = vmax.f32 %v550, 0.0
      %v616 = vmax.f32 %v552, 0.0
      %v617 = vmax.f32 %v554, 0.0
      %v618 = vmax.f32 %v558, 0.0
      %v619 = vmax.f32 %v560, 0.0
      %v620 = vmax.f32 %v562, 0.0
      %v621 = vmax.f32 %v564, 0.0
      %v622 = vadd.f32 %v606, %v607
      %623 = vadd.xlane.f32.xlu0 %v622
      %v624 = vpop.xlane.xlu0 %623
      %v625 = vadd.f32 %v608, %v609
      %626 = vadd.xlane.f32.xlu0 %v625
      %v627 = vpop.xlane.xlu0 %626
      %v628 = vadd.f32 %v610, %v611
      %629 = vadd.xlane.f32.xlu0 %v628
      %v630 = vpop.xlane.xlu0 %629
      %v631 = vadd.f32 %v612, %v613
      %632 = vadd.xlane.f32.xlu0 %v631
      %v633 = vpop.xlane.xlu0 %632
      %v634 = vadd.f32 %v614, %v615
      %635 = vadd.xlane.f32.xlu0 %v634
      %v636 = vpop.xlane.xlu0 %635
      %v637 = vadd.f32 %v616, %v617
      %638 = vadd.xlane.f32.xlu0 %v637
      %v639 = vpop.xlane.xlu0 %638
      %v640 = vadd.f32 %v618, %v619
      %641 = vadd.xlane.f32.xlu0 %v640
      %v642 = vpop.xlane.xlu0 %641
      %v643 = vadd.f32 %v620, %v621
      %644 = vadd.xlane.f32.xlu0 %v643
      %v645 = vpop.xlane.xlu0 %644
      %v646 = vadd.f32 %v568, %v570
      %647 = vadd.xlane.f32.xlu0 %v646
      %v648 = vpop.xlane.xlu0 %647
      %v649 = vadd.f32 %v572, %v574
      %650 = vadd.xlane.f32.xlu0 %v649
      %v651 = vpop.xlane.xlu0 %650
      %v652 = vadd.f32 %v578, %v580
      %653 = vadd.xlane.f32.xlu0 %v652
      %v654 = vpop.xlane.xlu0 %653
      %v655 = vadd.f32 %v582, %v584
      %656 = vadd.xlane.f32.xlu0 %v655
      %v657 = vpop.xlane.xlu0 %656
      %v658 = vadd.f32 %v588, %v590
      %659 = vadd.xlane.f32.xlu0 %v658
      %v660 = vpop.xlane.xlu0 %659
      %v661 = vadd.f32 %v592, %v594
      %662 = vadd.xlane.f32.xlu0 %v661
      %v663 = vpop.xlane.xlu0 %662
      %v664 = vadd.f32 %v598, %v600
      %665 = vadd.xlane.f32.xlu0 %v664
      %v666 = vpop.xlane.xlu0 %665
      %v667 = vadd.f32 %v602, %v604
      %668 = vadd.xlane.f32.xlu0 %v667
      %v669 = vpop.xlane.xlu0 %668
      %v670 = vld [vmem:[#allocation2] sm:$0xff]
      %v671 = vld [vmem:[#allocation2 + $0x8] sm:$0xff]
      %v672 = vld [vmem:[#allocation2 + $0x10] sm:$0xff]
      %v673 = vld [vmem:[#allocation2 + $0x18] sm:$0xff]
      %v674 = vld [vmem:[#allocation2 + $0x20] sm:$0xff]
      %v675 = vld [vmem:[#allocation2 + $0x28] sm:$0xff]
      %v676 = vld [vmem:[#allocation2 + $0x30] sm:$0xff]
      %v677 = vld [vmem:[#allocation2 + $0x38] sm:$0xff]
      %v678 = vadd.f32 %v670, %v624
      %v679 = vadd.f32 %v671, %v627
      %v680 = vadd.f32 %v672, %v630
      %v681 = vadd.f32 %v673, %v633
      %v682 = vadd.f32 %v674, %v636
      %v683 = vadd.f32 %v675, %v639
      %v684 = vadd.f32 %v676, %v642
      %v685 = vadd.f32 %v677, %v645
      %vm686 = vcmask 7168
      %687 = vst.msk [vmem:[#allocation2] sm:$0xff] %vm686, %v678
      %688 = vst.msk [vmem:[#allocation2 + $0x8] sm:$0xff] %vm686, %v679
      %689 = vst.msk [vmem:[#allocation2 + $0x10] sm:$0xff] %vm686, %v680
      %690 = vst.msk [vmem:[#allocation2 + $0x18] sm:$0xff] %vm686, %v681
      %691 = vst.msk [vmem:[#allocation2 + $0x20] sm:$0xff] %vm686, %v682
      %692 = vst.msk [vmem:[#allocation2 + $0x28] sm:$0xff] %vm686, %v683
      %693 = vst.msk [vmem:[#allocation2 + $0x30] sm:$0xff] %vm686, %v684
      %694 = vst.msk [vmem:[#allocation2 + $0x38] sm:$0xff] %vm686, %v685
      %v695 = vld [vmem:[#allocation2 + $0x40] sm:$0xff]
      %v696 = vld [vmem:[#allocation2 + $0x48] sm:$0xff]
      %v697 = vld [vmem:[#allocation2 + $0x50] sm:$0xff]
      %v698 = vld [vmem:[#allocation2 + $0x58] sm:$0xff]
      %v699 = vld [vmem:[#allocation2 + $0x60] sm:$0xff]
      %v700 = vld [vmem:[#allocation2 + $0x68] sm:$0xff]
      %v701 = vld [vmem:[#allocation2 + $0x70] sm:$0xff]
      %v702 = vld [vmem:[#allocation2 + $0x78] sm:$0xff]
      %v703 = vadd.f32 %v695, %v648
      %v704 = vadd.f32 %v696, %v651
      %v705 = vadd.f32 %v697, %v654
      %v706 = vadd.f32 %v698, %v657
      %v707 = vadd.f32 %v699, %v660
      %v708 = vadd.f32 %v700, %v663
      %v709 = vadd.f32 %v701, %v666
      %v710 = vadd.f32 %v702, %v669
      %711 = vst.msk [vmem:[#allocation2 + $0x40] sm:$0xff] %vm686, %v703
      %712 = vst.msk [vmem:[#allocation2 + $0x48] sm:$0xff] %vm686, %v704
      %713 = vst.msk [vmem:[#allocation2 + $0x50] sm:$0xff] %vm686, %v705
      %714 = vst.msk [vmem:[#allocation2 + $0x58] sm:$0xff] %vm686, %v706
      %715 = vst.msk [vmem:[#allocation2 + $0x60] sm:$0xff] %vm686, %v707
      %716 = vst.msk [vmem:[#allocation2 + $0x68] sm:$0xff] %vm686, %v708
      %717 = vst.msk [vmem:[#allocation2 + $0x70] sm:$0xff] %vm686, %v709
      %718 = vst.msk [vmem:[#allocation2 + $0x78] sm:$0xff] %vm686, %v710
      // Predicated region
      $region37: #{dgad_forward.2} parent=31 // pred_check
        %p719 = pneg %p238
      $region38: #{dgad_forward.2} parent=31 // pred_check_branch
        %721 = sbr.rel (%p719) target = $region40
      $region39: #{dgad_forward.2} parent=31 // pred_region
        %v722 = vld [vmem:[#allocation2] sm:$0xff]
        %v723 = vld [vmem:[#allocation2 + $0x8] sm:$0xff]
        %v724 = vld [vmem:[#allocation2 + $0x10] sm:$0xff]
        %v725 = vld [vmem:[#allocation2 + $0x18] sm:$0xff]
        %v726 = vld [vmem:[#allocation2 + $0x20] sm:$0xff]
        %v727 = vld [vmem:[#allocation2 + $0x28] sm:$0xff]
        %v728 = vld [vmem:[#allocation2 + $0x30] sm:$0xff]
        %v729 = vld [vmem:[#allocation2 + $0x38] sm:$0xff]
        %v730 = vld [vmem:[#allocation2 + $0x40] sm:$0xff]
        %v731 = vld [vmem:[#allocation2 + $0x48] sm:$0xff]
        %v732 = vld [vmem:[#allocation2 + $0x50] sm:$0xff]
        %v733 = vld [vmem:[#allocation2 + $0x58] sm:$0xff]
        %v734 = vld [vmem:[#allocation2 + $0x60] sm:$0xff]
        %v735 = vld [vmem:[#allocation2 + $0x68] sm:$0xff]
        %v736 = vld [vmem:[#allocation2 + $0x70] sm:$0xff]
        %v737 = vld [vmem:[#allocation2 + $0x78] sm:$0xff]
        %v738 = vmul.f32 %v722, 0.00390625
        %v739 = vmul.f32 %v723, 0.00390625
        %v740 = vmul.f32 %v724, 0.00390625
        %v741 = vmul.f32 %v725, 0.00390625
        %v742 = vmul.f32 %v726, 0.00390625
        %v743 = vmul.f32 %v727, 0.00390625
        %v744 = vmul.f32 %v728, 0.00390625
        %v745 = vmul.f32 %v729, 0.00390625
        %v746 = vmul.f32 %v730, 0.00390625
        %v747 = vmul.f32 %v731, 0.00390625
        %v748 = vmul.f32 %v732, 0.00390625
        %v749 = vmul.f32 %v733, 0.00390625
        %v750 = vmul.f32 %v734, 0.00390625
        %v751 = vmul.f32 %v735, 0.00390625
        %v752 = vmul.f32 %v736, 0.00390625
        %v753 = vmul.f32 %v737, 0.00390625
        %754 = vst.msk [vmem:[%s236] sm:$0xff] %vm686, %v738
        %755 = vst.msk [vmem:[%s236 + $0x8] sm:$0xff] %vm686, %v739
        %756 = vst.msk [vmem:[%s236 + $0x10] sm:$0xff] %vm686, %v740
        %757 = vst.msk [vmem:[%s236 + $0x18] sm:$0xff] %vm686, %v741
        %758 = vst.msk [vmem:[%s236 + $0x20] sm:$0xff] %vm686, %v742
        %759 = vst.msk [vmem:[%s236 + $0x28] sm:$0xff] %vm686, %v743
        %760 = vst.msk [vmem:[%s236 + $0x30] sm:$0xff] %vm686, %v744
        %761 = vst.msk [vmem:[%s236 + $0x38] sm:$0xff] %vm686, %v745
        %762 = vst.msk [vmem:[%s236 + $0x40] sm:$0xff] %vm686, %v746
        %763 = vst.msk [vmem:[%s236 + $0x48] sm:$0xff] %vm686, %v747
        %764 = vst.msk [vmem:[%s236 + $0x50] sm:$0xff] %vm686, %v748
        %765 = vst.msk [vmem:[%s236 + $0x58] sm:$0xff] %vm686, %v749
        %766 = vst.msk [vmem:[%s236 + $0x60] sm:$0xff] %vm686, %v750
        %767 = vst.msk [vmem:[%s236 + $0x68] sm:$0xff] %vm686, %v751
        %768 = vst.msk [vmem:[%s236 + $0x70] sm:$0xff] %vm686, %v752
        %769 = vst.msk [vmem:[%s236 + $0x78] sm:$0xff] %vm686, %v753
      $region40: #{dgad_forward.2} parent=31 // pred_fallthru
        _
      %p770 = scmp.lt.s32.totalorder %s19, 0
      %s771 = scalar_select %p770, %s19, 0
      %p772 = scmp.lt.s32.totalorder %s20, 1
      %s773 = scalar_select %p772, %s20, 1
      %s774 = smul.addr %s773, 16
      %s775 = smul.addr %s771, 32
      %s776 = sadd.s32 %s774, %s775
      %s777 = smul.addr %s776, 8
      %s778 = scalar_lea.vmem %s3, %s777
      // Predicated region
      $region41: #{dgad_forward.2} parent=31 // pred_check
        %p779 = pneg %p129
      $region42: #{dgad_forward.2} parent=31 // pred_check_branch
        %781 = sbr.rel (%p779) target = $region44
      $region43: #{dgad_forward.2} parent=31 // pred_region
        _
      $region44: #{dgad_forward.2} parent=31 // pred_fallthru
        _
    $region32: #{dgad_forward.2} parent=5 // pred_fallthru
      _
    %p782 = scmp.le.s32.totalorder 2, %s9
    // Predicated region
    $region45: #{dgad_forward.2} parent=5 // pred_check
      %p783 = pneg %p782
    $region46: #{dgad_forward.2} parent=5 // pred_check_branch
      %785 = sbr.rel (%p783) target = $region48
    $region47: #{dgad_forward.2} parent=5 // pred_region
      %s786 = ssub.s32 %s9, 2
      // Predicated region
      $region49: #{dgad_forward.2} parent=47 // pred_check
        %p787 = pneg %p135
      $region50: #{dgad_forward.2} parent=47 // pred_check_branch
        %789 = sbr.rel (%p787) target = $region52
      $region51: #{dgad_forward.2} parent=47 // pred_region
        %p790 = scmp.lt.s32.totalorder %s22, 0
        %s791 = scalar_select %p790, %s22, 0
        %p792 = scmp.lt.s32.totalorder %s23, 1
        %s793 = scalar_select %p792, %s23, 1
        %s794 = smul.addr %s793, 16
        %s795 = smul.addr %s791, 32
        %s796 = sadd.s32 %s794, %s795
        %s797 = smul.addr %s796, 8
        %s798 = scalar_lea.vmem %s3, %s797
      $region52: #{dgad_forward.2} parent=47 // pred_fallthru
        _
    $region48: #{dgad_forward.2} parent=5 // pred_fallthru
      _
  $region6: #{dgad_forward.2} parent=0 // loop_footer
    %s13 = sadd.s32 1, %s9
  $region7: #{dgad_forward.2} parent=0 // loop_footer_branch
    %8 = sbr.rel target = $region3
  $region8: #{dgad_forward.2} parent=0 // loop_exit
    _

// kernel: dgad_forward.3
$region0: #{dgad_forward.3}
  #allocation0 [shape = 'u32[]', space=smem, size = 0x4, offset = 0x4, fixed_abs, tag = 'smem constant byte address 0x4 - core index']
  #allocation1 [shape = 'u32[144,128]{1,0:T(1,128)}', space=vmem, size = 0x12000, scoped, tag = 'internal scratch']
  %s0 = inlined_call_operand.vmem [shape: f32[2,64], index: 0, kind: input, shape index: {}]
  %s1 = inlined_call_operand.vmem [shape: f32[2,64], index: 1, kind: input, shape index: {}]
  %s2 = inlined_call_operand.vmem [shape: bf16[64,1024], index: 2, kind: input, shape index: {}]
  %s3 = inlined_call_operand.vmem [shape: bf16[1024,512], index: 3, kind: input, shape index: {}]
  %s4 = inlined_call_operand.vmem [shape: bf16[512,64], index: 4, kind: input, shape index: {}]
  %s5 = inlined_call_operand.vmem [shape: bf16[64,1024], index: 5, kind: input, shape index: {}]
  %s6 = inlined_call_operand.vmem [shape: bf16[1024,512], index: 6, kind: input, shape index: {}]
  %s7 = inlined_call_operand.vmem [shape: bf16[512,64], index: 7, kind: input, shape index: {}]
  %s8 = inlined_call_operand.vmem [shape: bf16[64,64], index: 8, kind: input, shape index: {}]
  %s9 = inlined_call_operand.vmem [shape: bf16[64,64], index: 9, kind: input, shape index: {}]
  %s10 = inlined_call_operand.vmem [shape: bf16[64,64], index: 10, kind: input, shape index: {}]
  %s11 = inlined_call_operand.vmem [shape: bf16[64,64], index: 11, kind: input, shape index: {}]
  %s12 = inlined_call_operand.vmem [shape: bf16[64,64], index: 12, kind: input, shape index: {}]
  %s13 = inlined_call_operand.vmem [shape: bf16[64,64], index: 13, kind: input, shape index: {}]
  %s14 = inlined_call_operand.vmem [shape: bf16[64,64], index: 14, kind: input, shape index: {}]
  %s15 = inlined_call_operand.vmem [shape: bf16[64,64], index: 15, kind: input, shape index: {}]
  %s16 = inlined_call_operand.vmem [shape: f32[1,64], index: 16, kind: input, shape index: {}]
  %s17 = inlined_call_operand.vmem [shape: f32[3,64], index: 17, kind: input, shape index: {}]
  %s18 = inlined_call_operand.vmem [shape: f32[64,3], index: 18, kind: input, shape index: {}]
  %s19 = inlined_call_operand.hbm [shape: f32[1,4], index: 19, kind: output, shape index: {}]
  %s20 = sld [smem:[#allocation0]]
  $region86: #{dgad_forward.3} parent=0
    _
  %s22 = ssub.s32 1, %s20
  %s23 = scalar_select 0, %s22, %s20
  $region1: #{dgad_forward.3} parent=0
    #allocation2 [shape = 'u8[512]{0}', space=vmem, size = 0x400, scoped, tag = 'output window, operand 0, single buffered']
    #allocation3 [shape = 's32[1]{0}', space=sflag, size = 0x4, scoped, tag = 'scoped memory for dgad_forward.3']
    %24 = vsyncpa [#allocation3], 0
    // Predicated region
    $region2: #{dgad_forward.3} parent=1 // pred_check
      _
    $region3: #{dgad_forward.3} parent=1 // pred_check_branch
      %26 = sbr.rel (0) target = $region5
    $region4: #{dgad_forward.3} parent=1 // pred_region
      _
    $region5: #{dgad_forward.3} parent=1 // pred_fallthru
      _
    // Predicated region
    $region6: #{dgad_forward.3} parent=1 // pred_check
      _
    $region7: #{dgad_forward.3} parent=1 // pred_check_branch
      %28 = sbr.rel (0) target = $region9
    $region8: #{dgad_forward.3} parent=1 // pred_region
      _
    $region9: #{dgad_forward.3} parent=1 // pred_fallthru
      _
    // Predicated region
    $region10: #{dgad_forward.3} parent=1 // pred_check
      _
    $region11: #{dgad_forward.3} parent=1 // pred_check_branch
      %30 = sbr.rel (0) target = $region13
    $region12: #{dgad_forward.3} parent=1 // pred_region
      _
    $region13: #{dgad_forward.3} parent=1 // pred_fallthru
      _
    // Predicated region
    $region14: #{dgad_forward.3} parent=1 // pred_check
      _
    $region15: #{dgad_forward.3} parent=1 // pred_check_branch
      %32 = sbr.rel (0) target = $region17
    $region16: #{dgad_forward.3} parent=1 // pred_region
      _
    $region17: #{dgad_forward.3} parent=1 // pred_fallthru
      _
    // Predicated region
    $region18: #{dgad_forward.3} parent=1 // pred_check
      _
    $region19: #{dgad_forward.3} parent=1 // pred_check_branch
      %34 = sbr.rel (0) target = $region21
    $region20: #{dgad_forward.3} parent=1 // pred_region
      _
    $region21: #{dgad_forward.3} parent=1 // pred_fallthru
      _
    // Predicated region
    $region22: #{dgad_forward.3} parent=1 // pred_check
      _
    $region23: #{dgad_forward.3} parent=1 // pred_check_branch
      %36 = sbr.rel (0) target = $region25
    $region24: #{dgad_forward.3} parent=1 // pred_region
      _
    $region25: #{dgad_forward.3} parent=1 // pred_fallthru
      _
    // Predicated region
    $region26: #{dgad_forward.3} parent=1 // pred_check
      _
    $region27: #{dgad_forward.3} parent=1 // pred_check_branch
      %38 = sbr.rel (0) target = $region29
    $region28: #{dgad_forward.3} parent=1 // pred_region
      _
    $region29: #{dgad_forward.3} parent=1 // pred_fallthru
      _
    // Predicated region
    $region30: #{dgad_forward.3} parent=1 // pred_check
      _
    $region31: #{dgad_forward.3} parent=1 // pred_check_branch
      %40 = sbr.rel (0) target = $region33
    $region32: #{dgad_forward.3} parent=1 // pred_region
      _
    $region33: #{dgad_forward.3} parent=1 // pred_fallthru
      _
    // Predicated region
    $region34: #{dgad_forward.3} parent=1 // pred_check
      _
    $region35: #{dgad_forward.3} parent=1 // pred_check_branch
      %42 = sbr.rel (0) target = $region37
    $region36: #{dgad_forward.3} parent=1 // pred_region
      _
    $region37: #{dgad_forward.3} parent=1 // pred_fallthru
      _
    // Predicated region
    $region38: #{dgad_forward.3} parent=1 // pred_check
      _
    $region39: #{dgad_forward.3} parent=1 // pred_check_branch
      %44 = sbr.rel (0) target = $region41
    $region40: #{dgad_forward.3} parent=1 // pred_region
      _
    $region41: #{dgad_forward.3} parent=1 // pred_fallthru
      _
    // Predicated region
    $region42: #{dgad_forward.3} parent=1 // pred_check
      _
    $region43: #{dgad_forward.3} parent=1 // pred_check_branch
      %46 = sbr.rel (0) target = $region45
    $region44: #{dgad_forward.3} parent=1 // pred_region
      _
    $region45: #{dgad_forward.3} parent=1 // pred_fallthru
      _
    // Predicated region
    $region46: #{dgad_forward.3} parent=1 // pred_check
      _
    $region47: #{dgad_forward.3} parent=1 // pred_check_branch
      %48 = sbr.rel (0) target = $region49
    $region48: #{dgad_forward.3} parent=1 // pred_region
      _
    $region49: #{dgad_forward.3} parent=1 // pred_fallthru
      _
    // Predicated region
    $region50: #{dgad_forward.3} parent=1 // pred_check
      _
    $region51: #{dgad_forward.3} parent=1 // pred_check_branch
      %50 = sbr.rel (0) target = $region53
    $region52: #{dgad_forward.3} parent=1 // pred_region
      _
    $region53: #{dgad_forward.3} parent=1 // pred_fallthru
      _
    // Predicated region
    $region54: #{dgad_forward.3} parent=1 // pred_check
      _
    $region55: #{dgad_forward.3} parent=1 // pred_check_branch
      %52 = sbr.rel (0) target = $region57
    $region56: #{dgad_forward.3} parent=1 // pred_region
      _
    $region57: #{dgad_forward.3} parent=1 // pred_fallthru
      _
    // Predicated region
    $region58: #{dgad_forward.3} parent=1 // pred_check
      _
    $region59: #{dgad_forward.3} parent=1 // pred_check_branch
      %54 = sbr.rel (0) target = $region61
    $region60: #{dgad_forward.3} parent=1 // pred_region
      _
    $region61: #{dgad_forward.3} parent=1 // pred_fallthru
      _
    // Predicated region
    $region62: #{dgad_forward.3} parent=1 // pred_check
      _
    $region63: #{dgad_forward.3} parent=1 // pred_check_branch
      %56 = sbr.rel (0) target = $region65
    $region64: #{dgad_forward.3} parent=1 // pred_region
      _
    $region65: #{dgad_forward.3} parent=1 // pred_fallthru
      _
    // Predicated region
    $region66: #{dgad_forward.3} parent=1 // pred_check
      _
    $region67: #{dgad_forward.3} parent=1 // pred_check_branch
      %58 = sbr.rel (0) target = $region69
    $region68: #{dgad_forward.3} parent=1 // pred_region
      _
    $region69: #{dgad_forward.3} parent=1 // pred_fallthru
      _
    // Predicated region
    $region70: #{dgad_forward.3} parent=1 // pred_check
      _
    $region71: #{dgad_forward.3} parent=1 // pred_check_branch
      %60 = sbr.rel (0) target = $region73
    $region72: #{dgad_forward.3} parent=1 // pred_region
      _
    $region73: #{dgad_forward.3} parent=1 // pred_fallthru
      _
    // Predicated region
    $region74: #{dgad_forward.3} parent=1 // pred_check
      _
    $region75: #{dgad_forward.3} parent=1 // pred_check_branch
      %62 = sbr.rel (0) target = $region77
    $region76: #{dgad_forward.3} parent=1 // pred_region
      _
    $region77: #{dgad_forward.3} parent=1 // pred_fallthru
      _
    %v64 = vld [vmem:[%s0] sm:$0x3]
    %v65 = vld [vmem:[%s1] sm:$0x3]
    %v66 = vld [vmem:[%s2] sm:$0xff]
    %v67 = vld [vmem:[%s2 + $0x8] sm:$0xff]
    %v68 = vld [vmem:[%s2 + $0x10] sm:$0xff]
    %v69 = vld [vmem:[%s2 + $0x18] sm:$0xff]
    %v70 = vld [vmem:[%s2 + $0x20] sm:$0xff]
    %v71 = vld [vmem:[%s2 + $0x28] sm:$0xff]
    %v72 = vld [vmem:[%s2 + $0x30] sm:$0xff]
    %v73 = vld [vmem:[%s2 + $0x38] sm:$0xff]
    %v74 = vld [vmem:[%s2 + $0x40] sm:$0xff]
    %v75 = vld [vmem:[%s2 + $0x48] sm:$0xff]
    %v76 = vld [vmem:[%s2 + $0x50] sm:$0xff]
    %v77 = vld [vmem:[%s2 + $0x58] sm:$0xff]
    %v78 = vld [vmem:[%s2 + $0x60] sm:$0xff]
    %v79 = vld [vmem:[%s2 + $0x68] sm:$0xff]
    %v80 = vld [vmem:[%s2 + $0x70] sm:$0xff]
    %v81 = vld [vmem:[%s2 + $0x78] sm:$0xff]
    %v82 = vld [vmem:[%s2 + $0x80] sm:$0xff]
    %v83 = vld [vmem:[%s2 + $0x88] sm:$0xff]
    %v84 = vld [vmem:[%s2 + $0x90] sm:$0xff]
    %v85 = vld [vmem:[%s2 + $0x98] sm:$0xff]
    %v86 = vld [vmem:[%s2 + $0xa0] sm:$0xff]
    %v87 = vld [vmem:[%s2 + $0xa8] sm:$0xff]
    %v88 = vld [vmem:[%s2 + $0xb0] sm:$0xff]
    %v89 = vld [vmem:[%s2 + $0xb8] sm:$0xff]
    %v90 = vld [vmem:[%s2 + $0xc0] sm:$0xff]
    %v91 = vld [vmem:[%s2 + $0xc8] sm:$0xff]
    %v92 = vld [vmem:[%s2 + $0xd0] sm:$0xff]
    %v93 = vld [vmem:[%s2 + $0xd8] sm:$0xff]
    %v94 = vld [vmem:[%s2 + $0xe0] sm:$0xff]
    %v95 = vld [vmem:[%s2 + $0xe8] sm:$0xff]
    %v96 = vld [vmem:[%s2 + $0xf0] sm:$0xff]
    %v97 = vld [vmem:[%s2 + $0xf8] sm:$0xff]
    %v98 = vld [vmem:[%s3] sm:$0xff]
    %v99 = vld [vmem:[%s3 + $0x8] sm:$0xff]
    %v100 = vld [vmem:[%s3 + $0x10] sm:$0xff]
    %v101 = vld [vmem:[%s3 + $0x18] sm:$0xff]
    %v102 = vld [vmem:[%s3 + $0x20] sm:$0xff]
    %v103 = vld [vmem:[%s3 + $0x28] sm:$0xff]
    %v104 = vld [vmem:[%s3 + $0x30] sm:$0xff]
    %v105 = vld [vmem:[%s3 + $0x38] sm:$0xff]
    %v106 = vld [vmem:[%s3 + $0x40] sm:$0xff]
    %v107 = vld [vmem:[%s3 + $0x48] sm:$0xff]
    %v108 = vld [vmem:[%s3 + $0x50] sm:$0xff]
    %v109 = vld [vmem:[%s3 + $0x58] sm:$0xff]
    %v110 = vld [vmem:[%s3 + $0x60] sm:$0xff]
    %v111 = vld [vmem:[%s3 + $0x68] sm:$0xff]
    %v112 = vld [vmem:[%s3 + $0x70] sm:$0xff]
    %v113 = vld [vmem:[%s3 + $0x78] sm:$0xff]
    %v114 = vld [vmem:[%s3 + $0x80] sm:$0xff]
    %v115 = vld [vmem:[%s3 + $0x88] sm:$0xff]
    %v116 = vld [vmem:[%s3 + $0x90] sm:$0xff]
    %v117 = vld [vmem:[%s3 + $0x98] sm:$0xff]
    %v118 = vld [vmem:[%s3 + $0xa0] sm:$0xff]
    %v119 = vld [vmem:[%s3 + $0xa8] sm:$0xff]
    %v120 = vld [vmem:[%s3 + $0xb0] sm:$0xff]
    %v121 = vld [vmem:[%s3 + $0xb8] sm:$0xff]
    %v122 = vld [vmem:[%s3 + $0xc0] sm:$0xff]
    %v123 = vld [vmem:[%s3 + $0xc8] sm:$0xff]
    %v124 = vld [vmem:[%s3 + $0xd0] sm:$0xff]
    %v125 = vld [vmem:[%s3 + $0xd8] sm:$0xff]
    %v126 = vld [vmem:[%s3 + $0xe0] sm:$0xff]
    %v127 = vld [vmem:[%s3 + $0xe8] sm:$0xff]
    %v128 = vld [vmem:[%s3 + $0xf0] sm:$0xff]
    %v129 = vld [vmem:[%s3 + $0xf8] sm:$0xff]
    %v130 = vld [vmem:[%s3 + $0x100] sm:$0xff]
    %v131 = vld [vmem:[%s3 + $0x108] sm:$0xff]
    %v132 = vld [vmem:[%s3 + $0x110] sm:$0xff]
    %v133 = vld [vmem:[%s3 + $0x118] sm:$0xff]
    %v134 = vld [vmem:[%s3 + $0x120] sm:$0xff]
    %v135 = vld [vmem:[%s3 + $0x128] sm:$0xff]
    %v136 = vld [vmem:[%s3 + $0x130] sm:$0xff]
    %v137 = vld [vmem:[%s3 + $0x138] sm:$0xff]
    %v138 = vld [vmem:[%s3 + $0x140] sm:$0xff]
    %v139 = vld [vmem:[%s3 + $0x148] sm:$0xff]
    %v140 = vld [vmem:[%s3 + $0x150] sm:$0xff]
    %v141 = vld [vmem:[%s3 + $0x158] sm:$0xff]
    %v142 = vld [vmem:[%s3 + $0x160] sm:$0xff]
    %v143 = vld [vmem:[%s3 + $0x168] sm:$0xff]
    %v144 = vld [vmem:[%s3 + $0x170] sm:$0xff]
    %v145 = vld [vmem:[%s3 + $0x178] sm:$0xff]
    %v146 = vld [vmem:[%s3 + $0x180] sm:$0xff]
    %v147 = vld [vmem:[%s3 + $0x188] sm:$0xff]
    %v148 = vld [vmem:[%s3 + $0x190] sm:$0xff]
    %v149 = vld [vmem:[%s3 + $0x198] sm:$0xff]
    %v150 = vld [vmem:[%s3 + $0x1a0] sm:$0xff]
    %v151 = vld [vmem:[%s3 + $0x1a8] sm:$0xff]
    %v152 = vld [vmem:[%s3 + $0x1b0] sm:$0xff]
    %v153 = vld [vmem:[%s3 + $0x1b8] sm:$0xff]
    %v154 = vld [vmem:[%s3 + $0x1c0] sm:$0xff]
    %v155 = vld [vmem:[%s3 + $0x1c8] sm:$0xff]
    %v156 = vld [vmem:[%s3 + $0x1d0] sm:$0xff]
    %v157 = vld [vmem:[%s3 + $0x1d8] sm:$0xff]
    %v158 = vld [vmem:[%s3 + $0x1e0] sm:$0xff]
    %v159 = vld [vmem:[%s3 + $0x1e8] sm:$0xff]
    %v160 = vld [vmem:[%s3 + $0x1f0] sm:$0xff]
    %v161 = vld [vmem:[%s3 + $0x1f8] sm:$0xff]
    %v162 = vld [vmem:[%s3 + $0x200] sm:$0xff]
    %v163 = vld [vmem:[%s3 + $0x208] sm:$0xff]
    %v164 = vld [vmem:[%s3 + $0x210] sm:$0xff]
    %v165 = vld [vmem:[%s3 + $0x218] sm:$0xff]
    %v166 = vld [vmem:[%s3 + $0x220] sm:$0xff]
    %v167 = vld [vmem:[%s3 + $0x228] sm:$0xff]
    %v168 = vld [vmem:[%s3 + $0x230] sm:$0xff]
    %v169 = vld [vmem:[%s3 + $0x238] sm:$0xff]
    %v170 = vld [vmem:[%s3 + $0x240] sm:$0xff]
    %v171 = vld [vmem:[%s3 + $0x248] sm:$0xff]
    %v172 = vld [vmem:[%s3 + $0x250] sm:$0xff]
    %v173 = vld [vmem:[%s3 + $0x258] sm:$0xff]
    %v174 = vld [vmem:[%s3 + $0x260] sm:$0xff]
    %v175 = vld [vmem:[%s3 + $0x268] sm:$0xff]
    %v176 = vld [vmem:[%s3 + $0x270] sm:$0xff]
    %v177 = vld [vmem:[%s3 + $0x278] sm:$0xff]
    %v178 = vld [vmem:[%s3 + $0x280] sm:$0xff]
    %v179 = vld [vmem:[%s3 + $0x288] sm:$0xff]
    %v180 = vld [vmem:[%s3 + $0x290] sm:$0xff]
    %v181 = vld [vmem:[%s3 + $0x298] sm:$0xff]
    %v182 = vld [vmem:[%s3 + $0x2a0] sm:$0xff]
    %v183 = vld [vmem:[%s3 + $0x2a8] sm:$0xff]
    %v184 = vld [vmem:[%s3 + $0x2b0] sm:$0xff]
    %v185 = vld [vmem:[%s3 + $0x2b8] sm:$0xff]
    %v186 = vld [vmem:[%s3 + $0x2c0] sm:$0xff]
    %v187 = vld [vmem:[%s3 + $0x2c8] sm:$0xff]
    %v188 = vld [vmem:[%s3 + $0x2d0] sm:$0xff]
    %v189 = vld [vmem:[%s3 + $0x2d8] sm:$0xff]
    %v190 = vld [vmem:[%s3 + $0x2e0] sm:$0xff]
    %v191 = vld [vmem:[%s3 + $0x2e8] sm:$0xff]
    %v192 = vld [vmem:[%s3 + $0x2f0] sm:$0xff]
    %v193 = vld [vmem:[%s3 + $0x2f8] sm:$0xff]
    %v194 = vld [vmem:[%s3 + $0x300] sm:$0xff]
    %v195 = vld [vmem:[%s3 + $0x308] sm:$0xff]
    %v196 = vld [vmem:[%s3 + $0x310] sm:$0xff]
    %v197 = vld [vmem:[%s3 + $0x318] sm:$0xff]
    %v198 = vld [vmem:[%s3 + $0x320] sm:$0xff]
    %v199 = vld [vmem:[%s3 + $0x328] sm:$0xff]
    %v200 = vld [vmem:[%s3 + $0x330] sm:$0xff]
    %v201 = vld [vmem:[%s3 + $0x338] sm:$0xff]
    %v202 = vld [vmem:[%s3 + $0x340] sm:$0xff]
    %v203 = vld [vmem:[%s3 + $0x348] sm:$0xff]
    %v204 = vld [vmem:[%s3 + $0x350] sm:$0xff]
    %v205 = vld [vmem:[%s3 + $0x358] sm:$0xff]
    %v206 = vld [vmem:[%s3 + $0x360] sm:$0xff]
    %v207 = vld [vmem:[%s3 + $0x368] sm:$0xff]
    %v208 = vld [vmem:[%s3 + $0x370] sm:$0xff]
    %v209 = vld [vmem:[%s3 + $0x378] sm:$0xff]
    %v210 = vld [vmem:[%s3 + $0x380] sm:$0xff]
    %v211 = vld [vmem:[%s3 + $0x388] sm:$0xff]
    %v212 = vld [vmem:[%s3 + $0x390] sm:$0xff]
    %v213 = vld [vmem:[%s3 + $0x398] sm:$0xff]
    %v214 = vld [vmem:[%s3 + $0x3a0] sm:$0xff]
    %v215 = vld [vmem:[%s3 + $0x3a8] sm:$0xff]
    %v216 = vld [vmem:[%s3 + $0x3b0] sm:$0xff]
    %v217 = vld [vmem:[%s3 + $0x3b8] sm:$0xff]
    %v218 = vld [vmem:[%s3 + $0x3c0] sm:$0xff]
    %v219 = vld [vmem:[%s3 + $0x3c8] sm:$0xff]
    %v220 = vld [vmem:[%s3 + $0x3d0] sm:$0xff]
    %v221 = vld [vmem:[%s3 + $0x3d8] sm:$0xff]
    %v222 = vld [vmem:[%s3 + $0x3e0] sm:$0xff]
    %v223 = vld [vmem:[%s3 + $0x3e8] sm:$0xff]
    %v224 = vld [vmem:[%s3 + $0x3f0] sm:$0xff]
    %v225 = vld [vmem:[%s3 + $0x3f8] sm:$0xff]
    %v226 = vld [vmem:[%s3 + $0x400] sm:$0xff]
    %v227 = vld [vmem:[%s3 + $0x408] sm:$0xff]
    %v228 = vld [vmem:[%s3 + $0x410] sm:$0xff]
    %v229 = vld [vmem:[%s3 + $0x418] sm:$0xff]
    %v230 = vld [vmem:[%s3 + $0x420] sm:$0xff]
    %v231 = vld [vmem:[%s3 + $0x428] sm:$0xff]
    %v232 = vld [vmem:[%s3 + $0x430] sm:$0xff]
    %v233 = vld [vmem:[%s3 + $0x438] sm:$0xff]
    %v234 = vld [vmem:[%s3 + $0x440] sm:$0xff]
    %v235 = vld [vmem:[%s3 + $0x448] sm:$0xff]
    %v236 = vld [vmem:[%s3 + $0x450] sm:$0xff]
    %v237 = vld [vmem:[%s3 + $0x458] sm:$0xff]
    %v238 = vld [vmem:[%s3 + $0x460] sm:$0xff]
    %v239 = vld [vmem:[%s3 + $0x468] sm:$0xff]
    %v240 = vld [vmem:[%s3 + $0x470] sm:$0xff]
    %v241 = vld [vmem:[%s3 + $0x478] sm:$0xff]
    %v242 = vld [vmem:[%s3 + $0x480] sm:$0xff]
    %v243 = vld [vmem:[%s3 + $0x488] sm:$0xff]
    %v244 = vld [vmem:[%s3 + $0x490] sm:$0xff]
    %v245 = vld [vmem:[%s3 + $0x498] sm:$0xff]
    %v246 = vld [vmem:[%s3 + $0x4a0] sm:$0xff]
    %v247 = vld [vmem:[%s3 + $0x4a8] sm:$0xff]
    %v248 = vld [vmem:[%s3 + $0x4b0] sm:$0xff]
    %v249 = vld [vmem:[%s3 + $0x4b8] sm:$0xff]
    %v250 = vld [vmem:[%s3 + $0x4c0] sm:$0xff]
    %v251 = vld [vmem:[%s3 + $0x4c8] sm:$0xff]
    %v252 = vld [vmem:[%s3 + $0x4d0] sm:$0xff]
    %v253 = vld [vmem:[%s3 + $0x4d8] sm:$0xff]
    %v254 = vld [vmem:[%s3 + $0x4e0] sm:$0xff]
    %v255 = vld [vmem:[%s3 + $0x4e8] sm:$0xff]
    %v256 = vld [vmem:[%s3 + $0x4f0] sm:$0xff]
    %v257 = vld [vmem:[%s3 + $0x4f8] sm:$0xff]
    %v258 = vld [vmem:[%s3 + $0x500] sm:$0xff]
    %v259 = vld [vmem:[%s3 + $0x508] sm:$0xff]
    %v260 = vld [vmem:[%s3 + $0x510] sm:$0xff]
    %v261 = vld [vmem:[%s3 + $0x518] sm:$0xff]
    %v262 = vld [vmem:[%s3 + $0x520] sm:$0xff]
    %v263 = vld [vmem:[%s3 + $0x528] sm:$0xff]
    %v264 = vld [vmem:[%s3 + $0x530] sm:$0xff]
    %v265 = vld [vmem:[%s3 + $0x538] sm:$0xff]
    %v266 = vld [vmem:[%s3 + $0x540] sm:$0xff]
    %v267 = vld [vmem:[%s3 + $0x548] sm:$0xff]
    %v268 = vld [vmem:[%s3 + $0x550] sm:$0xff]
    %v269 = vld [vmem:[%s3 + $0x558] sm:$0xff]
    %v270 = vld [vmem:[%s3 + $0x560] sm:$0xff]
    %v271 = vld [vmem:[%s3 + $0x568] sm:$0xff]
    %v272 = vld [vmem:[%s3 + $0x570] sm:$0xff]
    %v273 = vld [vmem:[%s3 + $0x578] sm:$0xff]
    %v274 = vld [vmem:[%s3 + $0x580] sm:$0xff]
    %v275 = vld [vmem:[%s3 + $0x588] sm:$0xff]
    %v276 = vld [vmem:[%s3 + $0x590] sm:$0xff]
    %v277 = vld [vmem:[%s3 + $0x598] sm:$0xff]
    %v278 = vld [vmem:[%s3 + $0x5a0] sm:$0xff]
    %v279 = vld [vmem:[%s3 + $0x5a8] sm:$0xff]
    %v280 = vld [vmem:[%s3 + $0x5b0] sm:$0xff]
    %v281 = vld [vmem:[%s3 + $0x5b8] sm:$0xff]
    %v282 = vld [vmem:[%s3 + $0x5c0] sm:$0xff]
    %v283 = vld [vmem:[%s3 + $0x5c8] sm:$0xff]
    %v284 = vld [vmem:[%s3 + $0x5d0] sm:$0xff]
    %v285 = vld [vmem:[%s3 + $0x5d8] sm:$0xff]
    %v286 = vld [vmem:[%s3 + $0x5e0] sm:$0xff]
    %v287 = vld [vmem:[%s3 + $0x5e8] sm:$0xff]
    %v288 = vld [vmem:[%s3 + $0x5f0] sm:$0xff]
    %v289 = vld [vmem:[%s3 + $0x5f8] sm:$0xff]
    %v290 = vld [vmem:[%s3 + $0x600] sm:$0xff]
    %v291 = vld [vmem:[%s3 + $0x608] sm:$0xff]
    %v292 = vld [vmem:[%s3 + $0x610] sm:$0xff]
    %v293 = vld [vmem:[%s3 + $0x618] sm:$0xff]
    %v294 = vld [vmem:[%s3 + $0x620] sm:$0xff]
    %v295 = vld [vmem:[%s3 + $0x628] sm:$0xff]
    %v296 = vld [vmem:[%s3 + $0x630] sm:$0xff]
    %v297 = vld [vmem:[%s3 + $0x638] sm:$0xff]
    %v298 = vld [vmem:[%s3 + $0x640] sm:$0xff]
    %v299 = vld [vmem:[%s3 + $0x648] sm:$0xff]
    %v300 = vld [vmem:[%s3 + $0x650] sm:$0xff]
    %v301 = vld [vmem:[%s3 + $0x658] sm:$0xff]
    %v302 = vld [vmem:[%s3 + $0x660] sm:$0xff]
    %v303 = vld [vmem:[%s3 + $0x668] sm:$0xff]
    %v304 = vld [vmem:[%s3 + $0x670] sm:$0xff]
    %v305 = vld [vmem:[%s3 + $0x678] sm:$0xff]
    %v306 = vld [vmem:[%s3 + $0x680] sm:$0xff]
    %v307 = vld [vmem:[%s3 + $0x688] sm:$0xff]
    %v308 = vld [vmem:[%s3 + $0x690] sm:$0xff]
    %v309 = vld [vmem:[%s3 + $0x698] sm:$0xff]
    %v310 = vld [vmem:[%s3 + $0x6a0] sm:$0xff]
    %v311 = vld [vmem:[%s3 + $0x6a8] sm:$0xff]
    %v312 = vld [vmem:[%s3 + $0x6b0] sm:$0xff]
    %v313 = vld [vmem:[%s3 + $0x6b8] sm:$0xff]
    %v314 = vld [vmem:[%s3 + $0x6c0] sm:$0xff]
    %v315 = vld [vmem:[%s3 + $0x6c8] sm:$0xff]
    %v316 = vld [vmem:[%s3 + $0x6d0] sm:$0xff]
    %v317 = vld [vmem:[%s3 + $0x6d8] sm:$0xff]
    %v318 = vld [vmem:[%s3 + $0x6e0] sm:$0xff]
    %v319 = vld [vmem:[%s3 + $0x6e8] sm:$0xff]
    %v320 = vld [vmem:[%s3 + $0x6f0] sm:$0xff]
    %v321 = vld [vmem:[%s3 + $0x6f8] sm:$0xff]
    %v322 = vld [vmem:[%s3 + $0x700] sm:$0xff]
    %v323 = vld [vmem:[%s3 + $0x708] sm:$0xff]
    %v324 = vld [vmem:[%s3 + $0x710] sm:$0xff]
    %v325 = vld [vmem:[%s3 + $0x718] sm:$0xff]
    %v326 = vld [vmem:[%s3 + $0x720] sm:$0xff]
    %v327 = vld [vmem:[%s3 + $0x728] sm:$0xff]
    %v328 = vld [vmem:[%s3 + $0x730] sm:$0xff]
    %v329 = vld [vmem:[%s3 + $0x738] sm:$0xff]
    %v330 = vld [vmem:[%s3 + $0x740] sm:$0xff]
    %v331 = vld [vmem:[%s3 + $0x748] sm:$0xff]
    %v332 = vld [vmem:[%s3 + $0x750] sm:$0xff]
    %v333 = vld [vmem:[%s3 + $0x758] sm:$0xff]
    %v334 = vld [vmem:[%s3 + $0x760] sm:$0xff]
    %v335 = vld [vmem:[%s3 + $0x768] sm:$0xff]
    %v336 = vld [vmem:[%s3 + $0x770] sm:$0xff]
    %v337 = vld [vmem:[%s3 + $0x778] sm:$0xff]
    %v338 = vld [vmem:[%s3 + $0x780] sm:$0xff]
    %v339 = vld [vmem:[%s3 + $0x788] sm:$0xff]
    %v340 = vld [vmem:[%s3 + $0x790] sm:$0xff]
    %v341 = vld [vmem:[%s3 + $0x798] sm:$0xff]
    %v342 = vld [vmem:[%s3 + $0x7a0] sm:$0xff]
    %v343 = vld [vmem:[%s3 + $0x7a8] sm:$0xff]
    %v344 = vld [vmem:[%s3 + $0x7b0] sm:$0xff]
    %v345 = vld [vmem:[%s3 + $0x7b8] sm:$0xff]
    %v346 = vld [vmem:[%s3 + $0x7c0] sm:$0xff]
    %v347 = vld [vmem:[%s3 + $0x7c8] sm:$0xff]
    %v348 = vld [vmem:[%s3 + $0x7d0] sm:$0xff]
    %v349 = vld [vmem:[%s3 + $0x7d8] sm:$0xff]
    %v350 = vld [vmem:[%s3 + $0x7e0] sm:$0xff]
    %v351 = vld [vmem:[%s3 + $0x7e8] sm:$0xff]
    %v352 = vld [vmem:[%s3 + $0x7f0] sm:$0xff]
    %v353 = vld [vmem:[%s3 + $0x7f8] sm:$0xff]
    %v354 = vld [vmem:[%s4] sm:$0xf]
    %v355 = vld [vmem:[%s4 + $0x4] sm:$0xf]
    %v356 = vld [vmem:[%s4 + $0x8] sm:$0xf]
    %v357 = vld [vmem:[%s4 + $0xc] sm:$0xf]
    %v358 = vld [vmem:[%s4 + $0x10] sm:$0xf]
    %v359 = vld [vmem:[%s4 + $0x14] sm:$0xf]
    %v360 = vld [vmem:[%s4 + $0x18] sm:$0xf]
    %v361 = vld [vmem:[%s4 + $0x1c] sm:$0xf]
    %v362 = vld [vmem:[%s4 + $0x20] sm:$0xf]
    %v363 = vld [vmem:[%s4 + $0x24] sm:$0xf]
    %v364 = vld [vmem:[%s4 + $0x28] sm:$0xf]
    %v365 = vld [vmem:[%s4 + $0x2c] sm:$0xf]
    %v366 = vld [vmem:[%s4 + $0x30] sm:$0xf]
    %v367 = vld [vmem:[%s4 + $0x34] sm:$0xf]
    %v368 = vld [vmem:[%s4 + $0x38] sm:$0xf]
    %v369 = vld [vmem:[%s4 + $0x3c] sm:$0xf]
    %v370 = vld [vmem:[%s4 + $0x40] sm:$0xf]
    %v371 = vld [vmem:[%s4 + $0x44] sm:$0xf]
    %v372 = vld [vmem:[%s4 + $0x48] sm:$0xf]
    %v373 = vld [vmem:[%s4 + $0x4c] sm:$0xf]
    %v374 = vld [vmem:[%s4 + $0x50] sm:$0xf]
    %v375 = vld [vmem:[%s4 + $0x54] sm:$0xf]
    %v376 = vld [vmem:[%s4 + $0x58] sm:$0xf]
    %v377 = vld [vmem:[%s4 + $0x5c] sm:$0xf]
    %v378 = vld [vmem:[%s4 + $0x60] sm:$0xf]
    %v379 = vld [vmem:[%s4 + $0x64] sm:$0xf]
    %v380 = vld [vmem:[%s4 + $0x68] sm:$0xf]
    %v381 = vld [vmem:[%s4 + $0x6c] sm:$0xf]
    %v382 = vld [vmem:[%s4 + $0x70] sm:$0xf]
    %v383 = vld [vmem:[%s4 + $0x74] sm:$0xf]
    %v384 = vld [vmem:[%s4 + $0x78] sm:$0xf]
    %v385 = vld [vmem:[%s4 + $0x7c] sm:$0xf]
    %v386 = vld [vmem:[%s4 + $0x80] sm:$0xf]
    %v387 = vld [vmem:[%s4 + $0x84] sm:$0xf]
    %v388 = vld [vmem:[%s4 + $0x88] sm:$0xf]
    %v389 = vld [vmem:[%s4 + $0x8c] sm:$0xf]
    %v390 = vld [vmem:[%s4 + $0x90] sm:$0xf]
    %v391 = vld [vmem:[%s4 + $0x94] sm:$0xf]
    %v392 = vld [vmem:[%s4 + $0x98] sm:$0xf]
    %v393 = vld [vmem:[%s4 + $0x9c] sm:$0xf]
    %v394 = vld [vmem:[%s4 + $0xa0] sm:$0xf]
    %v395 = vld [vmem:[%s4 + $0xa4] sm:$0xf]
    %v396 = vld [vmem:[%s4 + $0xa8] sm:$0xf]
    %v397 = vld [vmem:[%s4 + $0xac] sm:$0xf]
    %v398 = vld [vmem:[%s4 + $0xb0] sm:$0xf]
    %v399 = vld [vmem:[%s4 + $0xb4] sm:$0xf]
    %v400 = vld [vmem:[%s4 + $0xb8] sm:$0xf]
    %v401 = vld [vmem:[%s4 + $0xbc] sm:$0xf]
    %v402 = vld [vmem:[%s4 + $0xc0] sm:$0xf]
    %v403 = vld [vmem:[%s4 + $0xc4] sm:$0xf]
    %v404 = vld [vmem:[%s4 + $0xc8] sm:$0xf]
    %v405 = vld [vmem:[%s4 + $0xcc] sm:$0xf]
    %v406 = vld [vmem:[%s4 + $0xd0] sm:$0xf]
    %v407 = vld [vmem:[%s4 + $0xd4] sm:$0xf]
    %v408 = vld [vmem:[%s4 + $0xd8] sm:$0xf]
    %v409 = vld [vmem:[%s4 + $0xdc] sm:$0xf]
    %v410 = vld [vmem:[%s4 + $0xe0] sm:$0xf]
    %v411 = vld [vmem:[%s4 + $0xe4] sm:$0xf]
    %v412 = vld [vmem:[%s4 + $0xe8] sm:$0xf]
    %v413 = vld [vmem:[%s4 + $0xec] sm:$0xf]
    %v414 = vld [vmem:[%s4 + $0xf0] sm:$0xf]
    %v415 = vld [vmem:[%s4 + $0xf4] sm:$0xf]
    %v416 = vld [vmem:[%s4 + $0xf8] sm:$0xf]
    %v417 = vld [vmem:[%s4 + $0xfc] sm:$0xf]
    %v418 = vld [vmem:[%s5] sm:$0xff]
    %v419 = vld [vmem:[%s5 + $0x8] sm:$0xff]
    %v420 = vld [vmem:[%s5 + $0x10] sm:$0xff]
    %v421 = vld [vmem:[%s5 + $0x18] sm:$0xff]
    %v422 = vld [vmem:[%s5 + $0x20] sm:$0xff]
    %v423 = vld [vmem:[%s5 + $0x28] sm:$0xff]
    %v424 = vld [vmem:[%s5 + $0x30] sm:$0xff]
    %v425 = vld [vmem:[%s5 + $0x38] sm:$0xff]
    %v426 = vld [vmem:[%s5 + $0x40] sm:$0xff]
    %v427 = vld [vmem:[%s5 + $0x48] sm:$0xff]
    %v428 = vld [vmem:[%s5 + $0x50] sm:$0xff]
    %v429 = vld [vmem:[%s5 + $0x58] sm:$0xff]
    %v430 = vld [vmem:[%s5 + $0x60] sm:$0xff]
    %v431 = vld [vmem:[%s5 + $0x68] sm:$0xff]
    %v432 = vld [vmem:[%s5 + $0x70] sm:$0xff]
    %v433 = vld [vmem:[%s5 + $0x78] sm:$0xff]
    %v434 = vld [vmem:[%s5 + $0x80] sm:$0xff]
    %v435 = vld [vmem:[%s5 + $0x88] sm:$0xff]
    %v436 = vld [vmem:[%s5 + $0x90] sm:$0xff]
    %v437 = vld [vmem:[%s5 + $0x98] sm:$0xff]
    %v438 = vld [vmem:[%s5 + $0xa0] sm:$0xff]
    %v439 = vld [vmem:[%s5 + $0xa8] sm:$0xff]
    %v440 = vld [vmem:[%s5 + $0xb0] sm:$0xff]
    %v441 = vld [vmem:[%s5 + $0xb8] sm:$0xff]
    %v442 = vld [vmem:[%s5 + $0xc0] sm:$0xff]
    %v443 = vld [vmem:[%s5 + $0xc8] sm:$0xff]
    %v444 = vld [vmem:[%s5 + $0xd0] sm:$0xff]
    %v445 = vld [vmem:[%s5 + $0xd8] sm:$0xff]
    %v446 = vld [vmem:[%s5 + $0xe0] sm:$0xff]
    %v447 = vld [vmem:[%s5 + $0xe8] sm:$0xff]
    %v448 = vld [vmem:[%s5 + $0xf0] sm:$0xff]
    %v449 = vld [vmem:[%s5 + $0xf8] sm:$0xff]
    %v450 = vld [vmem:[%s6] sm:$0xff]
    %v451 = vld [vmem:[%s6 + $0x8] sm:$0xff]
    %v452 = vld [vmem:[%s6 + $0x10] sm:$0xff]
    %v453 = vld [vmem:[%s6 + $0x18] sm:$0xff]
    %v454 = vld [vmem:[%s6 + $0x20] sm:$0xff]
    %v455 = vld [vmem:[%s6 + $0x28] sm:$0xff]
    %v456 = vld [vmem:[%s6 + $0x30] sm:$0xff]
    %v457 = vld [vmem:[%s6 + $0x38] sm:$0xff]
    %v458 = vld [vmem:[%s6 + $0x40] sm:$0xff]
    %v459 = vld [vmem:[%s6 + $0x48] sm:$0xff]
    %v460 = vld [vmem:[%s6 + $0x50] sm:$0xff]
    %v461 = vld [vmem:[%s6 + $0x58] sm:$0xff]
    %v462 = vld [vmem:[%s6 + $0x60] sm:$0xff]
    %v463 = vld [vmem:[%s6 + $0x68] sm:$0xff]
    %v464 = vld [vmem:[%s6 + $0x70] sm:$0xff]
    %v465 = vld [vmem:[%s6 + $0x78] sm:$0xff]
    %v466 = vld [vmem:[%s6 + $0x80] sm:$0xff]
    %v467 = vld [vmem:[%s6 + $0x88] sm:$0xff]
    %v468 = vld [vmem:[%s6 + $0x90] sm:$0xff]
    %v469 = vld [vmem:[%s6 + $0x98] sm:$0xff]
    %v470 = vld [vmem:[%s6 + $0xa0] sm:$0xff]
    %v471 = vld [vmem:[%s6 + $0xa8] sm:$0xff]
    %v472 = vld [vmem:[%s6 + $0xb0] sm:$0xff]
    %v473 = vld [vmem:[%s6 + $0xb8] sm:$0xff]
    %v474 = vld [vmem:[%s6 + $0xc0] sm:$0xff]
    %v475 = vld [vmem:[%s6 + $0xc8] sm:$0xff]
    %v476 = vld [vmem:[%s6 + $0xd0] sm:$0xff]
    %v477 = vld [vmem:[%s6 + $0xd8] sm:$0xff]
    %v478 = vld [vmem:[%s6 + $0xe0] sm:$0xff]
    %v479 = vld [vmem:[%s6 + $0xe8] sm:$0xff]
    %v480 = vld [vmem:[%s6 + $0xf0] sm:$0xff]
    %v481 = vld [vmem:[%s6 + $0xf8] sm:$0xff]
    %v482 = vld [vmem:[%s6 + $0x100] sm:$0xff]
    %v483 = vld [vmem:[%s6 + $0x108] sm:$0xff]
    %v484 = vld [vmem:[%s6 + $0x110] sm:$0xff]
    %v485 = vld [vmem:[%s6 + $0x118] sm:$0xff]
    %v486 = vld [vmem:[%s6 + $0x120] sm:$0xff]
    %v487 = vld [vmem:[%s6 + $0x128] sm:$0xff]
    %v488 = vld [vmem:[%s6 + $0x130] sm:$0xff]
    %v489 = vld [vmem:[%s6 + $0x138] sm:$0xff]
    %v490 = vld [vmem:[%s6 + $0x140] sm:$0xff]
    %v491 = vld [vmem:[%s6 + $0x148] sm:$0xff]
    %v492 = vld [vmem:[%s6 + $0x150] sm:$0xff]
    %v493 = vld [vmem:[%s6 + $0x158] sm:$0xff]
    %v494 = vld [vmem:[%s6 + $0x160] sm:$0xff]
    %v495 = vld [vmem:[%s6 + $0x168] sm:$0xff]
    %v496 = vld [vmem:[%s6 + $0x170] sm:$0xff]
    %v497 = vld [vmem:[%s6 + $0x178] sm:$0xff]
    %v498 = vld [vmem:[%s6 + $0x180] sm:$0xff]
    %v499 = vld [vmem:[%s6 + $0x188] sm:$0xff]
    %v500 = vld [vmem:[%s6 + $0x190] sm:$0xff]
    %v501 = vld [vmem:[%s6 + $0x198] sm:$0xff]
    %v502 = vld [vmem:[%s6 + $0x1a0] sm:$0xff]
    %v503 = vld [vmem:[%s6 + $0x1a8] sm:$0xff]
    %v504 = vld [vmem:[%s6 + $0x1b0] sm:$0xff]
    %v505 = vld [vmem:[%s6 + $0x1b8] sm:$0xff]
    %v506 = vld [vmem:[%s6 + $0x1c0] sm:$0xff]
    %v507 = vld [vmem:[%s6 + $0x1c8] sm:$0xff]
    %v508 = vld [vmem:[%s6 + $0x1d0] sm:$0xff]
    %v509 = vld [vmem:[%s6 + $0x1d8] sm:$0xff]
    %v510 = vld [vmem:[%s6 + $0x1e0] sm:$0xff]
    %v511 = vld [vmem:[%s6 + $0x1e8] sm:$0xff]
    %v512 = vld [vmem:[%s6 + $0x1f0] sm:$0xff]
    %v513 = vld [vmem:[%s6 + $0x1f8] sm:$0xff]
    %v514 = vld [vmem:[%s6 + $0x200] sm:$0xff]
    %v515 = vld [vmem:[%s6 + $0x208] sm:$0xff]
    %v516 = vld [vmem:[%s6 + $0x210] sm:$0xff]
    %v517 = vld [vmem:[%s6 + $0x218] sm:$0xff]
    %v518 = vld [vmem:[%s6 + $0x220] sm:$0xff]
    %v519 = vld [vmem:[%s6 + $0x228] sm:$0xff]
    %v520 = vld [vmem:[%s6 + $0x230] sm:$0xff]
    %v521 = vld [vmem:[%s6 + $0x238] sm:$0xff]
    %v522 = vld [vmem:[%s6 + $0x240] sm:$0xff]
    %v523 = vld [vmem:[%s6 + $0x248] sm:$0xff]
    %v524 = vld [vmem:[%s6 + $0x250] sm:$0xff]
    %v525 = vld [vmem:[%s6 + $0x258] sm:$0xff]
    %v526 = vld [vmem:[%s6 + $0x260] sm:$0xff]
    %v527 = vld [vmem:[%s6 + $0x268] sm:$0xff]
    %v528 = vld [vmem:[%s6 + $0x270] sm:$0xff]
    %v529 = vld [vmem:[%s6 + $0x278] sm:$0xff]
    %v530 = vld [vmem:[%s6 + $0x280] sm:$0xff]
    %v531 = vld [vmem:[%s6 + $0x288] sm:$0xff]
    %v532 = vld [vmem:[%s6 + $0x290] sm:$0xff]
    %v533 = vld [vmem:[%s6 + $0x298] sm:$0xff]
    %v534 = vld [vmem:[%s6 + $0x2a0] sm:$0xff]
    %v535 = vld [vmem:[%s6 + $0x2a8] sm:$0xff]
    %v536 = vld [vmem:[%s6 + $0x2b0] sm:$0xff]
    %v537 = vld [vmem:[%s6 + $0x2b8] sm:$0xff]
    %v538 = vld [vmem:[%s6 + $0x2c0] sm:$0xff]
    %v539 = vld [vmem:[%s6 + $0x2c8] sm:$0xff]
    %v540 = vld [vmem:[%s6 + $0x2d0] sm:$0xff]
    %v541 = vld [vmem:[%s6 + $0x2d8] sm:$0xff]
    %v542 = vld [vmem:[%s6 + $0x2e0] sm:$0xff]
    %v543 = vld [vmem:[%s6 + $0x2e8] sm:$0xff]
    %v544 = vld [vmem:[%s6 + $0x2f0] sm:$0xff]
    %v545 = vld [vmem:[%s6 + $0x2f8] sm:$0xff]
    %v546 = vld [vmem:[%s6 + $0x300] sm:$0xff]
    %v547 = vld [vmem:[%s6 + $0x308] sm:$0xff]
    %v548 = vld [vmem:[%s6 + $0x310] sm:$0xff]
    %v549 = vld [vmem:[%s6 + $0x318] sm:$0xff]
    %v550 = vld [vmem:[%s6 + $0x320] sm:$0xff]
    %v551 = vld [vmem:[%s6 + $0x328] sm:$0xff]
    %v552 = vld [vmem:[%s6 + $0x330] sm:$0xff]
    %v553 = vld [vmem:[%s6 + $0x338] sm:$0xff]
    %v554 = vld [vmem:[%s6 + $0x340] sm:$0xff]
    %v555 = vld [vmem:[%s6 + $0x348] sm:$0xff]
    %v556 = vld [vmem:[%s6 + $0x350] sm:$0xff]
    %v557 = vld [vmem:[%s6 + $0x358] sm:$0xff]
    %v558 = vld [vmem:[%s6 + $0x360] sm:$0xff]
    %v559 = vld [vmem:[%s6 + $0x368] sm:$0xff]
    %v560 = vld [vmem:[%s6 + $0x370] sm:$0xff]
    %v561 = vld [vmem:[%s6 + $0x378] sm:$0xff]
    %v562 = vld [vmem:[%s6 + $0x380] sm:$0xff]
    %v563 = vld [vmem:[%s6 + $0x388] sm:$0xff]
    %v564 = vld [vmem:[%s6 + $0x390] sm:$0xff]
    %v565 = vld [vmem:[%s6 + $0x398] sm:$0xff]
    %v566 = vld [vmem:[%s6 + $0x3a0] sm:$0xff]
    %v567 = vld [vmem:[%s6 + $0x3a8] sm:$0xff]
    %v568 = vld [vmem:[%s6 + $0x3b0] sm:$0xff]
    %v569 = vld [vmem:[%s6 + $0x3b8] sm:$0xff]
    %v570 = vld [vmem:[%s6 + $0x3c0] sm:$0xff]
    %v571 = vld [vmem:[%s6 + $0x3c8] sm:$0xff]
    %v572 = vld [vmem:[%s6 + $0x3d0] sm:$0xff]
    %v573 = vld [vmem:[%s6 + $0x3d8] sm:$0xff]
    %v574 = vld [vmem:[%s6 + $0x3e0] sm:$0xff]
    %v575 = vld [vmem:[%s6 + $0x3e8] sm:$0xff]
    %v576 = vld [vmem:[%s6 + $0x3f0] sm:$0xff]
    %v577 = vld [vmem:[%s6 + $0x3f8] sm:$0xff]
    %v578 = vld [vmem:[%s6 + $0x400] sm:$0xff]
    %v579 = vld [vmem:[%s6 + $0x408] sm:$0xff]
    %v580 = vld [vmem:[%s6 + $0x410] sm:$0xff]
    %v581 = vld [vmem:[%s6 + $0x418] sm:$0xff]
    %v582 = vld [vmem:[%s6 + $0x420] sm:$0xff]
    %v583 = vld [vmem:[%s6 + $0x428] sm:$0xff]
    %v584 = vld [vmem:[%s6 + $0x430] sm:$0xff]
    %v585 = vld [vmem:[%s6 + $0x438] sm:$0xff]
    %v586 = vld [vmem:[%s6 + $0x440] sm:$0xff]
    %v587 = vld [vmem:[%s6 + $0x448] sm:$0xff]
    %v588 = vld [vmem:[%s6 + $0x450] sm:$0xff]
    %v589 = vld [vmem:[%s6 + $0x458] sm:$0xff]
    %v590 = vld [vmem:[%s6 + $0x460] sm:$0xff]
    %v591 = vld [vmem:[%s6 + $0x468] sm:$0xff]
    %v592 = vld [vmem:[%s6 + $0x470] sm:$0xff]
    %v593 = vld [vmem:[%s6 + $0x478] sm:$0xff]
    %v594 = vld [vmem:[%s6 + $0x480] sm:$0xff]
    %v595 = vld [vmem:[%s6 + $0x488] sm:$0xff]
    %v596 = vld [vmem:[%s6 + $0x490] sm:$0xff]
    %v597 = vld [vmem:[%s6 + $0x498] sm:$0xff]
    %v598 = vld [vmem:[%s6 + $0x4a0] sm:$0xff]
    %v599 = vld [vmem:[%s6 + $0x4a8] sm:$0xff]
    %v600 = vld [vmem:[%s6 + $0x4b0] sm:$0xff]
    %v601 = vld [vmem:[%s6 + $0x4b8] sm:$0xff]
    %v602 = vld [vmem:[%s6 + $0x4c0] sm:$0xff]
    %v603 = vld [vmem:[%s6 + $0x4c8] sm:$0xff]
    %v604 = vld [vmem:[%s6 + $0x4d0] sm:$0xff]
    %v605 = vld [vmem:[%s6 + $0x4d8] sm:$0xff]
    %v606 = vld [vmem:[%s6 + $0x4e0] sm:$0xff]
    %v607 = vld [vmem:[%s6 + $0x4e8] sm:$0xff]
    %v608 = vld [vmem:[%s6 + $0x4f0] sm:$0xff]
    %v609 = vld [vmem:[%s6 + $0x4f8] sm:$0xff]
    %v610 = vld [vmem:[%s6 + $0x500] sm:$0xff]
    %v611 = vld [vmem:[%s6 + $0x508] sm:$0xff]
    %v612 = vld [vmem:[%s6 + $0x510] sm:$0xff]
    %v613 = vld [vmem:[%s6 + $0x518] sm:$0xff]
    %v614 = vld [vmem:[%s6 + $0x520] sm:$0xff]
    %v615 = vld [vmem:[%s6 + $0x528] sm:$0xff]
    %v616 = vld [vmem:[%s6 + $0x530] sm:$0xff]
    %v617 = vld [vmem:[%s6 + $0x538] sm:$0xff]
    %v618 = vld [vmem:[%s6 + $0x540] sm:$0xff]
    %v619 = vld [vmem:[%s6 + $0x548] sm:$0xff]
    %v620 = vld [vmem:[%s6 + $0x550] sm:$0xff]
    %v621 = vld [vmem:[%s6 + $0x558] sm:$0xff]
    %v622 = vld [vmem:[%s6 + $0x560] sm:$0xff]
    %v623 = vld [vmem:[%s6 + $0x568] sm:$0xff]
    %v624 = vld [vmem:[%s6 + $0x570] sm:$0xff]
    %v625 = vld [vmem:[%s6 + $0x578] sm:$0xff]
    %v626 = vld [vmem:[%s6 + $0x580] sm:$0xff]
    %v627 = vld [vmem:[%s6 + $0x588] sm:$0xff]
    %v628 = vld [vmem:[%s6 + $0x590] sm:$0xff]
    %v629 = vld [vmem:[%s6 + $0x598] sm:$0xff]
    %v630 = vld [vmem:[%s6 + $0x5a0] sm:$0xff]
    %v631 = vld [vmem:[%s6 + $0x5a8] sm:$0xff]
    %v632 = vld [vmem:[%s6 + $0x5b0] sm:$0xff]
    %v633 = vld [vmem:[%s6 + $0x5b8] sm:$0xff]
    %v634 = vld [vmem:[%s6 + $0x5c0] sm:$0xff]
    %v635 = vld [vmem:[%s6 + $0x5c8] sm:$0xff]
    %v636 = vld [vmem:[%s6 + $0x5d0] sm:$0xff]
    %v637 = vld [vmem:[%s6 + $0x5d8] sm:$0xff]
    %v638 = vld [vmem:[%s6 + $0x5e0] sm:$0xff]
    %v639 = vld [vmem:[%s6 + $0x5e8] sm:$0xff]
    %v640 = vld [vmem:[%s6 + $0x5f0] sm:$0xff]
    %v641 = vld [vmem:[%s6 + $0x5f8] sm:$0xff]
    %v642 = vld [vmem:[%s6 + $0x600] sm:$0xff]
    %v643 = vld [vmem:[%s6 + $0x608] sm:$0xff]
    %v644 = vld [vmem:[%s6 + $0x610] sm:$0xff]
    %v645 = vld [vmem:[%s6 + $0x618] sm:$0xff]
    %v646 = vld [vmem:[%s6 + $0x620] sm:$0xff]
    %v647 = vld [vmem:[%s6 + $0x628] sm:$0xff]
    %v648 = vld [vmem:[%s6 + $0x630] sm:$0xff]
    %v649 = vld [vmem:[%s6 + $0x638] sm:$0xff]
    %v650 = vld [vmem:[%s6 + $0x640] sm:$0xff]
    %v651 = vld [vmem:[%s6 + $0x648] sm:$0xff]
    %v652 = vld [vmem:[%s6 + $0x650] sm:$0xff]
    %v653 = vld [vmem:[%s6 + $0x658] sm:$0xff]
    %v654 = vld [vmem:[%s6 + $0x660] sm:$0xff]
    %v655 = vld [vmem:[%s6 + $0x668] sm:$0xff]
    %v656 = vld [vmem:[%s6 + $0x670] sm:$0xff]
    %v657 = vld [vmem:[%s6 + $0x678] sm:$0xff]
    %v658 = vld [vmem:[%s6 + $0x680] sm:$0xff]
    %v659 = vld [vmem:[%s6 + $0x688] sm:$0xff]
    %v660 = vld [vmem:[%s6 + $0x690] sm:$0xff]
    %v661 = vld [vmem:[%s6 + $0x698] sm:$0xff]
    %v662 = vld [vmem:[%s6 + $0x6a0] sm:$0xff]
    %v663 = vld [vmem:[%s6 + $0x6a8] sm:$0xff]
    %v664 = vld [vmem:[%s6 + $0x6b0] sm:$0xff]
    %v665 = vld [vmem:[%s6 + $0x6b8] sm:$0xff]
    %v666 = vld [vmem:[%s6 + $0x6c0] sm:$0xff]
    %v667 = vld [vmem:[%s6 + $0x6c8] sm:$0xff]
    %v668 = vld [vmem:[%s6 + $0x6d0] sm:$0xff]
    %v669 = vld [vmem:[%s6 + $0x6d8] sm:$0xff]
    %v670 = vld [vmem:[%s6 + $0x6e0] sm:$0xff]
    %v671 = vld [vmem:[%s6 + $0x6e8] sm:$0xff]
    %v672 = vld [vmem:[%s6 + $0x6f0] sm:$0xff]
    %v673 = vld [vmem:[%s6 + $0x6f8] sm:$0xff]
    %v674 = vld [vmem:[%s6 + $0x700] sm:$0xff]
    %v675 = vld [vmem:[%s6 + $0x708] sm:$0xff]
    %v676 = vld [vmem:[%s6 + $0x710] sm:$0xff]
    %v677 = vld [vmem:[%s6 + $0x718] sm:$0xff]
    %v678 = vld [vmem:[%s6 + $0x720] sm:$0xff]
    %v679 = vld [vmem:[%s6 + $0x728] sm:$0xff]
    %v680 = vld [vmem:[%s6 + $0x730] sm:$0xff]
    %v681 = vld [vmem:[%s6 + $0x738] sm:$0xff]
    %v682 = vld [vmem:[%s6 + $0x740] sm:$0xff]
    %v683 = vld [vmem:[%s6 + $0x748] sm:$0xff]
    %v684 = vld [vmem:[%s6 + $0x750] sm:$0xff]
    %v685 = vld [vmem:[%s6 + $0x758] sm:$0xff]
    %v686 = vld [vmem:[%s6 + $0x760] sm:$0xff]
    %v687 = vld [vmem:[%s6 + $0x768] sm:$0xff]
    %v688 = vld [vmem:[%s6 + $0x770] sm:$0xff]
    %v689 = vld [vmem:[%s6 + $0x778] sm:$0xff]
    %v690 = vld [vmem:[%s6 + $0x780] sm:$0xff]
    %v691 = vld [vmem:[%s6 + $0x788] sm:$0xff]
    %v692 = vld [vmem:[%s6 + $0x790] sm:$0xff]
    %v693 = vld [vmem:[%s6 + $0x798] sm:$0xff]
    %v694 = vld [vmem:[%s6 + $0x7a0] sm:$0xff]
    %v695 = vld [vmem:[%s6 + $0x7a8] sm:$0xff]
    %v696 = vld [vmem:[%s6 + $0x7b0] sm:$0xff]
    %v697 = vld [vmem:[%s6 + $0x7b8] sm:$0xff]
    %v698 = vld [vmem:[%s6 + $0x7c0] sm:$0xff]
    %v699 = vld [vmem:[%s6 + $0x7c8] sm:$0xff]
    %v700 = vld [vmem:[%s6 + $0x7d0] sm:$0xff]
    %v701 = vld [vmem:[%s6 + $0x7d8] sm:$0xff]
    %v702 = vld [vmem:[%s6 + $0x7e0] sm:$0xff]
    %v703 = vld [vmem:[%s6 + $0x7e8] sm:$0xff]
    %v704 = vld [vmem:[%s6 + $0x7f0] sm:$0xff]
    %v705 = vld [vmem:[%s6 + $0x7f8] sm:$0xff]
    %v706 = vld [vmem:[%s7] sm:$0xf]
    %v707 = vld [vmem:[%s7 + $0x4] sm:$0xf]
    %v708 = vld [vmem:[%s7 + $0x8] sm:$0xf]
    %v709 = vld [vmem:[%s7 + $0xc] sm:$0xf]
    %v710 = vld [vmem:[%s7 + $0x10] sm:$0xf]
    %v711 = vld [vmem:[%s7 + $0x14] sm:$0xf]
    %v712 = vld [vmem:[%s7 + $0x18] sm:$0xf]
    %v713 = vld [vmem:[%s7 + $0x1c] sm:$0xf]
    %v714 = vld [vmem:[%s7 + $0x20] sm:$0xf]
    %v715 = vld [vmem:[%s7 + $0x24] sm:$0xf]
    %v716 = vld [vmem:[%s7 + $0x28] sm:$0xf]
    %v717 = vld [vmem:[%s7 + $0x2c] sm:$0xf]
    %v718 = vld [vmem:[%s7 + $0x30] sm:$0xf]
    %v719 = vld [vmem:[%s7 + $0x34] sm:$0xf]
    %v720 = vld [vmem:[%s7 + $0x38] sm:$0xf]
    %v721 = vld [vmem:[%s7 + $0x3c] sm:$0xf]
    %v722 = vld [vmem:[%s7 + $0x40] sm:$0xf]
    %v723 = vld [vmem:[%s7 + $0x44] sm:$0xf]
    %v724 = vld [vmem:[%s7 + $0x48] sm:$0xf]
    %v725 = vld [vmem:[%s7 + $0x4c] sm:$0xf]
    %v726 = vld [vmem:[%s7 + $0x50] sm:$0xf]
    %v727 = vld [vmem:[%s7 + $0x54] sm:$0xf]
    %v728 = vld [vmem:[%s7 + $0x58] sm:$0xf]
    %v729 = vld [vmem:[%s7 + $0x5c] sm:$0xf]
    %v730 = vld [vmem:[%s7 + $0x60] sm:$0xf]
    %v731 = vld [vmem:[%s7 + $0x64] sm:$0xf]
    %v732 = vld [vmem:[%s7 + $0x68] sm:$0xf]
    %v733 = vld [vmem:[%s7 + $0x6c] sm:$0xf]
    %v734 = vld [vmem:[%s7 + $0x70] sm:$0xf]
    %v735 = vld [vmem:[%s7 + $0x74] sm:$0xf]
    %v736 = vld [vmem:[%s7 + $0x78] sm:$0xf]
    %v737 = vld [vmem:[%s7 + $0x7c] sm:$0xf]
    %v738 = vld [vmem:[%s7 + $0x80] sm:$0xf]
    %v739 = vld [vmem:[%s7 + $0x84] sm:$0xf]
    %v740 = vld [vmem:[%s7 + $0x88] sm:$0xf]
    %v741 = vld [vmem:[%s7 + $0x8c] sm:$0xf]
    %v742 = vld [vmem:[%s7 + $0x90] sm:$0xf]
    %v743 = vld [vmem:[%s7 + $0x94] sm:$0xf]
    %v744 = vld [vmem:[%s7 + $0x98] sm:$0xf]
    %v745 = vld [vmem:[%s7 + $0x9c] sm:$0xf]
    %v746 = vld [vmem:[%s7 + $0xa0] sm:$0xf]
    %v747 = vld [vmem:[%s7 + $0xa4] sm:$0xf]
    %v748 = vld [vmem:[%s7 + $0xa8] sm:$0xf]
    %v749 = vld [vmem:[%s7 + $0xac] sm:$0xf]
    %v750 = vld [vmem:[%s7 + $0xb0] sm:$0xf]
    %v751 = vld [vmem:[%s7 + $0xb4] sm:$0xf]
    %v752 = vld [vmem:[%s7 + $0xb8] sm:$0xf]
    %v753 = vld [vmem:[%s7 + $0xbc] sm:$0xf]
    %v754 = vld [vmem:[%s7 + $0xc0] sm:$0xf]
    %v755 = vld [vmem:[%s7 + $0xc4] sm:$0xf]
    %v756 = vld [vmem:[%s7 + $0xc8] sm:$0xf]
    %v757 = vld [vmem:[%s7 + $0xcc] sm:$0xf]
    %v758 = vld [vmem:[%s7 + $0xd0] sm:$0xf]
    %v759 = vld [vmem:[%s7 + $0xd4] sm:$0xf]
    %v760 = vld [vmem:[%s7 + $0xd8] sm:$0xf]
    %v761 = vld [vmem:[%s7 + $0xdc] sm:$0xf]
    %v762 = vld [vmem:[%s7 + $0xe0] sm:$0xf]
    %v763 = vld [vmem:[%s7 + $0xe4] sm:$0xf]
    %v764 = vld [vmem:[%s7 + $0xe8] sm:$0xf]
    %v765 = vld [vmem:[%s7 + $0xec] sm:$0xf]
    %v766 = vld [vmem:[%s7 + $0xf0] sm:$0xf]
    %v767 = vld [vmem:[%s7 + $0xf4] sm:$0xf]
    %v768 = vld [vmem:[%s7 + $0xf8] sm:$0xf]
    %v769 = vld [vmem:[%s7 + $0xfc] sm:$0xf]
    %v770 = vld [vmem:[%s8] sm:$0xf]
    %v771 = vld [vmem:[%s8 + $0x4] sm:$0xf]
    %v772 = vld [vmem:[%s8 + $0x8] sm:$0xf]
    %v773 = vld [vmem:[%s8 + $0xc] sm:$0xf]
    %v774 = vld [vmem:[%s8 + $0x10] sm:$0xf]
    %v775 = vld [vmem:[%s8 + $0x14] sm:$0xf]
    %v776 = vld [vmem:[%s8 + $0x18] sm:$0xf]
    %v777 = vld [vmem:[%s8 + $0x1c] sm:$0xf]
    %v778 = vld [vmem:[%s9] sm:$0xf]
    %v779 = vld [vmem:[%s9 + $0x4] sm:$0xf]
    %v780 = vld [vmem:[%s9 + $0x8] sm:$0xf]
    %v781 = vld [vmem:[%s9 + $0xc] sm:$0xf]
    %v782 = vld [vmem:[%s9 + $0x10] sm:$0xf]
    %v783 = vld [vmem:[%s9 + $0x14] sm:$0xf]
    %v784 = vld [vmem:[%s9 + $0x18] sm:$0xf]
    %v785 = vld [vmem:[%s9 + $0x1c] sm:$0xf]
    %v786 = vld [vmem:[%s10] sm:$0xf]
    %v787 = vld [vmem:[%s10 + $0x4] sm:$0xf]
    %v788 = vld [vmem:[%s10 + $0x8] sm:$0xf]
    %v789 = vld [vmem:[%s10 + $0xc] sm:$0xf]
    %v790 = vld [vmem:[%s10 + $0x10] sm:$0xf]
    %v791 = vld [vmem:[%s10 + $0x14] sm:$0xf]
    %v792 = vld [vmem:[%s10 + $0x18] sm:$0xf]
    %v793 = vld [vmem:[%s10 + $0x1c] sm:$0xf]
    %v794 = vld [vmem:[%s11] sm:$0xf]
    %v795 = vld [vmem:[%s11 + $0x4] sm:$0xf]
    %v796 = vld [vmem:[%s11 + $0x8] sm:$0xf]
    %v797 = vld [vmem:[%s11 + $0xc] sm:$0xf]
    %v798 = vld [vmem:[%s11 + $0x10] sm:$0xf]
    %v799 = vld [vmem:[%s11 + $0x14] sm:$0xf]
    %v800 = vld [vmem:[%s11 + $0x18] sm:$0xf]
    %v801 = vld [vmem:[%s11 + $0x1c] sm:$0xf]
    %v802 = vld [vmem:[%s12] sm:$0xf]
    %v803 = vld [vmem:[%s12 + $0x4] sm:$0xf]
    %v804 = vld [vmem:[%s12 + $0x8] sm:$0xf]
    %v805 = vld [vmem:[%s12 + $0xc] sm:$0xf]
    %v806 = vld [vmem:[%s12 + $0x10] sm:$0xf]
    %v807 = vld [vmem:[%s12 + $0x14] sm:$0xf]
    %v808 = vld [vmem:[%s12 + $0x18] sm:$0xf]
    %v809 = vld [vmem:[%s12 + $0x1c] sm:$0xf]
    %v810 = vld [vmem:[%s13] sm:$0xf]
    %v811 = vld [vmem:[%s13 + $0x4] sm:$0xf]
    %v812 = vld [vmem:[%s13 + $0x8] sm:$0xf]
    %v813 = vld [vmem:[%s13 + $0xc] sm:$0xf]
    %v814 = vld [vmem:[%s13 + $0x10] sm:$0xf]
    %v815 = vld [vmem:[%s13 + $0x14] sm:$0xf]
    %v816 = vld [vmem:[%s13 + $0x18] sm:$0xf]
    %v817 = vld [vmem:[%s13 + $0x1c] sm:$0xf]
    %v818 = vld [vmem:[%s14] sm:$0xf]
    %v819 = vld [vmem:[%s14 + $0x4] sm:$0xf]
    %v820 = vld [vmem:[%s14 + $0x8] sm:$0xf]
    %v821 = vld [vmem:[%s14 + $0xc] sm:$0xf]
    %v822 = vld [vmem:[%s14 + $0x10] sm:$0xf]
    %v823 = vld [vmem:[%s14 + $0x14] sm:$0xf]
    %v824 = vld [vmem:[%s14 + $0x18] sm:$0xf]
    %v825 = vld [vmem:[%s14 + $0x1c] sm:$0xf]
    %v826 = vld [vmem:[%s15] sm:$0xf]
    %v827 = vld [vmem:[%s15 + $0x4] sm:$0xf]
    %v828 = vld [vmem:[%s15 + $0x8] sm:$0xf]
    %v829 = vld [vmem:[%s15 + $0xc] sm:$0xf]
    %v830 = vld [vmem:[%s15 + $0x10] sm:$0xf]
    %v831 = vld [vmem:[%s15 + $0x14] sm:$0xf]
    %v832 = vld [vmem:[%s15 + $0x18] sm:$0xf]
    %v833 = vld [vmem:[%s15 + $0x1c] sm:$0xf]
    %v834 = vld [vmem:[%s16] sm:$0x1]
    %v835 = vld [vmem:[%s17] sm:$0x7]
    %v836 = vld [vmem:[%s18] sm:$0xff]
    %v837 = vld [vmem:[%s18 + $0x8] sm:$0xff]
    %v838 = vld [vmem:[%s18 + $0x10] sm:$0xff]
    %v839 = vld [vmem:[%s18 + $0x18] sm:$0xff]
    %v840 = vld [vmem:[%s18 + $0x20] sm:$0xff]
    %v841 = vld [vmem:[%s18 + $0x28] sm:$0xff]
    %v842 = vld [vmem:[%s18 + $0x30] sm:$0xff]
    %v843 = vld [vmem:[%s18 + $0x38] sm:$0xff]
    %v844 = vpack.c.bf16 %v64, %v64
    %v877 = vunpack.c.l.b16 %v66
    %v878 = vunpack.c.h.b16 %v66
    %v879 = vunpack.c.l.b16 %v67
    %v880 = vunpack.c.h.b16 %v67
    %v881 = vunpack.c.l.b16 %v68
    %v882 = vunpack.c.h.b16 %v68
    %v883 = vunpack.c.l.b16 %v69
    %v884 = vunpack.c.h.b16 %v69
    %v885 = vunpack.c.l.b16 %v70
    %v886 = vunpack.c.h.b16 %v70
    %v887 = vunpack.c.l.b16 %v71
    %v888 = vunpack.c.h.b16 %v71
    %v889 = vunpack.c.l.b16 %v72
    %v890 = vunpack.c.h.b16 %v72
    %v891 = vunpack.c.l.b16 %v73
    %v892 = vunpack.c.h.b16 %v73
    %v893 = vunpack.c.l.b16 %v74
    %v894 = vunpack.c.h.b16 %v74
    %v895 = vunpack.c.l.b16 %v75
    %v896 = vunpack.c.h.b16 %v75
    %v897 = vunpack.c.l.b16 %v76
    %v898 = vunpack.c.h.b16 %v76
    %v899 = vunpack.c.l.b16 %v77
    %v900 = vunpack.c.h.b16 %v77
    %v901 = vunpack.c.l.b16 %v78
    %v902 = vunpack.c.h.b16 %v78
    %v903 = vunpack.c.l.b16 %v79
    %v904 = vunpack.c.h.b16 %v79
    %v905 = vunpack.c.l.b16 %v80
    %v906 = vunpack.c.h.b16 %v80
    %v907 = vunpack.c.l.b16 %v81
    %v908 = vunpack.c.h.b16 %v81
    %v909 = vunpack.c.l.b16 %v82
    %v910 = vunpack.c.h.b16 %v82
    %v911 = vunpack.c.l.b16 %v83
    %v912 = vunpack.c.h.b16 %v83
    %v913 = vunpack.c.l.b16 %v84
    %v914 = vunpack.c.h.b16 %v84
    %v915 = vunpack.c.l.b16 %v85
    %v916 = vunpack.c.h.b16 %v85
    %v917 = vunpack.c.l.b16 %v86
    %v918 = vunpack.c.h.b16 %v86
    %v919 = vunpack.c.l.b16 %v87
    %v920 = vunpack.c.h.b16 %v87
    %v921 = vunpack.c.l.b16 %v88
    %v922 = vunpack.c.h.b16 %v88
    %v923 = vunpack.c.l.b16 %v89
    %v924 = vunpack.c.h.b16 %v89
    %v925 = vunpack.c.l.b16 %v90
    %v926 = vunpack.c.h.b16 %v90
    %v927 = vunpack.c.l.b16 %v91
    %v928 = vunpack.c.h.b16 %v91
    %v929 = vunpack.c.l.b16 %v92
    %v930 = vunpack.c.h.b16 %v92
    %v931 = vunpack.c.l.b16 %v93
    %v932 = vunpack.c.h.b16 %v93
    %v933 = vunpack.c.l.b16 %v94
    %v934 = vunpack.c.h.b16 %v94
    %v935 = vunpack.c.l.b16 %v95
    %v936 = vunpack.c.h.b16 %v95
    %v937 = vunpack.c.l.b16 %v96
    %v938 = vunpack.c.h.b16 %v96
    %v939 = vunpack.c.l.b16 %v97
    %v940 = vunpack.c.h.b16 %v97
    %v941 = vpack.c.b16 %v885, %v877
    %v942 = vpack.c.b16 %v886, %v878
    %v943 = vpack.c.b16 %v887, %v879
    %v944 = vpack.c.b16 %v888, %v880
    %v945 = vpack.c.b16 %v889, %v881
    %v946 = vpack.c.b16 %v890, %v882
    %v947 = vpack.c.b16 %v891, %v883
    %v948 = vpack.c.b16 %v892, %v884
    %v949 = vpack.c.b16 %v901, %v893
    %v950 = vpack.c.b16 %v902, %v894
    %v951 = vpack.c.b16 %v903, %v895
    %v952 = vpack.c.b16 %v904, %v896
    %v953 = vpack.c.b16 %v905, %v897
    %v954 = vpack.c.b16 %v906, %v898
    %v955 = vpack.c.b16 %v907, %v899
    %v956 = vpack.c.b16 %v908, %v900
    %v957 = vpack.c.b16 %v917, %v909
    %v958 = vpack.c.b16 %v918, %v910
    %v959 = vpack.c.b16 %v919, %v911
    %v960 = vpack.c.b16 %v920, %v912
    %v961 = vpack.c.b16 %v921, %v913
    %v962 = vpack.c.b16 %v922, %v914
    %v963 = vpack.c.b16 %v923, %v915
    %v964 = vpack.c.b16 %v924, %v916
    %v965 = vpack.c.b16 %v933, %v925
    %v966 = vpack.c.b16 %v934, %v926
    %v967 = vpack.c.b16 %v935, %v927
    %v968 = vpack.c.b16 %v936, %v928
    %v969 = vpack.c.b16 %v937, %v929
    %v970 = vpack.c.b16 %v938, %v930
    %v971 = vpack.c.b16 %v939, %v931
    %v972 = vpack.c.b16 %v940, %v932
    %vm1005 = vcmask 523264
    %v1007 = vsel %vm1005, %v844, 0
    %1009 = vmatprep.subr.bf16.mxu0 0
    %1010 = vmatpush1.bf16.msra.mxu0 0
    %1011 = vmatprep.subr.bf16.mxu0 0
    %1012 = vmatpush1.bf16.msra.mxu0 0
    %1013 = vmatprep.subr.bf16.mxu0 0
    %1014 = vmatpush1.bf16.msra.mxu0 0
    %1015 = vmatprep.subr.bf16.mxu0 0
    %1016 = vmatpush1.bf16.msra.mxu0 0
    %1017 = vmatprep.subr.bf16.mxu0 %v966
    %1018 = vmatpush1.bf16.msra.mxu0 %v965
    %1019 = vmatprep.subr.bf16.mxu0 %v958
    %1020 = vmatpush1.bf16.msra.mxu0 %v957
    %1021 = vmatprep.subr.bf16.mxu0 %v950
    %1022 = vmatpush1.bf16.msra.mxu0 %v949
    %1023 = vmatprep.subr.bf16.mxu0 %v942
    %1024 = vmatpush1.bf16.msra.mxu0 %v941
    %1025 = vmatprep.subr.bf16.mxu0 0
    %1026 = vmatpush2.bf16.msra.mxu0 0
    %1027 = vmatprep.subr.bf16.mxu0 0
    %1028 = vmatpush2.bf16.msra.mxu0 0
    %1029 = vmatprep.subr.bf16.mxu0 0
    %1030 = vmatpush2.bf16.msra.mxu0 0
    %1031 = vmatprep.subr.bf16.mxu0 0
    %1032 = vmatpush2.bf16.msra.mxu0 0
    %1033 = vmatprep.subr.bf16.mxu0 0
    %1034 = vmatpush2.bf16.msra.mxu0 0
    %1035 = vmatprep.subr.bf16.mxu0 0
    %1036 = vmatpush2.bf16.msra.mxu0 0
    %1037 = vmatprep.subr.bf16.mxu0 0
    %1038 = vmatpush2.bf16.msra.mxu0 0
    %1039 = vmatprep.subr.bf16.mxu0 0
    %1040 = vmatpush2.bf16.msra.mxu0 0
    %1041 = vmatprep.mubr.bf16.mxu0 0
    %1042 = vmatmul.mubr.bf16.gmra.mxu0 %v1007
    %v1043 = vpop.f32.mrf.mxu0
    %v1044 = vadd.f32 0.0, %v1043
    %v1045 = vpop.f32.mrf.mxu0
    %v1046 = vadd.f32 0.0, %v1045
    %v1047 = vpop.f32.mrf.mxu0
    %v1048 = vpop.f32.mrf.mxu0
    %1049 = vdwg.mxu0
    %1050 = vmatprep.subr.bf16.mxu0 0
    %1051 = vmatpush1.bf16.msra.mxu0 0
    %1052 = vmatprep.subr.bf16.mxu0 0
    %1053 = vmatpush1.bf16.msra.mxu0 0
    %1054 = vmatprep.subr.bf16.mxu0 0
    %1055 = vmatpush1.bf16.msra.mxu0 0
    %1056 = vmatprep.subr.bf16.mxu0 0
    %1057 = vmatpush1.bf16.msra.mxu0 0
    %1058 = vmatprep.subr.bf16.mxu0 %v968
    %1059 = vmatpush1.bf16.msra.mxu0 %v967
    %1060 = vmatprep.subr.bf16.mxu0 %v960
    %1061 = vmatpush1.bf16.msra.mxu0 %v959
    %1062 = vmatprep.subr.bf16.mxu0 %v952
    %1063 = vmatpush1.bf16.msra.mxu0 %v951
    %1064 = vmatprep.subr.bf16.mxu0 %v944
    %1065 = vmatpush1.bf16.msra.mxu0 %v943
    %1066 = vmatprep.subr.bf16.mxu0 0
    %1067 = vmatpush2.bf16.msra.mxu0 0
    %1068 = vmatprep.subr.bf16.mxu0 0
    %1069 = vmatpush2.bf16.msra.mxu0 0
    %1070 = vmatprep.subr.bf16.mxu0 0
    %1071 = vmatpush2.bf16.msra.mxu0 0
    %1072 = vmatprep.subr.bf16.mxu0 0
    %1073 = vmatpush2.bf16.msra.mxu0 0
    %1074 = vmatprep.subr.bf16.mxu0 0
    %1075 = vmatpush2.bf16.msra.mxu0 0
    %1076 = vmatprep.subr.bf16.mxu0 0
    %1077 = vmatpush2.bf16.msra.mxu0 0
    %1078 = vmatprep.subr.bf16.mxu0 0
    %1079 = vmatpush2.bf16.msra.mxu0 0
    %1080 = vmatprep.subr.bf16.mxu0 0
    %1081 = vmatpush2.bf16.msra.mxu0 0
    %1082 = vmatprep.mubr.bf16.mxu0 0
    %1083 = vmatmul.mubr.bf16.gmra.mxu0 %v1007
    %v1084 = vpop.f32.mrf.mxu0
    %v1085 = vadd.f32 0.0, %v1084
    %v1086 = vpop.f32.mrf.mxu0
    %v1087 = vadd.f32 0.0, %v1086
    %v1088 = vpop.f32.mrf.mxu0
    %v1089 = vpop.f32.mrf.mxu0
    %1090 = vdwg.mxu0
    %1091 = vmatprep.subr.bf16.mxu0 0
    %1092 = vmatpush1.bf16.msra.mxu0 0
    %1093 = vmatprep.subr.bf16.mxu0 0
    %1094 = vmatpush1.bf16.msra.mxu0 0
    %1095 = vmatprep.subr.bf16.mxu0 0
    %1096 = vmatpush1.bf16.msra.mxu0 0
    %1097 = vmatprep.subr.bf16.mxu0 0
    %1098 = vmatpush1.bf16.msra.mxu0 0
    %1099 = vmatprep.subr.bf16.mxu0 %v970
    %1100 = vmatpush1.bf16.msra.mxu0 %v969
    %1101 = vmatprep.subr.bf16.mxu0 %v962
    %1102 = vmatpush1.bf16.msra.mxu0 %v961
    %1103 = vmatprep.subr.bf16.mxu0 %v954
    %1104 = vmatpush1.bf16.msra.mxu0 %v953
    %1105 = vmatprep.subr.bf16.mxu0 %v946
    %1106 = vmatpush1.bf16.msra.mxu0 %v945
    %1107 = vmatprep.subr.bf16.mxu0 0
    %1108 = vmatpush2.bf16.msra.mxu0 0
    %1109 = vmatprep.subr.bf16.mxu0 0
    %1110 = vmatpush2.bf16.msra.mxu0 0
    %1111 = vmatprep.subr.bf16.mxu0 0
    %1112 = vmatpush2.bf16.msra.mxu0 0
    %1113 = vmatprep.subr.bf16.mxu0 0
    %1114 = vmatpush2.bf16.msra.mxu0 0
    %1115 = vmatprep.subr.bf16.mxu0 0
    %1116 = vmatpush2.bf16.msra.mxu0 0
    %1117 = vmatprep.subr.bf16.mxu0 0
    %1118 = vmatpush2.bf16.msra.mxu0 0
    %1119 = vmatprep.subr.bf16.mxu0 0
    %1120 = vmatpush2.bf16.msra.mxu0 0
    %1121 = vmatprep.subr.bf16.mxu0 0
    %1122 = vmatpush2.bf16.msra.mxu0 0
    %1123 = vmatprep.mubr.bf16.mxu0 0
    %1124 = vmatmul.mubr.bf16.gmra.mxu0 %v1007
    %v1125 = vpop.f32.mrf.mxu0
    %v1126 = vadd.f32 0.0, %v1125
    %v1127 = vpop.f32.mrf.mxu0
    %v1128 = vadd.f32 0.0, %v1127
    %v1129 = vpop.f32.mrf.mxu0
    %v1130 = vpop.f32.mrf.mxu0
    %1131 = vdwg.mxu0
    %1132 = vmatprep.subr.bf16.mxu0 0
    %1133 = vmatpush1.bf16.msra.mxu0 0
    %1134 = vmatprep.subr.bf16.mxu0 0
    %1135 = vmatpush1.bf16.msra.mxu0 0
    %1136 = vmatprep.subr.bf16.mxu0 0
    %1137 = vmatpush1.bf16.msra.mxu0 0
    %1138 = vmatprep.subr.bf16.mxu0 0
    %1139 = vmatpush1.bf16.msra.mxu0 0
    %1140 = vmatprep.subr.bf16.mxu0 %v972
    %1141 = vmatpush1.bf16.msra.mxu0 %v971
    %1142 = vmatprep.subr.bf16.mxu0 %v964
    %1143 = vmatpush1.bf16.msra.mxu0 %v963
    %1144 = vmatprep.subr.bf16.mxu0 %v956
    %1145 = vmatpush1.bf16.msra.mxu0 %v955
    %1146 = vmatprep.subr.bf16.mxu0 %v948
    %1147 = vmatpush1.bf16.msra.mxu0 %v947
    %1148 = vmatprep.subr.bf16.mxu0 0
    %1149 = vmatpush2.bf16.msra.mxu0 0
    %1150 = vmatprep.subr.bf16.mxu0 0
    %1151 = vmatpush2.bf16.msra.mxu0 0
    %1152 = vmatprep.subr.bf16.mxu0 0
    %1153 = vmatpush2.bf16.msra.mxu0 0
    %1154 = vmatprep.subr.bf16.mxu0 0
    %1155 = vmatpush2.bf16.msra.mxu0 0
    %1156 = vmatprep.subr.bf16.mxu0 0
    %1157 = vmatpush2.bf16.msra.mxu0 0
    %1158 = vmatprep.subr.bf16.mxu0 0
    %1159 = vmatpush2.bf16.msra.mxu0 0
    %1160 = vmatprep.subr.bf16.mxu0 0
    %1161 = vmatpush2.bf16.msra.mxu0 0
    %1162 = vmatprep.subr.bf16.mxu0 0
    %1163 = vmatpush2.bf16.msra.mxu0 0
    %1164 = vmatprep.mubr.bf16.mxu0 0
    %1165 = vmatmul.mubr.bf16.gmra.mxu0 %v1007
    %v1166 = vpop.f32.mrf.mxu0
    %v1167 = vadd.f32 0.0, %v1166
    %v1168 = vpop.f32.mrf.mxu0
    %v1169 = vadd.f32 0.0, %v1168
    %v1170 = vpop.f32.mrf.mxu0
    %v1171 = vpop.f32.mrf.mxu0
    %1172 = vdwg.mxu0
    %vm1173 = vcmp.ge.f32.partialorder %v1044, 0.0
    %vm1174 = vcmp.ge.f32.partialorder %v1046, 0.0
    %vm1175 = vcmp.ge.f32.partialorder %v1085, 0.0
    %vm1176 = vcmp.ge.f32.partialorder %v1087, 0.0
    %vm1177 = vcmp.ge.f32.partialorder %v1126, 0.0
    %vm1178 = vcmp.ge.f32.partialorder %v1128, 0.0
    %vm1179 = vcmp.ge.f32.partialorder %v1167, 0.0
    %vm1180 = vcmp.ge.f32.partialorder %v1169, 0.0
    %v1181 = vmul.f32 %v1044, 0.01
    %v1182 = vmul.f32 %v1046, 0.01
    %v1183 = vmul.f32 %v1085, 0.01
    %v1184 = vmul.f32 %v1087, 0.01
    %v1185 = vmul.f32 %v1126, 0.01
    %v1186 = vmul.f32 %v1128, 0.01
    %v1187 = vmul.f32 %v1167, 0.01
    %v1188 = vmul.f32 %v1169, 0.01
    %v1189 = vsel %vm1173, %v1044, %v1181
    %v1190 = vsel %vm1174, %v1046, %v1182
    %v1191 = vsel %vm1175, %v1085, %v1183
    %v1192 = vsel %vm1176, %v1087, %v1184
    %v1193 = vsel %vm1177, %v1126, %v1185
    %v1194 = vsel %vm1178, %v1128, %v1186
    %v1195 = vsel %vm1179, %v1167, %v1187
    %v1196 = vsel %vm1180, %v1169, %v1188
    %v1197 = vpack.c.bf16 %v1189, %v1189
    %v1198 = vpack.c.bf16 %v1190, %v1190
    %v1199 = vpack.c.bf16 %v1191, %v1191
    %v1200 = vpack.c.bf16 %v1192, %v1192
    %v1201 = vpack.c.bf16 %v1193, %v1193
    %v1202 = vpack.c.bf16 %v1194, %v1194
    %v1203 = vpack.c.bf16 %v1195, %v1195
    %v1204 = vpack.c.bf16 %v1196, %v1196
    %v1461 = vunpack.c.l.b16 %v98
    %v1462 = vunpack.c.h.b16 %v98
    %v1463 = vunpack.c.l.b16 %v99
    %v1464 = vunpack.c.h.b16 %v99
    %v1465 = vunpack.c.l.b16 %v100
    %v1466 = vunpack.c.h.b16 %v100
    %v1467 = vunpack.c.l.b16 %v101
    %v1468 = vunpack.c.h.b16 %v101
    %v1469 = vunpack.c.l.b16 %v102
    %v1470 = vunpack.c.h.b16 %v102
    %v1471 = vunpack.c.l.b16 %v103
    %v1472 = vunpack.c.h.b16 %v103
    %v1473 = vunpack.c.l.b16 %v104
    %v1474 = vunpack.c.h.b16 %v104
    %v1475 = vunpack.c.l.b16 %v105
    %v1476 = vunpack.c.h.b16 %v105
    %v1477 = vunpack.c.l.b16 %v106
    %v1478 = vunpack.c.h.b16 %v106
    %v1479 = vunpack.c.l.b16 %v107
    %v1480 = vunpack.c.h.b16 %v107
    %v1481 = vunpack.c.l.b16 %v108
    %v1482 = vunpack.c.h.b16 %v108
    %v1483 = vunpack.c.l.b16 %v109
    %v1484 = vunpack.c.h.b16 %v109
    %v1485 = vunpack.c.l.b16 %v110
    %v1486 = vunpack.c.h.b16 %v110
    %v1487 = vunpack.c.l.b16 %v111
    %v1488 = vunpack.c.h.b16 %v111
    %v1489 = vunpack.c.l.b16 %v112
    %v1490 = vunpack.c.h.b16 %v112
    %v1491 = vunpack.c.l.b16 %v113
    %v1492 = vunpack.c.h.b16 %v113
    %v1493 = vunpack.c.l.b16 %v114
    %v1494 = vunpack.c.h.b16 %v114
    %v1495 = vunpack.c.l.b16 %v115
    %v1496 = vunpack.c.h.b16 %v115
    %v1497 = vunpack.c.l.b16 %v116
    %v1498 = vunpack.c.h.b16 %v116
    %v1499 = vunpack.c.l.b16 %v117
    %v1500 = vunpack.c.h.b16 %v117
    %v1501 = vunpack.c.l.b16 %v118
    %v1502 = vunpack.c.h.b16 %v118
    %v1503 = vunpack.c.l.b16 %v119
    %v1504 = vunpack.c.h.b16 %v119
    %v1505 = vunpack.c.l.b16 %v120
    %v1506 = vunpack.c.h.b16 %v120
    %v1507 = vunpack.c.l.b16 %v121
    %v1508 = vunpack.c.h.b16 %v121
    %v1509 = vunpack.c.l.b16 %v122
    %v1510 = vunpack.c.h.b16 %v122
    %v1511 = vunpack.c.l.b16 %v123
    %v1512 = vunpack.c.h.b16 %v123
    %v1513 = vunpack.c.l.b16 %v124
    %v1514 = vunpack.c.h.b16 %v124
    %v1515 = vunpack.c.l.b16 %v125
    %v1516 = vunpack.c.h.b16 %v125
    %v1517 = vunpack.c.l.b16 %v126
    %v1518 = vunpack.c.h.b16 %v126
    %v1519 = vunpack.c.l.b16 %v127
    %v1520 = vunpack.c.h.b16 %v127
    %v1521 = vunpack.c.l.b16 %v128
    %v1522 = vunpack.c.h.b16 %v128
    %v1523 = vunpack.c.l.b16 %v129
    %v1524 = vunpack.c.h.b16 %v129
    %v1525 = vunpack.c.l.b16 %v130
    %v1526 = vunpack.c.h.b16 %v130
    %v1527 = vunpack.c.l.b16 %v131
    %v1528 = vunpack.c.h.b16 %v131
    %v1529 = vunpack.c.l.b16 %v132
    %v1530 = vunpack.c.h.b16 %v132
    %v1531 = vunpack.c.l.b16 %v133
    %v1532 = vunpack.c.h.b16 %v133
    %v1533 = vunpack.c.l.b16 %v134
    %v1534 = vunpack.c.h.b16 %v134
    %v1535 = vunpack.c.l.b16 %v135
    %v1536 = vunpack.c.h.b16 %v135
    %v1537 = vunpack.c.l.b16 %v136
    %v1538 = vunpack.c.h.b16 %v136
    %v1539 = vunpack.c.l.b16 %v137
    %v1540 = vunpack.c.h.b16 %v137
    %v1541 = vunpack.c.l.b16 %v138
    %v1542 = vunpack.c.h.b16 %v138
    %v1543 = vunpack.c.l.b16 %v139
    %v1544 = vunpack.c.h.b16 %v139
    %v1545 = vunpack.c.l.b16 %v140
    %v1546 = vunpack.c.h.b16 %v140
    %v1547 = vunpack.c.l.b16 %v141
    %v1548 = vunpack.c.h.b16 %v141
    %v1549 = vunpack.c.l.b16 %v142
    %v1550 = vunpack.c.h.b16 %v142
    %v1551 = vunpack.c.l.b16 %v143
    %v1552 = vunpack.c.h.b16 %v143
    %v1553 = vunpack.c.l.b16 %v144
    %v1554 = vunpack.c.h.b16 %v144
    %v1555 = vunpack.c.l.b16 %v145
    %v1556 = vunpack.c.h.b16 %v145
    %v1557 = vunpack.c.l.b16 %v146
    %v1558 = vunpack.c.h.b16 %v146
    %v1559 = vunpack.c.l.b16 %v147
    %v1560 = vunpack.c.h.b16 %v147
    %v1561 = vunpack.c.l.b16 %v148
    %v1562 = vunpack.c.h.b16 %v148
    %v1563 = vunpack.c.l.b16 %v149
    %v1564 = vunpack.c.h.b16 %v149
    %v1565 = vunpack.c.l.b16 %v150
    %v1566 = vunpack.c.h.b16 %v150
    %v1567 = vunpack.c.l.b16 %v151
    %v1568 = vunpack.c.h.b16 %v151
    %v1569 = vunpack.c.l.b16 %v152
    %v1570 = vunpack.c.h.b16 %v152
    %v1571 = vunpack.c.l.b16 %v153
    %v1572 = vunpack.c.h.b16 %v153
    %v1573 = vunpack.c.l.b16 %v154
    %v1574 = vunpack.c.h.b16 %v154
    %v1575 = vunpack.c.l.b16 %v155
    %v1576 = vunpack.c.h.b16 %v155
    %v1577 = vunpack.c.l.b16 %v156
    %v1578 = vunpack.c.h.b16 %v156
    %v1579 = vunpack.c.l.b16 %v157
    %v1580 = vunpack.c.h.b16 %v157
    %v1581 = vunpack.c.l.b16 %v158
    %v1582 = vunpack.c.h.b16 %v158
    %v1583 = vunpack.c.l.b16 %v159
    %v1584 = vunpack.c.h.b16 %v159
    %v1585 = vunpack.c.l.b16 %v160
    %v1586 = vunpack.c.h.b16 %v160
    %v1587 = vunpack.c.l.b16 %v161
    %v1588 = vunpack.c.h.b16 %v161
    %v1589 = vunpack.c.l.b16 %v162
    %v1590 = vunpack.c.h.b16 %v162
    %v1591 = vunpack.c.l.b16 %v163
    %v1592 = vunpack.c.h.b16 %v163
    %v1593 = vunpack.c.l.b16 %v164
    %v1594 = vunpack.c.h.b16 %v164
    %v1595 = vunpack.c.l.b16 %v165
    %v1596 = vunpack.c.h.b16 %v165
    %v1597 = vunpack.c.l.b16 %v166
    %v1598 = vunpack.c.h.b16 %v166
    %v1599 = vunpack.c.l.b16 %v167
    %v1600 = vunpack.c.h.b16 %v167
    %v1601 = vunpack.c.l.b16 %v168
    %v1602 = vunpack.c.h.b16 %v168
    %v1603 = vunpack.c.l.b16 %v169
    %v1604 = vunpack.c.h.b16 %v169
    %v1605 = vunpack.c.l.b16 %v170
    %v1606 = vunpack.c.h.b16 %v170
    %v1607 = vunpack.c.l.b16 %v171
    %v1608 = vunpack.c.h.b16 %v171
    %v1609 = vunpack.c.l.b16 %v172
    %v1610 = vunpack.c.h.b16 %v172
    %v1611 = vunpack.c.l.b16 %v173
    %v1612 = vunpack.c.h.b16 %v173
    %v1613 = vunpack.c.l.b16 %v174
    %v1614 = vunpack.c.h.b16 %v174
    %v1615 = vunpack.c.l.b16 %v175
    %v1616 = vunpack.c.h.b16 %v175
    %v1617 = vunpack.c.l.b16 %v176
    %v1618 = vunpack.c.h.b16 %v176
    %v1619 = vunpack.c.l.b16 %v177
    %v1620 = vunpack.c.h.b16 %v177
    %v1621 = vunpack.c.l.b16 %v178
    %v1622 = vunpack.c.h.b16 %v178
    %v1623 = vunpack.c.l.b16 %v179
    %v1624 = vunpack.c.h.b16 %v179
    %v1625 = vunpack.c.l.b16 %v180
    %v1626 = vunpack.c.h.b16 %v180
    %v1627 = vunpack.c.l.b16 %v181
    %v1628 = vunpack.c.h.b16 %v181
    %v1629 = vunpack.c.l.b16 %v182
    %v1630 = vunpack.c.h.b16 %v182
    %v1631 = vunpack.c.l.b16 %v183
    %v1632 = vunpack.c.h.b16 %v183
    %v1633 = vunpack.c.l.b16 %v184
    %v1634 = vunpack.c.h.b16 %v184
    %v1635 = vunpack.c.l.b16 %v185
    %v1636 = vunpack.c.h.b16 %v185
    %v1637 = vunpack.c.l.b16 %v186
    %v1638 = vunpack.c.h.b16 %v186
    %v1639 = vunpack.c.l.b16 %v187
    %v1640 = vunpack.c.h.b16 %v187
    %v1641 = vunpack.c.l.b16 %v188
    %v1642 = vunpack.c.h.b16 %v188
    %v1643 = vunpack.c.l.b16 %v189
    %v1644 = vunpack.c.h.b16 %v189
    %v1645 = vunpack.c.l.b16 %v190
    %v1646 = vunpack.c.h.b16 %v190
    %v1647 = vunpack.c.l.b16 %v191
    %v1648 = vunpack.c.h.b16 %v191
    %v1649 = vunpack.c.l.b16 %v192
    %v1650 = vunpack.c.h.b16 %v192
    %v1651 = vunpack.c.l.b16 %v193
    %v1652 = vunpack.c.h.b16 %v193
    %v1653 = vunpack.c.l.b16 %v194
    %v1654 = vunpack.c.h.b16 %v194
    %v1655 = vunpack.c.l.b16 %v195
    %v1656 = vunpack.c.h.b16 %v195
    %v1657 = vunpack.c.l.b16 %v196
    %v1658 = vunpack.c.h.b16 %v196
    %v1659 = vunpack.c.l.b16 %v197
    %v1660 = vunpack.c.h.b16 %v197
    %v1661 = vunpack.c.l.b16 %v198
    %v1662 = vunpack.c.h.b16 %v198
    %v1663 = vunpack.c.l.b16 %v199
    %v1664 = vunpack.c.h.b16 %v199
    %v1665 = vunpack.c.l.b16 %v200
    %v1666 = vunpack.c.h.b16 %v200
    %v1667 = vunpack.c.l.b16 %v201
    %v1668 = vunpack.c.h.b16 %v201
    %v1669 = vunpack.c.l.b16 %v202
    %v1670 = vunpack.c.h.b16 %v202
    %v1671 = vunpack.c.l.b16 %v203
    %v1672 = vunpack.c.h.b16 %v203
    %v1673 = vunpack.c.l.b16 %v204
    %v1674 = vunpack.c.h.b16 %v204
    %v1675 = vunpack.c.l.b16 %v205
    %v1676 = vunpack.c.h.b16 %v205
    %v1677 = vunpack.c.l.b16 %v206
    %v1678 = vunpack.c.h.b16 %v206
    %v1679 = vunpack.c.l.b16 %v207
    %v1680 = vunpack.c.h.b16 %v207
    %v1681 = vunpack.c.l.b16 %v208
    %v1682 = vunpack.c.h.b16 %v208
    %v1683 = vunpack.c.l.b16 %v209
    %v1684 = vunpack.c.h.b16 %v209
    %v1685 = vunpack.c.l.b16 %v210
    %v1686 = vunpack.c.h.b16 %v210
    %v1687 = vunpack.c.l.b16 %v211
    %v1688 = vunpack.c.h.b16 %v211
    %v1689 = vunpack.c.l.b16 %v212
    %v1690 = vunpack.c.h.b16 %v212
    %v1691 = vunpack.c.l.b16 %v213
    %v1692 = vunpack.c.h.b16 %v213
    %v1693 = vunpack.c.l.b16 %v214
    %v1694 = vunpack.c.h.b16 %v214
    %v1695 = vunpack.c.l.b16 %v215
    %v1696 = vunpack.c.h.b16 %v215
    %v1697 = vunpack.c.l.b16 %v216
    %v1698 = vunpack.c.h.b16 %v216
    %v1699 = vunpack.c.l.b16 %v217
    %v1700 = vunpack.c.h.b16 %v217
    %v1701 = vunpack.c.l.b16 %v218
    %v1702 = vunpack.c.h.b16 %v218
    %v1703 = vunpack.c.l.b16 %v219
    %v1704 = vunpack.c.h.b16 %v219
    %v1705 = vunpack.c.l.b16 %v220
    %v1706 = vunpack.c.h.b16 %v220
    %v1707 = vunpack.c.l.b16 %v221
    %v1708 = vunpack.c.h.b16 %v221
    %v1709 = vunpack.c.l.b16 %v222
    %v1710 = vunpack.c.h.b16 %v222
    %v1711 = vunpack.c.l.b16 %v223
    %v1712 = vunpack.c.h.b16 %v223
    %v1713 = vunpack.c.l.b16 %v224
    %v1714 = vunpack.c.h.b16 %v224
    %v1715 = vunpack.c.l.b16 %v225
    %v1716 = vunpack.c.h.b16 %v225
    %v1717 = vunpack.c.l.b16 %v226
    %v1718 = vunpack.c.h.b16 %v226
    %v1719 = vunpack.c.l.b16 %v227
    %v1720 = vunpack.c.h.b16 %v227
    %v1721 = vunpack.c.l.b16 %v228
    %v1722 = vunpack.c.h.b16 %v228
    %v1723 = vunpack.c.l.b16 %v229
    %v1724 = vunpack.c.h.b16 %v229
    %v1725 = vunpack.c.l.b16 %v230
    %v1726 = vunpack.c.h.b16 %v230
    %v1727 = vunpack.c.l.b16 %v231
    %v1728 = vunpack.c.h.b16 %v231
    %v1729 = vunpack.c.l.b16 %v232
    %v1730 = vunpack.c.h.b16 %v232
    %v1731 = vunpack.c.l.b16 %v233
    %v1732 = vunpack.c.h.b16 %v233
    %v1733 = vunpack.c.l.b16 %v234
    %v1734 = vunpack.c.h.b16 %v234
    %v1735 = vunpack.c.l.b16 %v235
    %v1736 = vunpack.c.h.b16 %v235
    %v1737 = vunpack.c.l.b16 %v236
    %v1738 = vunpack.c.h.b16 %v236
    %v1739 = vunpack.c.l.b16 %v237
    %v1740 = vunpack.c.h.b16 %v237
    %v1741 = vunpack.c.l.b16 %v238
    %v1742 = vunpack.c.h.b16 %v238
    %v1743 = vunpack.c.l.b16 %v239
    %v1744 = vunpack.c.h.b16 %v239
    %v1745 = vunpack.c.l.b16 %v240
    %v1746 = vunpack.c.h.b16 %v240
    %v1747 = vunpack.c.l.b16 %v241
    %v1748 = vunpack.c.h.b16 %v241
    %v1749 = vunpack.c.l.b16 %v242
    %v1750 = vunpack.c.h.b16 %v242
    %v1751 = vunpack.c.l.b16 %v243
    %v1752 = vunpack.c.h.b16 %v243
    %v1753 = vunpack.c.l.b16 %v244
    %v1754 = vunpack.c.h.b16 %v244
    %v1755 = vunpack.c.l.b16 %v245
    %v1756 = vunpack.c.h.b16 %v245
    %v1757 = vunpack.c.l.b16 %v246
    %v1758 = vunpack.c.h.b16 %v246
    %v1759 = vunpack.c.l.b16 %v247
    %v1760 = vunpack.c.h.b16 %v247
    %v1761 = vunpack.c.l.b16 %v248
    %v1762 = vunpack.c.h.b16 %v248
    %v1763 = vunpack.c.l.b16 %v249
    %v1764 = vunpack.c.h.b16 %v249
    %v1765 = vunpack.c.l.b16 %v250
    %v1766 = vunpack.c.h.b16 %v250
    %v1767 = vunpack.c.l.b16 %v251
    %v1768 = vunpack.c.h.b16 %v251
    %v1769 = vunpack.c.l.b16 %v252
    %v1770 = vunpack.c.h.b16 %v252
    %v1771 = vunpack.c.l.b16 %v253
    %v1772 = vunpack.c.h.b16 %v253
    %v1773 = vunpack.c.l.b16 %v254
    %v1774 = vunpack.c.h.b16 %v254
    %v1775 = vunpack.c.l.b16 %v255
    %v1776 = vunpack.c.h.b16 %v255
    %v1777 = vunpack.c.l.b16 %v256
    %v1778 = vunpack.c.h.b16 %v256
    %v1779 = vunpack.c.l.b16 %v257
    %v1780 = vunpack.c.h.b16 %v257
    %v1781 = vunpack.c.l.b16 %v258
    %v1782 = vunpack.c.h.b16 %v258
    %v1783 = vunpack.c.l.b16 %v259
    %v1784 = vunpack.c.h.b16 %v259
    %v1785 = vunpack.c.l.b16 %v260
    %v1786 = vunpack.c.h.b16 %v260
    %v1787 = vunpack.c.l.b16 %v261
    %v1788 = vunpack.c.h.b16 %v261
    %v1789 = vunpack.c.l.b16 %v262
    %v1790 = vunpack.c.h.b16 %v262
    %v1791 = vunpack.c.l.b16 %v263
    %v1792 = vunpack.c.h.b16 %v263
    %v1793 = vunpack.c.l.b16 %v264
    %v1794 = vunpack.c.h.b16 %v264
    %v1795 = vunpack.c.l.b16 %v265
    %v1796 = vunpack.c.h.b16 %v265
    %v1797 = vunpack.c.l.b16 %v266
    %v1798 = vunpack.c.h.b16 %v266
    %v1799 = vunpack.c.l.b16 %v267
    %v1800 = vunpack.c.h.b16 %v267
    %v1801 = vunpack.c.l.b16 %v268
    %v1802 = vunpack.c.h.b16 %v268
    %v1803 = vunpack.c.l.b16 %v269
    %v1804 = vunpack.c.h.b16 %v269
    %v1805 = vunpack.c.l.b16 %v270
    %v1806 = vunpack.c.h.b16 %v270
    %v1807 = vunpack.c.l.b16 %v271
    %v1808 = vunpack.c.h.b16 %v271
    %v1809 = vunpack.c.l.b16 %v272
    %v1810 = vunpack.c.h.b16 %v272
    %v1811 = vunpack.c.l.b16 %v273
    %v1812 = vunpack.c.h.b16 %v273
    %v1813 = vunpack.c.l.b16 %v274
    %v1814 = vunpack.c.h.b16 %v274
    %v1815 = vunpack.c.l.b16 %v275
    %v1816 = vunpack.c.h.b16 %v275
    %v1817 = vunpack.c.l.b16 %v276
    %v1818 = vunpack.c.h.b16 %v276
    %v1819 = vunpack.c.l.b16 %v277
    %v1820 = vunpack.c.h.b16 %v277
    %v1821 = vunpack.c.l.b16 %v278
    %v1822 = vunpack.c.h.b16 %v278
    %v1823 = vunpack.c.l.b16 %v279
    %v1824 = vunpack.c.h.b16 %v279
    %v1825 = vunpack.c.l.b16 %v280
    %v1826 = vunpack.c.h.b16 %v280
    %v1827 = vunpack.c.l.b16 %v281
    %v1828 = vunpack.c.h.b16 %v281
    %v1829 = vunpack.c.l.b16 %v282
    %v1830 = vunpack.c.h.b16 %v282
    %v1831 = vunpack.c.l.b16 %v283
    %v1832 = vunpack.c.h.b16 %v283
    %v1833 = vunpack.c.l.b16 %v284
    %v1834 = vunpack.c.h.b16 %v284
    %v1835 = vunpack.c.l.b16 %v285
    %v1836 = vunpack.c.h.b16 %v285
    %v1837 = vunpack.c.l.b16 %v286
    %v1838 = vunpack.c.h.b16 %v286
    %v1839 = vunpack.c.l.b16 %v287
    %v1840 = vunpack.c.h.b16 %v287
    %v1841 = vunpack.c.l.b16 %v288
    %v1842 = vunpack.c.h.b16 %v288
    %v1843 = vunpack.c.l.b16 %v289
    %v1844 = vunpack.c.h.b16 %v289
    %v1845 = vunpack.c.l.b16 %v290
    %v1846 = vunpack.c.h.b16 %v290
    %v1847 = vunpack.c.l.b16 %v291
    %v1848 = vunpack.c.h.b16 %v291
    %v1849 = vunpack.c.l.b16 %v292
    %v1850 = vunpack.c.h.b16 %v292
    %v1851 = vunpack.c.l.b16 %v293
    %v1852 = vunpack.c.h.b16 %v293
    %v1853 = vunpack.c.l.b16 %v294
    %v1854 = vunpack.c.h.b16 %v294
    %v1855 = vunpack.c.l.b16 %v295
    %v1856 = vunpack.c.h.b16 %v295
    %v1857 = vunpack.c.l.b16 %v296
    %v1858 = vunpack.c.h.b16 %v296
    %v1859 = vunpack.c.l.b16 %v297
    %v1860 = vunpack.c.h.b16 %v297
    %v1861 = vunpack.c.l.b16 %v298
    %v1862 = vunpack.c.h.b16 %v298
    %v1863 = vunpack.c.l.b16 %v299
    %v1864 = vunpack.c.h.b16 %v299
    %v1865 = vunpack.c.l.b16 %v300
    %v1866 = vunpack.c.h.b16 %v300
    %v1867 = vunpack.c.l.b16 %v301
    %v1868 = vunpack.c.h.b16 %v301
    %v1869 = vunpack.c.l.b16 %v302
    %v1870 = vunpack.c.h.b16 %v302
    %v1871 = vunpack.c.l.b16 %v303
    %v1872 = vunpack.c.h.b16 %v303
    %v1873 = vunpack.c.l.b16 %v304
    %v1874 = vunpack.c.h.b16 %v304
    %v1875 = vunpack.c.l.b16 %v305
    %v1876 = vunpack.c.h.b16 %v305
    %v1877 = vunpack.c.l.b16 %v306
    %v1878 = vunpack.c.h.b16 %v306
    %v1879 = vunpack.c.l.b16 %v307
    %v1880 = vunpack.c.h.b16 %v307
    %v1881 = vunpack.c.l.b16 %v308
    %v1882 = vunpack.c.h.b16 %v308
    %v1883 = vunpack.c.l.b16 %v309
    %v1884 = vunpack.c.h.b16 %v309
    %v1885 = vunpack.c.l.b16 %v310
    %v1886 = vunpack.c.h.b16 %v310
    %v1887 = vunpack.c.l.b16 %v311
    %v1888 = vunpack.c.h.b16 %v311
    %v1889 = vunpack.c.l.b16 %v312
    %v1890 = vunpack.c.h.b16 %v312
    %v1891 = vunpack.c.l.b16 %v313
    %v1892 = vunpack.c.h.b16 %v313
    %v1893 = vunpack.c.l.b16 %v314
    %v1894 = vunpack.c.h.b16 %v314
    %v1895 = vunpack.c.l.b16 %v315
    %v1896 = vunpack.c.h.b16 %v315
    %v1897 = vunpack.c.l.b16 %v316
    %v1898 = vunpack.c.h.b16 %v316
    %v1899 = vunpack.c.l.b16 %v317
    %v1900 = vunpack.c.h.b16 %v317
    %v1901 = vunpack.c.l.b16 %v318
    %v1902 = vunpack.c.h.b16 %v318
    %v1903 = vunpack.c.l.b16 %v319
    %v1904 = vunpack.c.h.b16 %v319
    %v1905 = vunpack.c.l.b16 %v320
    %v1906 = vunpack.c.h.b16 %v320
    %v1907 = vunpack.c.l.b16 %v321
    %v1908 = vunpack.c.h.b16 %v321
    %v1909 = vunpack.c.l.b16 %v322
    %v1910 = vunpack.c.h.b16 %v322
    %v1911 = vunpack.c.l.b16 %v323
    %v1912 = vunpack.c.h.b16 %v323
    %v1913 = vunpack.c.l.b16 %v324
    %v1914 = vunpack.c.h.b16 %v324
    %v1915 = vunpack.c.l.b16 %v325
    %v1916 = vunpack.c.h.b16 %v325
    %v1917 = vunpack.c.l.b16 %v326
    %v1918 = vunpack.c.h.b16 %v326
    %v1919 = vunpack.c.l.b16 %v327
    %v1920 = vunpack.c.h.b16 %v327
    %v1921 = vunpack.c.l.b16 %v328
    %v1922 = vunpack.c.h.b16 %v328
    %v1923 = vunpack.c.l.b16 %v329
    %v1924 = vunpack.c.h.b16 %v329
    %v1925 = vunpack.c.l.b16 %v330
    %v1926 = vunpack.c.h.b16 %v330
    %v1927 = vunpack.c.l.b16 %v331
    %v1928 = vunpack.c.h.b16 %v331
    %v1929 = vunpack.c.l.b16 %v332
    %v1930 = vunpack.c.h.b16 %v332
    %v1931 = vunpack.c.l.b16 %v333
    %v1932 = vunpack.c.h.b16 %v333
    %v1933 = vunpack.c.l.b16 %v334
    %v1934 = vunpack.c.h.b16 %v334
    %v1935 = vunpack.c.l.b16 %v335
    %v1936 = vunpack.c.h.b16 %v335
    %v1937 = vunpack.c.l.b16 %v336
    %v1938 = vunpack.c.h.b16 %v336
    %v1939 = vunpack.c.l.b16 %v337
    %v1940 = vunpack.c.h.b16 %v337
    %v1941 = vunpack.c.l.b16 %v338
    %v1942 = vunpack.c.h.b16 %v338
    %v1943 = vunpack.c.l.b16 %v339
    %v1944 = vunpack.c.h.b16 %v339
    %v1945 = vunpack.c.l.b16 %v340
    %v1946 = vunpack.c.h.b16 %v340
    %v1947 = vunpack.c.l.b16 %v341
    %v1948 = vunpack.c.h.b16 %v341
    %v1949 = vunpack.c.l.b16 %v342
    %v1950 = vunpack.c.h.b16 %v342
    %v1951 = vunpack.c.l.b16 %v343
    %v1952 = vunpack.c.h.b16 %v343
    %v1953 = vunpack.c.l.b16 %v344
    %v1954 = vunpack.c.h.b16 %v344
    %v1955 = vunpack.c.l.b16 %v345
    %v1956 = vunpack.c.h.b16 %v345
    %v1957 = vunpack.c.l.b16 %v346
    %v1958 = vunpack.c.h.b16 %v346
    %v1959 = vunpack.c.l.b16 %v347
    %v1960 = vunpack.c.h.b16 %v347
    %v1961 = vunpack.c.l.b16 %v348
    %v1962 = vunpack.c.h.b16 %v348
    %v1963 = vunpack.c.l.b16 %v349
    %v1964 = vunpack.c.h.b16 %v349
    %v1965 = vunpack.c.l.b16 %v350
    %v1966 = vunpack.c.h.b16 %v350
    %v1967 = vunpack.c.l.b16 %v351
    %v1968 = vunpack.c.h.b16 %v351
    %v1969 = vunpack.c.l.b16 %v352
    %v1970 = vunpack.c.h.b16 %v352
    %v1971 = vunpack.c.l.b16 %v353
    %v1972 = vunpack.c.h.b16 %v353
    %v1973 = vpack.c.b16 %v1465, %v1461
    %v1974 = vpack.c.b16 %v1466, %v1462
    %v1975 = vpack.c.b16 %v1467, %v1463
    %v1976 = vpack.c.b16 %v1468, %v1464
    %v1977 = vpack.c.b16 %v1473, %v1469
    %v1978 = vpack.c.b16 %v1474, %v1470
    %v1979 = vpack.c.b16 %v1475, %v1471
    %v1980 = vpack.c.b16 %v1476, %v1472
    %v1981 = vpack.c.b16 %v1481, %v1477
    %v1982 = vpack.c.b16 %v1482, %v1478
    %v1983 = vpack.c.b16 %v1483, %v1479
    %v1984 = vpack.c.b16 %v1484, %v1480
    %v1985 = vpack.c.b16 %v1489, %v1485
    %v1986 = vpack.c.b16 %v1490, %v1486
    %v1987 = vpack.c.b16 %v1491, %v1487
    %v1988 = vpack.c.b16 %v1492, %v1488
    %v1989 = vpack.c.b16 %v1497, %v1493
    %v1990 = vpack.c.b16 %v1498, %v1494
    %v1991 = vpack.c.b16 %v1499, %v1495
    %v1992 = vpack.c.b16 %v1500, %v1496
    %v1993 = vpack.c.b16 %v1505, %v1501
    %v1994 = vpack.c.b16 %v1506, %v1502
    %v1995 = vpack.c.b16 %v1507, %v1503
    %v1996 = vpack.c.b16 %v1508, %v1504
    %v1997 = vpack.c.b16 %v1513, %v1509
    %v1998 = vpack.c.b16 %v1514, %v1510
    %v1999 = vpack.c.b16 %v1515, %v1511
    %v2000 = vpack.c.b16 %v1516, %v1512
    %v2001 = vpack.c.b16 %v1521, %v1517
    %v2002 = vpack.c.b16 %v1522, %v1518
    %v2003 = vpack.c.b16 %v1523, %v1519
    %v2004 = vpack.c.b16 %v1524, %v1520
    %v2005 = vpack.c.b16 %v1529, %v1525
    %v2006 = vpack.c.b16 %v1530, %v1526
    %v2007 = vpack.c.b16 %v1531, %v1527
    %v2008 = vpack.c.b16 %v1532, %v1528
    %v2009 = vpack.c.b16 %v1537, %v1533
    %v2010 = vpack.c.b16 %v1538, %v1534
    %v2011 = vpack.c.b16 %v1539, %v1535
    %v2012 = vpack.c.b16 %v1540, %v1536
    %v2013 = vpack.c.b16 %v1545, %v1541
    %v2014 = vpack.c.b16 %v1546, %v1542
    %v2015 = vpack.c.b16 %v1547, %v1543
    %v2016 = vpack.c.b16 %v1548, %v1544
    %v2017 = vpack.c.b16 %v1553, %v1549
    %v2018 = vpack.c.b16 %v1554, %v1550
    %v2019 = vpack.c.b16 %v1555, %v1551
    %v2020 = vpack.c.b16 %v1556, %v1552
    %v2021 = vpack.c.b16 %v1561, %v1557
    %v2022 = vpack.c.b16 %v1562, %v1558
    %v2023 = vpack.c.b16 %v1563, %v1559
    %v2024 = vpack.c.b16 %v1564, %v1560
    %v2025 = vpack.c.b16 %v1569, %v1565
    %v2026 = vpack.c.b16 %v1570, %v1566
    %v2027 = vpack.c.b16 %v1571, %v1567
    %v2028 = vpack.c.b16 %v1572, %v1568
    %v2029 = vpack.c.b16 %v1577, %v1573
    %v2030 = vpack.c.b16 %v1578, %v1574
    %v2031 = vpack.c.b16 %v1579, %v1575
    %v2032 = vpack.c.b16 %v1580, %v1576
    %v2033 = vpack.c.b16 %v1585, %v1581
    %v2034 = vpack.c.b16 %v1586, %v1582
    %v2035 = vpack.c.b16 %v1587, %v1583
    %v2036 = vpack.c.b16 %v1588, %v1584
    %v2037 = vpack.c.b16 %v1593, %v1589
    %v2038 = vpack.c.b16 %v1594, %v1590
    %v2039 = vpack.c.b16 %v1595, %v1591
    %v2040 = vpack.c.b16 %v1596, %v1592
    %v2041 = vpack.c.b16 %v1601, %v1597
    %v2042 = vpack.c.b16 %v1602, %v1598
    %v2043 = vpack.c.b16 %v1603, %v1599
    %v2044 = vpack.c.b16 %v1604, %v1600
    %v2045 = vpack.c.b16 %v1609, %v1605
    %v2046 = vpack.c.b16 %v1610, %v1606
    %v2047 = vpack.c.b16 %v1611, %v1607
    %v2048 = vpack.c.b16 %v1612, %v1608
    %v2049 = vpack.c.b16 %v1617, %v1613
    %v2050 = vpack.c.b16 %v1618, %v1614
    %v2051 = vpack.c.b16 %v1619, %v1615
    %v2052 = vpack.c.b16 %v1620, %v1616
    %v2053 = vpack.c.b16 %v1625, %v1621
    %v2054 = vpack.c.b16 %v1626, %v1622
    %v2055 = vpack.c.b16 %v1627, %v1623
    %v2056 = vpack.c.b16 %v1628, %v1624
    %v2057 = vpack.c.b16 %v1633, %v1629
    %v2058 = vpack.c.b16 %v1634, %v1630
    %v2059 = vpack.c.b16 %v1635, %v1631
    %v2060 = vpack.c.b16 %v1636, %v1632
    %v2061 = vpack.c.b16 %v1641, %v1637
    %v2062 = vpack.c.b16 %v1642, %v1638
    %v2063 = vpack.c.b16 %v1643, %v1639
    %v2064 = vpack.c.b16 %v1644, %v1640
    %v2065 = vpack.c.b16 %v1649, %v1645
    %v2066 = vpack.c.b16 %v1650, %v1646
    %v2067 = vpack.c.b16 %v1651, %v1647
    %v2068 = vpack.c.b16 %v1652, %v1648
    %v2069 = vpack.c.b16 %v1657, %v1653
    %v2070 = vpack.c.b16 %v1658, %v1654
    %v2071 = vpack.c.b16 %v1659, %v1655
    %v2072 = vpack.c.b16 %v1660, %v1656
    %v2073 = vpack.c.b16 %v1665, %v1661
    %v2074 = vpack.c.b16 %v1666, %v1662
    %v2075 = vpack.c.b16 %v1667, %v1663
    %v2076 = vpack.c.b16 %v1668, %v1664
    %v2077 = vpack.c.b16 %v1673, %v1669
    %v2078 = vpack.c.b16 %v1674, %v1670
    %v2079 = vpack.c.b16 %v1675, %v1671
    %v2080 = vpack.c.b16 %v1676, %v1672
    %v2081 = vpack.c.b16 %v1681, %v1677
    %v2082 = vpack.c.b16 %v1682, %v1678
    %v2083 = vpack.c.b16 %v1683, %v1679
    %v2084 = vpack.c.b16 %v1684, %v1680
    %v2085 = vpack.c.b16 %v1689, %v1685
    %v2086 = vpack.c.b16 %v1690, %v1686
    %v2087 = vpack.c.b16 %v1691, %v1687
    %v2088 = vpack.c.b16 %v1692, %v1688
    %v2089 = vpack.c.b16 %v1697, %v1693
    %v2090 = vpack.c.b16 %v1698, %v1694
    %v2091 = vpack.c.b16 %v1699, %v1695
    %v2092 = vpack.c.b16 %v1700, %v1696
    %v2093 = vpack.c.b16 %v1705, %v1701
    %v2094 = vpack.c.b16 %v1706, %v1702
    %v2095 = vpack.c.b16 %v1707, %v1703
    %v2096 = vpack.c.b16 %v1708, %v1704
    %v2097 = vpack.c.b16 %v1713, %v1709
    %v2098 = vpack.c.b16 %v1714, %v1710
    %v2099 = vpack.c.b16 %v1715, %v1711
    %v2100 = vpack.c.b16 %v1716, %v1712
    %v2101 = vpack.c.b16 %v1721, %v1717
    %v2102 = vpack.c.b16 %v1722, %v1718
    %v2103 = vpack.c.b16 %v1723, %v1719
    %v2104 = vpack.c.b16 %v1724, %v1720
    %v2105 = vpack.c.b16 %v1729, %v1725
    %v2106 = vpack.c.b16 %v1730, %v1726
    %v2107 = vpack.c.b16 %v1731, %v1727
    %v2108 = vpack.c.b16 %v1732, %v1728
    %v2109 = vpack.c.b16 %v1737, %v1733
    %v2110 = vpack.c.b16 %v1738, %v1734
    %v2111 = vpack.c.b16 %v1739, %v1735
    %v2112 = vpack.c.b16 %v1740, %v1736
    %v2113 = vpack.c.b16 %v1745, %v1741
    %v2114 = vpack.c.b16 %v1746, %v1742
    %v2115 = vpack.c.b16 %v1747, %v1743
    %v2116 = vpack.c.b16 %v1748, %v1744
    %v2117 = vpack.c.b16 %v1753, %v1749
    %v2118 = vpack.c.b16 %v1754, %v1750
    %v2119 = vpack.c.b16 %v1755, %v1751
    %v2120 = vpack.c.b16 %v1756, %v1752
    %v2121 = vpack.c.b16 %v1761, %v1757
    %v2122 = vpack.c.b16 %v1762, %v1758
    %v2123 = vpack.c.b16 %v1763, %v1759
    %v2124 = vpack.c.b16 %v1764, %v1760
    %v2125 = vpack.c.b16 %v1769, %v1765
    %v2126 = vpack.c.b16 %v1770, %v1766
    %v2127 = vpack.c.b16 %v1771, %v1767
    %v2128 = vpack.c.b16 %v1772, %v1768
    %v2129 = vpack.c.b16 %v1777, %v1773
    %v2130 = vpack.c.b16 %v1778, %v1774
    %v2131 = vpack.c.b16 %v1779, %v1775
    %v2132 = vpack.c.b16 %v1780, %v1776
    %v2133 = vpack.c.b16 %v1785, %v1781
    %v2134 = vpack.c.b16 %v1786, %v1782
    %v2135 = vpack.c.b16 %v1787, %v1783
    %v2136 = vpack.c.b16 %v1788, %v1784
    %v2137 = vpack.c.b16 %v1793, %v1789
    %v2138 = vpack.c.b16 %v1794, %v1790
    %v2139 = vpack.c.b16 %v1795, %v1791
    %v2140 = vpack.c.b16 %v1796, %v1792
    %v2141 = vpack.c.b16 %v1801, %v1797
    %v2142 = vpack.c.b16 %v1802, %v1798
    %v2143 = vpack.c.b16 %v1803, %v1799
    %v2144 = vpack.c.b16 %v1804, %v1800
    %v2145 = vpack.c.b16 %v1809, %v1805
    %v2146 = vpack.c.b16 %v1810, %v1806
    %v2147 = vpack.c.b16 %v1811, %v1807
    %v2148 = vpack.c.b16 %v1812, %v1808
    %v2149 = vpack.c.b16 %v1817, %v1813
    %v2150 = vpack.c.b16 %v1818, %v1814
    %v2151 = vpack.c.b16 %v1819, %v1815
    %v2152 = vpack.c.b16 %v1820, %v1816
    %v2153 = vpack.c.b16 %v1825, %v1821
    %v2154 = vpack.c.b16 %v1826, %v1822
    %v2155 = vpack.c.b16 %v1827, %v1823
    %v2156 = vpack.c.b16 %v1828, %v1824
    %v2157 = vpack.c.b16 %v1833, %v1829
    %v2158 = vpack.c.b16 %v1834, %v1830
    %v2159 = vpack.c.b16 %v1835, %v1831
    %v2160 = vpack.c.b16 %v1836, %v1832
    %v2161 = vpack.c.b16 %v1841, %v1837
    %v2162 = vpack.c.b16 %v1842, %v1838
    %v2163 = vpack.c.b16 %v1843, %v1839
    %v2164 = vpack.c.b16 %v1844, %v1840
    %v2165 = vpack.c.b16 %v1849, %v1845
    %v2166 = vpack.c.b16 %v1850, %v1846
    %v2167 = vpack.c.b16 %v1851, %v1847
    %v2168 = vpack.c.b16 %v1852, %v1848
    %v2169 = vpack.c.b16 %v1857, %v1853
    %v2170 = vpack.c.b16 %v1858, %v1854
    %v2171 = vpack.c.b16 %v1859, %v1855
    %v2172 = vpack.c.b16 %v1860, %v1856
    %v2173 = vpack.c.b16 %v1865, %v1861
    %v2174 = vpack.c.b16 %v1866, %v1862
    %v2175 = vpack.c.b16 %v1867, %v1863
    %v2176 = vpack.c.b16 %v1868, %v1864
    %v2177 = vpack.c.b16 %v1873, %v1869
    %v2178 = vpack.c.b16 %v1874, %v1870
    %v2179 = vpack.c.b16 %v1875, %v1871
    %v2180 = vpack.c.b16 %v1876, %v1872
    %v2181 = vpack.c.b16 %v1881, %v1877
    %v2182 = vpack.c.b16 %v1882, %v1878
    %v2183 = vpack.c.b16 %v1883, %v1879
    %v2184 = vpack.c.b16 %v1884, %v1880
    %v2185 = vpack.c.b16 %v1889, %v1885
    %v2186 = vpack.c.b16 %v1890, %v1886
    %v2187 = vpack.c.b16 %v1891, %v1887
    %v2188 = vpack.c.b16 %v1892, %v1888
    %v2189 = vpack.c.b16 %v1897, %v1893
    %v2190 = vpack.c.b16 %v1898, %v1894
    %v2191 = vpack.c.b16 %v1899, %v1895
    %v2192 = vpack.c.b16 %v1900, %v1896
    %v2193 = vpack.c.b16 %v1905, %v1901
    %v2194 = vpack.c.b16 %v1906, %v1902
    %v2195 = vpack.c.b16 %v1907, %v1903
    %v2196 = vpack.c.b16 %v1908, %v1904
    %v2197 = vpack.c.b16 %v1913, %v1909
    %v2198 = vpack.c.b16 %v1914, %v1910
    %v2199 = vpack.c.b16 %v1915, %v1911
    %v2200 = vpack.c.b16 %v1916, %v1912
    %v2201 = vpack.c.b16 %v1921, %v1917
    %v2202 = vpack.c.b16 %v1922, %v1918
    %v2203 = vpack.c.b16 %v1923, %v1919
    %v2204 = vpack.c.b16 %v1924, %v1920
    %v2205 = vpack.c.b16 %v1929, %v1925
    %v2206 = vpack.c.b16 %v1930, %v1926
    %v2207 = vpack.c.b16 %v1931, %v1927
    %v2208 = vpack.c.b16 %v1932, %v1928
    %v2209 = vpack.c.b16 %v1937, %v1933
    %v2210 = vpack.c.b16 %v1938, %v1934
    %v2211 = vpack.c.b16 %v1939, %v1935
    %v2212 = vpack.c.b16 %v1940, %v1936
    %v2213 = vpack.c.b16 %v1945, %v1941
    %v2214 = vpack.c.b16 %v1946, %v1942
    %v2215 = vpack.c.b16 %v1947, %v1943
    %v2216 = vpack.c.b16 %v1948, %v1944
    %v2217 = vpack.c.b16 %v1953, %v1949
    %v2218 = vpack.c.b16 %v1954, %v1950
    %v2219 = vpack.c.b16 %v1955, %v1951
    %v2220 = vpack.c.b16 %v1956, %v1952
    %v2221 = vpack.c.b16 %v1961, %v1957
    %v2222 = vpack.c.b16 %v1962, %v1958
    %v2223 = vpack.c.b16 %v1963, %v1959
    %v2224 = vpack.c.b16 %v1964, %v1960
    %v2225 = vpack.c.b16 %v1969, %v1965
    %v2226 = vpack.c.b16 %v1970, %v1966
    %v2227 = vpack.c.b16 %v1971, %v1967
    %v2228 = vpack.c.b16 %v1972, %v1968
    %2485 = vmatprep.subr.bf16.mxu0 %v2002
    %2486 = vmatpush1.bf16.msra.mxu0 %v2001
    %2487 = vmatprep.subr.bf16.mxu0 %v1998
    %2488 = vmatpush1.bf16.msra.mxu0 %v1997
    %2489 = vmatprep.subr.bf16.mxu0 %v1994
    %2490 = vmatpush1.bf16.msra.mxu0 %v1993
    %2491 = vmatprep.subr.bf16.mxu0 %v1990
    %2492 = vmatpush1.bf16.msra.mxu0 %v1989
    %2493 = vmatprep.subr.bf16.mxu0 %v1986
    %2494 = vmatpush1.bf16.msra.mxu0 %v1985
    %2495 = vmatprep.subr.bf16.mxu0 %v1982
    %2496 = vmatpush1.bf16.msra.mxu0 %v1981
    %2497 = vmatprep.subr.bf16.mxu0 %v1978
    %2498 = vmatpush1.bf16.msra.mxu0 %v1977
    %2499 = vmatprep.subr.bf16.mxu0 %v1974
    %2500 = vmatpush1.bf16.msra.mxu0 %v1973
    %2501 = vmatprep.subr.bf16.mxu0 %v2034
    %2502 = vmatpush2.bf16.msra.mxu0 %v2033
    %2503 = vmatprep.subr.bf16.mxu0 %v2030
    %2504 = vmatpush2.bf16.msra.mxu0 %v2029
    %2505 = vmatprep.subr.bf16.mxu0 %v2026
    %2506 = vmatpush2.bf16.msra.mxu0 %v2025
    %2507 = vmatprep.subr.bf16.mxu0 %v2022
    %2508 = vmatpush2.bf16.msra.mxu0 %v2021
    %2509 = vmatprep.subr.bf16.mxu0 %v2018
    %2510 = vmatpush2.bf16.msra.mxu0 %v2017
    %2511 = vmatprep.subr.bf16.mxu0 %v2014
    %2512 = vmatpush2.bf16.msra.mxu0 %v2013
    %2513 = vmatprep.subr.bf16.mxu0 %v2010
    %2514 = vmatpush2.bf16.msra.mxu0 %v2009
    %2515 = vmatprep.subr.bf16.mxu0 %v2006
    %2516 = vmatpush2.bf16.msra.mxu0 %v2005
    %2517 = vmatprep.mubr.bf16.mxu0 %v1198
    %2518 = vmatmul.mubr.bf16.gmra.mxu0 %v1197
    %v2519 = vpop.f32.mrf.mxu0
    %v2520 = vadd.f32 0.0, %v2519
    %v2521 = vpop.f32.mrf.mxu0
    %v2522 = vadd.f32 0.0, %v2521
    %v2523 = vpop.f32.mrf.mxu0
    %v2524 = vpop.f32.mrf.mxu0
    %2525 = vdwg.mxu0
    %2526 = vmatprep.subr.bf16.mxu0 %v2066
    %2527 = vmatpush1.bf16.msra.mxu0 %v2065
    %2528 = vmatprep.subr.bf16.mxu0 %v2062
    %2529 = vmatpush1.bf16.msra.mxu0 %v2061
    %2530 = vmatprep.subr.bf16.mxu0 %v2058
    %2531 = vmatpush1.bf16.msra.mxu0 %v2057
    %2532 = vmatprep.subr.bf16.mxu0 %v2054
    %2533 = vmatpush1.bf16.msra.mxu0 %v2053
    %2534 = vmatprep.subr.bf16.mxu0 %v2050
    %2535 = vmatpush1.bf16.msra.mxu0 %v2049
    %2536 = vmatprep.subr.bf16.mxu0 %v2046
    %2537 = vmatpush1.bf16.msra.mxu0 %v2045
    %2538 = vmatprep.subr.bf16.mxu0 %v2042
    %2539 = vmatpush1.bf16.msra.mxu0 %v2041
    %2540 = vmatprep.subr.bf16.mxu0 %v2038
    %2541 = vmatpush1.bf16.msra.mxu0 %v2037
    %2542 = vmatprep.subr.bf16.mxu0 %v2098
    %2543 = vmatpush2.bf16.msra.mxu0 %v2097
    %2544 = vmatprep.subr.bf16.mxu0 %v2094
    %2545 = vmatpush2.bf16.msra.mxu0 %v2093
    %2546 = vmatprep.subr.bf16.mxu0 %v2090
    %2547 = vmatpush2.bf16.msra.mxu0 %v2089
    %2548 = vmatprep.subr.bf16.mxu0 %v2086
    %2549 = vmatpush2.bf16.msra.mxu0 %v2085
    %2550 = vmatprep.subr.bf16.mxu0 %v2082
    %2551 = vmatpush2.bf16.msra.mxu0 %v2081
    %2552 = vmatprep.subr.bf16.mxu0 %v2078
    %2553 = vmatpush2.bf16.msra.mxu0 %v2077
    %2554 = vmatprep.subr.bf16.mxu0 %v2074
    %2555 = vmatpush2.bf16.msra.mxu0 %v2073
    %2556 = vmatprep.subr.bf16.mxu0 %v2070
    %2557 = vmatpush2.bf16.msra.mxu0 %v2069
    %2558 = vmatprep.mubr.bf16.mxu0 %v1200
    %2559 = vmatmul.mubr.bf16.gmra.mxu0 %v1199
    %v2560 = vpop.f32.mrf.mxu0
    %v2561 = vadd.f32 %v2520, %v2560
    %v2562 = vpop.f32.mrf.mxu0
    %v2563 = vadd.f32 %v2522, %v2562
    %v2564 = vpop.f32.mrf.mxu0
    %v2565 = vpop.f32.mrf.mxu0
    %2566 = vdwg.mxu0
    %2567 = vmatprep.subr.bf16.mxu0 %v2130
    %2568 = vmatpush1.bf16.msra.mxu0 %v2129
    %2569 = vmatprep.subr.bf16.mxu0 %v2126
    %2570 = vmatpush1.bf16.msra.mxu0 %v2125
    %2571 = vmatprep.subr.bf16.mxu0 %v2122
    %2572 = vmatpush1.bf16.msra.mxu0 %v2121
    %2573 = vmatprep.subr.bf16.mxu0 %v2118
    %2574 = vmatpush1.bf16.msra.mxu0 %v2117
    %2575 = vmatprep.subr.bf16.mxu0 %v2114
    %2576 = vmatpush1.bf16.msra.mxu0 %v2113
    %2577 = vmatprep.subr.bf16.mxu0 %v2110
    %2578 = vmatpush1.bf16.msra.mxu0 %v2109
    %2579 = vmatprep.subr.bf16.mxu0 %v2106
    %2580 = vmatpush1.bf16.msra.mxu0 %v2105
    %2581 = vmatprep.subr.bf16.mxu0 %v2102
    %2582 = vmatpush1.bf16.msra.mxu0 %v2101
    %2583 = vmatprep.subr.bf16.mxu0 %v2162
    %2584 = vmatpush2.bf16.msra.mxu0 %v2161
    %2585 = vmatprep.subr.bf16.mxu0 %v2158
    %2586 = vmatpush2.bf16.msra.mxu0 %v2157
    %2587 = vmatprep.subr.bf16.mxu0 %v2154
    %2588 = vmatpush2.bf16.msra.mxu0 %v2153
    %2589 = vmatprep.subr.bf16.mxu0 %v2150
    %2590 = vmatpush2.bf16.msra.mxu0 %v2149
    %2591 = vmatprep.subr.bf16.mxu0 %v2146
    %2592 = vmatpush2.bf16.msra.mxu0 %v2145
    %2593 = vmatprep.subr.bf16.mxu0 %v2142
    %2594 = vmatpush2.bf16.msra.mxu0 %v2141
    %2595 = vmatprep.subr.bf16.mxu0 %v2138
    %2596 = vmatpush2.bf16.msra.mxu0 %v2137
    %2597 = vmatprep.subr.bf16.mxu0 %v2134
    %2598 = vmatpush2.bf16.msra.mxu0 %v2133
    %2599 = vmatprep.mubr.bf16.mxu0 %v1202
    %2600 = vmatmul.mubr.bf16.gmra.mxu0 %v1201
    %v2601 = vpop.f32.mrf.mxu0
    %v2602 = vadd.f32 %v2561, %v2601
    %v2603 = vpop.f32.mrf.mxu0
    %v2604 = vadd.f32 %v2563, %v2603
    %v2605 = vpop.f32.mrf.mxu0
    %v2606 = vpop.f32.mrf.mxu0
    %2607 = vdwg.mxu0
    %2608 = vmatprep.subr.bf16.mxu0 %v2194
    %2609 = vmatpush1.bf16.msra.mxu0 %v2193
    %2610 = vmatprep.subr.bf16.mxu0 %v2190
    %2611 = vmatpush1.bf16.msra.mxu0 %v2189
    %2612 = vmatprep.subr.bf16.mxu0 %v2186
    %2613 = vmatpush1.bf16.msra.mxu0 %v2185
    %2614 = vmatprep.subr.bf16.mxu0 %v2182
    %2615 = vmatpush1.bf16.msra.mxu0 %v2181
    %2616 = vmatprep.subr.bf16.mxu0 %v2178
    %2617 = vmatpush1.bf16.msra.mxu0 %v2177
    %2618 = vmatprep.subr.bf16.mxu0 %v2174
    %2619 = vmatpush1.bf16.msra.mxu0 %v2173
    %2620 = vmatprep.subr.bf16.mxu0 %v2170
    %2621 = vmatpush1.bf16.msra.mxu0 %v2169
    %2622 = vmatprep.subr.bf16.mxu0 %v2166
    %2623 = vmatpush1.bf16.msra.mxu0 %v2165
    %2624 = vmatprep.subr.bf16.mxu0 %v2226
    %2625 = vmatpush2.bf16.msra.mxu0 %v2225
    %2626 = vmatprep.subr.bf16.mxu0 %v2222
    %2627 = vmatpush2.bf16.msra.mxu0 %v2221
    %2628 = vmatprep.subr.bf16.mxu0 %v2218
    %2629 = vmatpush2.bf16.msra.mxu0 %v2217
    %2630 = vmatprep.subr.bf16.mxu0 %v2214
    %2631 = vmatpush2.bf16.msra.mxu0 %v2213
    %2632 = vmatprep.subr.bf16.mxu0 %v2210
    %2633 = vmatpush2.bf16.msra.mxu0 %v2209
    %2634 = vmatprep.subr.bf16.mxu0 %v2206
    %2635 = vmatpush2.bf16.msra.mxu0 %v2205
    %2636 = vmatprep.subr.bf16.mxu0 %v2202
    %2637 = vmatpush2.bf16.msra.mxu0 %v2201
    %2638 = vmatprep.subr.bf16.mxu0 %v2198
    %2639 = vmatpush2.bf16.msra.mxu0 %v2197
    %2640 = vmatprep.mubr.bf16.mxu0 %v1204
    %2641 = vmatmul.mubr.bf16.gmra.mxu0 %v1203
    %v2642 = vpop.f32.mrf.mxu0
    %v2643 = vadd.f32 %v2602, %v2642
    %v2644 = vpop.f32.mrf.mxu0
    %v2645 = vadd.f32 %v2604, %v2644
    %v2646 = vpop.f32.mrf.mxu0
    %v2647 = vpop.f32.mrf.mxu0
    %2648 = vdwg.mxu0
    %2649 = vmatprep.subr.bf16.mxu0 %v2004
    %2650 = vmatpush1.bf16.msra.mxu0 %v2003
    %2651 = vmatprep.subr.bf16.mxu0 %v2000
    %2652 = vmatpush1.bf16.msra.mxu0 %v1999
    %2653 = vmatprep.subr.bf16.mxu0 %v1996
    %2654 = vmatpush1.bf16.msra.mxu0 %v1995
    %2655 = vmatprep.subr.bf16.mxu0 %v1992
    %2656 = vmatpush1.bf16.msra.mxu0 %v1991
    %2657 = vmatprep.subr.bf16.mxu0 %v1988
    %2658 = vmatpush1.bf16.msra.mxu0 %v1987
    %2659 = vmatprep.subr.bf16.mxu0 %v1984
    %2660 = vmatpush1.bf16.msra.mxu0 %v1983
    %2661 = vmatprep.subr.bf16.mxu0 %v1980
    %2662 = vmatpush1.bf16.msra.mxu0 %v1979
    %2663 = vmatprep.subr.bf16.mxu0 %v1976
    %2664 = vmatpush1.bf16.msra.mxu0 %v1975
    %2665 = vmatprep.subr.bf16.mxu0 %v2036
    %2666 = vmatpush2.bf16.msra.mxu0 %v2035
    %2667 = vmatprep.subr.bf16.mxu0 %v2032
    %2668 = vmatpush2.bf16.msra.mxu0 %v2031
    %2669 = vmatprep.subr.bf16.mxu0 %v2028
    %2670 = vmatpush2.bf16.msra.mxu0 %v2027
    %2671 = vmatprep.subr.bf16.mxu0 %v2024
    %2672 = vmatpush2.bf16.msra.mxu0 %v2023
    %2673 = vmatprep.subr.bf16.mxu0 %v2020
    %2674 = vmatpush2.bf16.msra.mxu0 %v2019
    %2675 = vmatprep.subr.bf16.mxu0 %v2016
    %2676 = vmatpush2.bf16.msra.mxu0 %v2015
    %2677 = vmatprep.subr.bf16.mxu0 %v2012
    %2678 = vmatpush2.bf16.msra.mxu0 %v2011
    %2679 = vmatprep.subr.bf16.mxu0 %v2008
    %2680 = vmatpush2.bf16.msra.mxu0 %v2007
    %2681 = vmatprep.mubr.bf16.mxu0 %v1198
    %2682 = vmatmul.mubr.bf16.gmra.mxu0 %v1197
    %v2683 = vpop.f32.mrf.mxu0
    %v2684 = vadd.f32 0.0, %v2683
    %v2685 = vpop.f32.mrf.mxu0
    %v2686 = vadd.f32 0.0, %v2685
    %v2687 = vpop.f32.mrf.mxu0
    %v2688 = vpop.f32.mrf.mxu0
    %2689 = vdwg.mxu0
    %2690 = vmatprep.subr.bf16.mxu0 %v2068
    %2691 = vmatpush1.bf16.msra.mxu0 %v2067
    %2692 = vmatprep.subr.bf16.mxu0 %v2064
    %2693 = vmatpush1.bf16.msra.mxu0 %v2063
    %2694 = vmatprep.subr.bf16.mxu0 %v2060
    %2695 = vmatpush1.bf16.msra.mxu0 %v2059
    %2696 = vmatprep.subr.bf16.mxu0 %v2056
    %2697 = vmatpush1.bf16.msra.mxu0 %v2055
    %2698 = vmatprep.subr.bf16.mxu0 %v2052
    %2699 = vmatpush1.bf16.msra.mxu0 %v2051
    %2700 = vmatprep.subr.bf16.mxu0 %v2048
    %2701 = vmatpush1.bf16.msra.mxu0 %v2047
    %2702 = vmatprep.subr.bf16.mxu0 %v2044
    %2703 = vmatpush1.bf16.msra.mxu0 %v2043
    %2704 = vmatprep.subr.bf16.mxu0 %v2040
    %2705 = vmatpush1.bf16.msra.mxu0 %v2039
    %2706 = vmatprep.subr.bf16.mxu0 %v2100
    %2707 = vmatpush2.bf16.msra.mxu0 %v2099
    %2708 = vmatprep.subr.bf16.mxu0 %v2096
    %2709 = vmatpush2.bf16.msra.mxu0 %v2095
    %2710 = vmatprep.subr.bf16.mxu0 %v2092
    %2711 = vmatpush2.bf16.msra.mxu0 %v2091
    %2712 = vmatprep.subr.bf16.mxu0 %v2088
    %2713 = vmatpush2.bf16.msra.mxu0 %v2087
    %2714 = vmatprep.subr.bf16.mxu0 %v2084
    %2715 = vmatpush2.bf16.msra.mxu0 %v2083
    %2716 = vmatprep.subr.bf16.mxu0 %v2080
    %2717 = vmatpush2.bf16.msra.mxu0 %v2079
    %2718 = vmatprep.subr.bf16.mxu0 %v2076
    %2719 = vmatpush2.bf16.msra.mxu0 %v2075
    %2720 = vmatprep.subr.bf16.mxu0 %v2072
    %2721 = vmatpush2.bf16.msra.mxu0 %v2071
    %2722 = vmatprep.mubr.bf16.mxu0 %v1200
    %2723 = vmatmul.mubr.bf16.gmra.mxu0 %v1199
    %v2724 = vpop.f32.mrf.mxu0
    %v2725 = vadd.f32 %v2684, %v2724
    %v2726 = vpop.f32.mrf.mxu0
    %v2727 = vadd.f32 %v2686, %v2726
    %v2728 = vpop.f32.mrf.mxu0
    %v2729 = vpop.f32.mrf.mxu0
    %2730 = vdwg.mxu0
    %2731 = vmatprep.subr.bf16.mxu0 %v2132
    %2732 = vmatpush1.bf16.msra.mxu0 %v2131
    %2733 = vmatprep.subr.bf16.mxu0 %v2128
    %2734 = vmatpush1.bf16.msra.mxu0 %v2127
    %2735 = vmatprep.subr.bf16.mxu0 %v2124
    %2736 = vmatpush1.bf16.msra.mxu0 %v2123
    %2737 = vmatprep.subr.bf16.mxu0 %v2120
    %2738 = vmatpush1.bf16.msra.mxu0 %v2119
    %2739 = vmatprep.subr.bf16.mxu0 %v2116
    %2740 = vmatpush1.bf16.msra.mxu0 %v2115
    %2741 = vmatprep.subr.bf16.mxu0 %v2112
    %2742 = vmatpush1.bf16.msra.mxu0 %v2111
    %2743 = vmatprep.subr.bf16.mxu0 %v2108
    %2744 = vmatpush1.bf16.msra.mxu0 %v2107
    %2745 = vmatprep.subr.bf16.mxu0 %v2104
    %2746 = vmatpush1.bf16.msra.mxu0 %v2103
    %2747 = vmatprep.subr.bf16.mxu0 %v2164
    %2748 = vmatpush2.bf16.msra.mxu0 %v2163
    %2749 = vmatprep.subr.bf16.mxu0 %v2160
    %2750 = vmatpush2.bf16.msra.mxu0 %v2159
    %2751 = vmatprep.subr.bf16.mxu0 %v2156
    %2752 = vmatpush2.bf16.msra.mxu0 %v2155
    %2753 = vmatprep.subr.bf16.mxu0 %v2152
    %2754 = vmatpush2.bf16.msra.mxu0 %v2151
    %2755 = vmatprep.subr.bf16.mxu0 %v2148
    %2756 = vmatpush2.bf16.msra.mxu0 %v2147
    %2757 = vmatprep.subr.bf16.mxu0 %v2144
    %2758 = vmatpush2.bf16.msra.mxu0 %v2143
    %2759 = vmatprep.subr.bf16.mxu0 %v2140
    %2760 = vmatpush2.bf16.msra.mxu0 %v2139
    %2761 = vmatprep.subr.bf16.mxu0 %v2136
    %2762 = vmatpush2.bf16.msra.mxu0 %v2135
    %2763 = vmatprep.mubr.bf16.mxu0 %v1202
    %2764 = vmatmul.mubr.bf16.gmra.mxu0 %v1201
    %v2765 = vpop.f32.mrf.mxu0
    %v2766 = vadd.f32 %v2725, %v2765
    %v2767 = vpop.f32.mrf.mxu0
    %v2768 = vadd.f32 %v2727, %v2767
    %v2769 = vpop.f32.mrf.mxu0
    %v2770 = vpop.f32.mrf.mxu0
    %2771 = vdwg.mxu0
    %2772 = vmatprep.subr.bf16.mxu0 %v2196
    %2773 = vmatpush1.bf16.msra.mxu0 %v2195
    %2774 = vmatprep.subr.bf16.mxu0 %v2192
    %2775 = vmatpush1.bf16.msra.mxu0 %v2191
    %2776 = vmatprep.subr.bf16.mxu0 %v2188
    %2777 = vmatpush1.bf16.msra.mxu0 %v2187
    %2778 = vmatprep.subr.bf16.mxu0 %v2184
    %2779 = vmatpush1.bf16.msra.mxu0 %v2183
    %2780 = vmatprep.subr.bf16.mxu0 %v2180
    %2781 = vmatpush1.bf16.msra.mxu0 %v2179
    %2782 = vmatprep.subr.bf16.mxu0 %v2176
    %2783 = vmatpush1.bf16.msra.mxu0 %v2175
    %2784 = vmatprep.subr.bf16.mxu0 %v2172
    %2785 = vmatpush1.bf16.msra.mxu0 %v2171
    %2786 = vmatprep.subr.bf16.mxu0 %v2168
    %2787 = vmatpush1.bf16.msra.mxu0 %v2167
    %2788 = vmatprep.subr.bf16.mxu0 %v2228
    %2789 = vmatpush2.bf16.msra.mxu0 %v2227
    %2790 = vmatprep.subr.bf16.mxu0 %v2224
    %2791 = vmatpush2.bf16.msra.mxu0 %v2223
    %2792 = vmatprep.subr.bf16.mxu0 %v2220
    %2793 = vmatpush2.bf16.msra.mxu0 %v2219
    %2794 = vmatprep.subr.bf16.mxu0 %v2216
    %2795 = vmatpush2.bf16.msra.mxu0 %v2215
    %2796 = vmatprep.subr.bf16.mxu0 %v2212
    %2797 = vmatpush2.bf16.msra.mxu0 %v2211
    %2798 = vmatprep.subr.bf16.mxu0 %v2208
    %2799 = vmatpush2.bf16.msra.mxu0 %v2207
    %2800 = vmatprep.subr.bf16.mxu0 %v2204
    %2801 = vmatpush2.bf16.msra.mxu0 %v2203
    %2802 = vmatprep.subr.bf16.mxu0 %v2200
    %2803 = vmatpush2.bf16.msra.mxu0 %v2199
    %2804 = vmatprep.mubr.bf16.mxu0 %v1204
    %2805 = vmatmul.mubr.bf16.gmra.mxu0 %v1203
    %v2806 = vpop.f32.mrf.mxu0
    %v2807 = vadd.f32 %v2766, %v2806
    %v2808 = vpop.f32.mrf.mxu0
    %v2809 = vadd.f32 %v2768, %v2808
    %v2810 = vpop.f32.mrf.mxu0
    %v2811 = vpop.f32.mrf.mxu0
    %2812 = vdwg.mxu0
    %vm2813 = vcmp.ge.f32.partialorder %v2643, 0.0
    %vm2814 = vcmp.ge.f32.partialorder %v2645, 0.0
    %vm2815 = vcmp.ge.f32.partialorder %v2807, 0.0
    %vm2816 = vcmp.ge.f32.partialorder %v2809, 0.0
    %v2817 = vmul.f32 %v2643, 0.01
    %v2818 = vmul.f32 %v2645, 0.01
    %v2819 = vmul.f32 %v2807, 0.01
    %v2820 = vmul.f32 %v2809, 0.01
    %v2821 = vsel %vm2813, %v2643, %v2817
    %v2822 = vsel %vm2814, %v2645, %v2818
    %v2823 = vsel %vm2815, %v2807, %v2819
    %v2824 = vsel %vm2816, %v2809, %v2820
    %v2825 = vpack.c.bf16 %v2821, %v2821
    %v2826 = vpack.c.bf16 %v2822, %v2822
    %v2827 = vpack.c.bf16 %v2823, %v2823
    %v2828 = vpack.c.bf16 %v2824, %v2824
    %v2893 = vunpack.c.l.b16 %v354
    %v2894 = vunpack.c.l.b16 %v355
    %v2895 = vunpack.c.l.b16 %v356
    %v2896 = vunpack.c.l.b16 %v357
    %v2897 = vunpack.c.l.b16 %v358
    %v2898 = vunpack.c.l.b16 %v359
    %v2899 = vunpack.c.l.b16 %v360
    %v2900 = vunpack.c.l.b16 %v361
    %v2901 = vunpack.c.l.b16 %v362
    %v2902 = vunpack.c.l.b16 %v363
    %v2903 = vunpack.c.l.b16 %v364
    %v2904 = vunpack.c.l.b16 %v365
    %v2905 = vunpack.c.l.b16 %v366
    %v2906 = vunpack.c.l.b16 %v367
    %v2907 = vunpack.c.l.b16 %v368
    %v2908 = vunpack.c.l.b16 %v369
    %v2909 = vunpack.c.l.b16 %v370
    %v2910 = vunpack.c.l.b16 %v371
    %v2911 = vunpack.c.l.b16 %v372
    %v2912 = vunpack.c.l.b16 %v373
    %v2913 = vunpack.c.l.b16 %v374
    %v2914 = vunpack.c.l.b16 %v375
    %v2915 = vunpack.c.l.b16 %v376
    %v2916 = vunpack.c.l.b16 %v377
    %v2917 = vunpack.c.l.b16 %v378
    %v2918 = vunpack.c.l.b16 %v379
    %v2919 = vunpack.c.l.b16 %v380
    %v2920 = vunpack.c.l.b16 %v381
    %v2921 = vunpack.c.l.b16 %v382
    %v2922 = vunpack.c.l.b16 %v383
    %v2923 = vunpack.c.l.b16 %v384
    %v2924 = vunpack.c.l.b16 %v385
    %v2925 = vunpack.c.l.b16 %v386
    %v2926 = vunpack.c.l.b16 %v387
    %v2927 = vunpack.c.l.b16 %v388
    %v2928 = vunpack.c.l.b16 %v389
    %v2929 = vunpack.c.l.b16 %v390
    %v2930 = vunpack.c.l.b16 %v391
    %v2931 = vunpack.c.l.b16 %v392
    %v2932 = vunpack.c.l.b16 %v393
    %v2933 = vunpack.c.l.b16 %v394
    %v2934 = vunpack.c.l.b16 %v395
    %v2935 = vunpack.c.l.b16 %v396
    %v2936 = vunpack.c.l.b16 %v397
    %v2937 = vunpack.c.l.b16 %v398
    %v2938 = vunpack.c.l.b16 %v399
    %v2939 = vunpack.c.l.b16 %v400
    %v2940 = vunpack.c.l.b16 %v401
    %v2941 = vunpack.c.l.b16 %v402
    %v2942 = vunpack.c.l.b16 %v403
    %v2943 = vunpack.c.l.b16 %v404
    %v2944 = vunpack.c.l.b16 %v405
    %v2945 = vunpack.c.l.b16 %v406
    %v2946 = vunpack.c.l.b16 %v407
    %v2947 = vunpack.c.l.b16 %v408
    %v2948 = vunpack.c.l.b16 %v409
    %v2949 = vunpack.c.l.b16 %v410
    %v2950 = vunpack.c.l.b16 %v411
    %v2951 = vunpack.c.l.b16 %v412
    %v2952 = vunpack.c.l.b16 %v413
    %v2953 = vunpack.c.l.b16 %v414
    %v2954 = vunpack.c.l.b16 %v415
    %v2955 = vunpack.c.l.b16 %v416
    %v2956 = vunpack.c.l.b16 %v417
    %v2957 = vpack.c.b16 %v2894, %v2893
    %v2958 = vpack.c.b16 %v2896, %v2895
    %v2959 = vpack.c.b16 %v2898, %v2897
    %v2960 = vpack.c.b16 %v2900, %v2899
    %v2961 = vpack.c.b16 %v2902, %v2901
    %v2962 = vpack.c.b16 %v2904, %v2903
    %v2963 = vpack.c.b16 %v2906, %v2905
    %v2964 = vpack.c.b16 %v2908, %v2907
    %v2965 = vpack.c.b16 %v2910, %v2909
    %v2966 = vpack.c.b16 %v2912, %v2911
    %v2967 = vpack.c.b16 %v2914, %v2913
    %v2968 = vpack.c.b16 %v2916, %v2915
    %v2969 = vpack.c.b16 %v2918, %v2917
    %v2970 = vpack.c.b16 %v2920, %v2919
    %v2971 = vpack.c.b16 %v2922, %v2921
    %v2972 = vpack.c.b16 %v2924, %v2923
    %v2973 = vpack.c.b16 %v2926, %v2925
    %v2974 = vpack.c.b16 %v2928, %v2927
    %v2975 = vpack.c.b16 %v2930, %v2929
    %v2976 = vpack.c.b16 %v2932, %v2931
    %v2977 = vpack.c.b16 %v2934, %v2933
    %v2978 = vpack.c.b16 %v2936, %v2935
    %v2979 = vpack.c.b16 %v2938, %v2937
    %v2980 = vpack.c.b16 %v2940, %v2939
    %v2981 = vpack.c.b16 %v2942, %v2941
    %v2982 = vpack.c.b16 %v2944, %v2943
    %v2983 = vpack.c.b16 %v2946, %v2945
    %v2984 = vpack.c.b16 %v2948, %v2947
    %v2985 = vpack.c.b16 %v2950, %v2949
    %v2986 = vpack.c.b16 %v2952, %v2951
    %v2987 = vpack.c.b16 %v2954, %v2953
    %v2988 = vpack.c.b16 %v2956, %v2955
    %3021 = vmatprep.subr.bf16.mxu0 0
    %3022 = vmatpush1.bf16.msra.mxu0 %v2964
    %3023 = vmatprep.subr.bf16.mxu0 0
    %3024 = vmatpush1.bf16.msra.mxu0 %v2963
    %3025 = vmatprep.subr.bf16.mxu0 0
    %3026 = vmatpush1.bf16.msra.mxu0 %v2962
    %3027 = vmatprep.subr.bf16.mxu0 0
    %3028 = vmatpush1.bf16.msra.mxu0 %v2961
    %3029 = vmatprep.subr.bf16.mxu0 0
    %3030 = vmatpush1.bf16.msra.mxu0 %v2960
    %3031 = vmatprep.subr.bf16.mxu0 0
    %3032 = vmatpush1.bf16.msra.mxu0 %v2959
    %3033 = vmatprep.subr.bf16.mxu0 0
    %3034 = vmatpush1.bf16.msra.mxu0 %v2958
    %3035 = vmatprep.subr.bf16.mxu0 0
    %3036 = vmatpush1.bf16.msra.mxu0 %v2957
    %3037 = vmatprep.subr.bf16.mxu0 0
    %3038 = vmatpush2.bf16.msra.mxu0 %v2972
    %3039 = vmatprep.subr.bf16.mxu0 0
    %3040 = vmatpush2.bf16.msra.mxu0 %v2971
    %3041 = vmatprep.subr.bf16.mxu0 0
    %3042 = vmatpush2.bf16.msra.mxu0 %v2970
    %3043 = vmatprep.subr.bf16.mxu0 0
    %3044 = vmatpush2.bf16.msra.mxu0 %v2969
    %3045 = vmatprep.subr.bf16.mxu0 0
    %3046 = vmatpush2.bf16.msra.mxu0 %v2968
    %3047 = vmatprep.subr.bf16.mxu0 0
    %3048 = vmatpush2.bf16.msra.mxu0 %v2967
    %3049 = vmatprep.subr.bf16.mxu0 0
    %3050 = vmatpush2.bf16.msra.mxu0 %v2966
    %3051 = vmatprep.subr.bf16.mxu0 0
    %3052 = vmatpush2.bf16.msra.mxu0 %v2965
    %3053 = vmatprep.mubr.bf16.mxu0 %v2826
    %3054 = vmatmul.mubr.bf16.gmra.mxu0 %v2825
    %v3055 = vpop.f32.mrf.mxu0
    %v3056 = vadd.f32 0.0, %v3055
    %v3057 = vpop.f32.mrf.mxu0
    %v3058 = vpop.f32.mrf.mxu0
    %v3059 = vpop.f32.mrf.mxu0
    %3060 = vdwg.mxu0
    %3061 = vmatprep.subr.bf16.mxu0 0
    %3062 = vmatpush1.bf16.msra.mxu0 %v2980
    %3063 = vmatprep.subr.bf16.mxu0 0
    %3064 = vmatpush1.bf16.msra.mxu0 %v2979
    %3065 = vmatprep.subr.bf16.mxu0 0
    %3066 = vmatpush1.bf16.msra.mxu0 %v2978
    %3067 = vmatprep.subr.bf16.mxu0 0
    %3068 = vmatpush1.bf16.msra.mxu0 %v2977
    %3069 = vmatprep.subr.bf16.mxu0 0
    %3070 = vmatpush1.bf16.msra.mxu0 %v2976
    %3071 = vmatprep.subr.bf16.mxu0 0
    %3072 = vmatpush1.bf16.msra.mxu0 %v2975
    %3073 = vmatprep.subr.bf16.mxu0 0
    %3074 = vmatpush1.bf16.msra.mxu0 %v2974
    %3075 = vmatprep.subr.bf16.mxu0 0
    %3076 = vmatpush1.bf16.msra.mxu0 %v2973
    %3077 = vmatprep.subr.bf16.mxu0 0
    %3078 = vmatpush2.bf16.msra.mxu0 %v2988
    %3079 = vmatprep.subr.bf16.mxu0 0
    %3080 = vmatpush2.bf16.msra.mxu0 %v2987
    %3081 = vmatprep.subr.bf16.mxu0 0
    %3082 = vmatpush2.bf16.msra.mxu0 %v2986
    %3083 = vmatprep.subr.bf16.mxu0 0
    %3084 = vmatpush2.bf16.msra.mxu0 %v2985
    %3085 = vmatprep.subr.bf16.mxu0 0
    %3086 = vmatpush2.bf16.msra.mxu0 %v2984
    %3087 = vmatprep.subr.bf16.mxu0 0
    %3088 = vmatpush2.bf16.msra.mxu0 %v2983
    %3089 = vmatprep.subr.bf16.mxu0 0
    %3090 = vmatpush2.bf16.msra.mxu0 %v2982
    %3091 = vmatprep.subr.bf16.mxu0 0
    %3092 = vmatpush2.bf16.msra.mxu0 %v2981
    %3093 = vmatprep.mubr.bf16.mxu0 %v2828
    %3094 = vmatmul.mubr.bf16.gmra.mxu0 %v2827
    %v3095 = vpop.f32.mrf.mxu0
    %v3096 = vadd.f32 %v3056, %v3095
    %v3097 = vpop.f32.mrf.mxu0
    %v3098 = vpop.f32.mrf.mxu0
    %v3099 = vpop.f32.mrf.mxu0
    %3100 = vdwg.mxu0
    %vm3101 = vcmp.ge.f32.partialorder %v3096, 0.0
    %v3102 = vmul.f32 %v3096, 0.01
    %v3103 = vsel %vm3101, %v3096, %v3102
    %v3104 = vpack.c.bf16 %v65, %v65
    %v3137 = vunpack.c.l.b16 %v418
    %v3138 = vunpack.c.h.b16 %v418
    %v3139 = vunpack.c.l.b16 %v419
    %v3140 = vunpack.c.h.b16 %v419
    %v3141 = vunpack.c.l.b16 %v420
    %v3142 = vunpack.c.h.b16 %v420
    %v3143 = vunpack.c.l.b16 %v421
    %v3144 = vunpack.c.h.b16 %v421
    %v3145 = vunpack.c.l.b16 %v422
    %v3146 = vunpack.c.h.b16 %v422
    %v3147 = vunpack.c.l.b16 %v423
    %v3148 = vunpack.c.h.b16 %v423
    %v3149 = vunpack.c.l.b16 %v424
    %v3150 = vunpack.c.h.b16 %v424
    %v3151 = vunpack.c.l.b16 %v425
    %v3152 = vunpack.c.h.b16 %v425
    %v3153 = vunpack.c.l.b16 %v426
    %v3154 = vunpack.c.h.b16 %v426
    %v3155 = vunpack.c.l.b16 %v427
    %v3156 = vunpack.c.h.b16 %v427
    %v3157 = vunpack.c.l.b16 %v428
    %v3158 = vunpack.c.h.b16 %v428
    %v3159 = vunpack.c.l.b16 %v429
    %v3160 = vunpack.c.h.b16 %v429
    %v3161 = vunpack.c.l.b16 %v430
    %v3162 = vunpack.c.h.b16 %v430
    %v3163 = vunpack.c.l.b16 %v431
    %v3164 = vunpack.c.h.b16 %v431
    %v3165 = vunpack.c.l.b16 %v432
    %v3166 = vunpack.c.h.b16 %v432
    %v3167 = vunpack.c.l.b16 %v433
    %v3168 = vunpack.c.h.b16 %v433
    %v3169 = vunpack.c.l.b16 %v434
    %v3170 = vunpack.c.h.b16 %v434
    %v3171 = vunpack.c.l.b16 %v435
    %v3172 = vunpack.c.h.b16 %v435
    %v3173 = vunpack.c.l.b16 %v436
    %v3174 = vunpack.c.h.b16 %v436
    %v3175 = vunpack.c.l.b16 %v437
    %v3176 = vunpack.c.h.b16 %v437
    %v3177 = vunpack.c.l.b16 %v438
    %v3178 = vunpack.c.h.b16 %v438
    %v3179 = vunpack.c.l.b16 %v439
    %v3180 = vunpack.c.h.b16 %v439
    %v3181 = vunpack.c.l.b16 %v440
    %v3182 = vunpack.c.h.b16 %v440
    %v3183 = vunpack.c.l.b16 %v441
    %v3184 = vunpack.c.h.b16 %v441
    %v3185 = vunpack.c.l.b16 %v442
    %v3186 = vunpack.c.h.b16 %v442
    %v3187 = vunpack.c.l.b16 %v443
    %v3188 = vunpack.c.h.b16 %v443
    %v3189 = vunpack.c.l.b16 %v444
    %v3190 = vunpack.c.h.b16 %v444
    %v3191 = vunpack.c.l.b16 %v445
    %v3192 = vunpack.c.h.b16 %v445
    %v3193 = vunpack.c.l.b16 %v446
    %v3194 = vunpack.c.h.b16 %v446
    %v3195 = vunpack.c.l.b16 %v447
    %v3196 = vunpack.c.h.b16 %v447
    %v3197 = vunpack.c.l.b16 %v448
    %v3198 = vunpack.c.h.b16 %v448
    %v3199 = vunpack.c.l.b16 %v449
    %v3200 = vunpack.c.h.b16 %v449
    %v3201 = vpack.c.b16 %v3145, %v3137
    %v3202 = vpack.c.b16 %v3146, %v3138
    %v3203 = vpack.c.b16 %v3147, %v3139
    %v3204 = vpack.c.b16 %v3148, %v3140
    %v3205 = vpack.c.b16 %v3149, %v3141
    %v3206 = vpack.c.b16 %v3150, %v3142
    %v3207 = vpack.c.b16 %v3151, %v3143
    %v3208 = vpack.c.b16 %v3152, %v3144
    %v3209 = vpack.c.b16 %v3161, %v3153
    %v3210 = vpack.c.b16 %v3162, %v3154
    %v3211 = vpack.c.b16 %v3163, %v3155
    %v3212 = vpack.c.b16 %v3164, %v3156
    %v3213 = vpack.c.b16 %v3165, %v3157
    %v3214 = vpack.c.b16 %v3166, %v3158
    %v3215 = vpack.c.b16 %v3167, %v3159
    %v3216 = vpack.c.b16 %v3168, %v3160
    %v3217 = vpack.c.b16 %v3177, %v3169
    %v3218 = vpack.c.b16 %v3178, %v3170
    %v3219 = vpack.c.b16 %v3179, %v3171
    %v3220 = vpack.c.b16 %v3180, %v3172
    %v3221 = vpack.c.b16 %v3181, %v3173
    %v3222 = vpack.c.b16 %v3182, %v3174
    %v3223 = vpack.c.b16 %v3183, %v3175
    %v3224 = vpack.c.b16 %v3184, %v3176
    %v3225 = vpack.c.b16 %v3193, %v3185
    %v3226 = vpack.c.b16 %v3194, %v3186
    %v3227 = vpack.c.b16 %v3195, %v3187
    %v3228 = vpack.c.b16 %v3196, %v3188
    %v3229 = vpack.c.b16 %v3197, %v3189
    %v3230 = vpack.c.b16 %v3198, %v3190
    %v3231 = vpack.c.b16 %v3199, %v3191
    %v3232 = vpack.c.b16 %v3200, %v3192
    %v3266 = vsel %vm1005, %v3104, 0
    %3268 = vmatprep.subr.bf16.mxu0 0
    %3269 = vmatpush1.bf16.msra.mxu0 0
    %3270 = vmatprep.subr.bf16.mxu0 0
    %3271 = vmatpush1.bf16.msra.mxu0 0
    %3272 = vmatprep.subr.bf16.mxu0 0
    %3273 = vmatpush1.bf16.msra.mxu0 0
    %3274 = vmatprep.subr.bf16.mxu0 0
    %3275 = vmatpush1.bf16.msra.mxu0 0
    %3276 = vmatprep.subr.bf16.mxu0 %v3226
    %3277 = vmatpush1.bf16.msra.mxu0 %v3225
    %3278 = vmatprep.subr.bf16.mxu0 %v3218
    %3279 = vmatpush1.bf16.msra.mxu0 %v3217
    %3280 = vmatprep.subr.bf16.mxu0 %v3210
    %3281 = vmatpush1.bf16.msra.mxu0 %v3209
    %3282 = vmatprep.subr.bf16.mxu0 %v3202
    %3283 = vmatpush1.bf16.msra.mxu0 %v3201
    %3284 = vmatprep.subr.bf16.mxu0 0
    %3285 = vmatpush2.bf16.msra.mxu0 0
    %3286 = vmatprep.subr.bf16.mxu0 0
    %3287 = vmatpush2.bf16.msra.mxu0 0
    %3288 = vmatprep.subr.bf16.mxu0 0
    %3289 = vmatpush2.bf16.msra.mxu0 0
    %3290 = vmatprep.subr.bf16.mxu0 0
    %3291 = vmatpush2.bf16.msra.mxu0 0
    %3292 = vmatprep.subr.bf16.mxu0 0
    %3293 = vmatpush2.bf16.msra.mxu0 0
    %3294 = vmatprep.subr.bf16.mxu0 0
    %3295 = vmatpush2.bf16.msra.mxu0 0
    %3296 = vmatprep.subr.bf16.mxu0 0
    %3297 = vmatpush2.bf16.msra.mxu0 0
    %3298 = vmatprep.subr.bf16.mxu0 0
    %3299 = vmatpush2.bf16.msra.mxu0 0
    %3300 = vmatprep.mubr.bf16.mxu0 0
    %3301 = vmatmul.mubr.bf16.gmra.mxu0 %v3266
    %v3302 = vpop.f32.mrf.mxu0
    %v3303 = vadd.f32 0.0, %v3302
    %v3304 = vpop.f32.mrf.mxu0
    %v3305 = vadd.f32 0.0, %v3304
    %v3306 = vpop.f32.mrf.mxu0
    %v3307 = vpop.f32.mrf.mxu0
    %3308 = vdwg.mxu0
    %3309 = vmatprep.subr.bf16.mxu0 0
    %3310 = vmatpush1.bf16.msra.mxu0 0
    %3311 = vmatprep.subr.bf16.mxu0 0
    %3312 = vmatpush1.bf16.msra.mxu0 0
    %3313 = vmatprep.subr.bf16.mxu0 0
    %3314 = vmatpush1.bf16.msra.mxu0 0
    %3315 = vmatprep.subr.bf16.mxu0 0
    %3316 = vmatpush1.bf16.msra.mxu0 0
    %3317 = vmatprep.subr.bf16.mxu0 %v3228
    %3318 = vmatpush1.bf16.msra.mxu0 %v3227
    %3319 = vmatprep.subr.bf16.mxu0 %v3220
    %3320 = vmatpush1.bf16.msra.mxu0 %v3219
    %3321 = vmatprep.subr.bf16.mxu0 %v3212
    %3322 = vmatpush1.bf16.msra.mxu0 %v3211
    %3323 = vmatprep.subr.bf16.mxu0 %v3204
    %3324 = vmatpush1.bf16.msra.mxu0 %v3203
    %3325 = vmatprep.subr.bf16.mxu0 0
    %3326 = vmatpush2.bf16.msra.mxu0 0
    %3327 = vmatprep.subr.bf16.mxu0 0
    %3328 = vmatpush2.bf16.msra.mxu0 0
    %3329 = vmatprep.subr.bf16.mxu0 0
    %3330 = vmatpush2.bf16.msra.mxu0 0
    %3331 = vmatprep.subr.bf16.mxu0 0
    %3332 = vmatpush2.bf16.msra.mxu0 0
    %3333 = vmatprep.subr.bf16.mxu0 0
    %3334 = vmatpush2.bf16.msra.mxu0 0
    %3335 = vmatprep.subr.bf16.mxu0 0
    %3336 = vmatpush2.bf16.msra.mxu0 0
    %3337 = vmatprep.subr.bf16.mxu0 0
    %3338 = vmatpush2.bf16.msra.mxu0 0
    %3339 = vmatprep.subr.bf16.mxu0 0
    %3340 = vmatpush2.bf16.msra.mxu0 0
    %3341 = vmatprep.mubr.bf16.mxu0 0
    %3342 = vmatmul.mubr.bf16.gmra.mxu0 %v3266
    %v3343 = vpop.f32.mrf.mxu0
    %v3344 = vadd.f32 0.0, %v3343
    %v3345 = vpop.f32.mrf.mxu0
    %v3346 = vadd.f32 0.0, %v3345
    %v3347 = vpop.f32.mrf.mxu0
    %v3348 = vpop.f32.mrf.mxu0
    %3349 = vdwg.mxu0
    %3350 = vmatprep.subr.bf16.mxu0 0
    %3351 = vmatpush1.bf16.msra.mxu0 0
    %3352 = vmatprep.subr.bf16.mxu0 0
    %3353 = vmatpush1.bf16.msra.mxu0 0
    %3354 = vmatprep.subr.bf16.mxu0 0
    %3355 = vmatpush1.bf16.msra.mxu0 0
    %3356 = vmatprep.subr.bf16.mxu0 0
    %3357 = vmatpush1.bf16.msra.mxu0 0
    %3358 = vmatprep.subr.bf16.mxu0 %v3230
    %3359 = vmatpush1.bf16.msra.mxu0 %v3229
    %3360 = vmatprep.subr.bf16.mxu0 %v3222
    %3361 = vmatpush1.bf16.msra.mxu0 %v3221
    %3362 = vmatprep.subr.bf16.mxu0 %v3214
    %3363 = vmatpush1.bf16.msra.mxu0 %v3213
    %3364 = vmatprep.subr.bf16.mxu0 %v3206
    %3365 = vmatpush1.bf16.msra.mxu0 %v3205
    %3366 = vmatprep.subr.bf16.mxu0 0
    %3367 = vmatpush2.bf16.msra.mxu0 0
    %3368 = vmatprep.subr.bf16.mxu0 0
    %3369 = vmatpush2.bf16.msra.mxu0 0
    %3370 = vmatprep.subr.bf16.mxu0 0
    %3371 = vmatpush2.bf16.msra.mxu0 0
    %3372 = vmatprep.subr.bf16.mxu0 0
    %3373 = vmatpush2.bf16.msra.mxu0 0
    %3374 = vmatprep.subr.bf16.mxu0 0
    %3375 = vmatpush2.bf16.msra.mxu0 0
    %3376 = vmatprep.subr.bf16.mxu0 0
    %3377 = vmatpush2.bf16.msra.mxu0 0
    %3378 = vmatprep.subr.bf16.mxu0 0
    %3379 = vmatpush2.bf16.msra.mxu0 0
    %3380 = vmatprep.subr.bf16.mxu0 0
    %3381 = vmatpush2.bf16.msra.mxu0 0
    %3382 = vmatprep.mubr.bf16.mxu0 0
    %3383 = vmatmul.mubr.bf16.gmra.mxu0 %v3266
    %v3384 = vpop.f32.mrf.mxu0
    %v3385 = vadd.f32 0.0, %v3384
    %v3386 = vpop.f32.mrf.mxu0
    %v3387 = vadd.f32 0.0, %v3386
    %v3388 = vpop.f32.mrf.mxu0
    %v3389 = vpop.f32.mrf.mxu0
    %3390 = vdwg.mxu0
    %3391 = vmatprep.subr.bf16.mxu0 0
    %3392 = vmatpush1.bf16.msra.mxu0 0
    %3393 = vmatprep.subr.bf16.mxu0 0
    %3394 = vmatpush1.bf16.msra.mxu0 0
    %3395 = vmatprep.subr.bf16.mxu0 0
    %3396 = vmatpush1.bf16.msra.mxu0 0
    %3397 = vmatprep.subr.bf16.mxu0 0
    %3398 = vmatpush1.bf16.msra.mxu0 0
    %3399 = vmatprep.subr.bf16.mxu0 %v3232
    %3400 = vmatpush1.bf16.msra.mxu0 %v3231
    %3401 = vmatprep.subr.bf16.mxu0 %v3224
    %3402 = vmatpush1.bf16.msra.mxu0 %v3223
    %3403 = vmatprep.subr.bf16.mxu0 %v3216
    %3404 = vmatpush1.bf16.msra.mxu0 %v3215
    %3405 = vmatprep.subr.bf16.mxu0 %v3208
    %3406 = vmatpush1.bf16.msra.mxu0 %v3207
    %3407 = vmatprep.subr.bf16.mxu0 0
    %3408 = vmatpush2.bf16.msra.mxu0 0
    %3409 = vmatprep.subr.bf16.mxu0 0
    %3410 = vmatpush2.bf16.msra.mxu0 0
    %3411 = vmatprep.subr.bf16.mxu0 0
    %3412 = vmatpush2.bf16.msra.mxu0 0
    %3413 = vmatprep.subr.bf16.mxu0 0
    %3414 = vmatpush2.bf16.msra.mxu0 0
    %3415 = vmatprep.subr.bf16.mxu0 0
    %3416 = vmatpush2.bf16.msra.mxu0 0
    %3417 = vmatprep.subr.bf16.mxu0 0
    %3418 = vmatpush2.bf16.msra.mxu0 0
    %3419 = vmatprep.subr.bf16.mxu0 0
    %3420 = vmatpush2.bf16.msra.mxu0 0
    %3421 = vmatprep.subr.bf16.mxu0 0
    %3422 = vmatpush2.bf16.msra.mxu0 0
    %3423 = vmatprep.mubr.bf16.mxu0 0
    %3424 = vmatmul.mubr.bf16.gmra.mxu0 %v3266
    %v3425 = vpop.f32.mrf.mxu0
    %v3426 = vadd.f32 0.0, %v3425
    %v3427 = vpop.f32.mrf.mxu0
    %v3428 = vadd.f32 0.0, %v3427
    %v3429 = vpop.f32.mrf.mxu0
    %v3430 = vpop.f32.mrf.mxu0
    %3431 = vdwg.mxu0
    %vm3432 = vcmp.ge.f32.partialorder %v3303, 0.0
    %vm3433 = vcmp.ge.f32.partialorder %v3305, 0.0
    %vm3434 = vcmp.ge.f32.partialorder %v3344, 0.0
    %vm3435 = vcmp.ge.f32.partialorder %v3346, 0.0
    %vm3436 = vcmp.ge.f32.partialorder %v3385, 0.0
    %vm3437 = vcmp.ge.f32.partialorder %v3387, 0.0
    %vm3438 = vcmp.ge.f32.partialorder %v3426, 0.0
    %vm3439 = vcmp.ge.f32.partialorder %v3428, 0.0
    %v3440 = vmul.f32 %v3303, 0.01
    %v3441 = vmul.f32 %v3305, 0.01
    %v3442 = vmul.f32 %v3344, 0.01
    %v3443 = vmul.f32 %v3346, 0.01
    %v3444 = vmul.f32 %v3385, 0.01
    %v3445 = vmul.f32 %v3387, 0.01
    %v3446 = vmul.f32 %v3426, 0.01
    %v3447 = vmul.f32 %v3428, 0.01
    %v3448 = vsel %vm3432, %v3303, %v3440
    %v3449 = vsel %vm3433, %v3305, %v3441
    %v3450 = vsel %vm3434, %v3344, %v3442
    %v3451 = vsel %vm3435, %v3346, %v3443
    %v3452 = vsel %vm3436, %v3385, %v3444
    %v3453 = vsel %vm3437, %v3387, %v3445
    %v3454 = vsel %vm3438, %v3426, %v3446
    %v3455 = vsel %vm3439, %v3428, %v3447
    %v3456 = vpack.c.bf16 %v3448, %v3448
    %v3457 = vpack.c.bf16 %v3449, %v3449
    %v3458 = vpack.c.bf16 %v3450, %v3450
    %v3459 = vpack.c.bf16 %v3451, %v3451
    %v3460 = vpack.c.bf16 %v3452, %v3452
    %v3461 = vpack.c.bf16 %v3453, %v3453
    %v3462 = vpack.c.bf16 %v3454, %v3454
    %v3463 = vpack.c.bf16 %v3455, %v3455
    %v3720 = vunpack.c.l.b16 %v450
    %v3721 = vunpack.c.h.b16 %v450
    %v3722 = vunpack.c.l.b16 %v451
    %v3723 = vunpack.c.h.b16 %v451
    %v3724 = vunpack.c.l.b16 %v452
    %v3725 = vunpack.c.h.b16 %v452
    %v3726 = vunpack.c.l.b16 %v453
    %v3727 = vunpack.c.h.b16 %v453
    %v3728 = vunpack.c.l.b16 %v454
    %v3729 = vunpack.c.h.b16 %v454
    %v3730 = vunpack.c.l.b16 %v455
    %v3731 = vunpack.c.h.b16 %v455
    %v3732 = vunpack.c.l.b16 %v456
    %v3733 = vunpack.c.h.b16 %v456
    %v3734 = vunpack.c.l.b16 %v457
    %v3735 = vunpack.c.h.b16 %v457
    %v3736 = vunpack.c.l.b16 %v458
    %v3737 = vunpack.c.h.b16 %v458
    %v3738 = vunpack.c.l.b16 %v459
    %v3739 = vunpack.c.h.b16 %v459
    %v3740 = vunpack.c.l.b16 %v460
    %v3741 = vunpack.c.h.b16 %v460
    %v3742 = vunpack.c.l.b16 %v461
    %v3743 = vunpack.c.h.b16 %v461
    %v3744 = vunpack.c.l.b16 %v462
    %v3745 = vunpack.c.h.b16 %v462
    %v3746 = vunpack.c.l.b16 %v463
    %v3747 = vunpack.c.h.b16 %v463
    %v3748 = vunpack.c.l.b16 %v464
    %v3749 = vunpack.c.h.b16 %v464
    %v3750 = vunpack.c.l.b16 %v465
    %v3751 = vunpack.c.h.b16 %v465
    %v3752 = vunpack.c.l.b16 %v466
    %v3753 = vunpack.c.h.b16 %v466
    %v3754 = vunpack.c.l.b16 %v467
    %v3755 = vunpack.c.h.b16 %v467
    %v3756 = vunpack.c.l.b16 %v468
    %v3757 = vunpack.c.h.b16 %v468
    %v3758 = vunpack.c.l.b16 %v469
    %v3759 = vunpack.c.h.b16 %v469
    %v3760 = vunpack.c.l.b16 %v470
    %v3761 = vunpack.c.h.b16 %v470
    %v3762 = vunpack.c.l.b16 %v471
    %v3763 = vunpack.c.h.b16 %v471
    %v3764 = vunpack.c.l.b16 %v472
    %v3765 = vunpack.c.h.b16 %v472
    %v3766 = vunpack.c.l.b16 %v473
    %v3767 = vunpack.c.h.b16 %v473
    %v3768 = vunpack.c.l.b16 %v474
    %v3769 = vunpack.c.h.b16 %v474
    %v3770 = vunpack.c.l.b16 %v475
    %v3771 = vunpack.c.h.b16 %v475
    %v3772 = vunpack.c.l.b16 %v476
    %v3773 = vunpack.c.h.b16 %v476
    %v3774 = vunpack.c.l.b16 %v477
    %v3775 = vunpack.c.h.b16 %v477
    %v3776 = vunpack.c.l.b16 %v478
    %v3777 = vunpack.c.h.b16 %v478
    %v3778 = vunpack.c.l.b16 %v479
    %v3779 = vunpack.c.h.b16 %v479
    %v3780 = vunpack.c.l.b16 %v480
    %v3781 = vunpack.c.h.b16 %v480
    %v3782 = vunpack.c.l.b16 %v481
    %v3783 = vunpack.c.h.b16 %v481
    %v3784 = vunpack.c.l.b16 %v482
    %v3785 = vunpack.c.h.b16 %v482
    %v3786 = vunpack.c.l.b16 %v483
    %v3787 = vunpack.c.h.b16 %v483
    %v3788 = vunpack.c.l.b16 %v484
    %v3789 = vunpack.c.h.b16 %v484
    %v3790 = vunpack.c.l.b16 %v485
    %v3791 = vunpack.c.h.b16 %v485
    %v3792 = vunpack.c.l.b16 %v486
    %v3793 = vunpack.c.h.b16 %v486
    %v3794 = vunpack.c.l.b16 %v487
    %v3795 = vunpack.c.h.b16 %v487
    %v3796 = vunpack.c.l.b16 %v488
    %v3797 = vunpack.c.h.b16 %v488
    %v3798 = vunpack.c.l.b16 %v489
    %v3799 = vunpack.c.h.b16 %v489
    %v3800 = vunpack.c.l.b16 %v490
    %v3801 = vunpack.c.h.b16 %v490
    %v3802 = vunpack.c.l.b16 %v491
    %v3803 = vunpack.c.h.b16 %v491
    %v3804 = vunpack.c.l.b16 %v492
    %v3805 = vunpack.c.h.b16 %v492
    %v3806 = vunpack.c.l.b16 %v493
    %v3807 = vunpack.c.h.b16 %v493
    %v3808 = vunpack.c.l.b16 %v494
    %v3809 = vunpack.c.h.b16 %v494
    %v3810 = vunpack.c.l.b16 %v495
    %v3811 = vunpack.c.h.b16 %v495
    %v3812 = vunpack.c.l.b16 %v496
    %v3813 = vunpack.c.h.b16 %v496
    %v3814 = vunpack.c.l.b16 %v497
    %v3815 = vunpack.c.h.b16 %v497
    %v3816 = vunpack.c.l.b16 %v498
    %v3817 = vunpack.c.h.b16 %v498
    %v3818 = vunpack.c.l.b16 %v499
    %v3819 = vunpack.c.h.b16 %v499
    %v3820 = vunpack.c.l.b16 %v500
    %v3821 = vunpack.c.h.b16 %v500
    %v3822 = vunpack.c.l.b16 %v501
    %v3823 = vunpack.c.h.b16 %v501
    %v3824 = vunpack.c.l.b16 %v502
    %v3825 = vunpack.c.h.b16 %v502
    %v3826 = vunpack.c.l.b16 %v503
    %v3827 = vunpack.c.h.b16 %v503
    %v3828 = vunpack.c.l.b16 %v504
    %v3829 = vunpack.c.h.b16 %v504
    %v3830 = vunpack.c.l.b16 %v505
    %v3831 = vunpack.c.h.b16 %v505
    %v3832 = vunpack.c.l.b16 %v506
    %v3833 = vunpack.c.h.b16 %v506
    %v3834 = vunpack.c.l.b16 %v507
    %v3835 = vunpack.c.h.b16 %v507
    %v3836 = vunpack.c.l.b16 %v508
    %v3837 = vunpack.c.h.b16 %v508
    %v3838 = vunpack.c.l.b16 %v509
    %v3839 = vunpack.c.h.b16 %v509
    %v3840 = vunpack.c.l.b16 %v510
    %v3841 = vunpack.c.h.b16 %v510
    %v3842 = vunpack.c.l.b16 %v511
    %v3843 = vunpack.c.h.b16 %v511
    %v3844 = vunpack.c.l.b16 %v512
    %v3845 = vunpack.c.h.b16 %v512
    %v3846 = vunpack.c.l.b16 %v513
    %v3847 = vunpack.c.h.b16 %v513
    %v3848 = vunpack.c.l.b16 %v514
    %v3849 = vunpack.c.h.b16 %v514
    %v3850 = vunpack.c.l.b16 %v515
    %v3851 = vunpack.c.h.b16 %v515
    %v3852 = vunpack.c.l.b16 %v516
    %v3853 = vunpack.c.h.b16 %v516
    %v3854 = vunpack.c.l.b16 %v517
    %v3855 = vunpack.c.h.b16 %v517
    %v3856 = vunpack.c.l.b16 %v518
    %v3857 = vunpack.c.h.b16 %v518
    %v3858 = vunpack.c.l.b16 %v519
    %v3859 = vunpack.c.h.b16 %v519
    %v3860 = vunpack.c.l.b16 %v520
    %v3861 = vunpack.c.h.b16 %v520
    %v3862 = vunpack.c.l.b16 %v521
    %v3863 = vunpack.c.h.b16 %v521
    %v3864 = vunpack.c.l.b16 %v522
    %v3865 = vunpack.c.h.b16 %v522
    %v3866 = vunpack.c.l.b16 %v523
    %v3867 = vunpack.c.h.b16 %v523
    %v3868 = vunpack.c.l.b16 %v524
    %v3869 = vunpack.c.h.b16 %v524
    %v3870 = vunpack.c.l.b16 %v525
    %v3871 = vunpack.c.h.b16 %v525
    %v3872 = vunpack.c.l.b16 %v526
    %v3873 = vunpack.c.h.b16 %v526
    %v3874 = vunpack.c.l.b16 %v527
    %v3875 = vunpack.c.h.b16 %v527
    %v3876 = vunpack.c.l.b16 %v528
    %v3877 = vunpack.c.h.b16 %v528
    %v3878 = vunpack.c.l.b16 %v529
    %v3879 = vunpack.c.h.b16 %v529
    %v3880 = vunpack.c.l.b16 %v530
    %v3881 = vunpack.c.h.b16 %v530
    %v3882 = vunpack.c.l.b16 %v531
    %v3883 = vunpack.c.h.b16 %v531
    %v3884 = vunpack.c.l.b16 %v532
    %v3885 = vunpack.c.h.b16 %v532
    %v3886 = vunpack.c.l.b16 %v533
    %v3887 = vunpack.c.h.b16 %v533
    %v3888 = vunpack.c.l.b16 %v534
    %v3889 = vunpack.c.h.b16 %v534
    %v3890 = vunpack.c.l.b16 %v535
    %v3891 = vunpack.c.h.b16 %v535
    %v3892 = vunpack.c.l.b16 %v536
    %v3893 = vunpack.c.h.b16 %v536
    %v3894 = vunpack.c.l.b16 %v537
    %v3895 = vunpack.c.h.b16 %v537
    %v3896 = vunpack.c.l.b16 %v538
    %v3897 = vunpack.c.h.b16 %v538
    %v3898 = vunpack.c.l.b16 %v539
    %v3899 = vunpack.c.h.b16 %v539
    %v3900 = vunpack.c.l.b16 %v540
    %v3901 = vunpack.c.h.b16 %v540
    %v3902 = vunpack.c.l.b16 %v541
    %v3903 = vunpack.c.h.b16 %v541
    %v3904 = vunpack.c.l.b16 %v542
    %v3905 = vunpack.c.h.b16 %v542
    %v3906 = vunpack.c.l.b16 %v543
    %v3907 = vunpack.c.h.b16 %v543
    %v3908 = vunpack.c.l.b16 %v544
    %v3909 = vunpack.c.h.b16 %v544
    %v3910 = vunpack.c.l.b16 %v545
    %v3911 = vunpack.c.h.b16 %v545
    %v3912 = vunpack.c.l.b16 %v546
    %v3913 = vunpack.c.h.b16 %v546
    %v3914 = vunpack.c.l.b16 %v547
    %v3915 = vunpack.c.h.b16 %v547
    %v3916 = vunpack.c.l.b16 %v548
    %v3917 = vunpack.c.h.b16 %v548
    %v3918 = vunpack.c.l.b16 %v549
    %v3919 = vunpack.c.h.b16 %v549
    %v3920 = vunpack.c.l.b16 %v550
    %v3921 = vunpack.c.h.b16 %v550
    %v3922 = vunpack.c.l.b16 %v551
    %v3923 = vunpack.c.h.b16 %v551
    %v3924 = vunpack.c.l.b16 %v552
    %v3925 = vunpack.c.h.b16 %v552
    %v3926 = vunpack.c.l.b16 %v553
    %v3927 = vunpack.c.h.b16 %v553
    %v3928 = vunpack.c.l.b16 %v554
    %v3929 = vunpack.c.h.b16 %v554
    %v3930 = vunpack.c.l.b16 %v555
    %v3931 = vunpack.c.h.b16 %v555
    %v3932 = vunpack.c.l.b16 %v556
    %v3933 = vunpack.c.h.b16 %v556
    %v3934 = vunpack.c.l.b16 %v557
    %v3935 = vunpack.c.h.b16 %v557
    %v3936 = vunpack.c.l.b16 %v558
    %v3937 = vunpack.c.h.b16 %v558
    %v3938 = vunpack.c.l.b16 %v559
    %v3939 = vunpack.c.h.b16 %v559
    %v3940 = vunpack.c.l.b16 %v560
    %v3941 = vunpack.c.h.b16 %v560
    %v3942 = vunpack.c.l.b16 %v561
    %v3943 = vunpack.c.h.b16 %v561
    %v3944 = vunpack.c.l.b16 %v562
    %v3945 = vunpack.c.h.b16 %v562
    %v3946 = vunpack.c.l.b16 %v563
    %v3947 = vunpack.c.h.b16 %v563
    %v3948 = vunpack.c.l.b16 %v564
    %v3949 = vunpack.c.h.b16 %v564
    %v3950 = vunpack.c.l.b16 %v565
    %v3951 = vunpack.c.h.b16 %v565
    %v3952 = vunpack.c.l.b16 %v566
    %v3953 = vunpack.c.h.b16 %v566
    %v3954 = vunpack.c.l.b16 %v567
    %v3955 = vunpack.c.h.b16 %v567
    %v3956 = vunpack.c.l.b16 %v568
    %v3957 = vunpack.c.h.b16 %v568
    %v3958 = vunpack.c.l.b16 %v569
    %v3959 = vunpack.c.h.b16 %v569
    %v3960 = vunpack.c.l.b16 %v570
    %v3961 = vunpack.c.h.b16 %v570
    %v3962 = vunpack.c.l.b16 %v571
    %v3963 = vunpack.c.h.b16 %v571
    %v3964 = vunpack.c.l.b16 %v572
    %v3965 = vunpack.c.h.b16 %v572
    %v3966 = vunpack.c.l.b16 %v573
    %v3967 = vunpack.c.h.b16 %v573
    %v3968 = vunpack.c.l.b16 %v574
    %v3969 = vunpack.c.h.b16 %v574
    %v3970 = vunpack.c.l.b16 %v575
    %v3971 = vunpack.c.h.b16 %v575
    %v3972 = vunpack.c.l.b16 %v576
    %v3973 = vunpack.c.h.b16 %v576
    %v3974 = vunpack.c.l.b16 %v577
    %v3975 = vunpack.c.h.b16 %v577
    %v3976 = vunpack.c.l.b16 %v578
    %v3977 = vunpack.c.h.b16 %v578
    %v3978 = vunpack.c.l.b16 %v579
    %v3979 = vunpack.c.h.b16 %v579
    %v3980 = vunpack.c.l.b16 %v580
    %v3981 = vunpack.c.h.b16 %v580
    %v3982 = vunpack.c.l.b16 %v581
    %v3983 = vunpack.c.h.b16 %v581
    %v3984 = vunpack.c.l.b16 %v582
    %v3985 = vunpack.c.h.b16 %v582
    %v3986 = vunpack.c.l.b16 %v583
    %v3987 = vunpack.c.h.b16 %v583
    %v3988 = vunpack.c.l.b16 %v584
    %v3989 = vunpack.c.h.b16 %v584
    %v3990 = vunpack.c.l.b16 %v585
    %v3991 = vunpack.c.h.b16 %v585
    %v3992 = vunpack.c.l.b16 %v586
    %v3993 = vunpack.c.h.b16 %v586
    %v3994 = vunpack.c.l.b16 %v587
    %v3995 = vunpack.c.h.b16 %v587
    %v3996 = vunpack.c.l.b16 %v588
    %v3997 = vunpack.c.h.b16 %v588
    %v3998 = vunpack.c.l.b16 %v589
    %v3999 = vunpack.c.h.b16 %v589
    %v4000 = vunpack.c.l.b16 %v590
    %v4001 = vunpack.c.h.b16 %v590
    %v4002 = vunpack.c.l.b16 %v591
    %v4003 = vunpack.c.h.b16 %v591
    %v4004 = vunpack.c.l.b16 %v592
    %v4005 = vunpack.c.h.b16 %v592
    %v4006 = vunpack.c.l.b16 %v593
    %v4007 = vunpack.c.h.b16 %v593
    %v4008 = vunpack.c.l.b16 %v594
    %v4009 = vunpack.c.h.b16 %v594
    %v4010 = vunpack.c.l.b16 %v595
    %v4011 = vunpack.c.h.b16 %v595
    %v4012 = vunpack.c.l.b16 %v596
    %v4013 = vunpack.c.h.b16 %v596
    %v4014 = vunpack.c.l.b16 %v597
    %v4015 = vunpack.c.h.b16 %v597
    %v4016 = vunpack.c.l.b16 %v598
    %v4017 = vunpack.c.h.b16 %v598
    %v4018 = vunpack.c.l.b16 %v599
    %v4019 = vunpack.c.h.b16 %v599
    %v4020 = vunpack.c.l.b16 %v600
    %v4021 = vunpack.c.h.b16 %v600
    %v4022 = vunpack.c.l.b16 %v601
    %v4023 = vunpack.c.h.b16 %v601
    %v4024 = vunpack.c.l.b16 %v602
    %v4025 = vunpack.c.h.b16 %v602
    %v4026 = vunpack.c.l.b16 %v603
    %v4027 = vunpack.c.h.b16 %v603
    %v4028 = vunpack.c.l.b16 %v604
    %v4029 = vunpack.c.h.b16 %v604
    %v4030 = vunpack.c.l.b16 %v605
    %v4031 = vunpack.c.h.b16 %v605
    %v4032 = vunpack.c.l.b16 %v606
    %v4033 = vunpack.c.h.b16 %v606
    %v4034 = vunpack.c.l.b16 %v607
    %v4035 = vunpack.c.h.b16 %v607
    %v4036 = vunpack.c.l.b16 %v608
    %v4037 = vunpack.c.h.b16 %v608
    %v4038 = vunpack.c.l.b16 %v609
    %v4039 = vunpack.c.h.b16 %v609
    %v4040 = vunpack.c.l.b16 %v610
    %v4041 = vunpack.c.h.b16 %v610
    %v4042 = vunpack.c.l.b16 %v611
    %v4043 = vunpack.c.h.b16 %v611
    %v4044 = vunpack.c.l.b16 %v612
    %v4045 = vunpack.c.h.b16 %v612
    %v4046 = vunpack.c.l.b16 %v613
    %v4047 = vunpack.c.h.b16 %v613
    %v4048 = vunpack.c.l.b16 %v614
    %v4049 = vunpack.c.h.b16 %v614
    %v4050 = vunpack.c.l.b16 %v615
    %v4051 = vunpack.c.h.b16 %v615
    %v4052 = vunpack.c.l.b16 %v616
    %v4053 = vunpack.c.h.b16 %v616
    %v4054 = vunpack.c.l.b16 %v617
    %v4055 = vunpack.c.h.b16 %v617
    %v4056 = vunpack.c.l.b16 %v618
    %v4057 = vunpack.c.h.b16 %v618
    %v4058 = vunpack.c.l.b16 %v619
    %v4059 = vunpack.c.h.b16 %v619
    %v4060 = vunpack.c.l.b16 %v620
    %v4061 = vunpack.c.h.b16 %v620
    %v4062 = vunpack.c.l.b16 %v621
    %v4063 = vunpack.c.h.b16 %v621
    %v4064 = vunpack.c.l.b16 %v622
    %v4065 = vunpack.c.h.b16 %v622
    %v4066 = vunpack.c.l.b16 %v623
    %v4067 = vunpack.c.h.b16 %v623
    %v4068 = vunpack.c.l.b16 %v624
    %v4069 = vunpack.c.h.b16 %v624
    %v4070 = vunpack.c.l.b16 %v625
    %v4071 = vunpack.c.h.b16 %v625
    %v4072 = vunpack.c.l.b16 %v626
    %v4073 = vunpack.c.h.b16 %v626
    %v4074 = vunpack.c.l.b16 %v627
    %v4075 = vunpack.c.h.b16 %v627
    %v4076 = vunpack.c.l.b16 %v628
    %v4077 = vunpack.c.h.b16 %v628
    %v4078 = vunpack.c.l.b16 %v629
    %v4079 = vunpack.c.h.b16 %v629
    %v4080 = vunpack.c.l.b16 %v630
    %v4081 = vunpack.c.h.b16 %v630
    %v4082 = vunpack.c.l.b16 %v631
    %v4083 = vunpack.c.h.b16 %v631
    %v4084 = vunpack.c.l.b16 %v632
    %v4085 = vunpack.c.h.b16 %v632
    %v4086 = vunpack.c.l.b16 %v633
    %v4087 = vunpack.c.h.b16 %v633
    %v4088 = vunpack.c.l.b16 %v634
    %v4089 = vunpack.c.h.b16 %v634
    %v4090 = vunpack.c.l.b16 %v635
    %v4091 = vunpack.c.h.b16 %v635
    %v4092 = vunpack.c.l.b16 %v636
    %v4093 = vunpack.c.h.b16 %v636
    %v4094 = vunpack.c.l.b16 %v637
    %v4095 = vunpack.c.h.b16 %v637
    %v4096 = vunpack.c.l.b16 %v638
    %v4097 = vunpack.c.h.b16 %v638
    %v4098 = vunpack.c.l.b16 %v639
    %v4099 = vunpack.c.h.b16 %v639
    %v4100 = vunpack.c.l.b16 %v640
    %v4101 = vunpack.c.h.b16 %v640
    %v4102 = vunpack.c.l.b16 %v641
    %v4103 = vunpack.c.h.b16 %v641
    %v4104 = vunpack.c.l.b16 %v642
    %v4105 = vunpack.c.h.b16 %v642
    %v4106 = vunpack.c.l.b16 %v643
    %v4107 = vunpack.c.h.b16 %v643
    %v4108 = vunpack.c.l.b16 %v644
    %v4109 = vunpack.c.h.b16 %v644
    %v4110 = vunpack.c.l.b16 %v645
    %v4111 = vunpack.c.h.b16 %v645
    %v4112 = vunpack.c.l.b16 %v646
    %v4113 = vunpack.c.h.b16 %v646
    %v4114 = vunpack.c.l.b16 %v647
    %v4115 = vunpack.c.h.b16 %v647
    %v4116 = vunpack.c.l.b16 %v648
    %v4117 = vunpack.c.h.b16 %v648
    %v4118 = vunpack.c.l.b16 %v649
    %v4119 = vunpack.c.h.b16 %v649
    %v4120 = vunpack.c.l.b16 %v650
    %v4121 = vunpack.c.h.b16 %v650
    %v4122 = vunpack.c.l.b16 %v651
    %v4123 = vunpack.c.h.b16 %v651
    %v4124 = vunpack.c.l.b16 %v652
    %v4125 = vunpack.c.h.b16 %v652
    %v4126 = vunpack.c.l.b16 %v653
    %v4127 = vunpack.c.h.b16 %v653
    %v4128 = vunpack.c.l.b16 %v654
    %v4129 = vunpack.c.h.b16 %v654
    %v4130 = vunpack.c.l.b16 %v655
    %v4131 = vunpack.c.h.b16 %v655
    %v4132 = vunpack.c.l.b16 %v656
    %v4133 = vunpack.c.h.b16 %v656
    %v4134 = vunpack.c.l.b16 %v657
    %v4135 = vunpack.c.h.b16 %v657
    %v4136 = vunpack.c.l.b16 %v658
    %v4137 = vunpack.c.h.b16 %v658
    %v4138 = vunpack.c.l.b16 %v659
    %v4139 = vunpack.c.h.b16 %v659
    %v4140 = vunpack.c.l.b16 %v660
    %v4141 = vunpack.c.h.b16 %v660
    %v4142 = vunpack.c.l.b16 %v661
    %v4143 = vunpack.c.h.b16 %v661
    %v4144 = vunpack.c.l.b16 %v662
    %v4145 = vunpack.c.h.b16 %v662
    %v4146 = vunpack.c.l.b16 %v663
    %v4147 = vunpack.c.h.b16 %v663
    %v4148 = vunpack.c.l.b16 %v664
    %v4149 = vunpack.c.h.b16 %v664
    %v4150 = vunpack.c.l.b16 %v665
    %v4151 = vunpack.c.h.b16 %v665
    %v4152 = vunpack.c.l.b16 %v666
    %v4153 = vunpack.c.h.b16 %v666
    %v4154 = vunpack.c.l.b16 %v667
    %v4155 = vunpack.c.h.b16 %v667
    %v4156 = vunpack.c.l.b16 %v668
    %v4157 = vunpack.c.h.b16 %v668
    %v4158 = vunpack.c.l.b16 %v669
    %v4159 = vunpack.c.h.b16 %v669
    %v4160 = vunpack.c.l.b16 %v670
    %v4161 = vunpack.c.h.b16 %v670
    %v4162 = vunpack.c.l.b16 %v671
    %v4163 = vunpack.c.h.b16 %v671
    %v4164 = vunpack.c.l.b16 %v672
    %v4165 = vunpack.c.h.b16 %v672
    %v4166 = vunpack.c.l.b16 %v673
    %v4167 = vunpack.c.h.b16 %v673
    %v4168 = vunpack.c.l.b16 %v674
    %v4169 = vunpack.c.h.b16 %v674
    %v4170 = vunpack.c.l.b16 %v675
    %v4171 = vunpack.c.h.b16 %v675
    %v4172 = vunpack.c.l.b16 %v676
    %v4173 = vunpack.c.h.b16 %v676
    %v4174 = vunpack.c.l.b16 %v677
    %v4175 = vunpack.c.h.b16 %v677
    %v4176 = vunpack.c.l.b16 %v678
    %v4177 = vunpack.c.h.b16 %v678
    %v4178 = vunpack.c.l.b16 %v679
    %v4179 = vunpack.c.h.b16 %v679
    %v4180 = vunpack.c.l.b16 %v680
    %v4181 = vunpack.c.h.b16 %v680
    %v4182 = vunpack.c.l.b16 %v681
    %v4183 = vunpack.c.h.b16 %v681
    %v4184 = vunpack.c.l.b16 %v682
    %v4185 = vunpack.c.h.b16 %v682
    %v4186 = vunpack.c.l.b16 %v683
    %v4187 = vunpack.c.h.b16 %v683
    %v4188 = vunpack.c.l.b16 %v684
    %v4189 = vunpack.c.h.b16 %v684
    %v4190 = vunpack.c.l.b16 %v685
    %v4191 = vunpack.c.h.b16 %v685
    %v4192 = vunpack.c.l.b16 %v686
    %v4193 = vunpack.c.h.b16 %v686
    %v4194 = vunpack.c.l.b16 %v687
    %v4195 = vunpack.c.h.b16 %v687
    %v4196 = vunpack.c.l.b16 %v688
    %v4197 = vunpack.c.h.b16 %v688
    %v4198 = vunpack.c.l.b16 %v689
    %v4199 = vunpack.c.h.b16 %v689
    %v4200 = vunpack.c.l.b16 %v690
    %v4201 = vunpack.c.h.b16 %v690
    %v4202 = vunpack.c.l.b16 %v691
    %v4203 = vunpack.c.h.b16 %v691
    %v4204 = vunpack.c.l.b16 %v692
    %v4205 = vunpack.c.h.b16 %v692
    %v4206 = vunpack.c.l.b16 %v693
    %v4207 = vunpack.c.h.b16 %v693
    %v4208 = vunpack.c.l.b16 %v694
    %v4209 = vunpack.c.h.b16 %v694
    %v4210 = vunpack.c.l.b16 %v695
    %v4211 = vunpack.c.h.b16 %v695
    %v4212 = vunpack.c.l.b16 %v696
    %v4213 = vunpack.c.h.b16 %v696
    %v4214 = vunpack.c.l.b16 %v697
    %v4215 = vunpack.c.h.b16 %v697
    %v4216 = vunpack.c.l.b16 %v698
    %v4217 = vunpack.c.h.b16 %v698
    %v4218 = vunpack.c.l.b16 %v699
    %v4219 = vunpack.c.h.b16 %v699
    %v4220 = vunpack.c.l.b16 %v700
    %v4221 = vunpack.c.h.b16 %v700
    %v4222 = vunpack.c.l.b16 %v701
    %v4223 = vunpack.c.h.b16 %v701
    %v4224 = vunpack.c.l.b16 %v702
    %v4225 = vunpack.c.h.b16 %v702
    %v4226 = vunpack.c.l.b16 %v703
    %v4227 = vunpack.c.h.b16 %v703
    %v4228 = vunpack.c.l.b16 %v704
    %v4229 = vunpack.c.h.b16 %v704
    %v4230 = vunpack.c.l.b16 %v705
    %v4231 = vunpack.c.h.b16 %v705
    %v4232 = vpack.c.b16 %v3724, %v3720
    %v4233 = vpack.c.b16 %v3725, %v3721
    %v4234 = vpack.c.b16 %v3726, %v3722
    %v4235 = vpack.c.b16 %v3727, %v3723
    %v4236 = vpack.c.b16 %v3732, %v3728
    %v4237 = vpack.c.b16 %v3733, %v3729
    %v4238 = vpack.c.b16 %v3734, %v3730
    %v4239 = vpack.c.b16 %v3735, %v3731
    %v4240 = vpack.c.b16 %v3740, %v3736
    %v4241 = vpack.c.b16 %v3741, %v3737
    %v4242 = vpack.c.b16 %v3742, %v3738
    %v4243 = vpack.c.b16 %v3743, %v3739
    %v4244 = vpack.c.b16 %v3748, %v3744
    %v4245 = vpack.c.b16 %v3749, %v3745
    %v4246 = vpack.c.b16 %v3750, %v3746
    %v4247 = vpack.c.b16 %v3751, %v3747
    %v4248 = vpack.c.b16 %v3756, %v3752
    %v4249 = vpack.c.b16 %v3757, %v3753
    %v4250 = vpack.c.b16 %v3758, %v3754
    %v4251 = vpack.c.b16 %v3759, %v3755
    %v4252 = vpack.c.b16 %v3764, %v3760
    %v4253 = vpack.c.b16 %v3765, %v3761
    %v4254 = vpack.c.b16 %v3766, %v3762
    %v4255 = vpack.c.b16 %v3767, %v3763
    %v4256 = vpack.c.b16 %v3772, %v3768
    %v4257 = vpack.c.b16 %v3773, %v3769
    %v4258 = vpack.c.b16 %v3774, %v3770
    %v4259 = vpack.c.b16 %v3775, %v3771
    %v4260 = vpack.c.b16 %v3780, %v3776
    %v4261 = vpack.c.b16 %v3781, %v3777
    %v4262 = vpack.c.b16 %v3782, %v3778
    %v4263 = vpack.c.b16 %v3783, %v3779
    %v4264 = vpack.c.b16 %v3788, %v3784
    %v4265 = vpack.c.b16 %v3789, %v3785
    %v4266 = vpack.c.b16 %v3790, %v3786
    %v4267 = vpack.c.b16 %v3791, %v3787
    %v4268 = vpack.c.b16 %v3796, %v3792
    %v4269 = vpack.c.b16 %v3797, %v3793
    %v4270 = vpack.c.b16 %v3798, %v3794
    %v4271 = vpack.c.b16 %v3799, %v3795
    %v4272 = vpack.c.b16 %v3804, %v3800
    %v4273 = vpack.c.b16 %v3805, %v3801
    %v4274 = vpack.c.b16 %v3806, %v3802
    %v4275 = vpack.c.b16 %v3807, %v3803
    %v4276 = vpack.c.b16 %v3812, %v3808
    %v4277 = vpack.c.b16 %v3813, %v3809
    %v4278 = vpack.c.b16 %v3814, %v3810
    %v4279 = vpack.c.b16 %v3815, %v3811
    %v4280 = vpack.c.b16 %v3820, %v3816
    %v4281 = vpack.c.b16 %v3821, %v3817
    %v4282 = vpack.c.b16 %v3822, %v3818
    %v4283 = vpack.c.b16 %v3823, %v3819
    %v4284 = vpack.c.b16 %v3828, %v3824
    %v4285 = vpack.c.b16 %v3829, %v3825
    %v4286 = vpack.c.b16 %v3830, %v3826
    %v4287 = vpack.c.b16 %v3831, %v3827
    %v4288 = vpack.c.b16 %v3836, %v3832
    %v4289 = vpack.c.b16 %v3837, %v3833
    %v4290 = vpack.c.b16 %v3838, %v3834
    %v4291 = vpack.c.b16 %v3839, %v3835
    %v4292 = vpack.c.b16 %v3844, %v3840
    %v4293 = vpack.c.b16 %v3845, %v3841
    %v4294 = vpack.c.b16 %v3846, %v3842
    %v4295 = vpack.c.b16 %v3847, %v3843
    %v4296 = vpack.c.b16 %v3852, %v3848
    %v4297 = vpack.c.b16 %v3853, %v3849
    %v4298 = vpack.c.b16 %v3854, %v3850
    %v4299 = vpack.c.b16 %v3855, %v3851
    %v4300 = vpack.c.b16 %v3860, %v3856
    %v4301 = vpack.c.b16 %v3861, %v3857
    %v4302 = vpack.c.b16 %v3862, %v3858
    %v4303 = vpack.c.b16 %v3863, %v3859
    %v4304 = vpack.c.b16 %v3868, %v3864
    %v4305 = vpack.c.b16 %v3869, %v3865
    %v4306 = vpack.c.b16 %v3870, %v3866
    %v4307 = vpack.c.b16 %v3871, %v3867
    %v4308 = vpack.c.b16 %v3876, %v3872
    %v4309 = vpack.c.b16 %v3877, %v3873
    %v4310 = vpack.c.b16 %v3878, %v3874
    %v4311 = vpack.c.b16 %v3879, %v3875
    %v4312 = vpack.c.b16 %v3884, %v3880
    %v4313 = vpack.c.b16 %v3885, %v3881
    %v4314 = vpack.c.b16 %v3886, %v3882
    %v4315 = vpack.c.b16 %v3887, %v3883
    %v4316 = vpack.c.b16 %v3892, %v3888
    %v4317 = vpack.c.b16 %v3893, %v3889
    %v4318 = vpack.c.b16 %v3894, %v3890
    %v4319 = vpack.c.b16 %v3895, %v3891
    %v4320 = vpack.c.b16 %v3900, %v3896
    %v4321 = vpack.c.b16 %v3901, %v3897
    %v4322 = vpack.c.b16 %v3902, %v3898
    %v4323 = vpack.c.b16 %v3903, %v3899
    %v4324 = vpack.c.b16 %v3908, %v3904
    %v4325 = vpack.c.b16 %v3909, %v3905
    %v4326 = vpack.c.b16 %v3910, %v3906
    %v4327 = vpack.c.b16 %v3911, %v3907
    %v4328 = vpack.c.b16 %v3916, %v3912
    %v4329 = vpack.c.b16 %v3917, %v3913
    %v4330 = vpack.c.b16 %v3918, %v3914
    %v4331 = vpack.c.b16 %v3919, %v3915
    %v4332 = vpack.c.b16 %v3924, %v3920
    %v4333 = vpack.c.b16 %v3925, %v3921
    %v4334 = vpack.c.b16 %v3926, %v3922
    %v4335 = vpack.c.b16 %v3927, %v3923
    %v4336 = vpack.c.b16 %v3932, %v3928
    %v4337 = vpack.c.b16 %v3933, %v3929
    %v4338 = vpack.c.b16 %v3934, %v3930
    %v4339 = vpack.c.b16 %v3935, %v3931
    %v4340 = vpack.c.b16 %v3940, %v3936
    %v4341 = vpack.c.b16 %v3941, %v3937
    %v4342 = vpack.c.b16 %v3942, %v3938
    %v4343 = vpack.c.b16 %v3943, %v3939
    %v4344 = vpack.c.b16 %v3948, %v3944
    %v4345 = vpack.c.b16 %v3949, %v3945
    %v4346 = vpack.c.b16 %v3950, %v3946
    %v4347 = vpack.c.b16 %v3951, %v3947
    %v4348 = vpack.c.b16 %v3956, %v3952
    %v4349 = vpack.c.b16 %v3957, %v3953
    %v4350 = vpack.c.b16 %v3958, %v3954
    %v4351 = vpack.c.b16 %v3959, %v3955
    %v4352 = vpack.c.b16 %v3964, %v3960
    %v4353 = vpack.c.b16 %v3965, %v3961
    %v4354 = vpack.c.b16 %v3966, %v3962
    %v4355 = vpack.c.b16 %v3967, %v3963
    %v4356 = vpack.c.b16 %v3972, %v3968
    %v4357 = vpack.c.b16 %v3973, %v3969
    %v4358 = vpack.c.b16 %v3974, %v3970
    %v4359 = vpack.c.b16 %v3975, %v3971
    %v4360 = vpack.c.b16 %v3980, %v3976
    %v4361 = vpack.c.b16 %v3981, %v3977
    %v4362 = vpack.c.b16 %v3982, %v3978
    %v4363 = vpack.c.b16 %v3983, %v3979
    %v4364 = vpack.c.b16 %v3988, %v3984
    %v4365 = vpack.c.b16 %v3989, %v3985
    %v4366 = vpack.c.b16 %v3990, %v3986
    %v4367 = vpack.c.b16 %v3991, %v3987
    %v4368 = vpack.c.b16 %v3996, %v3992
    %v4369 = vpack.c.b16 %v3997, %v3993
    %v4370 = vpack.c.b16 %v3998, %v3994
    %v4371 = vpack.c.b16 %v3999, %v3995
    %v4372 = vpack.c.b16 %v4004, %v4000
    %v4373 = vpack.c.b16 %v4005, %v4001
    %v4374 = vpack.c.b16 %v4006, %v4002
    %v4375 = vpack.c.b16 %v4007, %v4003
    %v4376 = vpack.c.b16 %v4012, %v4008
    %v4377 = vpack.c.b16 %v4013, %v4009
    %v4378 = vpack.c.b16 %v4014, %v4010
    %v4379 = vpack.c.b16 %v4015, %v4011
    %v4380 = vpack.c.b16 %v4020, %v4016
    %v4381 = vpack.c.b16 %v4021, %v4017
    %v4382 = vpack.c.b16 %v4022, %v4018
    %v4383 = vpack.c.b16 %v4023, %v4019
    %v4384 = vpack.c.b16 %v4028, %v4024
    %v4385 = vpack.c.b16 %v4029, %v4025
    %v4386 = vpack.c.b16 %v4030, %v4026
    %v4387 = vpack.c.b16 %v4031, %v4027
    %v4388 = vpack.c.b16 %v4036, %v4032
    %v4389 = vpack.c.b16 %v4037, %v4033
    %v4390 = vpack.c.b16 %v4038, %v4034
    %v4391 = vpack.c.b16 %v4039, %v4035
    %v4392 = vpack.c.b16 %v4044, %v4040
    %v4393 = vpack.c.b16 %v4045, %v4041
    %v4394 = vpack.c.b16 %v4046, %v4042
    %v4395 = vpack.c.b16 %v4047, %v4043
    %v4396 = vpack.c.b16 %v4052, %v4048
    %v4397 = vpack.c.b16 %v4053, %v4049
    %v4398 = vpack.c.b16 %v4054, %v4050
    %v4399 = vpack.c.b16 %v4055, %v4051
    %v4400 = vpack.c.b16 %v4060, %v4056
    %v4401 = vpack.c.b16 %v4061, %v4057
    %v4402 = vpack.c.b16 %v4062, %v4058
    %v4403 = vpack.c.b16 %v4063, %v4059
    %v4404 = vpack.c.b16 %v4068, %v4064
    %v4405 = vpack.c.b16 %v4069, %v4065
    %v4406 = vpack.c.b16 %v4070, %v4066
    %v4407 = vpack.c.b16 %v4071, %v4067
    %v4408 = vpack.c.b16 %v4076, %v4072
    %v4409 = vpack.c.b16 %v4077, %v4073
    %v4410 = vpack.c.b16 %v4078, %v4074
    %v4411 = vpack.c.b16 %v4079, %v4075
    %v4412 = vpack.c.b16 %v4084, %v4080
    %v4413 = vpack.c.b16 %v4085, %v4081
    %v4414 = vpack.c.b16 %v4086, %v4082
    %v4415 = vpack.c.b16 %v4087, %v4083
    %v4416 = vpack.c.b16 %v4092, %v4088
    %v4417 = vpack.c.b16 %v4093, %v4089
    %v4418 = vpack.c.b16 %v4094, %v4090
    %v4419 = vpack.c.b16 %v4095, %v4091
    %v4420 = vpack.c.b16 %v4100, %v4096
    %v4421 = vpack.c.b16 %v4101, %v4097
    %v4422 = vpack.c.b16 %v4102, %v4098
    %v4423 = vpack.c.b16 %v4103, %v4099
    %v4424 = vpack.c.b16 %v4108, %v4104
    %v4425 = vpack.c.b16 %v4109, %v4105
    %v4426 = vpack.c.b16 %v4110, %v4106
    %v4427 = vpack.c.b16 %v4111, %v4107
    %v4428 = vpack.c.b16 %v4116, %v4112
    %v4429 = vpack.c.b16 %v4117, %v4113
    %v4430 = vpack.c.b16 %v4118, %v4114
    %v4431 = vpack.c.b16 %v4119, %v4115
    %v4432 = vpack.c.b16 %v4124, %v4120
    %v4433 = vpack.c.b16 %v4125, %v4121
    %v4434 = vpack.c.b16 %v4126, %v4122
    %v4435 = vpack.c.b16 %v4127, %v4123
    %v4436 = vpack.c.b16 %v4132, %v4128
    %v4437 = vpack.c.b16 %v4133, %v4129
    %v4438 = vpack.c.b16 %v4134, %v4130
    %v4439 = vpack.c.b16 %v4135, %v4131
    %v4440 = vpack.c.b16 %v4140, %v4136
    %v4441 = vpack.c.b16 %v4141, %v4137
    %v4442 = vpack.c.b16 %v4142, %v4138
    %v4443 = vpack.c.b16 %v4143, %v4139
    %v4444 = vpack.c.b16 %v4148, %v4144
    %v4445 = vpack.c.b16 %v4149, %v4145
    %v4446 = vpack.c.b16 %v4150, %v4146
    %v4447 = vpack.c.b16 %v4151, %v4147
    %v4448 = vpack.c.b16 %v4156, %v4152
    %v4449 = vpack.c.b16 %v4157, %v4153
    %v4450 = vpack.c.b16 %v4158, %v4154
    %v4451 = vpack.c.b16 %v4159, %v4155
    %v4452 = vpack.c.b16 %v4164, %v4160
    %v4453 = vpack.c.b16 %v4165, %v4161
    %v4454 = vpack.c.b16 %v4166, %v4162
    %v4455 = vpack.c.b16 %v4167, %v4163
    %v4456 = vpack.c.b16 %v4172, %v4168
    %v4457 = vpack.c.b16 %v4173, %v4169
    %v4458 = vpack.c.b16 %v4174, %v4170
    %v4459 = vpack.c.b16 %v4175, %v4171
    %v4460 = vpack.c.b16 %v4180, %v4176
    %v4461 = vpack.c.b16 %v4181, %v4177
    %v4462 = vpack.c.b16 %v4182, %v4178
    %v4463 = vpack.c.b16 %v4183, %v4179
    %v4464 = vpack.c.b16 %v4188, %v4184
    %v4465 = vpack.c.b16 %v4189, %v4185
    %v4466 = vpack.c.b16 %v4190, %v4186
    %v4467 = vpack.c.b16 %v4191, %v4187
    %v4468 = vpack.c.b16 %v4196, %v4192
    %v4469 = vpack.c.b16 %v4197, %v4193
    %v4470 = vpack.c.b16 %v4198, %v4194
    %v4471 = vpack.c.b16 %v4199, %v4195
    %v4472 = vpack.c.b16 %v4204, %v4200
    %v4473 = vpack.c.b16 %v4205, %v4201
    %v4474 = vpack.c.b16 %v4206, %v4202
    %v4475 = vpack.c.b16 %v4207, %v4203
    %v4476 = vpack.c.b16 %v4212, %v4208
    %v4477 = vpack.c.b16 %v4213, %v4209
    %v4478 = vpack.c.b16 %v4214, %v4210
    %v4479 = vpack.c.b16 %v4215, %v4211
    %v4480 = vpack.c.b16 %v4220, %v4216
    %v4481 = vpack.c.b16 %v4221, %v4217
    %v4482 = vpack.c.b16 %v4222, %v4218
    %v4483 = vpack.c.b16 %v4223, %v4219
    %v4484 = vpack.c.b16 %v4228, %v4224
    %v4485 = vpack.c.b16 %v4229, %v4225
    %v4486 = vpack.c.b16 %v4230, %v4226
    %v4487 = vpack.c.b16 %v4231, %v4227
    %4744 = vmatprep.subr.bf16.mxu0 %v4261
    %4745 = vmatpush1.bf16.msra.mxu0 %v4260
    %4746 = vmatprep.subr.bf16.mxu0 %v4257
    %4747 = vmatpush1.bf16.msra.mxu0 %v4256
    %4748 = vmatprep.subr.bf16.mxu0 %v4253
    %4749 = vmatpush1.bf16.msra.mxu0 %v4252
    %4750 = vmatprep.subr.bf16.mxu0 %v4249
    %4751 = vmatpush1.bf16.msra.mxu0 %v4248
    %4752 = vmatprep.subr.bf16.mxu0 %v4245
    %4753 = vmatpush1.bf16.msra.mxu0 %v4244
    %4754 = vmatprep.subr.bf16.mxu0 %v4241
    %4755 = vmatpush1.bf16.msra.mxu0 %v4240
    %4756 = vmatprep.subr.bf16.mxu0 %v4237
    %4757 = vmatpush1.bf16.msra.mxu0 %v4236
    %4758 = vmatprep.subr.bf16.mxu0 %v4233
    %4759 = vmatpush1.bf16.msra.mxu0 %v4232
    %4760 = vmatprep.subr.bf16.mxu0 %v4293
    %4761 = vmatpush2.bf16.msra.mxu0 %v4292
    %4762 = vmatprep.subr.bf16.mxu0 %v4289
    %4763 = vmatpush2.bf16.msra.mxu0 %v4288
    %4764 = vmatprep.subr.bf16.mxu0 %v4285
    %4765 = vmatpush2.bf16.msra.mxu0 %v4284
    %4766 = vmatprep.subr.bf16.mxu0 %v4281
    %4767 = vmatpush2.bf16.msra.mxu0 %v4280
    %4768 = vmatprep.subr.bf16.mxu0 %v4277
    %4769 = vmatpush2.bf16.msra.mxu0 %v4276
    %4770 = vmatprep.subr.bf16.mxu0 %v4273
    %4771 = vmatpush2.bf16.msra.mxu0 %v4272
    %4772 = vmatprep.subr.bf16.mxu0 %v4269
    %4773 = vmatpush2.bf16.msra.mxu0 %v4268
    %4774 = vmatprep.subr.bf16.mxu0 %v4265
    %4775 = vmatpush2.bf16.msra.mxu0 %v4264
    %4776 = vmatprep.mubr.bf16.mxu0 %v3457
    %4777 = vmatmul.mubr.bf16.gmra.mxu0 %v3456
    %v4778 = vpop.f32.mrf.mxu0
    %v4779 = vadd.f32 0.0, %v4778
    %v4780 = vpop.f32.mrf.mxu0
    %v4781 = vadd.f32 0.0, %v4780
    %v4782 = vpop.f32.mrf.mxu0
    %v4783 = vpop.f32.mrf.mxu0
    %4784 = vdwg.mxu0
    %4785 = vmatprep.subr.bf16.mxu0 %v4325
    %4786 = vmatpush1.bf16.msra.mxu0 %v4324
    %4787 = vmatprep.subr.bf16.mxu0 %v4321
    %4788 = vmatpush1.bf16.msra.mxu0 %v4320
    %4789 = vmatprep.subr.bf16.mxu0 %v4317
    %4790 = vmatpush1.bf16.msra.mxu0 %v4316
    %4791 = vmatprep.subr.bf16.mxu0 %v4313
    %4792 = vmatpush1.bf16.msra.mxu0 %v4312
    %4793 = vmatprep.subr.bf16.mxu0 %v4309
    %4794 = vmatpush1.bf16.msra.mxu0 %v4308
    %4795 = vmatprep.subr.bf16.mxu0 %v4305
    %4796 = vmatpush1.bf16.msra.mxu0 %v4304
    %4797 = vmatprep.subr.bf16.mxu0 %v4301
    %4798 = vmatpush1.bf16.msra.mxu0 %v4300
    %4799 = vmatprep.subr.bf16.mxu0 %v4297
    %4800 = vmatpush1.bf16.msra.mxu0 %v4296
    %4801 = vmatprep.subr.bf16.mxu0 %v4357
    %4802 = vmatpush2.bf16.msra.mxu0 %v4356
    %4803 = vmatprep.subr.bf16.mxu0 %v4353
    %4804 = vmatpush2.bf16.msra.mxu0 %v4352
    %4805 = vmatprep.subr.bf16.mxu0 %v4349
    %4806 = vmatpush2.bf16.msra.mxu0 %v4348
    %4807 = vmatprep.subr.bf16.mxu0 %v4345
    %4808 = vmatpush2.bf16.msra.mxu0 %v4344
    %4809 = vmatprep.subr.bf16.mxu0 %v4341
    %4810 = vmatpush2.bf16.msra.mxu0 %v4340
    %4811 = vmatprep.subr.bf16.mxu0 %v4337
    %4812 = vmatpush2.bf16.msra.mxu0 %v4336
    %4813 = vmatprep.subr.bf16.mxu0 %v4333
    %4814 = vmatpush2.bf16.msra.mxu0 %v4332
    %4815 = vmatprep.subr.bf16.mxu0 %v4329
    %4816 = vmatpush2.bf16.msra.mxu0 %v4328
    %4817 = vmatprep.mubr.bf16.mxu0 %v3459
    %4818 = vmatmul.mubr.bf16.gmra.mxu0 %v3458
    %v4819 = vpop.f32.mrf.mxu0
    %v4820 = vadd.f32 %v4779, %v4819
    %v4821 = vpop.f32.mrf.mxu0
    %v4822 = vadd.f32 %v4781, %v4821
    %v4823 = vpop.f32.mrf.mxu0
    %v4824 = vpop.f32.mrf.mxu0
    %4825 = vdwg.mxu0
    %4826 = vmatprep.subr.bf16.mxu0 %v4389
    %4827 = vmatpush1.bf16.msra.mxu0 %v4388
    %4828 = vmatprep.subr.bf16.mxu0 %v4385
    %4829 = vmatpush1.bf16.msra.mxu0 %v4384
    %4830 = vmatprep.subr.bf16.mxu0 %v4381
    %4831 = vmatpush1.bf16.msra.mxu0 %v4380
    %4832 = vmatprep.subr.bf16.mxu0 %v4377
    %4833 = vmatpush1.bf16.msra.mxu0 %v4376
    %4834 = vmatprep.subr.bf16.mxu0 %v4373
    %4835 = vmatpush1.bf16.msra.mxu0 %v4372
    %4836 = vmatprep.subr.bf16.mxu0 %v4369
    %4837 = vmatpush1.bf16.msra.mxu0 %v4368
    %4838 = vmatprep.subr.bf16.mxu0 %v4365
    %4839 = vmatpush1.bf16.msra.mxu0 %v4364
    %4840 = vmatprep.subr.bf16.mxu0 %v4361
    %4841 = vmatpush1.bf16.msra.mxu0 %v4360
    %4842 = vmatprep.subr.bf16.mxu0 %v4421
    %4843 = vmatpush2.bf16.msra.mxu0 %v4420
    %4844 = vmatprep.subr.bf16.mxu0 %v4417
    %4845 = vmatpush2.bf16.msra.mxu0 %v4416
    %4846 = vmatprep.subr.bf16.mxu0 %v4413
    %4847 = vmatpush2.bf16.msra.mxu0 %v4412
    %4848 = vmatprep.subr.bf16.mxu0 %v4409
    %4849 = vmatpush2.bf16.msra.mxu0 %v4408
    %4850 = vmatprep.subr.bf16.mxu0 %v4405
    %4851 = vmatpush2.bf16.msra.mxu0 %v4404
    %4852 = vmatprep.subr.bf16.mxu0 %v4401
    %4853 = vmatpush2.bf16.msra.mxu0 %v4400
    %4854 = vmatprep.subr.bf16.mxu0 %v4397
    %4855 = vmatpush2.bf16.msra.mxu0 %v4396
    %4856 = vmatprep.subr.bf16.mxu0 %v4393
    %4857 = vmatpush2.bf16.msra.mxu0 %v4392
    %4858 = vmatprep.mubr.bf16.mxu0 %v3461
    %4859 = vmatmul.mubr.bf16.gmra.mxu0 %v3460
    %v4860 = vpop.f32.mrf.mxu0
    %v4861 = vadd.f32 %v4820, %v4860
    %v4862 = vpop.f32.mrf.mxu0
    %v4863 = vadd.f32 %v4822, %v4862
    %v4864 = vpop.f32.mrf.mxu0
    %v4865 = vpop.f32.mrf.mxu0
    %4866 = vdwg.mxu0
    %4867 = vmatprep.subr.bf16.mxu0 %v4453
    %4868 = vmatpush1.bf16.msra.mxu0 %v4452
    %4869 = vmatprep.subr.bf16.mxu0 %v4449
    %4870 = vmatpush1.bf16.msra.mxu0 %v4448
    %4871 = vmatprep.subr.bf16.mxu0 %v4445
    %4872 = vmatpush1.bf16.msra.mxu0 %v4444
    %4873 = vmatprep.subr.bf16.mxu0 %v4441
    %4874 = vmatpush1.bf16.msra.mxu0 %v4440
    %4875 = vmatprep.subr.bf16.mxu0 %v4437
    %4876 = vmatpush1.bf16.msra.mxu0 %v4436
    %4877 = vmatprep.subr.bf16.mxu0 %v4433
    %4878 = vmatpush1.bf16.msra.mxu0 %v4432
    %4879 = vmatprep.subr.bf16.mxu0 %v4429
    %4880 = vmatpush1.bf16.msra.mxu0 %v4428
    %4881 = vmatprep.subr.bf16.mxu0 %v4425
    %4882 = vmatpush1.bf16.msra.mxu0 %v4424
    %4883 = vmatprep.subr.bf16.mxu0 %v4485
    %4884 = vmatpush2.bf16.msra.mxu0 %v4484
    %4885 = vmatprep.subr.bf16.mxu0 %v4481
    %4886 = vmatpush2.bf16.msra.mxu0 %v4480
    %4887 = vmatprep.subr.bf16.mxu0 %v4477
    %4888 = vmatpush2.bf16.msra.mxu0 %v4476
    %4889 = vmatprep.subr.bf16.mxu0 %v4473
    %4890 = vmatpush2.bf16.msra.mxu0 %v4472
    %4891 = vmatprep.subr.bf16.mxu0 %v4469
    %4892 = vmatpush2.bf16.msra.mxu0 %v4468
    %4893 = vmatprep.subr.bf16.mxu0 %v4465
    %4894 = vmatpush2.bf16.msra.mxu0 %v4464
    %4895 = vmatprep.subr.bf16.mxu0 %v4461
    %4896 = vmatpush2.bf16.msra.mxu0 %v4460
    %4897 = vmatprep.subr.bf16.mxu0 %v4457
    %4898 = vmatpush2.bf16.msra.mxu0 %v4456
    %4899 = vmatprep.mubr.bf16.mxu0 %v3463
    %4900 = vmatmul.mubr.bf16.gmra.mxu0 %v3462
    %v4901 = vpop.f32.mrf.mxu0
    %v4902 = vadd.f32 %v4861, %v4901
    %v4903 = vpop.f32.mrf.mxu0
    %v4904 = vadd.f32 %v4863, %v4903
    %v4905 = vpop.f32.mrf.mxu0
    %v4906 = vpop.f32.mrf.mxu0
    %4907 = vdwg.mxu0
    %4908 = vmatprep.subr.bf16.mxu0 %v4263
    %4909 = vmatpush1.bf16.msra.mxu0 %v4262
    %4910 = vmatprep.subr.bf16.mxu0 %v4259
    %4911 = vmatpush1.bf16.msra.mxu0 %v4258
    %4912 = vmatprep.subr.bf16.mxu0 %v4255
    %4913 = vmatpush1.bf16.msra.mxu0 %v4254
    %4914 = vmatprep.subr.bf16.mxu0 %v4251
    %4915 = vmatpush1.bf16.msra.mxu0 %v4250
    %4916 = vmatprep.subr.bf16.mxu0 %v4247
    %4917 = vmatpush1.bf16.msra.mxu0 %v4246
    %4918 = vmatprep.subr.bf16.mxu0 %v4243
    %4919 = vmatpush1.bf16.msra.mxu0 %v4242
    %4920 = vmatprep.subr.bf16.mxu0 %v4239
    %4921 = vmatpush1.bf16.msra.mxu0 %v4238
    %4922 = vmatprep.subr.bf16.mxu0 %v4235
    %4923 = vmatpush1.bf16.msra.mxu0 %v4234
    %4924 = vmatprep.subr.bf16.mxu0 %v4295
    %4925 = vmatpush2.bf16.msra.mxu0 %v4294
    %4926 = vmatprep.subr.bf16.mxu0 %v4291
    %4927 = vmatpush2.bf16.msra.mxu0 %v4290
    %4928 = vmatprep.subr.bf16.mxu0 %v4287
    %4929 = vmatpush2.bf16.msra.mxu0 %v4286
    %4930 = vmatprep.subr.bf16.mxu0 %v4283
    %4931 = vmatpush2.bf16.msra.mxu0 %v4282
    %4932 = vmatprep.subr.bf16.mxu0 %v4279
    %4933 = vmatpush2.bf16.msra.mxu0 %v4278
    %4934 = vmatprep.subr.bf16.mxu0 %v4275
    %4935 = vmatpush2.bf16.msra.mxu0 %v4274
    %4936 = vmatprep.subr.bf16.mxu0 %v4271
    %4937 = vmatpush2.bf16.msra.mxu0 %v4270
    %4938 = vmatprep.subr.bf16.mxu0 %v4267
    %4939 = vmatpush2.bf16.msra.mxu0 %v4266
    %4940 = vmatprep.mubr.bf16.mxu0 %v3457
    %4941 = vmatmul.mubr.bf16.gmra.mxu0 %v3456
    %v4942 = vpop.f32.mrf.mxu0
    %v4943 = vadd.f32 0.0, %v4942
    %v4944 = vpop.f32.mrf.mxu0
    %v4945 = vadd.f32 0.0, %v4944
    %v4946 = vpop.f32.mrf.mxu0
    %v4947 = vpop.f32.mrf.mxu0
    %4948 = vdwg.mxu0
    %4949 = vmatprep.subr.bf16.mxu0 %v4327
    %4950 = vmatpush1.bf16.msra.mxu0 %v4326
    %4951 = vmatprep.subr.bf16.mxu0 %v4323
    %4952 = vmatpush1.bf16.msra.mxu0 %v4322
    %4953 = vmatprep.subr.bf16.mxu0 %v4319
    %4954 = vmatpush1.bf16.msra.mxu0 %v4318
    %4955 = vmatprep.subr.bf16.mxu0 %v4315
    %4956 = vmatpush1.bf16.msra.mxu0 %v4314
    %4957 = vmatprep.subr.bf16.mxu0 %v4311
    %4958 = vmatpush1.bf16.msra.mxu0 %v4310
    %4959 = vmatprep.subr.bf16.mxu0 %v4307
    %4960 = vmatpush1.bf16.msra.mxu0 %v4306
    %4961 = vmatprep.subr.bf16.mxu0 %v4303
    %4962 = vmatpush1.bf16.msra.mxu0 %v4302
    %4963 = vmatprep.subr.bf16.mxu0 %v4299
    %4964 = vmatpush1.bf16.msra.mxu0 %v4298
    %4965 = vmatprep.subr.bf16.mxu0 %v4359
    %4966 = vmatpush2.bf16.msra.mxu0 %v4358
    %4967 = vmatprep.subr.bf16.mxu0 %v4355
    %4968 = vmatpush2.bf16.msra.mxu0 %v4354
    %4969 = vmatprep.subr.bf16.mxu0 %v4351
    %4970 = vmatpush2.bf16.msra.mxu0 %v4350
    %4971 = vmatprep.subr.bf16.mxu0 %v4347
    %4972 = vmatpush2.bf16.msra.mxu0 %v4346
    %4973 = vmatprep.subr.bf16.mxu0 %v4343
    %4974 = vmatpush2.bf16.msra.mxu0 %v4342
    %4975 = vmatprep.subr.bf16.mxu0 %v4339
    %4976 = vmatpush2.bf16.msra.mxu0 %v4338
    %4977 = vmatprep.subr.bf16.mxu0 %v4335
    %4978 = vmatpush2.bf16.msra.mxu0 %v4334
    %4979 = vmatprep.subr.bf16.mxu0 %v4331
    %4980 = vmatpush2.bf16.msra.mxu0 %v4330
    %4981 = vmatprep.mubr.bf16.mxu0 %v3459
    %4982 = vmatmul.mubr.bf16.gmra.mxu0 %v3458
    %v4983 = vpop.f32.mrf.mxu0
    %v4984 = vadd.f32 %v4943, %v4983
    %v4985 = vpop.f32.mrf.mxu0
    %v4986 = vadd.f32 %v4945, %v4985
    %v4987 = vpop.f32.mrf.mxu0
    %v4988 = vpop.f32.mrf.mxu0
    %4989 = vdwg.mxu0
    %4990 = vmatprep.subr.bf16.mxu0 %v4391
    %4991 = vmatpush1.bf16.msra.mxu0 %v4390
    %4992 = vmatprep.subr.bf16.mxu0 %v4387
    %4993 = vmatpush1.bf16.msra.mxu0 %v4386
    %4994 = vmatprep.subr.bf16.mxu0 %v4383
    %4995 = vmatpush1.bf16.msra.mxu0 %v4382
    %4996 = vmatprep.subr.bf16.mxu0 %v4379
    %4997 = vmatpush1.bf16.msra.mxu0 %v4378
    %4998 = vmatprep.subr.bf16.mxu0 %v4375
    %4999 = vmatpush1.bf16.msra.mxu0 %v4374
    %5000 = vmatprep.subr.bf16.mxu0 %v4371
    %5001 = vmatpush1.bf16.msra.mxu0 %v4370
    %5002 = vmatprep.subr.bf16.mxu0 %v4367
    %5003 = vmatpush1.bf16.msra.mxu0 %v4366
    %5004 = vmatprep.subr.bf16.mxu0 %v4363
    %5005 = vmatpush1.bf16.msra.mxu0 %v4362
    %5006 = vmatprep.subr.bf16.mxu0 %v4423
    %5007 = vmatpush2.bf16.msra.mxu0 %v4422
    %5008 = vmatprep.subr.bf16.mxu0 %v4419
    %5009 = vmatpush2.bf16.msra.mxu0 %v4418
    %5010 = vmatprep.subr.bf16.mxu0 %v4415
    %5011 = vmatpush2.bf16.msra.mxu0 %v4414
    %5012 = vmatprep.subr.bf16.mxu0 %v4411
    %5013 = vmatpush2.bf16.msra.mxu0 %v4410
    %5014 = vmatprep.subr.bf16.mxu0 %v4407
    %5015 = vmatpush2.bf16.msra.mxu0 %v4406
    %5016 = vmatprep.subr.bf16.mxu0 %v4403
    %5017 = vmatpush2.bf16.msra.mxu0 %v4402
    %5018 = vmatprep.subr.bf16.mxu0 %v4399
    %5019 = vmatpush2.bf16.msra.mxu0 %v4398
    %5020 = vmatprep.subr.bf16.mxu0 %v4395
    %5021 = vmatpush2.bf16.msra.mxu0 %v4394
    %5022 = vmatprep.mubr.bf16.mxu0 %v3461
    %5023 = vmatmul.mubr.bf16.gmra.mxu0 %v3460
    %v5024 = vpop.f32.mrf.mxu0
    %v5025 = vadd.f32 %v4984, %v5024
    %v5026 = vpop.f32.mrf.mxu0
    %v5027 = vadd.f32 %v4986, %v5026
    %v5028 = vpop.f32.mrf.mxu0
    %v5029 = vpop.f32.mrf.mxu0
    %5030 = vdwg.mxu0
    %5031 = vmatprep.subr.bf16.mxu0 %v4455
    %5032 = vmatpush1.bf16.msra.mxu0 %v4454
    %5033 = vmatprep.subr.bf16.mxu0 %v4451
    %5034 = vmatpush1.bf16.msra.mxu0 %v4450
    %5035 = vmatprep.subr.bf16.mxu0 %v4447
    %5036 = vmatpush1.bf16.msra.mxu0 %v4446
    %5037 = vmatprep.subr.bf16.mxu0 %v4443
    %5038 = vmatpush1.bf16.msra.mxu0 %v4442
    %5039 = vmatprep.subr.bf16.mxu0 %v4439
    %5040 = vmatpush1.bf16.msra.mxu0 %v4438
    %5041 = vmatprep.subr.bf16.mxu0 %v4435
    %5042 = vmatpush1.bf16.msra.mxu0 %v4434
    %5043 = vmatprep.subr.bf16.mxu0 %v4431
    %5044 = vmatpush1.bf16.msra.mxu0 %v4430
    %5045 = vmatprep.subr.bf16.mxu0 %v4427
    %5046 = vmatpush1.bf16.msra.mxu0 %v4426
    %5047 = vmatprep.subr.bf16.mxu0 %v4487
    %5048 = vmatpush2.bf16.msra.mxu0 %v4486
    %5049 = vmatprep.subr.bf16.mxu0 %v4483
    %5050 = vmatpush2.bf16.msra.mxu0 %v4482
    %5051 = vmatprep.subr.bf16.mxu0 %v4479
    %5052 = vmatpush2.bf16.msra.mxu0 %v4478
    %5053 = vmatprep.subr.bf16.mxu0 %v4475
    %5054 = vmatpush2.bf16.msra.mxu0 %v4474
    %5055 = vmatprep.subr.bf16.mxu0 %v4471
    %5056 = vmatpush2.bf16.msra.mxu0 %v4470
    %5057 = vmatprep.subr.bf16.mxu0 %v4467
    %5058 = vmatpush2.bf16.msra.mxu0 %v4466
    %5059 = vmatprep.subr.bf16.mxu0 %v4463
    %5060 = vmatpush2.bf16.msra.mxu0 %v4462
    %5061 = vmatprep.subr.bf16.mxu0 %v4459
    %5062 = vmatpush2.bf16.msra.mxu0 %v4458
    %5063 = vmatprep.mubr.bf16.mxu0 %v3463
    %5064 = vmatmul.mubr.bf16.gmra.mxu0 %v3462
    %v5065 = vpop.f32.mrf.mxu0
    %v5066 = vadd.f32 %v5025, %v5065
    %v5067 = vpop.f32.mrf.mxu0
    %v5068 = vadd.f32 %v5027, %v5067
    %v5069 = vpop.f32.mrf.mxu0
    %v5070 = vpop.f32.mrf.mxu0
    %5071 = vdwg.mxu0
    %vm5072 = vcmp.ge.f32.partialorder %v4902, 0.0
    %vm5073 = vcmp.ge.f32.partialorder %v4904, 0.0
    %vm5074 = vcmp.ge.f32.partialorder %v5066, 0.0
    %vm5075 = vcmp.ge.f32.partialorder %v5068, 0.0
    %v5076 = vmul.f32 %v4902, 0.01
    %v5077 = vmul.f32 %v4904, 0.01
    %v5078 = vmul.f32 %v5066, 0.01
    %v5079 = vmul.f32 %v5068, 0.01
    %v5080 = vsel %vm5072, %v4902, %v5076
    %v5081 = vsel %vm5073, %v4904, %v5077
    %v5082 = vsel %vm5074, %v5066, %v5078
    %v5083 = vsel %vm5075, %v5068, %v5079
    %v5084 = vpack.c.bf16 %v5080, %v5080
    %v5085 = vpack.c.bf16 %v5081, %v5081
    %v5086 = vpack.c.bf16 %v5082, %v5082
    %v5087 = vpack.c.bf16 %v5083, %v5083
    %v5152 = vunpack.c.l.b16 %v706
    %v5153 = vunpack.c.l.b16 %v707
    %v5154 = vunpack.c.l.b16 %v708
    %v5155 = vunpack.c.l.b16 %v709
    %v5156 = vunpack.c.l.b16 %v710
    %v5157 = vunpack.c.l.b16 %v711
    %v5158 = vunpack.c.l.b16 %v712
    %v5159 = vunpack.c.l.b16 %v713
    %v5160 = vunpack.c.l.b16 %v714
    %v5161 = vunpack.c.l.b16 %v715
    %v5162 = vunpack.c.l.b16 %v716
    %v5163 = vunpack.c.l.b16 %v717
    %v5164 = vunpack.c.l.b16 %v718
    %v5165 = vunpack.c.l.b16 %v719
    %v5166 = vunpack.c.l.b16 %v720
    %v5167 = vunpack.c.l.b16 %v721
    %v5168 = vunpack.c.l.b16 %v722
    %v5169 = vunpack.c.l.b16 %v723
    %v5170 = vunpack.c.l.b16 %v724
    %v5171 = vunpack.c.l.b16 %v725
    %v5172 = vunpack.c.l.b16 %v726
    %v5173 = vunpack.c.l.b16 %v727
    %v5174 = vunpack.c.l.b16 %v728
    %v5175 = vunpack.c.l.b16 %v729
    %v5176 = vunpack.c.l.b16 %v730
    %v5177 = vunpack.c.l.b16 %v731
    %v5178 = vunpack.c.l.b16 %v732
    %v5179 = vunpack.c.l.b16 %v733
    %v5180 = vunpack.c.l.b16 %v734
    %v5181 = vunpack.c.l.b16 %v735
    %v5182 = vunpack.c.l.b16 %v736
    %v5183 = vunpack.c.l.b16 %v737
    %v5184 = vunpack.c.l.b16 %v738
    %v5185 = vunpack.c.l.b16 %v739
    %v5186 = vunpack.c.l.b16 %v740
    %v5187 = vunpack.c.l.b16 %v741
    %v5188 = vunpack.c.l.b16 %v742
    %v5189 = vunpack.c.l.b16 %v743
    %v5190 = vunpack.c.l.b16 %v744
    %v5191 = vunpack.c.l.b16 %v745
    %v5192 = vunpack.c.l.b16 %v746
    %v5193 = vunpack.c.l.b16 %v747
    %v5194 = vunpack.c.l.b16 %v748
    %v5195 = vunpack.c.l.b16 %v749
    %v5196 = vunpack.c.l.b16 %v750
    %v5197 = vunpack.c.l.b16 %v751
    %v5198 = vunpack.c.l.b16 %v752
    %v5199 = vunpack.c.l.b16 %v753
    %v5200 = vunpack.c.l.b16 %v754
    %v5201 = vunpack.c.l.b16 %v755
    %v5202 = vunpack.c.l.b16 %v756
    %v5203 = vunpack.c.l.b16 %v757
    %v5204 = vunpack.c.l.b16 %v758
    %v5205 = vunpack.c.l.b16 %v759
    %v5206 = vunpack.c.l.b16 %v760
    %v5207 = vunpack.c.l.b16 %v761
    %v5208 = vunpack.c.l.b16 %v762
    %v5209 = vunpack.c.l.b16 %v763
    %v5210 = vunpack.c.l.b16 %v764
    %v5211 = vunpack.c.l.b16 %v765
    %v5212 = vunpack.c.l.b16 %v766
    %v5213 = vunpack.c.l.b16 %v767
    %v5214 = vunpack.c.l.b16 %v768
    %v5215 = vunpack.c.l.b16 %v769
    %v5216 = vpack.c.b16 %v5153, %v5152
    %v5217 = vpack.c.b16 %v5155, %v5154
    %v5218 = vpack.c.b16 %v5157, %v5156
    %v5219 = vpack.c.b16 %v5159, %v5158
    %v5220 = vpack.c.b16 %v5161, %v5160
    %v5221 = vpack.c.b16 %v5163, %v5162
    %v5222 = vpack.c.b16 %v5165, %v5164
    %v5223 = vpack.c.b16 %v5167, %v5166
    %v5224 = vpack.c.b16 %v5169, %v5168
    %v5225 = vpack.c.b16 %v5171, %v5170
    %v5226 = vpack.c.b16 %v5173, %v5172
    %v5227 = vpack.c.b16 %v5175, %v5174
    %v5228 = vpack.c.b16 %v5177, %v5176
    %v5229 = vpack.c.b16 %v5179, %v5178
    %v5230 = vpack.c.b16 %v5181, %v5180
    %v5231 = vpack.c.b16 %v5183, %v5182
    %v5232 = vpack.c.b16 %v5185, %v5184
    %v5233 = vpack.c.b16 %v5187, %v5186
    %v5234 = vpack.c.b16 %v5189, %v5188
    %v5235 = vpack.c.b16 %v5191, %v5190
    %v5236 = vpack.c.b16 %v5193, %v5192
    %v5237 = vpack.c.b16 %v5195, %v5194
    %v5238 = vpack.c.b16 %v5197, %v5196
    %v5239 = vpack.c.b16 %v5199, %v5198
    %v5240 = vpack.c.b16 %v5201, %v5200
    %v5241 = vpack.c.b16 %v5203, %v5202
    %v5242 = vpack.c.b16 %v5205, %v5204
    %v5243 = vpack.c.b16 %v5207, %v5206
    %v5244 = vpack.c.b16 %v5209, %v5208
    %v5245 = vpack.c.b16 %v5211, %v5210
    %v5246 = vpack.c.b16 %v5213, %v5212
    %v5247 = vpack.c.b16 %v5215, %v5214
    %5280 = vmatprep.subr.bf16.mxu0 0
    %5281 = vmatpush1.bf16.msra.mxu0 %v5223
    %5282 = vmatprep.subr.bf16.mxu0 0
    %5283 = vmatpush1.bf16.msra.mxu0 %v5222
    %5284 = vmatprep.subr.bf16.mxu0 0
    %5285 = vmatpush1.bf16.msra.mxu0 %v5221
    %5286 = vmatprep.subr.bf16.mxu0 0
    %5287 = vmatpush1.bf16.msra.mxu0 %v5220
    %5288 = vmatprep.subr.bf16.mxu0 0
    %5289 = vmatpush1.bf16.msra.mxu0 %v5219
    %5290 = vmatprep.subr.bf16.mxu0 0
    %5291 = vmatpush1.bf16.msra.mxu0 %v5218
    %5292 = vmatprep.subr.bf16.mxu0 0
    %5293 = vmatpush1.bf16.msra.mxu0 %v5217
    %5294 = vmatprep.subr.bf16.mxu0 0
    %5295 = vmatpush1.bf16.msra.mxu0 %v5216
    %5296 = vmatprep.subr.bf16.mxu0 0
    %5297 = vmatpush2.bf16.msra.mxu0 %v5231
    %5298 = vmatprep.subr.bf16.mxu0 0
    %5299 = vmatpush2.bf16.msra.mxu0 %v5230
    %5300 = vmatprep.subr.bf16.mxu0 0
    %5301 = vmatpush2.bf16.msra.mxu0 %v5229
    %5302 = vmatprep.subr.bf16.mxu0 0
    %5303 = vmatpush2.bf16.msra.mxu0 %v5228
    %5304 = vmatprep.subr.bf16.mxu0 0
    %5305 = vmatpush2.bf16.msra.mxu0 %v5227
    %5306 = vmatprep.subr.bf16.mxu0 0
    %5307 = vmatpush2.bf16.msra.mxu0 %v5226
    %5308 = vmatprep.subr.bf16.mxu0 0
    %5309 = vmatpush2.bf16.msra.mxu0 %v5225
    %5310 = vmatprep.subr.bf16.mxu0 0
    %5311 = vmatpush2.bf16.msra.mxu0 %v5224
    %5312 = vmatprep.mubr.bf16.mxu0 %v5085
    %5313 = vmatmul.mubr.bf16.gmra.mxu0 %v5084
    %v5314 = vpop.f32.mrf.mxu0
    %v5315 = vadd.f32 0.0, %v5314
    %v5316 = vpop.f32.mrf.mxu0
    %v5317 = vpop.f32.mrf.mxu0
    %v5318 = vpop.f32.mrf.mxu0
    %5319 = vdwg.mxu0
    %5320 = vmatprep.subr.bf16.mxu0 0
    %5321 = vmatpush1.bf16.msra.mxu0 %v5239
    %5322 = vmatprep.subr.bf16.mxu0 0
    %5323 = vmatpush1.bf16.msra.mxu0 %v5238
    %5324 = vmatprep.subr.bf16.mxu0 0
    %5325 = vmatpush1.bf16.msra.mxu0 %v5237
    %5326 = vmatprep.subr.bf16.mxu0 0
    %5327 = vmatpush1.bf16.msra.mxu0 %v5236
    %5328 = vmatprep.subr.bf16.mxu0 0
    %5329 = vmatpush1.bf16.msra.mxu0 %v5235
    %5330 = vmatprep.subr.bf16.mxu0 0
    %5331 = vmatpush1.bf16.msra.mxu0 %v5234
    %5332 = vmatprep.subr.bf16.mxu0 0
    %5333 = vmatpush1.bf16.msra.mxu0 %v5233
    %5334 = vmatprep.subr.bf16.mxu0 0
    %5335 = vmatpush1.bf16.msra.mxu0 %v5232
    %5336 = vmatprep.subr.bf16.mxu0 0
    %5337 = vmatpush2.bf16.msra.mxu0 %v5247
    %5338 = vmatprep.subr.bf16.mxu0 0
    %5339 = vmatpush2.bf16.msra.mxu0 %v5246
    %5340 = vmatprep.subr.bf16.mxu0 0
    %5341 = vmatpush2.bf16.msra.mxu0 %v5245
    %5342 = vmatprep.subr.bf16.mxu0 0
    %5343 = vmatpush2.bf16.msra.mxu0 %v5244
    %5344 = vmatprep.subr.bf16.mxu0 0
    %5345 = vmatpush2.bf16.msra.mxu0 %v5243
    %5346 = vmatprep.subr.bf16.mxu0 0
    %5347 = vmatpush2.bf16.msra.mxu0 %v5242
    %5348 = vmatprep.subr.bf16.mxu0 0
    %5349 = vmatpush2.bf16.msra.mxu0 %v5241
    %5350 = vmatprep.subr.bf16.mxu0 0
    %5351 = vmatpush2.bf16.msra.mxu0 %v5240
    %5352 = vmatprep.mubr.bf16.mxu0 %v5087
    %5353 = vmatmul.mubr.bf16.gmra.mxu0 %v5086
    %v5354 = vpop.f32.mrf.mxu0
    %v5355 = vadd.f32 %v5315, %v5354
    %v5356 = vpop.f32.mrf.mxu0
    %v5357 = vpop.f32.mrf.mxu0
    %v5358 = vpop.f32.mrf.mxu0
    %5359 = vdwg.mxu0
    %vm5360 = vcmp.ge.f32.partialorder %v5355, 0.0
    %v5361 = vmul.f32 %v5355, 0.01
    %v5362 = vsel %vm5360, %v5355, %v5361
    %v5363 = vpack.c.bf16 %v5362, %v5362
    %v5365 = vlaneseq
    %v5366 = vshrl.u32 %v5365, 7
    %v5367 = vsub.s32 0, %v5366
    %v5368 = vrot.slane %v834, %v5367
    %v5370 = vsub.f32 %v5362, %v5368
    %v5371 = vpack.c.bf16 %v5370, %v5370
    %v5380 = vunpack.c.l.b16 %v778
    %v5381 = vunpack.c.l.b16 %v779
    %v5382 = vunpack.c.l.b16 %v780
    %v5383 = vunpack.c.l.b16 %v781
    %v5384 = vunpack.c.l.b16 %v782
    %v5385 = vunpack.c.l.b16 %v783
    %v5386 = vunpack.c.l.b16 %v784
    %v5387 = vunpack.c.l.b16 %v785
    %v5388 = vpack.c.b16 %v5381, %v5380
    %v5389 = vpack.c.b16 %v5383, %v5382
    %v5390 = vpack.c.b16 %v5385, %v5384
    %v5391 = vpack.c.b16 %v5387, %v5386
    %v5397 = vsel %vm1005, %v5371, 0
    %5399 = vmatprep.subr.bf16.mxu0 0
    %5400 = vmatpush1.bf16.msra.mxu0 0
    %5401 = vmatprep.subr.bf16.mxu0 0
    %5402 = vmatpush1.bf16.msra.mxu0 0
    %5403 = vmatprep.subr.bf16.mxu0 0
    %5404 = vmatpush1.bf16.msra.mxu0 0
    %5405 = vmatprep.subr.bf16.mxu0 0
    %5406 = vmatpush1.bf16.msra.mxu0 0
    %5407 = vmatprep.subr.bf16.mxu0 0
    %5408 = vmatpush1.bf16.msra.mxu0 %v5391
    %5409 = vmatprep.subr.bf16.mxu0 0
    %5410 = vmatpush1.bf16.msra.mxu0 %v5390
    %5411 = vmatprep.subr.bf16.mxu0 0
    %5412 = vmatpush1.bf16.msra.mxu0 %v5389
    %5413 = vmatprep.subr.bf16.mxu0 0
    %5414 = vmatpush1.bf16.msra.mxu0 %v5388
    %5415 = vmatprep.subr.bf16.mxu0 0
    %5416 = vmatpush2.bf16.msra.mxu0 0
    %5417 = vmatprep.subr.bf16.mxu0 0
    %5418 = vmatpush2.bf16.msra.mxu0 0
    %5419 = vmatprep.subr.bf16.mxu0 0
    %5420 = vmatpush2.bf16.msra.mxu0 0
    %5421 = vmatprep.subr.bf16.mxu0 0
    %5422 = vmatpush2.bf16.msra.mxu0 0
    %5423 = vmatprep.subr.bf16.mxu0 0
    %5424 = vmatpush2.bf16.msra.mxu0 0
    %5425 = vmatprep.subr.bf16.mxu0 0
    %5426 = vmatpush2.bf16.msra.mxu0 0
    %5427 = vmatprep.subr.bf16.mxu0 0
    %5428 = vmatpush2.bf16.msra.mxu0 0
    %5429 = vmatprep.subr.bf16.mxu0 0
    %5430 = vmatpush2.bf16.msra.mxu0 0
    %5431 = vmatprep.mubr.bf16.mxu0 0
    %5432 = vmatmul.mubr.bf16.gmra.mxu0 %v5397
    %v5433 = vpop.f32.mrf.mxu0
    %v5434 = vadd.f32 0.0, %v5433
    %v5435 = vpop.f32.mrf.mxu0
    %v5436 = vpop.f32.mrf.mxu0
    %v5437 = vpop.f32.mrf.mxu0
    %5438 = vdwg.mxu0
    %v5447 = vunpack.c.l.b16 %v770
    %v5448 = vunpack.c.l.b16 %v771
    %v5449 = vunpack.c.l.b16 %v772
    %v5450 = vunpack.c.l.b16 %v773
    %v5451 = vunpack.c.l.b16 %v774
    %v5452 = vunpack.c.l.b16 %v775
    %v5453 = vunpack.c.l.b16 %v776
    %v5454 = vunpack.c.l.b16 %v777
    %v5455 = vpack.c.b16 %v5448, %v5447
    %v5456 = vpack.c.b16 %v5450, %v5449
    %v5457 = vpack.c.b16 %v5452, %v5451
    %v5458 = vpack.c.b16 %v5454, %v5453
    %v5464 = vsel %vm1005, %v5363, 0
    %5466 = vmatprep.subr.bf16.mxu0 0
    %5467 = vmatpush1.bf16.msra.mxu0 0
    %5468 = vmatprep.subr.bf16.mxu0 0
    %5469 = vmatpush1.bf16.msra.mxu0 0
    %5470 = vmatprep.subr.bf16.mxu0 0
    %5471 = vmatpush1.bf16.msra.mxu0 0
    %5472 = vmatprep.subr.bf16.mxu0 0
    %5473 = vmatpush1.bf16.msra.mxu0 0
    %5474 = vmatprep.subr.bf16.mxu0 0
    %5475 = vmatpush1.bf16.msra.mxu0 %v5458
    %5476 = vmatprep.subr.bf16.mxu0 0
    %5477 = vmatpush1.bf16.msra.mxu0 %v5457
    %5478 = vmatprep.subr.bf16.mxu0 0
    %5479 = vmatpush1.bf16.msra.mxu0 %v5456
    %5480 = vmatprep.subr.bf16.mxu0 0
    %5481 = vmatpush1.bf16.msra.mxu0 %v5455
    %5482 = vmatprep.subr.bf16.mxu0 0
    %5483 = vmatpush2.bf16.msra.mxu0 0
    %5484 = vmatprep.subr.bf16.mxu0 0
    %5485 = vmatpush2.bf16.msra.mxu0 0
    %5486 = vmatprep.subr.bf16.mxu0 0
    %5487 = vmatpush2.bf16.msra.mxu0 0
    %5488 = vmatprep.subr.bf16.mxu0 0
    %5489 = vmatpush2.bf16.msra.mxu0 0
    %5490 = vmatprep.subr.bf16.mxu0 0
    %5491 = vmatpush2.bf16.msra.mxu0 0
    %5492 = vmatprep.subr.bf16.mxu0 0
    %5493 = vmatpush2.bf16.msra.mxu0 0
    %5494 = vmatprep.subr.bf16.mxu0 0
    %5495 = vmatpush2.bf16.msra.mxu0 0
    %5496 = vmatprep.subr.bf16.mxu0 0
    %5497 = vmatpush2.bf16.msra.mxu0 0
    %5498 = vmatprep.mubr.bf16.mxu0 0
    %5499 = vmatmul.mubr.bf16.gmra.mxu0 %v5464
    %v5500 = vpop.f32.mrf.mxu0
    %v5501 = vadd.f32 %v5434, %v5500
    %v5502 = vpop.f32.mrf.mxu0
    %v5503 = vpop.f32.mrf.mxu0
    %v5504 = vpop.f32.mrf.mxu0
    %5505 = vdwg.mxu0
    %vm5506 = vcmp.ge.f32.partialorder %v5501, 0.0
    %v5507 = vmul.f32 %v5501, 0.01
    %v5508 = vsel %vm5506, %v5501, %v5507
    %v5509 = vpack.c.bf16 %v5508, %v5508
    %v5518 = vunpack.c.l.b16 %v786
    %v5519 = vunpack.c.l.b16 %v787
    %v5520 = vunpack.c.l.b16 %v788
    %v5521 = vunpack.c.l.b16 %v789
    %v5522 = vunpack.c.l.b16 %v790
    %v5523 = vunpack.c.l.b16 %v791
    %v5524 = vunpack.c.l.b16 %v792
    %v5525 = vunpack.c.l.b16 %v793
    %v5526 = vpack.c.b16 %v5519, %v5518
    %v5527 = vpack.c.b16 %v5521, %v5520
    %v5528 = vpack.c.b16 %v5523, %v5522
    %v5529 = vpack.c.b16 %v5525, %v5524
    %v5535 = vsel %vm1005, %v5509, 0
    %5537 = vmatprep.subr.bf16.mxu0 0
    %5538 = vmatpush1.bf16.msra.mxu0 0
    %5539 = vmatprep.subr.bf16.mxu0 0
    %5540 = vmatpush1.bf16.msra.mxu0 0
    %5541 = vmatprep.subr.bf16.mxu0 0
    %5542 = vmatpush1.bf16.msra.mxu0 0
    %5543 = vmatprep.subr.bf16.mxu0 0
    %5544 = vmatpush1.bf16.msra.mxu0 0
    %5545 = vmatprep.subr.bf16.mxu0 0
    %5546 = vmatpush1.bf16.msra.mxu0 %v5529
    %5547 = vmatprep.subr.bf16.mxu0 0
    %5548 = vmatpush1.bf16.msra.mxu0 %v5528
    %5549 = vmatprep.subr.bf16.mxu0 0
    %5550 = vmatpush1.bf16.msra.mxu0 %v5527
    %5551 = vmatprep.subr.bf16.mxu0 0
    %5552 = vmatpush1.bf16.msra.mxu0 %v5526
    %5553 = vmatprep.subr.bf16.mxu0 0
    %5554 = vmatpush2.bf16.msra.mxu0 0
    %5555 = vmatprep.subr.bf16.mxu0 0
    %5556 = vmatpush2.bf16.msra.mxu0 0
    %5557 = vmatprep.subr.bf16.mxu0 0
    %5558 = vmatpush2.bf16.msra.mxu0 0
    %5559 = vmatprep.subr.bf16.mxu0 0
    %5560 = vmatpush2.bf16.msra.mxu0 0
    %5561 = vmatprep.subr.bf16.mxu0 0
    %5562 = vmatpush2.bf16.msra.mxu0 0
    %5563 = vmatprep.subr.bf16.mxu0 0
    %5564 = vmatpush2.bf16.msra.mxu0 0
    %5565 = vmatprep.subr.bf16.mxu0 0
    %5566 = vmatpush2.bf16.msra.mxu0 0
    %5567 = vmatprep.subr.bf16.mxu0 0
    %5568 = vmatpush2.bf16.msra.mxu0 0
    %5569 = vmatprep.mubr.bf16.mxu0 0
    %5570 = vmatmul.mubr.bf16.gmra.mxu0 %v5535
    %v5571 = vpop.f32.mrf.mxu0
    %v5572 = vadd.f32 0.0, %v5571
    %v5573 = vpop.f32.mrf.mxu0
    %v5574 = vpop.f32.mrf.mxu0
    %v5575 = vpop.f32.mrf.mxu0
    %5576 = vdwg.mxu0
    %vm5577 = vcmp.ge.f32.partialorder %v5572, 0.0
    %v5578 = vmul.f32 %v5572, 0.01
    %v5579 = vsel %vm5577, %v5572, %v5578
    %v5580 = vmul.f32 %v5579, %v5579
    %vm5581 = vcmask 517120
    %v5582 = vsel %vm5581, %v5580, 0.0
    %5583 = vadd.xlane.f32.xlu0 %v5582
    %v5584 = vpop.xlane.xlu0 %5583
    %v5585 = vmul.f32 %v835, %v835
    %vm5586 = vcmask 518144
    %v5587 = vsel %vm5586, %v5585, 0.0
    %5588 = vadd.xlane.f32.xlu0 %v5587
    %v5589 = vpop.xlane.xlu0 %5588
    %v5591 = vsel %vm1005, %v5579, 0
    %5593 = vmatprep.subr.mxu0 0.0
    %5594 = vmatpush1.msra.mxu0 0.0
    %5595 = vmatprep.subr.mxu0 0.0
    %5596 = vmatpush1.msra.mxu0 0.0
    %5597 = vmatprep.subr.mxu0 0.0
    %5598 = vmatpush1.msra.mxu0 0.0
    %5599 = vmatprep.subr.mxu0 0.0
    %5600 = vmatpush1.msra.mxu0 0.0
    %5601 = vmatprep.subr.mxu0 0.0
    %5602 = vmatpush1.msra.mxu0 0.0
    %5603 = vmatprep.subr.mxu0 0.0
    %5604 = vmatpush1.msra.mxu0 0.0
    %5605 = vmatprep.subr.mxu0 0.0
    %5606 = vmatpush1.msra.mxu0 0.0
    %5607 = vmatprep.subr.mxu0 0.0
    %5608 = vmatpush1.msra.mxu0 0.0
    %5609 = vmatprep.subr.mxu0 0.0
    %5610 = vmatpush1.msra.mxu0 %v843
    %5611 = vmatprep.subr.mxu0 0.0
    %5612 = vmatpush1.msra.mxu0 %v842
    %5613 = vmatprep.subr.mxu0 0.0
    %5614 = vmatpush1.msra.mxu0 %v841
    %5615 = vmatprep.subr.mxu0 0.0
    %5616 = vmatpush1.msra.mxu0 %v840
    %5617 = vmatprep.subr.mxu0 0.0
    %5618 = vmatpush1.msra.mxu0 %v839
    %5619 = vmatprep.subr.mxu0 0.0
    %5620 = vmatpush1.msra.mxu0 %v838
    %5621 = vmatprep.subr.mxu0 0.0
    %5622 = vmatpush1.msra.mxu0 %v837
    %5623 = vmatprep.subr.mxu0 0.0
    %5624 = vmatpush1.msra.mxu0 %v836
    %5625 = vmatprep.subr.mxu0 0.0
    %5626 = vmatpush2.msra.mxu0 0.0
    %5627 = vmatprep.subr.mxu0 0.0
    %5628 = vmatpush2.msra.mxu0 0.0
    %5629 = vmatprep.subr.mxu0 0.0
    %5630 = vmatpush2.msra.mxu0 0.0
    %5631 = vmatprep.subr.mxu0 0.0
    %5632 = vmatpush2.msra.mxu0 0.0
    %5633 = vmatprep.subr.mxu0 0.0
    %5634 = vmatpush2.msra.mxu0 0.0
    %5635 = vmatprep.subr.mxu0 0.0
    %5636 = vmatpush2.msra.mxu0 0.0
    %5637 = vmatprep.subr.mxu0 0.0
    %5638 = vmatpush2.msra.mxu0 0.0
    %5639 = vmatprep.subr.mxu0 0.0
    %5640 = vmatpush2.msra.mxu0 0.0
    %5641 = vmatprep.subr.mxu0 0.0
    %5642 = vmatpush2.msra.mxu0 0.0
    %5643 = vmatprep.subr.mxu0 0.0
    %5644 = vmatpush2.msra.mxu0 0.0
    %5645 = vmatprep.subr.mxu0 0.0
    %5646 = vmatpush2.msra.mxu0 0.0
    %5647 = vmatprep.subr.mxu0 0.0
    %5648 = vmatpush2.msra.mxu0 0.0
    %5649 = vmatprep.subr.mxu0 0.0
    %5650 = vmatpush2.msra.mxu0 0.0
    %5651 = vmatprep.subr.mxu0 0.0
    %5652 = vmatpush2.msra.mxu0 0.0
    %5653 = vmatprep.subr.mxu0 0.0
    %5654 = vmatpush2.msra.mxu0 0.0
    %5655 = vmatprep.subr.mxu0 0.0
    %5656 = vmatpush2.msra.mxu0 0.0
    %5657 = vmatprep.mubr.f32.mxu0 0.0
    %5658 = vmatmul.mubr.f32.gmra.mxu0 %v5591
    %v5659 = vpop.f32.mrf.mxu0
    %v5660 = vadd.f32 0.0, %v5659
    %v5661 = vpop.f32.mrf.mxu0
    %5662 = vdwg.mxu0
    %v5663 = vmul.f32 %v5660, 2.0
    %v5664 = vsub.f32 %v5663, %v5584
    %v5666 = vlaneseq
    %v5667 = vand.u32 %v5666, 127
    %v5668 = vlaneseq
    %v5669 = vshrl.u32 %v5668, 7
    %v5670 = vsub.s32 %v5667, %v5669
    %v5671 = vrot.slane %v5589, %v5670
    %v5673 = vsub.f32 %v5664, %v5671
    %vm5674 = vcmask 17408
    %v5675 = vsel %vm5674, %v5673, -inf
    %5676 = vmax.xlane.f32.xlu0 %v5675
    %v5677 = vpop.xlane.xlu0 %5676
    %vm5678 = vcmp.eq.f32.partialorder %v5673, %v5677
    %v5679 = vsel %vm5678, %v5667, 3
    %v5680 = vsel %vm5674, %v5679, 2147483647
    %v5681 = vand.u32 %v5680, 65535
    %v5682 = vshra.s32 %v5680, 16
    %v5683 = vcvt.s32.f32 %v5681
    %v5684 = vcvt.s32.f32 %v5682
    %5685 = vmin.xlane.f32.xlu0 %v5684
    %v5686 = vpop.xlane.xlu0 %5685
    %vm5687 = vcmp.eq.f32.partialorder %v5684, %v5686
    %v5688 = vsel %vm5687, %v5683, inf
    %5689 = vmin.xlane.f32.xlu0 %v5688
    %v5690 = vpop.xlane.xlu0 %5689
    %v5691 = vcvt.f32.s32 %v5690
    %v5692 = vcvt.f32.s32 %v5686
    %v5693 = vshll.u32 %v5692, 16
    %v5694 = vadd.s32 %v5693, %v5691
    %vm5695 = vcmp.eq.s32.totalorder %v5667, %v5694
    %v5696 = vsel %vm5695, 1, 0
    %v5697 = vcvt.s32.f32 %v5696
    %v5698 = vsub.f32 %v5673, %v5677
    %v5699 = vmul.f32 %v5698, 1.442695
    %v5700 = vpow.pop %v5699
    %v5701 = vsel %vm5674, %v5700, 0.0
    %5702 = vadd.xlane.f32.xlu0 %v5701
    %v5703 = vpop.xlane.xlu0 %5702
    %v5704 = vlog2.pop %v5703
    %v5705 = vmul.f32 %v5704, 0.6931472
    %v5706 = vadd.f32 %v5677, %v5705
    %v5707 = vsub.f32 %v5706, %v5677
    %vm5708 = vcmask 1024
    %v5709 = vsel %vm5708, %v5707, 0.0
    %5710 = vadd.xlane.f32.xlu0 %v5709
    %v5711 = vpop.xlane.xlu0 %5710
    %v5712 = vrot.slane %v5711, 4
    %v5713 = vadd.f32 %v5711, %v5712
    %v5714 = vrot.slane %v5713, 2
    %v5715 = vadd.f32 %v5713, %v5714
    %v5716 = vrot.slane %v5715, 1
    %v5717 = vadd.f32 %v5715, %v5716
    %s5718 = vtos %v5717
    %v5719 = vstv %s5718
    %v5720 = vrcp.pop 2.0
    %v5721 = vmul.f32 %v5719, %v5720
    %vm5722 = vcmask 23552
    %v5724 = vsel %vm5722, %v5697, 0
    %vm5726 = vcmask 1042432
    %v5728 = vsel %vm5726, %v835, 0
    %5730 = vmatprep.subr.mxu0 0.0
    %5731 = vmatpush1.msra.mxu0 0.0
    %5732 = vmatprep.subr.mxu0 0.0
    %5733 = vmatpush1.msra.mxu0 0.0
    %5734 = vmatprep.subr.mxu0 0.0
    %5735 = vmatpush1.msra.mxu0 0.0
    %5736 = vmatprep.subr.mxu0 0.0
    %5737 = vmatpush1.msra.mxu0 0.0
    %5738 = vmatprep.subr.mxu0 0.0
    %5739 = vmatpush1.msra.mxu0 0.0
    %5740 = vmatprep.subr.mxu0 0.0
    %5741 = vmatpush1.msra.mxu0 0.0
    %5742 = vmatprep.subr.mxu0 0.0
    %5743 = vmatpush1.msra.mxu0 0.0
    %5744 = vmatprep.subr.mxu0 0.0
    %5745 = vmatpush1.msra.mxu0 0.0
    %5746 = vmatprep.subr.mxu0 0.0
    %5747 = vmatpush1.msra.mxu0 0.0
    %5748 = vmatprep.subr.mxu0 0.0
    %5749 = vmatpush1.msra.mxu0 0.0
    %5750 = vmatprep.subr.mxu0 0.0
    %5751 = vmatpush1.msra.mxu0 0.0
    %5752 = vmatprep.subr.mxu0 0.0
    %5753 = vmatpush1.msra.mxu0 0.0
    %5754 = vmatprep.subr.mxu0 0.0
    %5755 = vmatpush1.msra.mxu0 0.0
    %5756 = vmatprep.subr.mxu0 0.0
    %5757 = vmatpush1.msra.mxu0 0.0
    %5758 = vmatprep.subr.mxu0 0.0
    %5759 = vmatpush1.msra.mxu0 0.0
    %5760 = vmatprep.subr.mxu0 0.0
    %5761 = vmatpush1.msra.mxu0 %v5728
    %5762 = vmatprep.subr.mxu0 0.0
    %5763 = vmatpush2.msra.mxu0 0.0
    %5764 = vmatprep.subr.mxu0 0.0
    %5765 = vmatpush2.msra.mxu0 0.0
    %5766 = vmatprep.subr.mxu0 0.0
    %5767 = vmatpush2.msra.mxu0 0.0
    %5768 = vmatprep.subr.mxu0 0.0
    %5769 = vmatpush2.msra.mxu0 0.0
    %5770 = vmatprep.subr.mxu0 0.0
    %5771 = vmatpush2.msra.mxu0 0.0
    %5772 = vmatprep.subr.mxu0 0.0
    %5773 = vmatpush2.msra.mxu0 0.0
    %5774 = vmatprep.subr.mxu0 0.0
    %5775 = vmatpush2.msra.mxu0 0.0
    %5776 = vmatprep.subr.mxu0 0.0
    %5777 = vmatpush2.msra.mxu0 0.0
    %5778 = vmatprep.subr.mxu0 0.0
    %5779 = vmatpush2.msra.mxu0 0.0
    %5780 = vmatprep.subr.mxu0 0.0
    %5781 = vmatpush2.msra.mxu0 0.0
    %5782 = vmatprep.subr.mxu0 0.0
    %5783 = vmatpush2.msra.mxu0 0.0
    %5784 = vmatprep.subr.mxu0 0.0
    %5785 = vmatpush2.msra.mxu0 0.0
    %5786 = vmatprep.subr.mxu0 0.0
    %5787 = vmatpush2.msra.mxu0 0.0
    %5788 = vmatprep.subr.mxu0 0.0
    %5789 = vmatpush2.msra.mxu0 0.0
    %5790 = vmatprep.subr.mxu0 0.0
    %5791 = vmatpush2.msra.mxu0 0.0
    %5792 = vmatprep.subr.mxu0 0.0
    %5793 = vmatpush2.msra.mxu0 0.0
    %5794 = vmatprep.mubr.f32.mxu0 0.0
    %5795 = vmatmul.mubr.f32.gmra.mxu0 %v5724
    %v5796 = vpop.f32.mrf.mxu0
    %v5797 = vadd.f32 0.0, %v5796
    %v5798 = vpop.f32.mrf.mxu0
    %5799 = vdwg.mxu0
    %v5800 = vpack.c.bf16 %v3103, %v3103
    %v5801 = vsub.f32 %v3103, %v5797
    %v5802 = vpack.c.bf16 %v5801, %v5801
    %v5811 = vunpack.c.l.b16 %v802
    %v5812 = vunpack.c.l.b16 %v803
    %v5813 = vunpack.c.l.b16 %v804
    %v5814 = vunpack.c.l.b16 %v805
    %v5815 = vunpack.c.l.b16 %v806
    %v5816 = vunpack.c.l.b16 %v807
    %v5817 = vunpack.c.l.b16 %v808
    %v5818 = vunpack.c.l.b16 %v809
    %v5819 = vpack.c.b16 %v5812, %v5811
    %v5820 = vpack.c.b16 %v5814, %v5813
    %v5821 = vpack.c.b16 %v5816, %v5815
    %v5822 = vpack.c.b16 %v5818, %v5817
    %v5828 = vsel %vm1005, %v5802, 0
    %5830 = vmatprep.subr.bf16.mxu0 0
    %5831 = vmatpush1.bf16.msra.mxu0 0
    %5832 = vmatprep.subr.bf16.mxu0 0
    %5833 = vmatpush1.bf16.msra.mxu0 0
    %5834 = vmatprep.subr.bf16.mxu0 0
    %5835 = vmatpush1.bf16.msra.mxu0 0
    %5836 = vmatprep.subr.bf16.mxu0 0
    %5837 = vmatpush1.bf16.msra.mxu0 0
    %5838 = vmatprep.subr.bf16.mxu0 0
    %5839 = vmatpush1.bf16.msra.mxu0 %v5822
    %5840 = vmatprep.subr.bf16.mxu0 0
    %5841 = vmatpush1.bf16.msra.mxu0 %v5821
    %5842 = vmatprep.subr.bf16.mxu0 0
    %5843 = vmatpush1.bf16.msra.mxu0 %v5820
    %5844 = vmatprep.subr.bf16.mxu0 0
    %5845 = vmatpush1.bf16.msra.mxu0 %v5819
    %5846 = vmatprep.subr.bf16.mxu0 0
    %5847 = vmatpush2.bf16.msra.mxu0 0
    %5848 = vmatprep.subr.bf16.mxu0 0
    %5849 = vmatpush2.bf16.msra.mxu0 0
    %5850 = vmatprep.subr.bf16.mxu0 0
    %5851 = vmatpush2.bf16.msra.mxu0 0
    %5852 = vmatprep.subr.bf16.mxu0 0
    %5853 = vmatpush2.bf16.msra.mxu0 0
    %5854 = vmatprep.subr.bf16.mxu0 0
    %5855 = vmatpush2.bf16.msra.mxu0 0
    %5856 = vmatprep.subr.bf16.mxu0 0
    %5857 = vmatpush2.bf16.msra.mxu0 0
    %5858 = vmatprep.subr.bf16.mxu0 0
    %5859 = vmatpush2.bf16.msra.mxu0 0
    %5860 = vmatprep.subr.bf16.mxu0 0
    %5861 = vmatpush2.bf16.msra.mxu0 0
    %5862 = vmatprep.mubr.bf16.mxu0 0
    %5863 = vmatmul.mubr.bf16.gmra.mxu0 %v5828
    %v5864 = vpop.f32.mrf.mxu0
    %v5865 = vadd.f32 0.0, %v5864
    %v5866 = vpop.f32.mrf.mxu0
    %v5867 = vpop.f32.mrf.mxu0
    %v5868 = vpop.f32.mrf.mxu0
    %5869 = vdwg.mxu0
    %v5878 = vunpack.c.l.b16 %v794
    %v5879 = vunpack.c.l.b16 %v795
    %v5880 = vunpack.c.l.b16 %v796
    %v5881 = vunpack.c.l.b16 %v797
    %v5882 = vunpack.c.l.b16 %v798
    %v5883 = vunpack.c.l.b16 %v799
    %v5884 = vunpack.c.l.b16 %v800
    %v5885 = vunpack.c.l.b16 %v801
    %v5886 = vpack.c.b16 %v5879, %v5878
    %v5887 = vpack.c.b16 %v5881, %v5880
    %v5888 = vpack.c.b16 %v5883, %v5882
    %v5889 = vpack.c.b16 %v5885, %v5884
    %v5895 = vsel %vm1005, %v5800, 0
    %5897 = vmatprep.subr.bf16.mxu0 0
    %5898 = vmatpush1.bf16.msra.mxu0 0
    %5899 = vmatprep.subr.bf16.mxu0 0
    %5900 = vmatpush1.bf16.msra.mxu0 0
    %5901 = vmatprep.subr.bf16.mxu0 0
    %5902 = vmatpush1.bf16.msra.mxu0 0
    %5903 = vmatprep.subr.bf16.mxu0 0
    %5904 = vmatpush1.bf16.msra.mxu0 0
    %5905 = vmatprep.subr.bf16.mxu0 0
    %5906 = vmatpush1.bf16.msra.mxu0 %v5889
    %5907 = vmatprep.subr.bf16.mxu0 0
    %5908 = vmatpush1.bf16.msra.mxu0 %v5888
    %5909 = vmatprep.subr.bf16.mxu0 0
    %5910 = vmatpush1.bf16.msra.mxu0 %v5887
    %5911 = vmatprep.subr.bf16.mxu0 0
    %5912 = vmatpush1.bf16.msra.mxu0 %v5886
    %5913 = vmatprep.subr.bf16.mxu0 0
    %5914 = vmatpush2.bf16.msra.mxu0 0
    %5915 = vmatprep.subr.bf16.mxu0 0
    %5916 = vmatpush2.bf16.msra.mxu0 0
    %5917 = vmatprep.subr.bf16.mxu0 0
    %5918 = vmatpush2.bf16.msra.mxu0 0
    %5919 = vmatprep.subr.bf16.mxu0 0
    %5920 = vmatpush2.bf16.msra.mxu0 0
    %5921 = vmatprep.subr.bf16.mxu0 0
    %5922 = vmatpush2.bf16.msra.mxu0 0
    %5923 = vmatprep.subr.bf16.mxu0 0
    %5924 = vmatpush2.bf16.msra.mxu0 0
    %5925 = vmatprep.subr.bf16.mxu0 0
    %5926 = vmatpush2.bf16.msra.mxu0 0
    %5927 = vmatprep.subr.bf16.mxu0 0
    %5928 = vmatpush2.bf16.msra.mxu0 0
    %5929 = vmatprep.mubr.bf16.mxu0 0
    %5930 = vmatmul.mubr.bf16.gmra.mxu0 %v5895
    %v5931 = vpop.f32.mrf.mxu0
    %v5932 = vadd.f32 %v5865, %v5931
    %v5933 = vpop.f32.mrf.mxu0
    %v5934 = vpop.f32.mrf.mxu0
    %v5935 = vpop.f32.mrf.mxu0
    %5936 = vdwg.mxu0
    %vm5937 = vcmp.ge.f32.partialorder %v5932, 0.0
    %v5938 = vmul.f32 %v5932, 0.01
    %v5939 = vsel %vm5937, %v5932, %v5938
    %v5940 = vpack.c.bf16 %v5939, %v5939
    %v5949 = vunpack.c.l.b16 %v810
    %v5950 = vunpack.c.l.b16 %v811
    %v5951 = vunpack.c.l.b16 %v812
    %v5952 = vunpack.c.l.b16 %v813
    %v5953 = vunpack.c.l.b16 %v814
    %v5954 = vunpack.c.l.b16 %v815
    %v5955 = vunpack.c.l.b16 %v816
    %v5956 = vunpack.c.l.b16 %v817
    %v5957 = vpack.c.b16 %v5950, %v5949
    %v5958 = vpack.c.b16 %v5952, %v5951
    %v5959 = vpack.c.b16 %v5954, %v5953
    %v5960 = vpack.c.b16 %v5956, %v5955
    %v5966 = vsel %vm1005, %v5940, 0
    %5968 = vmatprep.subr.bf16.mxu0 0
    %5969 = vmatpush1.bf16.msra.mxu0 0
    %5970 = vmatprep.subr.bf16.mxu0 0
    %5971 = vmatpush1.bf16.msra.mxu0 0
    %5972 = vmatprep.subr.bf16.mxu0 0
    %5973 = vmatpush1.bf16.msra.mxu0 0
    %5974 = vmatprep.subr.bf16.mxu0 0
    %5975 = vmatpush1.bf16.msra.mxu0 0
    %5976 = vmatprep.subr.bf16.mxu0 0
    %5977 = vmatpush1.bf16.msra.mxu0 %v5960
    %5978 = vmatprep.subr.bf16.mxu0 0
    %5979 = vmatpush1.bf16.msra.mxu0 %v5959
    %5980 = vmatprep.subr.bf16.mxu0 0
    %5981 = vmatpush1.bf16.msra.mxu0 %v5958
    %5982 = vmatprep.subr.bf16.mxu0 0
    %5983 = vmatpush1.bf16.msra.mxu0 %v5957
    %5984 = vmatprep.subr.bf16.mxu0 0
    %5985 = vmatpush2.bf16.msra.mxu0 0
    %5986 = vmatprep.subr.bf16.mxu0 0
    %5987 = vmatpush2.bf16.msra.mxu0 0
    %5988 = vmatprep.subr.bf16.mxu0 0
    %5989 = vmatpush2.bf16.msra.mxu0 0
    %5990 = vmatprep.subr.bf16.mxu0 0
    %5991 = vmatpush2.bf16.msra.mxu0 0
    %5992 = vmatprep.subr.bf16.mxu0 0
    %5993 = vmatpush2.bf16.msra.mxu0 0
    %5994 = vmatprep.subr.bf16.mxu0 0
    %5995 = vmatpush2.bf16.msra.mxu0 0
    %5996 = vmatprep.subr.bf16.mxu0 0
    %5997 = vmatpush2.bf16.msra.mxu0 0
    %5998 = vmatprep.subr.bf16.mxu0 0
    %5999 = vmatpush2.bf16.msra.mxu0 0
    %6000 = vmatprep.mubr.bf16.mxu0 0
    %6001 = vmatmul.mubr.bf16.gmra.mxu0 %v5966
    %v6002 = vpop.f32.mrf.mxu0
    %v6003 = vadd.f32 0.0, %v6002
    %v6004 = vpop.f32.mrf.mxu0
    %v6005 = vpop.f32.mrf.mxu0
    %v6006 = vpop.f32.mrf.mxu0
    %6007 = vdwg.mxu0
    %vm6008 = vcmp.ge.f32.partialorder %v6003, 0.0
    %v6009 = vmul.f32 %v6003, 0.01
    %v6010 = vsel %vm6008, %v6003, %v6009
    %v6011 = vsub.f32 %v6010, %v5368
    %v6012 = vmul.f32 %v6011, %v6011
    %v6013 = vsel %vm5581, %v6012, 0.0
    %6014 = vadd.xlane.f32.xlu0 %v6013
    %v6015 = vpop.xlane.xlu0 %6014
    %v6024 = vunpack.c.l.b16 %v818
    %v6025 = vunpack.c.l.b16 %v819
    %v6026 = vunpack.c.l.b16 %v820
    %v6027 = vunpack.c.l.b16 %v821
    %v6028 = vunpack.c.l.b16 %v822
    %v6029 = vunpack.c.l.b16 %v823
    %v6030 = vunpack.c.l.b16 %v824
    %v6031 = vunpack.c.l.b16 %v825
    %v6032 = vpack.c.b16 %v6025, %v6024
    %v6033 = vpack.c.b16 %v6027, %v6026
    %v6034 = vpack.c.b16 %v6029, %v6028
    %v6035 = vpack.c.b16 %v6031, %v6030
    %6040 = vmatprep.subr.bf16.mxu0 0
    %6041 = vmatpush1.bf16.msra.mxu0 0
    %6042 = vmatprep.subr.bf16.mxu0 0
    %6043 = vmatpush1.bf16.msra.mxu0 0
    %6044 = vmatprep.subr.bf16.mxu0 0
    %6045 = vmatpush1.bf16.msra.mxu0 0
    %6046 = vmatprep.subr.bf16.mxu0 0
    %6047 = vmatpush1.bf16.msra.mxu0 0
    %6048 = vmatprep.subr.bf16.mxu0 0
    %6049 = vmatpush1.bf16.msra.mxu0 %v6035
    %6050 = vmatprep.subr.bf16.mxu0 0
    %6051 = vmatpush1.bf16.msra.mxu0 %v6034
    %6052 = vmatprep.subr.bf16.mxu0 0
    %6053 = vmatpush1.bf16.msra.mxu0 %v6033
    %6054 = vmatprep.subr.bf16.mxu0 0
    %6055 = vmatpush1.bf16.msra.mxu0 %v6032
    %6056 = vmatprep.subr.bf16.mxu0 0
    %6057 = vmatpush2.bf16.msra.mxu0 0
    %6058 = vmatprep.subr.bf16.mxu0 0
    %6059 = vmatpush2.bf16.msra.mxu0 0
    %6060 = vmatprep.subr.bf16.mxu0 0
    %6061 = vmatpush2.bf16.msra.mxu0 0
    %6062 = vmatprep.subr.bf16.mxu0 0
    %6063 = vmatpush2.bf16.msra.mxu0 0
    %6064 = vmatprep.subr.bf16.mxu0 0
    %6065 = vmatpush2.bf16.msra.mxu0 0
    %6066 = vmatprep.subr.bf16.mxu0 0
    %6067 = vmatpush2.bf16.msra.mxu0 0
    %6068 = vmatprep.subr.bf16.mxu0 0
    %6069 = vmatpush2.bf16.msra.mxu0 0
    %6070 = vmatprep.subr.bf16.mxu0 0
    %6071 = vmatpush2.bf16.msra.mxu0 0
    %6072 = vmatprep.mubr.bf16.mxu0 0
    %6073 = vmatmul.mubr.bf16.gmra.mxu0 %v5895
    %v6074 = vpop.f32.mrf.mxu0
    %v6075 = vadd.f32 0.0, %v6074
    %v6076 = vpop.f32.mrf.mxu0
    %v6077 = vpop.f32.mrf.mxu0
    %v6078 = vpop.f32.mrf.mxu0
    %6079 = vdwg.mxu0
    %vm6080 = vcmp.ge.f32.partialorder %v6075, 0.0
    %v6081 = vmul.f32 %v6075, 0.01
    %v6082 = vsel %vm6080, %v6075, %v6081
    %v6083 = vpack.c.bf16 %v6082, %v6082
    %v6092 = vunpack.c.l.b16 %v826
    %v6093 = vunpack.c.l.b16 %v827
    %v6094 = vunpack.c.l.b16 %v828
    %v6095 = vunpack.c.l.b16 %v829
    %v6096 = vunpack.c.l.b16 %v830
    %v6097 = vunpack.c.l.b16 %v831
    %v6098 = vunpack.c.l.b16 %v832
    %v6099 = vunpack.c.l.b16 %v833
    %v6100 = vpack.c.b16 %v6093, %v6092
    %v6101 = vpack.c.b16 %v6095, %v6094
    %v6102 = vpack.c.b16 %v6097, %v6096
    %v6103 = vpack.c.b16 %v6099, %v6098
    %v6109 = vsel %vm1005, %v6083, 0
    %6111 = vmatprep.subr.bf16.mxu0 0
    %6112 = vmatpush1.bf16.msra.mxu0 0
    %6113 = vmatprep.subr.bf16.mxu0 0
    %6114 = vmatpush1.bf16.msra.mxu0 0
    %6115 = vmatprep.subr.bf16.mxu0 0
    %6116 = vmatpush1.bf16.msra.mxu0 0
    %6117 = vmatprep.subr.bf16.mxu0 0
    %6118 = vmatpush1.bf16.msra.mxu0 0
    %6119 = vmatprep.subr.bf16.mxu0 0
    %6120 = vmatpush1.bf16.msra.mxu0 %v6103
    %6121 = vmatprep.subr.bf16.mxu0 0
    %6122 = vmatpush1.bf16.msra.mxu0 %v6102
    %6123 = vmatprep.subr.bf16.mxu0 0
    %6124 = vmatpush1.bf16.msra.mxu0 %v6101
    %6125 = vmatprep.subr.bf16.mxu0 0
    %6126 = vmatpush1.bf16.msra.mxu0 %v6100
    %6127 = vmatprep.subr.bf16.mxu0 0
    %6128 = vmatpush2.bf16.msra.mxu0 0
    %6129 = vmatprep.subr.bf16.mxu0 0
    %6130 = vmatpush2.bf16.msra.mxu0 0
    %6131 = vmatprep.subr.bf16.mxu0 0
    %6132 = vmatpush2.bf16.msra.mxu0 0
    %6133 = vmatprep.subr.bf16.mxu0 0
    %6134 = vmatpush2.bf16.msra.mxu0 0
    %6135 = vmatprep.subr.bf16.mxu0 0
    %6136 = vmatpush2.bf16.msra.mxu0 0
    %6137 = vmatprep.subr.bf16.mxu0 0
    %6138 = vmatpush2.bf16.msra.mxu0 0
    %6139 = vmatprep.subr.bf16.mxu0 0
    %6140 = vmatpush2.bf16.msra.mxu0 0
    %6141 = vmatprep.subr.bf16.mxu0 0
    %6142 = vmatpush2.bf16.msra.mxu0 0
    %6143 = vmatprep.mubr.bf16.mxu0 0
    %6144 = vmatmul.mubr.bf16.gmra.mxu0 %v6109
    %v6145 = vpop.f32.mrf.mxu0
    %v6146 = vadd.f32 0.0, %v6145
    %v6147 = vpop.f32.mrf.mxu0
    %v6148 = vpop.f32.mrf.mxu0
    %v6149 = vpop.f32.mrf.mxu0
    %6150 = vdwg.mxu0
    %vm6151 = vcmp.ge.f32.partialorder %v6146, 0.0
    %v6152 = vmul.f32 %v6146, 0.01
    %v6153 = vsel %vm6151, %v6146, %v6152
    %v6154 = vsub.f32 %v6153, %v5368
    %v6155 = vmul.f32 %v6154, %v6154
    %v6156 = vsel %vm5581, %v6155, 0.0
    %6157 = vadd.xlane.f32.xlu0 %v6156
    %v6158 = vpop.xlane.xlu0 %6157
    %v6159 = vsub.f32 %v6158, %v6015
    %v6160 = vand.u32 2147483647, %v6159
    %v6161 = vsel %vm5708, %v6158, 0.0
    %6162 = vadd.xlane.f32.xlu0 %v6161
    %v6163 = vpop.xlane.xlu0 %6162
    %v6164 = vrot.slane %v6163, 4
    %v6165 = vadd.f32 %v6163, %v6164
    %v6166 = vrot.slane %v6165, 2
    %v6167 = vadd.f32 %v6165, %v6166
    %v6168 = vrot.slane %v6167, 1
    %v6169 = vadd.f32 %v6167, %v6168
    %s6170 = vtos %v6169
    %v6171 = vstv %s6170
    %v6172 = vmul.f32 %v6171, %v5720
    %v6173 = vsel %vm5708, %v6015, 0.0
    %6174 = vadd.xlane.f32.xlu0 %v6173
    %v6175 = vpop.xlane.xlu0 %6174
    %v6176 = vrot.slane %v6175, 4
    %v6177 = vadd.f32 %v6175, %v6176
    %v6178 = vrot.slane %v6177, 2
    %v6179 = vadd.f32 %v6177, %v6178
    %v6180 = vrot.slane %v6179, 1
    %v6181 = vadd.f32 %v6179, %v6180
    %s6182 = vtos %v6181
    %v6183 = vstv %s6182
    %v6184 = vmul.f32 %v6183, %v5720
    %v6185 = vsel %vm5708, %v6160, 0.0
    %6186 = vadd.xlane.f32.xlu0 %v6185
    %v6187 = vpop.xlane.xlu0 %6186
    %v6188 = vrot.slane %v6187, 4
    %v6189 = vadd.f32 %v6187, %v6188
    %v6190 = vrot.slane %v6189, 2
    %v6191 = vadd.f32 %v6189, %v6190
    %v6192 = vrot.slane %v6191, 1
    %v6193 = vadd.f32 %v6191, %v6192
    %s6194 = vtos %v6193
    %v6195 = vstv %s6194
    %v6196 = vmul.f32 %v6195, %v5720
    %vm6197 = vcmask 7168
    %v6198 = vsel %vm6197, %v5721, %v6172
    %vm6199 = vcmask 15360
    %v6200 = vsel %vm6199, %v6198, %v6184
    %v6201 = vsel %vm5722, %v6200, %v6196
    %vm6202 = vcmask 24576
    %6203 = vst.msk [vmem:[#allocation2] sm:$0x1] %vm6202, %v6201
    // Predicated region
    $region78: #{dgad_forward.3} parent=1 // pred_check
      _
    $region79: #{dgad_forward.3} parent=1 // pred_check_branch
      %6205 = sbr.rel (0) target = $region81
    $region80: #{dgad_forward.3} parent=1 // pred_region
      %s6207 = ssub.s32 16, 16
      %6208 = vsyncadd [#allocation3], %s6207
      %s6210 = sshll.u32 [#allocation2], 4
      %s6211 = int_to_ptr.vmem [resolvable:$true] %s6210
      %6213 = dma.vmem_to_hbm [thread:$0]  %s6211, 16, %s19, [#allocation3]
    $region81: #{dgad_forward.3} parent=1 // pred_fallthru
      _
    // Predicated region
    $region82: #{dgad_forward.3} parent=1 // pred_check
      _
    $region83: #{dgad_forward.3} parent=1 // pred_check_branch
      %6215 = sbr.rel (0) target = $region85
    $region84: #{dgad_forward.3} parent=1 // pred_region
      %6216 = dma.done [#allocation3], 16
    $region85: #{dgad_forward.3} parent=1 // pred_fallthru
      _
    %6217 = vsyncpa [#allocation3], 1

</llo_original>
